<compile_context>
chip_gen: v7x
topology: tpu7x:2x2x1
jax: 0.10.0
libtpu: 0.0.40
codegen_flags: <defaults>
</compile_context>

<pallas_src>
import functools

import jax
import jax.numpy as jnp
from jax.experimental import pallas as pl
from jax.experimental.pallas import tpu as pltpu


def _convnet_kernel(t_ref,                       # SMEM (B,) int32 timesteps (scalar prefetch)
                    x_ref,                       # (1, C, HW) f32
                    w1_ref, b1_ref, w2_ref, b2_ref,
                    w3_ref, b3_ref, w4_ref, b4_ref,
                    o_ref,                       # (1, C, HW) f32
                    awide_ref,                   # VMEM (Cmax, HW + 2*(W+1)) f32
                    patch_ref,                   # VMEM (9*Cmax, HW) f32
                    *, H, W, C):
    HW = H * W
    padw = W + 1                                 # zero columns on each side of the flat pixel axis

    # Zero the padded-activation slab once; the border columns stay 0 for every layer,
    # which realizes the conv's zero padding in the flattened-pixel (lane) axis.
    awide_ref[...] = jnp.zeros_like(awide_ref)

    # Which output pixels have a valid left / right neighbour (lane-iota masks, hoisted once).
    col = jax.lax.broadcasted_iota(jnp.int32, (1, HW), 1) % W
    has_left = col > 0                           # needed for dx == -1 taps
    has_right = col < (W - 1)                    # needed for dx == +1 taps

    def conv3x3(w_ref, b_ref, *, relu):
        """One 3x3 same conv. Input = rows [0, Cin) of awide_ref. Returns (Cout, HW) f32."""
        cout, k9 = w_ref.shape
        cin = k9 // 9
        # im2col: 9 shifted copies of the activation stacked along K in a VMEM scratch.
        for dy in range(3):
            for dx in range(3):
                tap = dy * 3 + dx
                lo = padw + (dy - 1) * W + (dx - 1)
                slab = awide_ref[0:cin, lo:lo + HW]          # (Cin, HW), lane-offset read
                if dx == 0:                                   # source column w-1 invalid at w==0
                    slab = jnp.where(has_left, slab, 0.0)
                elif dx == 2:                                 # source column w+1 invalid at w==W-1
                    slab = jnp.where(has_right, slab, 0.0)
                patch_ref[tap * cin:(tap + 1) * cin, :] = slab
        patches = patch_ref[0:9 * cin, :].astype(jnp.bfloat16)          # (9*Cin, HW)
        out = jnp.dot(w_ref[...], patches,
                      preferred_element_type=jnp.float32)               # single MXU matmul
        out = out + b_ref[...]                                          # (Cout, 1) broadcast, f32
        if relu:
            out = jnp.maximum(out, 0.0)
        return out

    def write_act(a):
        # Stash the next layer's input (unpadded region) back into the padded slab.
        awide_ref[0:a.shape[0], padw:padw + HW] = a

    # Layer-1 input: image channels + constant t/1000 plane (concat done in-kernel).
    t_val = t_ref[pl.program_id(0)].astype(jnp.float32) / 1000.0
    awide_ref[0:C, padw:padw + HW] = x_ref[0]
    awide_ref[C:C + 1, padw:padw + HW] = jnp.full((1, HW), t_val, jnp.float32)

    a = conv3x3(w1_ref, b1_ref, relu=True)
    write_act(a)
    a = conv3x3(w2_ref, b2_ref, relu=True)
    write_act(a)
    a = conv3x3(w3_ref, b3_ref, relu=True)
    write_act(a)
    # Final layer written channel-major (C, HW): last dim = 256 -> lane-dense stores.
    o_ref[0] = conv3x3(w4_ref, b4_ref, relu=False)


# ----------------------------------------------------------------------------
# Parameters (deterministic, synthetic — matches nn.Conv2d shapes).
# ----------------------------------------------------------------------------
def init_params(key, channels=3):
    dims = [(channels + 1, 64), (64, 128), (128, 64), (64, channels)]
    params = []
    for i, (cin, cout) in enumerate(dims):
        kw, kb = jax.random.split(jax.random.fold_in(key, i))
        w_oihw = 0.05 * jax.random.normal(kw, (cout, cin, 3, 3), jnp.float32)
        b = 0.05 * jax.random.normal(kb, (cout,), jnp.float32)
        # (Cout, Cin, 3, 3) -> (Cout, dy, dx, Cin) -> (Cout, 9*Cin); column = tap*Cin + cin
        w_mat = jnp.transpose(w_oihw, (0, 2, 3, 1)).reshape(cout, 9 * cin)
        params.append({
            "w_oihw": w_oihw,                        # reference layout (f32)
            "w_mat": w_mat.astype(jnp.bfloat16),     # kernel layout, bf16 MXU inputs
            "b_col": b.reshape(cout, 1),             # f32 bias column for lane broadcast
            "b": b,
        })
    return params


# ----------------------------------------------------------------------------
# Forward pass (mirrors ConvNet.forward). Input/output are NCHW like PyTorch;
# the wrapper only does free reshapes (NCHW <-> (B, C, H*W)), no pad/transpose.
# ----------------------------------------------------------------------------
@jax.jit
def convnet_forward(params, x_nchw, t):
    B, C, H, W = x_nchw.shape
    HW = H * W
    x_flat = x_nchw.reshape(B, C, HW)               # free reshape, stays channel-major

    in_specs = [pl.BlockSpec((1, C, HW), lambda b, s: (b, 0, 0))]
    flat_args = [x_flat]
    for p in params:
        in_specs.append(pl.BlockSpec(p["w_mat"].shape, lambda b, s: (0, 0)))   # VMEM-resident
        in_specs.append(pl.BlockSpec(p["b_col"].shape, lambda b, s: (0, 0)))
        flat_args.extend([p["w_mat"], p["b_col"]])

    max_k = max(p["w_mat"].shape[1] for p in params)   # 9 * max(Cin) = 1152
    max_c = max_k // 9
    kernel = functools.partial(_convnet_kernel, H=H, W=W, C=C)

    # NOTE: at this problem size everything (weights + all intermediates) fits VMEM
    # trivially (~2 MiB). For large images on v7x (64 MiB VMEM), tile H into row
    # strips with a 2-row halo instead of whole-image blocks.
    out_flat = pl.pallas_call(
        kernel,
        out_shape=jax.ShapeDtypeStruct((B, C, HW), jnp.float32),
        grid_spec=pltpu.PrefetchScalarGridSpec(
            num_scalar_prefetch=1,                   # t -> SMEM
            grid=(B,),
            in_specs=in_specs,
            out_specs=pl.BlockSpec((1, C, HW), lambda b, s: (b, 0, 0)),
            scratch_shapes=[
                pltpu.VMEM((max_c, HW + 2 * (W + 1)), jnp.float32),  # padded activation slab
                pltpu.VMEM((max_k, HW), jnp.float32),                # im2col patch matrix
            ],
        ),
        compiler_params=pltpu.CompilerParams(
            dimension_semantics=("parallel",)),      # batch across v7x's 2 TensorCores
    )(t.astype(jnp.int32), *flat_args)
    return out_flat.reshape(B, C, H, W)


# Pure-JAX (XLA conv) reference with the same bf16-input / f32-accumulate quantization.
def convnet_reference(params, x_nchw, t):
    B, C, H, W = x_nchw.shape
    t_embed = (t.astype(jnp.float32) / 1000.0)[:, None, None, None]
    t_embed = jnp.broadcast_to(t_embed, (B, 1, H, W))
    x = jnp.concatenate([x_nchw, t_embed], axis=1)
    dn = ("NCHW", "OIHW", "NCHW")
    for i in range(4):
        y = jax.lax.conv_general_dilated(
            x.astype(jnp.bfloat16),
            params[i]["w_oihw"].astype(jnp.bfloat16),
            window_strides=(1, 1), padding="SAME",
            dimension_numbers=dn,
            preferred_element_type=jnp.float32)
        y = y + params[i]["b"][None, :, None, None]
        if i < 3:
            y = jnp.maximum(y, 0.0)
        x = y
    return x


if __name__ == "__main__":
    key = jax.random.PRNGKey(0)
    k_param, k_x, k_t = jax.random.split(key, 3)

    B, C, H, W = 2, 3, 16, 16
    params = init_params(k_param, channels=C)
    x = jax.random.normal(k_x, (B, C, H, W), jnp.float32)
    t = jax.random.randint(k_t, (B,), 0, 1000, jnp.int32)

    out = jax.block_until_ready(convnet_forward(params, x, t))
    ref = jax.block_until_ready(convnet_reference(params, x, t))

    assert out.shape == (B, C, H, W), out.shape
    max_err = float(jnp.max(jnp.abs(out - ref)))
    assert jnp.allclose(out, ref, rtol=1e-2, atol=1e-2), max_err
    print("KERNEL_OK")
</pallas_src>

<mosaic_0001>
module attributes {stable_mosaic.version = 11 : i64} {
  func.func @_convnet_kernel(%arg0: i32, %arg1: memref<2xi32, #tpu.memory_space<smem>>, %arg2: memref<1x3x256xf32, #tpu.memory_space<vmem>>, %arg3: memref<64x36xbf16, #tpu.memory_space<vmem>>, %arg4: memref<64x1xf32, #tpu.memory_space<vmem>>, %arg5: memref<128x576xbf16, #tpu.memory_space<vmem>>, %arg6: memref<128x1xf32, #tpu.memory_space<vmem>>, %arg7: memref<64x1152xbf16, #tpu.memory_space<vmem>>, %arg8: memref<64x1xf32, #tpu.memory_space<vmem>>, %arg9: memref<3x576xbf16, #tpu.memory_space<vmem>>, %arg10: memref<3x1xf32, #tpu.memory_space<vmem>>, %arg11: memref<1x3x256xf32, #tpu.memory_space<vmem>>, %arg12: memref<128x290xf32, #tpu.memory_space<vmem>>, %arg13: memref<1152x256xf32, #tpu.memory_space<vmem>>) attributes {dimension_semantics = [#tpu.dimension_semantics<parallel>], iteration_bounds = array<i64: 2>, scalar_prefetch = 1 : i64, scratch_operands = 2 : i64, tpu.core_type = #tpu.core_type<tc>, window_params = [{transform_indices = @transform_0, window_bounds = array<i64: 1, 3, 256>}, {pipeline_mode = #tpu.pipeline_mode<synchronous>, transform_indices = @transform_1, window_bounds = array<i64: 64, 36>}, {pipeline_mode = #tpu.pipeline_mode<synchronous>, transform_indices = @transform_2, window_bounds = array<i64: 64, 1>}, {pipeline_mode = #tpu.pipeline_mode<synchronous>, transform_indices = @transform_3, window_bounds = array<i64: 128, 576>}, {pipeline_mode = #tpu.pipeline_mode<synchronous>, transform_indices = @transform_4, window_bounds = array<i64: 128, 1>}, {pipeline_mode = #tpu.pipeline_mode<synchronous>, transform_indices = @transform_5, window_bounds = array<i64: 64, 1152>}, {pipeline_mode = #tpu.pipeline_mode<synchronous>, transform_indices = @transform_6, window_bounds = array<i64: 64, 1>}, {pipeline_mode = #tpu.pipeline_mode<synchronous>, transform_indices = @transform_7, window_bounds = array<i64: 3, 576>}, {pipeline_mode = #tpu.pipeline_mode<synchronous>, transform_indices = @transform_8, window_bounds = array<i64: 3, 1>}, {transform_indices = @transform_9, window_bounds = array<i64: 1, 3, 256>}]} {
    %cst = arith.constant 0.000000e+00 : f32
    %0 = vector.broadcast %cst : f32 to vector<128x290xf32>
    %c0 = arith.constant 0 : index
    %c0_0 = arith.constant 0 : index
    %1 = vector.load %arg12[%c0, %c0_0] : memref<128x290xf32, #tpu.memory_space<vmem>>, vector<128x290xf32>
    tpu.vector_store %arg12[%c0, %c0_0], %0 {strides = array<i32>} : memref<128x290xf32, #tpu.memory_space<vmem>>, vector<128x290xf32>,
    %2 = tpu.iota {dimensions = array<i32: 1>} : vector<1x256xi32>
    %c16_i32 = arith.constant 16 : i32
    %c0_i32 = arith.constant 0 : i32
    %3 = arith.cmpi eq, %c16_i32, %c0_i32 : i32
    %c1_i32 = arith.constant 1 : i32
    %4 = arith.select %3, %c1_i32, %c16_i32 : i32
    %5 = vector.broadcast %4 : i32 to vector<1x256xi32>
    %6 = arith.remsi %2, %5 : vector<1x256xi32>
    %c0_i32_1 = arith.constant 0 : i32
    %7 = vector.broadcast %c0_i32_1 : i32 to vector<1x256xi32>
    %8 = arith.cmpi ne, %6, %7 : vector<1x256xi32>
    %c0_i32_2 = arith.constant 0 : i32
    %9 = vector.broadcast %c0_i32_2 : i32 to vector<1x256xi32>
    %10 = arith.cmpi slt, %6, %9 : vector<1x256xi32>
    %c0_i32_3 = arith.constant 0 : i32
    %11 = arith.cmpi slt, %4, %c0_i32_3 : i32
    %12 = vector.broadcast %11 : i1 to vector<1x256xi1>
    %13 = vector.broadcast %12 : vector<1x256xi1> to vector<1x256xi1>
    %14 = arith.xori %10, %13 : vector<1x256xi1>
    %15 = arith.andi %14, %8 : vector<1x256xi1>
    %16 = vector.broadcast %4 : i32 to vector<1x256xi32>
    %17 = arith.addi %6, %16 : vector<1x256xi32>
    %18 = arith.select %15, %17, %6 : vector<1x256xi1>, vector<1x256xi32>
    %c0_i32_4 = arith.constant 0 : i32
    %19 = vector.broadcast %c0_i32_4 : i32 to vector<1x256xi32>
    %20 = arith.cmpi sgt, %18, %19 : vector<1x256xi32>
    %c15_i32 = arith.constant 15 : i32
    %21 = vector.broadcast %c15_i32 : i32 to vector<1x256xi32>
    %22 = arith.cmpi slt, %18, %21 : vector<1x256xi32>
    %23 = arith.index_cast %arg0 : i32 to index
    %24 = memref.load %arg1[%23] : memref<2xi32, #tpu.memory_space<smem>>
    %25 = arith.sitofp %24 : i32 to f32
    %cst_5 = arith.constant 1.000000e+03 : f32
    %26 = arith.divf %25, %cst_5 : f32
    %c0_6 = arith.constant 0 : index
    %c0_7 = arith.constant 0 : index
    %c0_8 = arith.constant 0 : index
    %27 = vector.load %arg2[%c0_6, %c0_7, %c0_8] : memref<1x3x256xf32, #tpu.memory_space<vmem>>, vector<1x3x256xf32>
    %28 = vector.shape_cast %27 : vector<1x3x256xf32> to vector<3x256xf32>
    %c0_9 = arith.constant 0 : index
    %c17 = arith.constant 17 : index
    %29 = vector.load %arg12[%c0_9, %c17] : memref<128x290xf32, #tpu.memory_space<vmem>>, vector<3x256xf32>
    tpu.vector_store %arg12[%c0_9, %c17], %28 {strides = array<i32>} : memref<128x290xf32, #tpu.memory_space<vmem>>, vector<3x256xf32>,
    %30 = vector.broadcast %26 : f32 to vector<1x256xf32>
    %c3 = arith.constant 3 : index
    %c17_10 = arith.constant 17 : index
    %31 = vector.load %arg12[%c3, %c17_10] : memref<128x290xf32, #tpu.memory_space<vmem>>, vector<1x256xf32>
    tpu.vector_store %arg12[%c3, %c17_10], %30 {strides = array<i32>} : memref<128x290xf32, #tpu.memory_space<vmem>>, vector<1x256xf32>,
    %c0_11 = arith.constant 0 : index
    %c0_12 = arith.constant 0 : index
    %32 = vector.load %arg12[%c0_11, %c0_12] : memref<128x290xf32, #tpu.memory_space<vmem>>, vector<4x256xf32>
    %cst_13 = arith.constant 0.000000e+00 : f32
    %33 = vector.shape_cast %20 : vector<1x256xi1> to vector<1x256xi1>
    %34 = vector.broadcast %33 : vector<1x256xi1> to vector<4x256xi1>
    %35 = vector.broadcast %cst_13 : f32 to vector<4x256xf32>
    %36 = arith.select %34, %32, %35 : vector<4x256xi1>, vector<4x256xf32>
    %c0_14 = arith.constant 0 : index
    %c0_15 = arith.constant 0 : index
    %37 = vector.load %arg13[%c0_14, %c0_15] : memref<1152x256xf32, #tpu.memory_space<vmem>>, vector<4x256xf32>
    tpu.vector_store %arg13[%c0_14, %c0_15], %36 {strides = array<i32>} : memref<1152x256xf32, #tpu.memory_space<vmem>>, vector<4x256xf32>,
    %c0_16 = arith.constant 0 : index
    %c1 = arith.constant 1 : index
    %38 = vector.load %arg12[%c0_16, %c1] : memref<128x290xf32, #tpu.memory_space<vmem>>, vector<4x256xf32>
    %c4 = arith.constant 4 : index
    %c0_17 = arith.constant 0 : index
    %39 = vector.load %arg13[%c4, %c0_17] : memref<1152x256xf32, #tpu.memory_space<vmem>>, vector<4x256xf32>
    tpu.vector_store %arg13[%c4, %c0_17], %38 {strides = array<i32>} : memref<1152x256xf32, #tpu.memory_space<vmem>>, vector<4x256xf32>,
    %c0_18 = arith.constant 0 : index
    %c2 = arith.constant 2 : index
    %40 = vector.load %arg12[%c0_18, %c2] : memref<128x290xf32, #tpu.memory_space<vmem>>, vector<4x256xf32>
    %cst_19 = arith.constant 0.000000e+00 : f32
    %41 = vector.shape_cast %22 : vector<1x256xi1> to vector<1x256xi1>
    %42 = vector.broadcast %41 : vector<1x256xi1> to vector<4x256xi1>
    %43 = vector.broadcast %cst_19 : f32 to vector<4x256xf32>
    %44 = arith.select %42, %40, %43 : vector<4x256xi1>, vector<4x256xf32>
    %c8 = arith.constant 8 : index
    %c0_20 = arith.constant 0 : index
    %45 = vector.load %arg13[%c8, %c0_20] : memref<1152x256xf32, #tpu.memory_space<vmem>>, vector<4x256xf32>
    tpu.vector_store %arg13[%c8, %c0_20], %44 {strides = array<i32>} : memref<1152x256xf32, #tpu.memory_space<vmem>>, vector<4x256xf32>,
    %c0_21 = arith.constant 0 : index
    %c16 = arith.constant 16 : index
    %46 = vector.load %arg12[%c0_21, %c16] : memref<128x290xf32, #tpu.memory_space<vmem>>, vector<4x256xf32>
    %cst_22 = arith.constant 0.000000e+00 : f32
    %47 = vector.shape_cast %20 : vector<1x256xi1> to vector<1x256xi1>
    %48 = vector.broadcast %47 : vector<1x256xi1> to vector<4x256xi1>
    %49 = vector.broadcast %cst_22 : f32 to vector<4x256xf32>
    %50 = arith.select %48, %46, %49 : vector<4x256xi1>, vector<4x256xf32>
    %c12 = arith.constant 12 : index
    %c0_23 = arith.constant 0 : index
    %51 = vector.load %arg13[%c12, %c0_23] : memref<1152x256xf32, #tpu.memory_space<vmem>>, vector<4x256xf32>
    tpu.vector_store %arg13[%c12, %c0_23], %50 {strides = array<i32>} : memref<1152x256xf32, #tpu.memory_space<vmem>>, vector<4x256xf32>,
    %c0_24 = arith.constant 0 : index
    %c17_25 = arith.constant 17 : index
    %52 = vector.load %arg12[%c0_24, %c17_25] : memref<128x290xf32, #tpu.memory_space<vmem>>, vector<4x256xf32>
    %c16_26 = arith.constant 16 : index
    %c0_27 = arith.constant 0 : index
    %53 = vector.load %arg13[%c16_26, %c0_27] : memref<1152x256xf32, #tpu.memory_space<vmem>>, vector<4x256xf32>
    tpu.vector_store %arg13[%c16_26, %c0_27], %52 {strides = array<i32>} : memref<1152x256xf32, #tpu.memory_space<vmem>>, vector<4x256xf32>,
    %c0_28 = arith.constant 0 : index
    %c18 = arith.constant 18 : index
    %54 = vector.load %arg12[%c0_28, %c18] : memref<128x290xf32, #tpu.memory_space<vmem>>, vector<4x256xf32>
    %cst_29 = arith.constant 0.000000e+00 : f32
    %55 = vector.shape_cast %22 : vector<1x256xi1> to vector<1x256xi1>
    %56 = vector.broadcast %55 : vector<1x256xi1> to vector<4x256xi1>
    %57 = vector.broadcast %cst_29 : f32 to vector<4x256xf32>
    %58 = arith.select %56, %54, %57 : vector<4x256xi1>, vector<4x256xf32>
    %c20 = arith.constant 20 : index
    %c0_30 = arith.constant 0 : index
    %59 = vector.load %arg13[%c20, %c0_30] : memref<1152x256xf32, #tpu.memory_space<vmem>>, vector<4x256xf32>
    tpu.vector_store %arg13[%c20, %c0_30], %58 {strides = array<i32>} : memref<1152x256xf32, #tpu.memory_space<vmem>>, vector<4x256xf32>,
    %c0_31 = arith.constant 0 : index
    %c32 = arith.constant 32 : index
    %60 = vector.load %arg12[%c0_31, %c32] : memref<128x290xf32, #tpu.memory_space<vmem>>, vector<4x256xf32>
    %cst_32 = arith.constant 0.000000e+00 : f32
    %61 = vector.shape_cast %20 : vector<1x256xi1> to vector<1x256xi1>
    %62 = vector.broadcast %61 : vector<1x256xi1> to vector<4x256xi1>
    %63 = vector.broadcast %cst_32 : f32 to vector<4x256xf32>
    %64 = arith.select %62, %60, %63 : vector<4x256xi1>, vector<4x256xf32>
    %c24 = arith.constant 24 : index
    %c0_33 = arith.constant 0 : index
    %65 = vector.load %arg13[%c24, %c0_33] : memref<1152x256xf32, #tpu.memory_space<vmem>>, vector<4x256xf32>
    tpu.vector_store %arg13[%c24, %c0_33], %64 {strides = array<i32>} : memref<1152x256xf32, #tpu.memory_space<vmem>>, vector<4x256xf32>,
    %c0_34 = arith.constant 0 : index
    %c33 = arith.constant 33 : index
    %66 = vector.load %arg12[%c0_34, %c33] : memref<128x290xf32, #tpu.memory_space<vmem>>, vector<4x256xf32>
    %c28 = arith.constant 28 : index
    %c0_35 = arith.constant 0 : index
    %67 = vector.load %arg13[%c28, %c0_35] : memref<1152x256xf32, #tpu.memory_space<vmem>>, vector<4x256xf32>
    tpu.vector_store %arg13[%c28, %c0_35], %66 {strides = array<i32>} : memref<1152x256xf32, #tpu.memory_space<vmem>>, vector<4x256xf32>,
    %c0_36 = arith.constant 0 : index
    %c34 = arith.constant 34 : index
    %68 = vector.load %arg12[%c0_36, %c34] : memref<128x290xf32, #tpu.memory_space<vmem>>, vector<4x256xf32>
    %cst_37 = arith.constant 0.000000e+00 : f32
    %69 = vector.shape_cast %22 : vector<1x256xi1> to vector<1x256xi1>
    %70 = vector.broadcast %69 : vector<1x256xi1> to vector<4x256xi1>
    %71 = vector.broadcast %cst_37 : f32 to vector<4x256xf32>
    %72 = arith.select %70, %68, %71 : vector<4x256xi1>, vector<4x256xf32>
    %c32_38 = arith.constant 32 : index
    %c0_39 = arith.constant 0 : index
    %73 = vector.load %arg13[%c32_38, %c0_39] : memref<1152x256xf32, #tpu.memory_space<vmem>>, vector<4x256xf32>
    tpu.vector_store %arg13[%c32_38, %c0_39], %72 {strides = array<i32>} : memref<1152x256xf32, #tpu.memory_space<vmem>>, vector<4x256xf32>,
    %c0_40 = arith.constant 0 : index
    %c0_41 = arith.constant 0 : index
    %74 = vector.load %arg13[%c0_40, %c0_41] : memref<1152x256xf32, #tpu.memory_space<vmem>>, vector<36x256xf32>
    %75 = arith.truncf %74 : vector<36x256xf32> to vector<36x256xbf16>
    %c0_42 = arith.constant 0 : index
    %c0_43 = arith.constant 0 : index
    %76 = vector.load %arg3[%c0_42, %c0_43] : memref<64x36xbf16, #tpu.memory_space<vmem>>, vector<64x36xbf16>
    %cst_44 = arith.constant dense<0.000000e+00> : vector<64x256xf32>
    %77 = tpu.matmul %76, %75, %cst_44 {dimension_numbers = #tpu.dot_dimension_numbers<[1], [0], [0], [1], [0, 0, 1, 1], [], []>} : vector<64x36xbf16>, vector<36x256xbf16>, vector<64x256xf32> -> vector<64x256xf32>
    %c0_45 = arith.constant 0 : index
    %c0_46 = arith.constant 0 : index
    %78 = vector.load %arg4[%c0_45, %c0_46] : memref<64x1xf32, #tpu.memory_space<vmem>>, vector<64x1xf32>
    %79 = vector.broadcast %78 : vector<64x1xf32> to vector<64x256xf32>
    %80 = arith.addf %77, %79 : vector<64x256xf32>
    %cst_47 = arith.constant 0.000000e+00 : f32
    %81 = vector.broadcast %cst_47 : f32 to vector<64x256xf32>
    %82 = arith.maximumf %80, %81 : vector<64x256xf32>
    %c0_48 = arith.constant 0 : index
    %c17_49 = arith.constant 17 : index
    %83 = vector.load %arg12[%c0_48, %c17_49] : memref<128x290xf32, #tpu.memory_space<vmem>>, vector<64x256xf32>
    tpu.vector_store %arg12[%c0_48, %c17_49], %82 {strides = array<i32>} : memref<128x290xf32, #tpu.memory_space<vmem>>, vector<64x256xf32>,
    %c0_50 = arith.constant 0 : index
    %c0_51 = arith.constant 0 : index
    %84 = vector.load %arg12[%c0_50, %c0_51] : memref<128x290xf32, #tpu.memory_space<vmem>>, vector<64x256xf32>
    %cst_52 = arith.constant 0.000000e+00 : f32
    %85 = vector.shape_cast %20 : vector<1x256xi1> to vector<1x256xi1>
    %86 = vector.broadcast %85 : vector<1x256xi1> to vector<64x256xi1>
    %87 = vector.broadcast %cst_52 : f32 to vector<64x256xf32>
    %88 = arith.select %86, %84, %87 : vector<64x256xi1>, vector<64x256xf32>
    %c0_53 = arith.constant 0 : index
    %c0_54 = arith.constant 0 : index
    %89 = vector.load %arg13[%c0_53, %c0_54] : memref<1152x256xf32, #tpu.memory_space<vmem>>, vector<64x256xf32>
    tpu.vector_store %arg13[%c0_53, %c0_54], %88 {strides = array<i32>} : memref<1152x256xf32, #tpu.memory_space<vmem>>, vector<64x256xf32>,
    %c0_55 = arith.constant 0 : index
    %c1_56 = arith.constant 1 : index
    %90 = vector.load %arg12[%c0_55, %c1_56] : memref<128x290xf32, #tpu.memory_space<vmem>>, vector<64x256xf32>
    %c64 = arith.constant 64 : index
    %c0_57 = arith.constant 0 : index
    %91 = vector.load %arg13[%c64, %c0_57] : memref<1152x256xf32, #tpu.memory_space<vmem>>, vector<64x256xf32>
    tpu.vector_store %arg13[%c64, %c0_57], %90 {strides = array<i32>} : memref<1152x256xf32, #tpu.memory_space<vmem>>, vector<64x256xf32>,
    %c0_58 = arith.constant 0 : index
    %c2_59 = arith.constant 2 : index
    %92 = vector.load %arg12[%c0_58, %c2_59] : memref<128x290xf32, #tpu.memory_space<vmem>>, vector<64x256xf32>
    %cst_60 = arith.constant 0.000000e+00 : f32
    %93 = vector.shape_cast %22 : vector<1x256xi1> to vector<1x256xi1>
    %94 = vector.broadcast %93 : vector<1x256xi1> to vector<64x256xi1>
    %95 = vector.broadcast %cst_60 : f32 to vector<64x256xf32>
    %96 = arith.select %94, %92, %95 : vector<64x256xi1>, vector<64x256xf32>
    %c128 = arith.constant 128 : index
    %c0_61 = arith.constant 0 : index
    %97 = vector.load %arg13[%c128, %c0_61] : memref<1152x256xf32, #tpu.memory_space<vmem>>, vector<64x256xf32>
    tpu.vector_store %arg13[%c128, %c0_61], %96 {strides = array<i32>} : memref<1152x256xf32, #tpu.memory_space<vmem>>, vector<64x256xf32>,
    %c0_62 = arith.constant 0 : index
    %c16_63 = arith.constant 16 : index
    %98 = vector.load %arg12[%c0_62, %c16_63] : memref<128x290xf32, #tpu.memory_space<vmem>>, vector<64x256xf32>
    %cst_64 = arith.constant 0.000000e+00 : f32
    %99 = vector.shape_cast %20 : vector<1x256xi1> to vector<1x256xi1>
    %100 = vector.broadcast %99 : vector<1x256xi1> to vector<64x256xi1>
    %101 = vector.broadcast %cst_64 : f32 to vector<64x256xf32>
    %102 = arith.select %100, %98, %101 : vector<64x256xi1>, vector<64x256xf32>
    %c192 = arith.constant 192 : index
    %c0_65 = arith.constant 0 : index
    %103 = vector.load %arg13[%c192, %c0_65] : memref<1152x256xf32, #tpu.memory_space<vmem>>, vector<64x256xf32>
    tpu.vector_store %arg13[%c192, %c0_65], %102 {strides = array<i32>} : memref<1152x256xf32, #tpu.memory_space<vmem>>, vector<64x256xf32>,
    %c0_66 = arith.constant 0 : index
    %c17_67 = arith.constant 17 : index
    %104 = vector.load %arg12[%c0_66, %c17_67] : memref<128x290xf32, #tpu.memory_space<vmem>>, vector<64x256xf32>
    %c256 = arith.constant 256 : index
    %c0_68 = arith.constant 0 : index
    %105 = vector.load %arg13[%c256, %c0_68] : memref<1152x256xf32, #tpu.memory_space<vmem>>, vector<64x256xf32>
    tpu.vector_store %arg13[%c256, %c0_68], %104 {strides = array<i32>} : memref<1152x256xf32, #tpu.memory_space<vmem>>, vector<64x256xf32>,
    %c0_69 = arith.constant 0 : index
    %c18_70 = arith.constant 18 : index
    %106 = vector.load %arg12[%c0_69, %c18_70] : memref<128x290xf32, #tpu.memory_space<vmem>>, vector<64x256xf32>
    %cst_71 = arith.constant 0.000000e+00 : f32
    %107 = vector.shape_cast %22 : vector<1x256xi1> to vector<1x256xi1>
    %108 = vector.broadcast %107 : vector<1x256xi1> to vector<64x256xi1>
    %109 = vector.broadcast %cst_71 : f32 to vector<64x256xf32>
    %110 = arith.select %108, %106, %109 : vector<64x256xi1>, vector<64x256xf32>
    %c320 = arith.constant 320 : index
    %c0_72 = arith.constant 0 : index
    %111 = vector.load %arg13[%c320, %c0_72] : memref<1152x256xf32, #tpu.memory_space<vmem>>, vector<64x256xf32>
    tpu.vector_store %arg13[%c320, %c0_72], %110 {strides = array<i32>} : memref<1152x256xf32, #tpu.memory_space<vmem>>, vector<64x256xf32>,
    %c0_73 = arith.constant 0 : index
    %c32_74 = arith.constant 32 : index
    %112 = vector.load %arg12[%c0_73, %c32_74] : memref<128x290xf32, #tpu.memory_space<vmem>>, vector<64x256xf32>
    %cst_75 = arith.constant 0.000000e+00 : f32
    %113 = vector.shape_cast %20 : vector<1x256xi1> to vector<1x256xi1>
    %114 = vector.broadcast %113 : vector<1x256xi1> to vector<64x256xi1>
    %115 = vector.broadcast %cst_75 : f32 to vector<64x256xf32>
    %116 = arith.select %114, %112, %115 : vector<64x256xi1>, vector<64x256xf32>
    %c384 = arith.constant 384 : index
    %c0_76 = arith.constant 0 : index
    %117 = vector.load %arg13[%c384, %c0_76] : memref<1152x256xf32, #tpu.memory_space<vmem>>, vector<64x256xf32>
    tpu.vector_store %arg13[%c384, %c0_76], %116 {strides = array<i32>} : memref<1152x256xf32, #tpu.memory_space<vmem>>, vector<64x256xf32>,
    %c0_77 = arith.constant 0 : index
    %c33_78 = arith.constant 33 : index
    %118 = vector.load %arg12[%c0_77, %c33_78] : memref<128x290xf32, #tpu.memory_space<vmem>>, vector<64x256xf32>
    %c448 = arith.constant 448 : index
    %c0_79 = arith.constant 0 : index
    %119 = vector.load %arg13[%c448, %c0_79] : memref<1152x256xf32, #tpu.memory_space<vmem>>, vector<64x256xf32>
    tpu.vector_store %arg13[%c448, %c0_79], %118 {strides = array<i32>} : memref<1152x256xf32, #tpu.memory_space<vmem>>, vector<64x256xf32>,
    %c0_80 = arith.constant 0 : index
    %c34_81 = arith.constant 34 : index
    %120 = vector.load %arg12[%c0_80, %c34_81] : memref<128x290xf32, #tpu.memory_space<vmem>>, vector<64x256xf32>
    %cst_82 = arith.constant 0.000000e+00 : f32
    %121 = vector.shape_cast %22 : vector<1x256xi1> to vector<1x256xi1>
    %122 = vector.broadcast %121 : vector<1x256xi1> to vector<64x256xi1>
    %123 = vector.broadcast %cst_82 : f32 to vector<64x256xf32>
    %124 = arith.select %122, %120, %123 : vector<64x256xi1>, vector<64x256xf32>
    %c512 = arith.constant 512 : index
    %c0_83 = arith.constant 0 : index
    %125 = vector.load %arg13[%c512, %c0_83] : memref<1152x256xf32, #tpu.memory_space<vmem>>, vector<64x256xf32>
    tpu.vector_store %arg13[%c512, %c0_83], %124 {strides = array<i32>} : memref<1152x256xf32, #tpu.memory_space<vmem>>, vector<64x256xf32>,
    %c0_84 = arith.constant 0 : index
    %c0_85 = arith.constant 0 : index
    %126 = vector.load %arg13[%c0_84, %c0_85] : memref<1152x256xf32, #tpu.memory_space<vmem>>, vector<576x256xf32>
    %127 = arith.truncf %126 : vector<576x256xf32> to vector<576x256xbf16>
    %c0_86 = arith.constant 0 : index
    %c0_87 = arith.constant 0 : index
    %128 = vector.load %arg5[%c0_86, %c0_87] : memref<128x576xbf16, #tpu.memory_space<vmem>>, vector<128x576xbf16>
    %cst_88 = arith.constant dense<0.000000e+00> : vector<128x256xf32>
    %129 = tpu.matmul %128, %127, %cst_88 {dimension_numbers = #tpu.dot_dimension_numbers<[1], [0], [0], [1], [0, 0, 1, 1], [], []>} : vector<128x576xbf16>, vector<576x256xbf16>, vector<128x256xf32> -> vector<128x256xf32>
    %c0_89 = arith.constant 0 : index
    %c0_90 = arith.constant 0 : index
    %130 = vector.load %arg6[%c0_89, %c0_90] : memref<128x1xf32, #tpu.memory_space<vmem>>, vector<128x1xf32>
    %131 = vector.broadcast %130 : vector<128x1xf32> to vector<128x256xf32>
    %132 = arith.addf %129, %131 : vector<128x256xf32>
    %cst_91 = arith.constant 0.000000e+00 : f32
    %133 = vector.broadcast %cst_91 : f32 to vector<128x256xf32>
    %134 = arith.maximumf %132, %133 : vector<128x256xf32>
    %c0_92 = arith.constant 0 : index
    %c17_93 = arith.constant 17 : index
    %135 = vector.load %arg12[%c0_92, %c17_93] : memref<128x290xf32, #tpu.memory_space<vmem>>, vector<128x256xf32>
    tpu.vector_store %arg12[%c0_92, %c17_93], %134 {strides = array<i32>} : memref<128x290xf32, #tpu.memory_space<vmem>>, vector<128x256xf32>,
    %c0_94 = arith.constant 0 : index
    %c0_95 = arith.constant 0 : index
    %136 = vector.load %arg12[%c0_94, %c0_95] : memref<128x290xf32, #tpu.memory_space<vmem>>, vector<128x256xf32>
    %cst_96 = arith.constant 0.000000e+00 : f32
    %137 = vector.shape_cast %20 : vector<1x256xi1> to vector<1x256xi1>
    %138 = vector.broadcast %137 : vector<1x256xi1> to vector<128x256xi1>
    %139 = vector.broadcast %cst_96 : f32 to vector<128x256xf32>
    %140 = arith.select %138, %136, %139 : vector<128x256xi1>, vector<128x256xf32>
    %c0_97 = arith.constant 0 : index
    %c0_98 = arith.constant 0 : index
    %141 = vector.load %arg13[%c0_97, %c0_98] : memref<1152x256xf32, #tpu.memory_space<vmem>>, vector<128x256xf32>
    tpu.vector_store %arg13[%c0_97, %c0_98], %140 {strides = array<i32>} : memref<1152x256xf32, #tpu.memory_space<vmem>>, vector<128x256xf32>,
    %c0_99 = arith.constant 0 : index
    %c1_100 = arith.constant 1 : index
    %142 = vector.load %arg12[%c0_99, %c1_100] : memref<128x290xf32, #tpu.memory_space<vmem>>, vector<128x256xf32>
    %c128_101 = arith.constant 128 : index
    %c0_102 = arith.constant 0 : index
    %143 = vector.load %arg13[%c128_101, %c0_102] : memref<1152x256xf32, #tpu.memory_space<vmem>>, vector<128x256xf32>
    tpu.vector_store %arg13[%c128_101, %c0_102], %142 {strides = array<i32>} : memref<1152x256xf32, #tpu.memory_space<vmem>>, vector<128x256xf32>,
    %c0_103 = arith.constant 0 : index
    %c2_104 = arith.constant 2 : index
    %144 = vector.load %arg12[%c0_103, %c2_104] : memref<128x290xf32, #tpu.memory_space<vmem>>, vector<128x256xf32>
    %cst_105 = arith.constant 0.000000e+00 : f32
    %145 = vector.shape_cast %22 : vector<1x256xi1> to vector<1x256xi1>
    %146 = vector.broadcast %145 : vector<1x256xi1> to vector<128x256xi1>
    %147 = vector.broadcast %cst_105 : f32 to vector<128x256xf32>
    %148 = arith.select %146, %144, %147 : vector<128x256xi1>, vector<128x256xf32>
    %c256_106 = arith.constant 256 : index
    %c0_107 = arith.constant 0 : index
    %149 = vector.load %arg13[%c256_106, %c0_107] : memref<1152x256xf32, #tpu.memory_space<vmem>>, vector<128x256xf32>
    tpu.vector_store %arg13[%c256_106, %c0_107], %148 {strides = array<i32>} : memref<1152x256xf32, #tpu.memory_space<vmem>>, vector<128x256xf32>,
    %c0_108 = arith.constant 0 : index
    %c16_109 = arith.constant 16 : index
    %150 = vector.load %arg12[%c0_108, %c16_109] : memref<128x290xf32, #tpu.memory_space<vmem>>, vector<128x256xf32>
    %cst_110 = arith.constant 0.000000e+00 : f32
    %151 = vector.shape_cast %20 : vector<1x256xi1> to vector<1x256xi1>
    %152 = vector.broadcast %151 : vector<1x256xi1> to vector<128x256xi1>
    %153 = vector.broadcast %cst_110 : f32 to vector<128x256xf32>
    %154 = arith.select %152, %150, %153 : vector<128x256xi1>, vector<128x256xf32>
    %c384_111 = arith.constant 384 : index
    %c0_112 = arith.constant 0 : index
    %155 = vector.load %arg13[%c384_111, %c0_112] : memref<1152x256xf32, #tpu.memory_space<vmem>>, vector<128x256xf32>
    tpu.vector_store %arg13[%c384_111, %c0_112], %154 {strides = array<i32>} : memref<1152x256xf32, #tpu.memory_space<vmem>>, vector<128x256xf32>,
    %c0_113 = arith.constant 0 : index
    %c17_114 = arith.constant 17 : index
    %156 = vector.load %arg12[%c0_113, %c17_114] : memref<128x290xf32, #tpu.memory_space<vmem>>, vector<128x256xf32>
    %c512_115 = arith.constant 512 : index
    %c0_116 = arith.constant 0 : index
    %157 = vector.load %arg13[%c512_115, %c0_116] : memref<1152x256xf32, #tpu.memory_space<vmem>>, vector<128x256xf32>
    tpu.vector_store %arg13[%c512_115, %c0_116], %156 {strides = array<i32>} : memref<1152x256xf32, #tpu.memory_space<vmem>>, vector<128x256xf32>,
    %c0_117 = arith.constant 0 : index
    %c18_118 = arith.constant 18 : index
    %158 = vector.load %arg12[%c0_117, %c18_118] : memref<128x290xf32, #tpu.memory_space<vmem>>, vector<128x256xf32>
    %cst_119 = arith.constant 0.000000e+00 : f32
    %159 = vector.shape_cast %22 : vector<1x256xi1> to vector<1x256xi1>
    %160 = vector.broadcast %159 : vector<1x256xi1> to vector<128x256xi1>
    %161 = vector.broadcast %cst_119 : f32 to vector<128x256xf32>
    %162 = arith.select %160, %158, %161 : vector<128x256xi1>, vector<128x256xf32>
    %c640 = arith.constant 640 : index
    %c0_120 = arith.constant 0 : index
    %163 = vector.load %arg13[%c640, %c0_120] : memref<1152x256xf32, #tpu.memory_space<vmem>>, vector<128x256xf32>
    tpu.vector_store %arg13[%c640, %c0_120], %162 {strides = array<i32>} : memref<1152x256xf32, #tpu.memory_space<vmem>>, vector<128x256xf32>,
    %c0_121 = arith.constant 0 : index
    %c32_122 = arith.constant 32 : index
    %164 = vector.load %arg12[%c0_121, %c32_122] : memref<128x290xf32, #tpu.memory_space<vmem>>, vector<128x256xf32>
    %cst_123 = arith.constant 0.000000e+00 : f32
    %165 = vector.shape_cast %20 : vector<1x256xi1> to vector<1x256xi1>
    %166 = vector.broadcast %165 : vector<1x256xi1> to vector<128x256xi1>
    %167 = vector.broadcast %cst_123 : f32 to vector<128x256xf32>
    %168 = arith.select %166, %164, %167 : vector<128x256xi1>, vector<128x256xf32>
    %c768 = arith.constant 768 : index
    %c0_124 = arith.constant 0 : index
    %169 = vector.load %arg13[%c768, %c0_124] : memref<1152x256xf32, #tpu.memory_space<vmem>>, vector<128x256xf32>
    tpu.vector_store %arg13[%c768, %c0_124], %168 {strides = array<i32>} : memref<1152x256xf32, #tpu.memory_space<vmem>>, vector<128x256xf32>,
    %c0_125 = arith.constant 0 : index
    %c33_126 = arith.constant 33 : index
    %170 = vector.load %arg12[%c0_125, %c33_126] : memref<128x290xf32, #tpu.memory_space<vmem>>, vector<128x256xf32>
    %c896 = arith.constant 896 : index
    %c0_127 = arith.constant 0 : index
    %171 = vector.load %arg13[%c896, %c0_127] : memref<1152x256xf32, #tpu.memory_space<vmem>>, vector<128x256xf32>
    tpu.vector_store %arg13[%c896, %c0_127], %170 {strides = array<i32>} : memref<1152x256xf32, #tpu.memory_space<vmem>>, vector<128x256xf32>,
    %c0_128 = arith.constant 0 : index
    %c34_129 = arith.constant 34 : index
    %172 = vector.load %arg12[%c0_128, %c34_129] : memref<128x290xf32, #tpu.memory_space<vmem>>, vector<128x256xf32>
    %cst_130 = arith.constant 0.000000e+00 : f32
    %173 = vector.shape_cast %22 : vector<1x256xi1> to vector<1x256xi1>
    %174 = vector.broadcast %173 : vector<1x256xi1> to vector<128x256xi1>
    %175 = vector.broadcast %cst_130 : f32 to vector<128x256xf32>
    %176 = arith.select %174, %172, %175 : vector<128x256xi1>, vector<128x256xf32>
    %c1024 = arith.constant 1024 : index
    %c0_131 = arith.constant 0 : index
    %177 = vector.load %arg13[%c1024, %c0_131] : memref<1152x256xf32, #tpu.memory_space<vmem>>, vector<128x256xf32>
    tpu.vector_store %arg13[%c1024, %c0_131], %176 {strides = array<i32>} : memref<1152x256xf32, #tpu.memory_space<vmem>>, vector<128x256xf32>,
    %c0_132 = arith.constant 0 : index
    %c0_133 = arith.constant 0 : index
    %178 = vector.load %arg13[%c0_132, %c0_133] : memref<1152x256xf32, #tpu.memory_space<vmem>>, vector<1152x256xf32>
    %179 = arith.truncf %178 : vector<1152x256xf32> to vector<1152x256xbf16>
    %c0_134 = arith.constant 0 : index
    %c0_135 = arith.constant 0 : index
    %180 = vector.load %arg7[%c0_134, %c0_135] : memref<64x1152xbf16, #tpu.memory_space<vmem>>, vector<64x1152xbf16>
    %cst_136 = arith.constant dense<0.000000e+00> : vector<64x256xf32>
    %181 = tpu.matmul %180, %179, %cst_136 {dimension_numbers = #tpu.dot_dimension_numbers<[1], [0], [0], [1], [0, 0, 1, 1], [], []>} : vector<64x1152xbf16>, vector<1152x256xbf16>, vector<64x256xf32> -> vector<64x256xf32>
    %c0_137 = arith.constant 0 : index
    %c0_138 = arith.constant 0 : index
    %182 = vector.load %arg8[%c0_137, %c0_138] : memref<64x1xf32, #tpu.memory_space<vmem>>, vector<64x1xf32>
    %183 = vector.broadcast %182 : vector<64x1xf32> to vector<64x256xf32>
    %184 = arith.addf %181, %183 : vector<64x256xf32>
    %cst_139 = arith.constant 0.000000e+00 : f32
    %185 = vector.broadcast %cst_139 : f32 to vector<64x256xf32>
    %186 = arith.maximumf %184, %185 : vector<64x256xf32>
    %c0_140 = arith.constant 0 : index
    %c17_141 = arith.constant 17 : index
    %187 = vector.load %arg12[%c0_140, %c17_141] : memref<128x290xf32, #tpu.memory_space<vmem>>, vector<64x256xf32>
    tpu.vector_store %arg12[%c0_140, %c17_141], %186 {strides = array<i32>} : memref<128x290xf32, #tpu.memory_space<vmem>>, vector<64x256xf32>,
    %c0_142 = arith.constant 0 : index
    %c0_143 = arith.constant 0 : index
    %188 = vector.load %arg12[%c0_142, %c0_143] : memref<128x290xf32, #tpu.memory_space<vmem>>, vector<64x256xf32>
    %cst_144 = arith.constant 0.000000e+00 : f32
    %189 = vector.shape_cast %20 : vector<1x256xi1> to vector<1x256xi1>
    %190 = vector.broadcast %189 : vector<1x256xi1> to vector<64x256xi1>
    %191 = vector.broadcast %cst_144 : f32 to vector<64x256xf32>
    %192 = arith.select %190, %188, %191 : vector<64x256xi1>, vector<64x256xf32>
    %c0_145 = arith.constant 0 : index
    %c0_146 = arith.constant 0 : index
    %193 = vector.load %arg13[%c0_145, %c0_146] : memref<1152x256xf32, #tpu.memory_space<vmem>>, vector<64x256xf32>
    tpu.vector_store %arg13[%c0_145, %c0_146], %192 {strides = array<i32>} : memref<1152x256xf32, #tpu.memory_space<vmem>>, vector<64x256xf32>,
    %c0_147 = arith.constant 0 : index
    %c1_148 = arith.constant 1 : index
    %194 = vector.load %arg12[%c0_147, %c1_148] : memref<128x290xf32, #tpu.memory_space<vmem>>, vector<64x256xf32>
    %c64_149 = arith.constant 64 : index
    %c0_150 = arith.constant 0 : index
    %195 = vector.load %arg13[%c64_149, %c0_150] : memref<1152x256xf32, #tpu.memory_space<vmem>>, vector<64x256xf32>
    tpu.vector_store %arg13[%c64_149, %c0_150], %194 {strides = array<i32>} : memref<1152x256xf32, #tpu.memory_space<vmem>>, vector<64x256xf32>,
    %c0_151 = arith.constant 0 : index
    %c2_152 = arith.constant 2 : index
    %196 = vector.load %arg12[%c0_151, %c2_152] : memref<128x290xf32, #tpu.memory_space<vmem>>, vector<64x256xf32>
    %cst_153 = arith.constant 0.000000e+00 : f32
    %197 = vector.shape_cast %22 : vector<1x256xi1> to vector<1x256xi1>
    %198 = vector.broadcast %197 : vector<1x256xi1> to vector<64x256xi1>
    %199 = vector.broadcast %cst_153 : f32 to vector<64x256xf32>
    %200 = arith.select %198, %196, %199 : vector<64x256xi1>, vector<64x256xf32>
    %c128_154 = arith.constant 128 : index
    %c0_155 = arith.constant 0 : index
    %201 = vector.load %arg13[%c128_154, %c0_155] : memref<1152x256xf32, #tpu.memory_space<vmem>>, vector<64x256xf32>
    tpu.vector_store %arg13[%c128_154, %c0_155], %200 {strides = array<i32>} : memref<1152x256xf32, #tpu.memory_space<vmem>>, vector<64x256xf32>,
    %c0_156 = arith.constant 0 : index
    %c16_157 = arith.constant 16 : index
    %202 = vector.load %arg12[%c0_156, %c16_157] : memref<128x290xf32, #tpu.memory_space<vmem>>, vector<64x256xf32>
    %cst_158 = arith.constant 0.000000e+00 : f32
    %203 = vector.shape_cast %20 : vector<1x256xi1> to vector<1x256xi1>
    %204 = vector.broadcast %203 : vector<1x256xi1> to vector<64x256xi1>
    %205 = vector.broadcast %cst_158 : f32 to vector<64x256xf32>
    %206 = arith.select %204, %202, %205 : vector<64x256xi1>, vector<64x256xf32>
    %c192_159 = arith.constant 192 : index
    %c0_160 = arith.constant 0 : index
    %207 = vector.load %arg13[%c192_159, %c0_160] : memref<1152x256xf32, #tpu.memory_space<vmem>>, vector<64x256xf32>
    tpu.vector_store %arg13[%c192_159, %c0_160], %206 {strides = array<i32>} : memref<1152x256xf32, #tpu.memory_space<vmem>>, vector<64x256xf32>,
    %c0_161 = arith.constant 0 : index
    %c17_162 = arith.constant 17 : index
    %208 = vector.load %arg12[%c0_161, %c17_162] : memref<128x290xf32, #tpu.memory_space<vmem>>, vector<64x256xf32>
    %c256_163 = arith.constant 256 : index
    %c0_164 = arith.constant 0 : index
    %209 = vector.load %arg13[%c256_163, %c0_164] : memref<1152x256xf32, #tpu.memory_space<vmem>>, vector<64x256xf32>
    tpu.vector_store %arg13[%c256_163, %c0_164], %208 {strides = array<i32>} : memref<1152x256xf32, #tpu.memory_space<vmem>>, vector<64x256xf32>,
    %c0_165 = arith.constant 0 : index
    %c18_166 = arith.constant 18 : index
    %210 = vector.load %arg12[%c0_165, %c18_166] : memref<128x290xf32, #tpu.memory_space<vmem>>, vector<64x256xf32>
    %cst_167 = arith.constant 0.000000e+00 : f32
    %211 = vector.shape_cast %22 : vector<1x256xi1> to vector<1x256xi1>
    %212 = vector.broadcast %211 : vector<1x256xi1> to vector<64x256xi1>
    %213 = vector.broadcast %cst_167 : f32 to vector<64x256xf32>
    %214 = arith.select %212, %210, %213 : vector<64x256xi1>, vector<64x256xf32>
    %c320_168 = arith.constant 320 : index
    %c0_169 = arith.constant 0 : index
    %215 = vector.load %arg13[%c320_168, %c0_169] : memref<1152x256xf32, #tpu.memory_space<vmem>>, vector<64x256xf32>
    tpu.vector_store %arg13[%c320_168, %c0_169], %214 {strides = array<i32>} : memref<1152x256xf32, #tpu.memory_space<vmem>>, vector<64x256xf32>,
    %c0_170 = arith.constant 0 : index
    %c32_171 = arith.constant 32 : index
    %216 = vector.load %arg12[%c0_170, %c32_171] : memref<128x290xf32, #tpu.memory_space<vmem>>, vector<64x256xf32>
    %cst_172 = arith.constant 0.000000e+00 : f32
    %217 = vector.shape_cast %20 : vector<1x256xi1> to vector<1x256xi1>
    %218 = vector.broadcast %217 : vector<1x256xi1> to vector<64x256xi1>
    %219 = vector.broadcast %cst_172 : f32 to vector<64x256xf32>
    %220 = arith.select %218, %216, %219 : vector<64x256xi1>, vector<64x256xf32>
    %c384_173 = arith.constant 384 : index
    %c0_174 = arith.constant 0 : index
    %221 = vector.load %arg13[%c384_173, %c0_174] : memref<1152x256xf32, #tpu.memory_space<vmem>>, vector<64x256xf32>
    tpu.vector_store %arg13[%c384_173, %c0_174], %220 {strides = array<i32>} : memref<1152x256xf32, #tpu.memory_space<vmem>>, vector<64x256xf32>,
    %c0_175 = arith.constant 0 : index
    %c33_176 = arith.constant 33 : index
    %222 = vector.load %arg12[%c0_175, %c33_176] : memref<128x290xf32, #tpu.memory_space<vmem>>, vector<64x256xf32>
    %c448_177 = arith.constant 448 : index
    %c0_178 = arith.constant 0 : index
    %223 = vector.load %arg13[%c448_177, %c0_178] : memref<1152x256xf32, #tpu.memory_space<vmem>>, vector<64x256xf32>
    tpu.vector_store %arg13[%c448_177, %c0_178], %222 {strides = array<i32>} : memref<1152x256xf32, #tpu.memory_space<vmem>>, vector<64x256xf32>,
    %c0_179 = arith.constant 0 : index
    %c34_180 = arith.constant 34 : index
    %224 = vector.load %arg12[%c0_179, %c34_180] : memref<128x290xf32, #tpu.memory_space<vmem>>, vector<64x256xf32>
    %cst_181 = arith.constant 0.000000e+00 : f32
    %225 = vector.shape_cast %22 : vector<1x256xi1> to vector<1x256xi1>
    %226 = vector.broadcast %225 : vector<1x256xi1> to vector<64x256xi1>
    %227 = vector.broadcast %cst_181 : f32 to vector<64x256xf32>
    %228 = arith.select %226, %224, %227 : vector<64x256xi1>, vector<64x256xf32>
    %c512_182 = arith.constant 512 : index
    %c0_183 = arith.constant 0 : index
    %229 = vector.load %arg13[%c512_182, %c0_183] : memref<1152x256xf32, #tpu.memory_space<vmem>>, vector<64x256xf32>
    tpu.vector_store %arg13[%c512_182, %c0_183], %228 {strides = array<i32>} : memref<1152x256xf32, #tpu.memory_space<vmem>>, vector<64x256xf32>,
    %c0_184 = arith.constant 0 : index
    %c0_185 = arith.constant 0 : index
    %230 = vector.load %arg13[%c0_184, %c0_185] : memref<1152x256xf32, #tpu.memory_space<vmem>>, vector<576x256xf32>
    %231 = arith.truncf %230 : vector<576x256xf32> to vector<576x256xbf16>
    %c0_186 = arith.constant 0 : index
    %c0_187 = arith.constant 0 : index
    %232 = vector.load %arg9[%c0_186, %c0_187] : memref<3x576xbf16, #tpu.memory_space<vmem>>, vector<3x576xbf16>
    %cst_188 = arith.constant dense<0.000000e+00> : vector<3x256xf32>
    %233 = tpu.matmul %232, %231, %cst_188 {dimension_numbers = #tpu.dot_dimension_numbers<[1], [0], [0], [1], [0, 0, 1, 1], [], []>} : vector<3x576xbf16>, vector<576x256xbf16>, vector<3x256xf32> -> vector<3x256xf32>
    %c0_189 = arith.constant 0 : index
    %c0_190 = arith.constant 0 : index
    %234 = vector.load %arg10[%c0_189, %c0_190] : memref<3x1xf32, #tpu.memory_space<vmem>>, vector<3x1xf32>
    %235 = vector.broadcast %234 : vector<3x1xf32> to vector<3x256xf32>
    %236 = arith.addf %233, %235 : vector<3x256xf32>
    %c0_191 = arith.constant 0 : index
    %c0_192 = arith.constant 0 : index
    %c0_193 = arith.constant 0 : index
    %237 = vector.load %arg11[%c0_191, %c0_192, %c0_193] : memref<1x3x256xf32, #tpu.memory_space<vmem>>, vector<1x3x256xf32>
    %238 = vector.shape_cast %237 : vector<1x3x256xf32> to vector<3x256xf32>
    %239 = vector.shape_cast %236 : vector<3x256xf32> to vector<1x3x256xf32>
    tpu.vector_store %arg11[%c0_191, %c0_192, %c0_193], %239 {strides = array<i32>} : memref<1x3x256xf32, #tpu.memory_space<vmem>>, vector<1x3x256xf32>,
    return
  }
  func.func @transform_0(%arg0: i32, %arg1: memref<2xi32, #tpu.memory_space<smem>>) -> (i32, i32, i32) {
    %c0_i32 = arith.constant 0 : i32
    %c0_i32_0 = arith.constant 0 : i32
    %c0_i32_1 = arith.constant 0 : i32
    return %arg0, %c0_i32, %c0_i32_0 : i32, i32, i32
  }
  func.func @transform_1(%arg0: i32, %arg1: memref<2xi32, #tpu.memory_space<smem>>) -> (i32, i32) {
    %c0_i32 = arith.constant 0 : i32
    %c0_i32_0 = arith.constant 0 : i32
    %c0_i32_1 = arith.constant 0 : i32
    return %c0_i32, %c0_i32_0 : i32, i32
  }
  func.func @transform_2(%arg0: i32, %arg1: memref<2xi32, #tpu.memory_space<smem>>) -> (i32, i32) {
    %c0_i32 = arith.constant 0 : i32
    %c0_i32_0 = arith.constant 0 : i32
    %c0_i32_1 = arith.constant 0 : i32
    return %c0_i32, %c0_i32_0 : i32, i32
  }
  func.func @transform_3(%arg0: i32, %arg1: memref<2xi32, #tpu.memory_space<smem>>) -> (i32, i32) {
    %c0_i32 = arith.constant 0 : i32
    %c0_i32_0 = arith.constant 0 : i32
    %c0_i32_1 = arith.constant 0 : i32
    return %c0_i32, %c0_i32_0 : i32, i32
  }
  func.func @transform_4(%arg0: i32, %arg1: memref<2xi32, #tpu.memory_space<smem>>) -> (i32, i32) {
    %c0_i32 = arith.constant 0 : i32
    %c0_i32_0 = arith.constant 0 : i32
    %c0_i32_1 = arith.constant 0 : i32
    return %c0_i32, %c0_i32_0 : i32, i32
  }
  func.func @transform_5(%arg0: i32, %arg1: memref<2xi32, #tpu.memory_space<smem>>) -> (i32, i32) {
    %c0_i32 = arith.constant 0 : i32
    %c0_i32_0 = arith.constant 0 : i32
    %c0_i32_1 = arith.constant 0 : i32
    return %c0_i32, %c0_i32_0 : i32, i32
  }
  func.func @transform_6(%arg0: i32, %arg1: memref<2xi32, #tpu.memory_space<smem>>) -> (i32, i32) {
    %c0_i32 = arith.constant 0 : i32
    %c0_i32_0 = arith.constant 0 : i32
    %c0_i32_1 = arith.constant 0 : i32
    return %c0_i32, %c0_i32_0 : i32, i32
  }
  func.func @transform_7(%arg0: i32, %arg1: memref<2xi32, #tpu.memory_space<smem>>) -> (i32, i32) {
    %c0_i32 = arith.constant 0 : i32
    %c0_i32_0 = arith.constant 0 : i32
    %c0_i32_1 = arith.constant 0 : i32
    return %c0_i32, %c0_i32_0 : i32, i32
  }
  func.func @transform_8(%arg0: i32, %arg1: memref<2xi32, #tpu.memory_space<smem>>) -> (i32, i32) {
    %c0_i32 = arith.constant 0 : i32
    %c0_i32_0 = arith.constant 0 : i32
    %c0_i32_1 = arith.constant 0 : i32
    return %c0_i32, %c0_i32_0 : i32, i32
  }
  func.func @transform_9(%arg0: i32, %arg1: memref<2xi32, #tpu.memory_space<smem>>) -> (i32, i32, i32) {
    %c0_i32 = arith.constant 0 : i32
    %c0_i32_0 = arith.constant 0 : i32
    %c0_i32_1 = arith.constant 0 : i32
    return %arg0, %c0_i32, %c0_i32_0 : i32, i32, i32
  }
}

</mosaic_0001>

<llo_original>
// kernel: convnet_forward.1
$region0: #{convnet_forward.1}
  #allocation0 [shape = 'u32[]', space=smem, size = 0x4, offset = 0x4, fixed_abs, tag = 'smem constant byte address 0x4 - core index']
  #allocation1 [shape = 'u32[144,128]{1,0:T(1,128)}', space=vmem, size = 0x12000, scoped, tag = 'internal scratch']
  #allocation2 [shape = 'f32[128,290]{1,0:T(8,128)}', space=vmem, size = 0x30000, scoped, tag = 'scratch operand']
  #allocation3 [shape = 'f32[1152,256]{1,0:T(8,128)}', space=vmem, size = 0x120000, scoped, tag = 'scratch operand']
  #allocation4 [shape = 's32[1]{0}', space=sflag, size = 0x4, scoped, tag = 'scoped memory for convnet_forward.1']
  #allocation5 [shape = 'u8[512]{0}', space=smem, size = 0x200, scoped, tag = 'prefetched SMEM operand 0']
  %s0 = inlined_call_operand.vmem [shape: s32[2], index: 0, kind: input, shape index: {}]
  %s1 = inlined_call_operand.vmem [shape: f32[2,3,256], index: 1, kind: input, shape index: {}]
  %s2 = inlined_call_operand.vmem [shape: bf16[64,36], index: 2, kind: input, shape index: {}]
  %s3 = inlined_call_operand.vmem [shape: f32[64,1], index: 3, kind: input, shape index: {}]
  %s4 = inlined_call_operand.vmem [shape: bf16[128,576], index: 4, kind: input, shape index: {}]
  %s5 = inlined_call_operand.vmem [shape: f32[128,1], index: 5, kind: input, shape index: {}]
  %s6 = inlined_call_operand.vmem [shape: bf16[64,1152], index: 6, kind: input, shape index: {}]
  %s7 = inlined_call_operand.vmem [shape: f32[64,1], index: 7, kind: input, shape index: {}]
  %s8 = inlined_call_operand.vmem [shape: bf16[3,576], index: 8, kind: input, shape index: {}]
  %s9 = inlined_call_operand.vmem [shape: f32[3,1], index: 9, kind: input, shape index: {}]
  %s10 = inlined_call_operand.vmem [shape: f32[2,3,256], index: 10, kind: output, shape index: {}]
  %s11 = sld [smem:[#allocation0]]
  $region69: #{convnet_forward.1} parent=0
    _
  %s13 = ssub.s32 1, %s11
  %s14 = scalar_select 0, %s13, %s11
  %s15 = sshll.u32 %s0, 4
  %s16 = int_to_ptr.vmem [resolvable:$true] %s15
  %18 = dma.vmem_to_smem %s16, 16, [#allocation5], [#allocation4]
  %19 = dma.done [#allocation4], 16
  %20 = sfence
  loop: start=0, step=1, limit=4
  $region2: #{convnet_forward.1} parent=0 // loop_pre_header
    _
  $region3: #{convnet_forward.1} parent=0 // loop_header
    %s22 = sphi 0, %s26
    %p23 = scmp.ge.s32.totalorder %s22, 4
    %s32 = sphi 0, %s34
    %s35 = sphi 0, %s32
    %s36 = sphi 0, %s35
    %s52 = sphi 0, %s36
    %s56 = sphi 0, %s56
    %s58 = sphi 0, %s56
    %s59 = sphi 0, %s58
    %s73 = sphi 0, %s59
    %s77 = sphi 0, %s77
    %s79 = sphi 0, %s77
    %s80 = sphi 0, %s79
    %s94 = sphi 0, %s80
    %s98 = sphi 0, %s98
    %s100 = sphi 0, %s98
    %s101 = sphi 0, %s100
    %s115 = sphi 0, %s101
    %s119 = sphi 0, %s119
    %s121 = sphi 0, %s119
    %s122 = sphi 0, %s121
    %s136 = sphi 0, %s122
    %s140 = sphi 0, %s140
    %s142 = sphi 0, %s140
    %s143 = sphi 0, %s142
    %s157 = sphi 0, %s143
    %s161 = sphi 0, %s161
    %s163 = sphi 0, %s161
    %s164 = sphi 0, %s163
    %s178 = sphi 0, %s164
    %s182 = sphi 0, %s182
    %s184 = sphi 0, %s182
    %s185 = sphi 0, %s184
    %s199 = sphi 0, %s185
    %s203 = sphi 0, %s203
    %s205 = sphi 0, %s203
    %s206 = sphi 0, %s205
    %s220 = sphi 0, %s206
    %s226 = sphi 0, %s228
    %s229 = sphi 0, %s226
    %s230 = sphi 0, %s229
    %s246 = sphi 0, %s230
  $region4: #{convnet_forward.1} parent=0 // loop_header_branch
    %25 = sbr.rel (%p23) target = $region8
  $region5: #{convnet_forward.1} parent=0 // loop_body
    %s27 = ssub.s32 %s22, 1
    %s28 = ssub.s32 %s22, 2
    %s29 = sadd.s32 %s22, 1
    %s30 = ssub.s32 %s22, %s29
    %p31 = scmp.eq.s32.totalorder %s30, 0
    %s33 = sadd.s32 %s32, 1
    %s34 = scalar_select %p31, %s32, %s33
    %p37 = pneg %p31
    %p38 = scmp.eq.s32.totalorder %s22, 1
    %p39 = por %p37, %p38
    %p40 = scmp.ne.s32.totalorder %s32, %s35
    %p41 = scmp.eq.s32.totalorder %s22, 0
    %p42 = por %p40, %p41
    %p43 = scmp.ne.s32.totalorder %s32, %s35
    %p44 = scmp.eq.s32.totalorder %s27, 1
    %p45 = por %p43, %p44
    %p46 = scmp.ne.s32.totalorder %s35, %s36
    %p47 = scmp.eq.s32.totalorder %s27, 0
    %p48 = por %p46, %p47
    %p49 = scmp.ne.s32.totalorder %s35, %s36
    %p50 = scmp.eq.s32.totalorder %s28, 1
    %p51 = por %p49, %p50
    %p53 = scmp.ne.s32.totalorder %s36, %s52
    %p54 = scmp.eq.s32.totalorder %s28, 0
    %p55 = por %p53, %p54
    %s57 = sadd.s32 %s56, 1
    %p60 = scmp.eq.s32.totalorder %s22, 1
    %p61 = scmp.ne.s32.totalorder %s56, %s58
    %p62 = scmp.eq.s32.totalorder %s22, 0
    %p63 = por %p61, %p62
    %p64 = scmp.ne.s32.totalorder %s56, %s58
    %p65 = scmp.eq.s32.totalorder %s27, 1
    %p66 = por %p64, %p65
    %p67 = scmp.ne.s32.totalorder %s58, %s59
    %p68 = scmp.eq.s32.totalorder %s27, 0
    %p69 = por %p67, %p68
    %p70 = scmp.ne.s32.totalorder %s58, %s59
    %p71 = scmp.eq.s32.totalorder %s28, 1
    %p72 = por %p70, %p71
    %p74 = scmp.ne.s32.totalorder %s59, %s73
    %p75 = scmp.eq.s32.totalorder %s28, 0
    %p76 = por %p74, %p75
    %s78 = sadd.s32 %s77, 1
    %p81 = scmp.eq.s32.totalorder %s22, 1
    %p82 = scmp.ne.s32.totalorder %s77, %s79
    %p83 = scmp.eq.s32.totalorder %s22, 0
    %p84 = por %p82, %p83
    %p85 = scmp.ne.s32.totalorder %s77, %s79
    %p86 = scmp.eq.s32.totalorder %s27, 1
    %p87 = por %p85, %p86
    %p88 = scmp.ne.s32.totalorder %s79, %s80
    %p89 = scmp.eq.s32.totalorder %s27, 0
    %p90 = por %p88, %p89
    %p91 = scmp.ne.s32.totalorder %s79, %s80
    %p92 = scmp.eq.s32.totalorder %s28, 1
    %p93 = por %p91, %p92
    %p95 = scmp.ne.s32.totalorder %s80, %s94
    %p96 = scmp.eq.s32.totalorder %s28, 0
    %p97 = por %p95, %p96
    %s99 = sadd.s32 %s98, 1
    %p102 = scmp.eq.s32.totalorder %s22, 1
    %p103 = scmp.ne.s32.totalorder %s98, %s100
    %p104 = scmp.eq.s32.totalorder %s22, 0
    %p105 = por %p103, %p104
    %p106 = scmp.ne.s32.totalorder %s98, %s100
    %p107 = scmp.eq.s32.totalorder %s27, 1
    %p108 = por %p106, %p107
    %p109 = scmp.ne.s32.totalorder %s100, %s101
    %p110 = scmp.eq.s32.totalorder %s27, 0
    %p111 = por %p109, %p110
    %p112 = scmp.ne.s32.totalorder %s100, %s101
    %p113 = scmp.eq.s32.totalorder %s28, 1
    %p114 = por %p112, %p113
    %p116 = scmp.ne.s32.totalorder %s101, %s115
    %p117 = scmp.eq.s32.totalorder %s28, 0
    %p118 = por %p116, %p117
    %s120 = sadd.s32 %s119, 1
    %p123 = scmp.eq.s32.totalorder %s22, 1
    %p124 = scmp.ne.s32.totalorder %s119, %s121
    %p125 = scmp.eq.s32.totalorder %s22, 0
    %p126 = por %p124, %p125
    %p127 = scmp.ne.s32.totalorder %s119, %s121
    %p128 = scmp.eq.s32.totalorder %s27, 1
    %p129 = por %p127, %p128
    %p130 = scmp.ne.s32.totalorder %s121, %s122
    %p131 = scmp.eq.s32.totalorder %s27, 0
    %p132 = por %p130, %p131
    %p133 = scmp.ne.s32.totalorder %s121, %s122
    %p134 = scmp.eq.s32.totalorder %s28, 1
    %p135 = por %p133, %p134
    %p137 = scmp.ne.s32.totalorder %s122, %s136
    %p138 = scmp.eq.s32.totalorder %s28, 0
    %p139 = por %p137, %p138
    %s141 = sadd.s32 %s140, 1
    %p144 = scmp.eq.s32.totalorder %s22, 1
    %p145 = scmp.ne.s32.totalorder %s140, %s142
    %p146 = scmp.eq.s32.totalorder %s22, 0
    %p147 = por %p145, %p146
    %p148 = scmp.ne.s32.totalorder %s140, %s142
    %p149 = scmp.eq.s32.totalorder %s27, 1
    %p150 = por %p148, %p149
    %p151 = scmp.ne.s32.totalorder %s142, %s143
    %p152 = scmp.eq.s32.totalorder %s27, 0
    %p153 = por %p151, %p152
    %p154 = scmp.ne.s32.totalorder %s142, %s143
    %p155 = scmp.eq.s32.totalorder %s28, 1
    %p156 = por %p154, %p155
    %p158 = scmp.ne.s32.totalorder %s143, %s157
    %p159 = scmp.eq.s32.totalorder %s28, 0
    %p160 = por %p158, %p159
    %s162 = sadd.s32 %s161, 1
    %p165 = scmp.eq.s32.totalorder %s22, 1
    %p166 = scmp.ne.s32.totalorder %s161, %s163
    %p167 = scmp.eq.s32.totalorder %s22, 0
    %p168 = por %p166, %p167
    %p169 = scmp.ne.s32.totalorder %s161, %s163
    %p170 = scmp.eq.s32.totalorder %s27, 1
    %p171 = por %p169, %p170
    %p172 = scmp.ne.s32.totalorder %s163, %s164
    %p173 = scmp.eq.s32.totalorder %s27, 0
    %p174 = por %p172, %p173
    %p175 = scmp.ne.s32.totalorder %s163, %s164
    %p176 = scmp.eq.s32.totalorder %s28, 1
    %p177 = por %p175, %p176
    %p179 = scmp.ne.s32.totalorder %s164, %s178
    %p180 = scmp.eq.s32.totalorder %s28, 0
    %p181 = por %p179, %p180
    %s183 = sadd.s32 %s182, 1
    %p186 = scmp.eq.s32.totalorder %s22, 1
    %p187 = scmp.ne.s32.totalorder %s182, %s184
    %p188 = scmp.eq.s32.totalorder %s22, 0
    %p189 = por %p187, %p188
    %p190 = scmp.ne.s32.totalorder %s182, %s184
    %p191 = scmp.eq.s32.totalorder %s27, 1
    %p192 = por %p190, %p191
    %p193 = scmp.ne.s32.totalorder %s184, %s185
    %p194 = scmp.eq.s32.totalorder %s27, 0
    %p195 = por %p193, %p194
    %p196 = scmp.ne.s32.totalorder %s184, %s185
    %p197 = scmp.eq.s32.totalorder %s28, 1
    %p198 = por %p196, %p197
    %p200 = scmp.ne.s32.totalorder %s185, %s199
    %p201 = scmp.eq.s32.totalorder %s28, 0
    %p202 = por %p200, %p201
    %s204 = sadd.s32 %s203, 1
    %p207 = scmp.eq.s32.totalorder %s22, 1
    %p208 = scmp.ne.s32.totalorder %s203, %s205
    %p209 = scmp.eq.s32.totalorder %s22, 0
    %p210 = por %p208, %p209
    %p211 = scmp.ne.s32.totalorder %s203, %s205
    %p212 = scmp.eq.s32.totalorder %s27, 1
    %p213 = por %p211, %p212
    %p214 = scmp.ne.s32.totalorder %s205, %s206
    %p215 = scmp.eq.s32.totalorder %s27, 0
    %p216 = por %p214, %p215
    %p217 = scmp.ne.s32.totalorder %s205, %s206
    %p218 = scmp.eq.s32.totalorder %s28, 1
    %p219 = por %p217, %p218
    %p221 = scmp.ne.s32.totalorder %s206, %s220
    %p222 = scmp.eq.s32.totalorder %s28, 0
    %p223 = por %p221, %p222
    %s224 = ssub.s32 %s22, %s29
    %p225 = scmp.eq.s32.totalorder %s224, 0
    %s227 = sadd.s32 %s226, 1
    %s228 = scalar_select %p225, %s226, %s227
    %p231 = pneg %p225
    %p232 = scmp.eq.s32.totalorder %s22, 1
    %p233 = por %p231, %p232
    %p234 = scmp.ne.s32.totalorder %s226, %s229
    %p235 = scmp.eq.s32.totalorder %s22, 0
    %p236 = por %p234, %p235
    %p237 = scmp.ne.s32.totalorder %s226, %s229
    %p238 = scmp.eq.s32.totalorder %s27, 1
    %p239 = por %p237, %p238
    %p240 = scmp.ne.s32.totalorder %s229, %s230
    %p241 = scmp.eq.s32.totalorder %s27, 0
    %p242 = por %p240, %p241
    %p243 = scmp.ne.s32.totalorder %s229, %s230
    %p244 = scmp.eq.s32.totalorder %s28, 1
    %p245 = por %p243, %p244
    %p247 = scmp.ne.s32.totalorder %s230, %s246
    %p248 = scmp.eq.s32.totalorder %s28, 0
    %p249 = por %p247, %p248
    %p250 = scmp.le.s32.totalorder 1, %s22
    %p251 = scmp.lt.s32.totalorder %s22, 3
    %p252 = pnand %p250, %p251
    %p253 = pneg %p252
    // Predicated region
    $region9: #{convnet_forward.1} parent=5 // pred_check
      _
    $region10: #{convnet_forward.1} parent=5 // pred_check_branch
      %255 = sbr.rel (%p252) target = $region12
    $region11: #{convnet_forward.1} parent=5 // pred_region
      %s256 = ssub.s32 %s22, 1
      // Predicated region
      $region13: #{convnet_forward.1} parent=11 // pred_check
        %p257 = pneg %p69
      $region14: #{convnet_forward.1} parent=11 // pred_check_branch
        %259 = sbr.rel (%p257) target = $region16
      $region15: #{convnet_forward.1} parent=11 // pred_region
        _
      $region16: #{convnet_forward.1} parent=11 // pred_fallthru
        _
      // Predicated region
      $region17: #{convnet_forward.1} parent=11 // pred_check
        %p260 = pneg %p90
      $region18: #{convnet_forward.1} parent=11 // pred_check_branch
        %262 = sbr.rel (%p260) target = $region20
      $region19: #{convnet_forward.1} parent=11 // pred_region
        _
      $region20: #{convnet_forward.1} parent=11 // pred_fallthru
        _
      // Predicated region
      $region21: #{convnet_forward.1} parent=11 // pred_check
        %p263 = pneg %p111
      $region22: #{convnet_forward.1} parent=11 // pred_check_branch
        %265 = sbr.rel (%p263) target = $region24
      $region23: #{convnet_forward.1} parent=11 // pred_region
        _
      $region24: #{convnet_forward.1} parent=11 // pred_fallthru
        _
      // Predicated region
      $region25: #{convnet_forward.1} parent=11 // pred_check
        %p266 = pneg %p132
      $region26: #{convnet_forward.1} parent=11 // pred_check_branch
        %268 = sbr.rel (%p266) target = $region28
      $region27: #{convnet_forward.1} parent=11 // pred_region
        _
      $region28: #{convnet_forward.1} parent=11 // pred_fallthru
        _
      // Predicated region
      $region29: #{convnet_forward.1} parent=11 // pred_check
        %p269 = pneg %p153
      $region30: #{convnet_forward.1} parent=11 // pred_check_branch
        %271 = sbr.rel (%p269) target = $region32
      $region31: #{convnet_forward.1} parent=11 // pred_region
        _
      $region32: #{convnet_forward.1} parent=11 // pred_fallthru
        _
      // Predicated region
      $region33: #{convnet_forward.1} parent=11 // pred_check
        %p272 = pneg %p174
      $region34: #{convnet_forward.1} parent=11 // pred_check_branch
        %274 = sbr.rel (%p272) target = $region36
      $region35: #{convnet_forward.1} parent=11 // pred_region
        _
      $region36: #{convnet_forward.1} parent=11 // pred_fallthru
        _
      // Predicated region
      $region37: #{convnet_forward.1} parent=11 // pred_check
        %p275 = pneg %p195
      $region38: #{convnet_forward.1} parent=11 // pred_check_branch
        %277 = sbr.rel (%p275) target = $region40
      $region39: #{convnet_forward.1} parent=11 // pred_region
        _
      $region40: #{convnet_forward.1} parent=11 // pred_fallthru
        _
      // Predicated region
      $region41: #{convnet_forward.1} parent=11 // pred_check
        %p278 = pneg %p216
      $region42: #{convnet_forward.1} parent=11 // pred_check_branch
        %280 = sbr.rel (%p278) target = $region44
      $region43: #{convnet_forward.1} parent=11 // pred_region
        _
      $region44: #{convnet_forward.1} parent=11 // pred_fallthru
        _
    $region12: #{convnet_forward.1} parent=5 // pred_fallthru
      _
    %p281 = scmp.lt.s32.totalorder %s22, 2
    // Predicated region
    $region45: #{convnet_forward.1} parent=5 // pred_check
      %p282 = pneg %p281
    $region46: #{convnet_forward.1} parent=5 // pred_check_branch
      %284 = sbr.rel (%p282) target = $region48
    $region47: #{convnet_forward.1} parent=5 // pred_region
      // Predicated region
      $region49: #{convnet_forward.1} parent=47 // pred_check
        %p285 = pneg %p42
      $region50: #{convnet_forward.1} parent=47 // pred_check_branch
        %287 = sbr.rel (%p285) target = $region52
      $region51: #{convnet_forward.1} parent=47 // pred_region
        %p288 = scmp.lt.s32.totalorder %s22, 1
        %s289 = scalar_select %p288, %s22, 1
        %s290 = smul.addr %s289, 2
        %s291 = smul.addr %s290, 4
        %s292 = scalar_lea.vmem %s1, %s291
      $region52: #{convnet_forward.1} parent=47 // pred_fallthru
        _
    $region48: #{convnet_forward.1} parent=5 // pred_fallthru
      _
    %p293 = scmp.le.s32.totalorder 1, %s22
    %p294 = scmp.lt.s32.totalorder %s22, 3
    %p295 = pnand %p293, %p294
    %p296 = pneg %p295
    // Predicated region
    $region53: #{convnet_forward.1} parent=5 // pred_check
      _
    $region54: #{convnet_forward.1} parent=5 // pred_check_branch
      %298 = sbr.rel (%p295) target = $region56
    $region55: #{convnet_forward.1} parent=5 // pred_region
      %s299 = ssub.s32 %s22, 1
      %p300 = scmp.lt.s32.totalorder %s27, 1
      %s301 = scalar_select %p300, %s27, 1
      %s302 = smul.addr %s301, 2
      %s303 = smul.addr %s302, 4
      %s304 = scalar_lea.vmem %s1, %s303
      %p305 = pneg %p48
      %p306 = pneg %p45
      %p307 = pneg %p69
      %p308 = pneg %p66
      %p309 = pneg %p90
      %p310 = pneg %p87
      %p311 = pneg %p111
      %p312 = pneg %p108
      %p313 = pneg %p132
      %p314 = pneg %p129
      %p315 = pneg %p153
      %p316 = pneg %p150
      %p317 = pneg %p174
      %p318 = pneg %p171
      %p319 = pneg %p195
      %p320 = pneg %p192
      %p321 = pneg %p216
      %p322 = pneg %p213
      %p323 = pneg %p242
      %p324 = pneg %p239
      %p325 = scmp.lt.s32.totalorder %s27, 1
      %s326 = scalar_select %p325, %s27, 1
      %s327 = smul.addr %s326, 2
      %s328 = smul.addr %s327, 4
      %s329 = scalar_lea.vmem %s10, %s328
      %p330 = scmp.lt.s32.totalorder %s27, 1
      %s331 = scalar_select %p330, %s27, 1
      %s332 = smul.addr %s331, 2
      %s333 = smul.addr %s332, 4
      %s334 = scalar_lea.vmem %s1, %s333
      %p335 = scmp.lt.s32.totalorder %s27, 1
      %s336 = scalar_select %p335, %s27, 1
      %s337 = smul.addr %s336, 2
      %s338 = smul.addr %s337, 4
      %s339 = scalar_lea.vmem %s10, %s338
      %341 = vst [vmem:[#allocation2] sm:$0xff] 0.0
      %342 = vst [vmem:[#allocation2 + $0x8] sm:$0xff] 0.0
      %vm343 = vcmask 277504
      %344 = vst.msk [vmem:[#allocation2 + $0x10] sm:$0xff] %vm343, 0.0
      %345 = vst [vmem:[#allocation2 + $0x18] sm:$0xff] 0.0
      %346 = vst [vmem:[#allocation2 + $0x20] sm:$0xff] 0.0
      %347 = vst.msk [vmem:[#allocation2 + $0x28] sm:$0xff] %vm343, 0.0
      %348 = vst [vmem:[#allocation2 + $0x30] sm:$0xff] 0.0
      %349 = vst [vmem:[#allocation2 + $0x38] sm:$0xff] 0.0
      %350 = vst.msk [vmem:[#allocation2 + $0x40] sm:$0xff] %vm343, 0.0
      %351 = vst [vmem:[#allocation2 + $0x48] sm:$0xff] 0.0
      %352 = vst [vmem:[#allocation2 + $0x50] sm:$0xff] 0.0
      %353 = vst.msk [vmem:[#allocation2 + $0x58] sm:$0xff] %vm343, 0.0
      %354 = vst [vmem:[#allocation2 + $0x60] sm:$0xff] 0.0
      %355 = vst [vmem:[#allocation2 + $0x68] sm:$0xff] 0.0
      %356 = vst.msk [vmem:[#allocation2 + $0x70] sm:$0xff] %vm343, 0.0
      %357 = vst [vmem:[#allocation2 + $0x78] sm:$0xff] 0.0
      %358 = vst [vmem:[#allocation2 + $0x80] sm:$0xff] 0.0
      %359 = vst.msk [vmem:[#allocation2 + $0x88] sm:$0xff] %vm343, 0.0
      %360 = vst [vmem:[#allocation2 + $0x90] sm:$0xff] 0.0
      %361 = vst [vmem:[#allocation2 + $0x98] sm:$0xff] 0.0
      %362 = vst.msk [vmem:[#allocation2 + $0xa0] sm:$0xff] %vm343, 0.0
      %363 = vst [vmem:[#allocation2 + $0xa8] sm:$0xff] 0.0
      %364 = vst [vmem:[#allocation2 + $0xb0] sm:$0xff] 0.0
      %365 = vst.msk [vmem:[#allocation2 + $0xb8] sm:$0xff] %vm343, 0.0
      %366 = vst [vmem:[#allocation2 + $0xc0] sm:$0xff] 0.0
      %367 = vst [vmem:[#allocation2 + $0xc8] sm:$0xff] 0.0
      %368 = vst.msk [vmem:[#allocation2 + $0xd0] sm:$0xff] %vm343, 0.0
      %369 = vst [vmem:[#allocation2 + $0xd8] sm:$0xff] 0.0
      %370 = vst [vmem:[#allocation2 + $0xe0] sm:$0xff] 0.0
      %371 = vst.msk [vmem:[#allocation2 + $0xe8] sm:$0xff] %vm343, 0.0
      %372 = vst [vmem:[#allocation2 + $0xf0] sm:$0xff] 0.0
      %373 = vst [vmem:[#allocation2 + $0xf8] sm:$0xff] 0.0
      %374 = vst.msk [vmem:[#allocation2 + $0x100] sm:$0xff] %vm343, 0.0
      %375 = vst [vmem:[#allocation2 + $0x108] sm:$0xff] 0.0
      %376 = vst [vmem:[#allocation2 + $0x110] sm:$0xff] 0.0
      %377 = vst.msk [vmem:[#allocation2 + $0x118] sm:$0xff] %vm343, 0.0
      %378 = vst [vmem:[#allocation2 + $0x120] sm:$0xff] 0.0
      %379 = vst [vmem:[#allocation2 + $0x128] sm:$0xff] 0.0
      %380 = vst.msk [vmem:[#allocation2 + $0x130] sm:$0xff] %vm343, 0.0
      %381 = vst [vmem:[#allocation2 + $0x138] sm:$0xff] 0.0
      %382 = vst [vmem:[#allocation2 + $0x140] sm:$0xff] 0.0
      %383 = vst.msk [vmem:[#allocation2 + $0x148] sm:$0xff] %vm343, 0.0
      %384 = vst [vmem:[#allocation2 + $0x150] sm:$0xff] 0.0
      %385 = vst [vmem:[#allocation2 + $0x158] sm:$0xff] 0.0
      %386 = vst.msk [vmem:[#allocation2 + $0x160] sm:$0xff] %vm343, 0.0
      %387 = vst [vmem:[#allocation2 + $0x168] sm:$0xff] 0.0
      %388 = vst [vmem:[#allocation2 + $0x170] sm:$0xff] 0.0
      %389 = vst.msk [vmem:[#allocation2 + $0x178] sm:$0xff] %vm343, 0.0
      %v390 = vlaneseq
      %v391 = vand.u32 %v390, 127
      %v392 = vadd.s32 %v391, 128
      %vm393 = vcmp.lt.s32.totalorder %v391, 0
      %v394 = vsub.s32 0, %v391
      %v395 = vsel %vm393, %v394, %v391
      %v396 = vshrl.u32 %v395, 4
      %v397 = vand.u32 %v395, 15
      %v398 = vsub.s32 0, %v397
      %v399 = vsel %vm393, %v398, %v397
      %vm400 = vcmp.lt.s32.totalorder %v392, 0
      %v401 = vsub.s32 0, %v392
      %v402 = vsel %vm400, %v401, %v392
      %v403 = vshrl.u32 %v402, 4
      %v404 = vand.u32 %v402, 15
      %v405 = vsub.s32 0, %v404
      %v406 = vsel %vm400, %v405, %v404
      %vm407 = vcmp.ne.s32.totalorder %v399, 0
      %vm408 = vcmp.ne.s32.totalorder %v406, 0
      %vm409 = vcmp.lt.s32.totalorder %v399, 0
      %vm410 = vcmp.lt.s32.totalorder %v406, 0
      %vm411 = vmand %vm409, %vm407
      %vm412 = vmand %vm410, %vm408
      %v413 = vadd.s32 %v399, 16
      %v414 = vadd.s32 %v406, 16
      %v415 = vsel %vm411, %v413, %v399
      %v416 = vsel %vm412, %v414, %v406
      %vm417 = vcmp.gt.s32.totalorder %v415, 0
      %vm418 = vcmp.gt.s32.totalorder %v416, 0
      %vm419 = vcmp.lt.s32.totalorder %v415, 15
      %vm420 = vcmp.lt.s32.totalorder %v416, 15
      %s421 = sld [smem:[#allocation5 + %s27]]
      %s422 = scvt.s32.f32 %s421
      %v423 = vrcp.pop 1000.0
      %s424 = vtos %v423
      %s425 = smul.f32 %s422, %s424
      %v426 = vld [vmem:[%s334] sm:$0x77]
      %v428 = vcombine.high %v426, %v426
      %429 = vrot.lane.b32.xlu0 %v426, 17
      %v430 = vpop.permute.xlu0 %429
      %431 = vrot.lane.b32.xlu0 %v428, 17
      %v432 = vpop.permute.xlu0 %431
      %vm433 = vcmask 138240
      %v434 = vsel %vm433, %v430, %v432
      %vm438 = vcmask 1042568
      %439 = vst.msk [vmem:[#allocation2] sm:$0x7] %vm438, %v430
      %440 = vst [vmem:[#allocation2 + $0x8] sm:$0x7] %v434
      %vm441 = vcmask 133120
      %442 = vst.msk [vmem:[#allocation2 + $0x10] sm:$0x7] %vm441, %v432
      %v443 = vstv %s425
      %v444 = vlaneseq
      %vm445 = vcmp.ge.s32.totalorder %v444, 17
      %vm446 = vcmp.lt.s32.totalorder %v444, 273
      %vm447 = vmand %vm445, %vm446
      %s448 = scalar_lea.vmem [#allocation2], 3
      %449 = vst.msk [vmem:[%s448] ss:$8 sm:$0x7] %vm447, %v443
      %450 = vst.msk [vmem:[%s448] ss:$8 sm:$0x0] %vm447, %v443
      %v451 = vld [vmem:[#allocation2] sm:$0xf]
      %v452 = vld [vmem:[#allocation2 + $0x8] sm:$0xf]
      %v453 = vsel %vm417, 1, 0
      %v454 = vsel %vm418, 1, 0
      %vm455 = vcmp.eq.s32.totalorder %v453, 1
      %vm456 = vcmp.eq.s32.totalorder %v454, 1
      %v457 = vsel %vm455, %v451, 0.0
      %v458 = vsel %vm456, %v452, 0.0
      %459 = vst [vmem:[#allocation3] sm:$0xf] %v457
      %460 = vst [vmem:[#allocation3 + $0x8] sm:$0xf] %v458
      %v461 = vld [vmem:[#allocation2] sm:$0xf]
      %v462 = vld [vmem:[#allocation2 + $0x8] sm:$0xf]
      %v463 = vld [vmem:[#allocation2 + $0x10] sm:$0xf]
      %v467 = vrot.slane %v461, 4
      %v468 = vrot.slane %v462, 4
      %v469 = vrot.slane %v463, 4
      %470 = vrot.lane.b32.xlu0 %v467, 127
      %v471 = vpop.permute.xlu0 %470
      %472 = vrot.lane.b32.xlu0 %v468, 127
      %v473 = vpop.permute.xlu0 %472
      %474 = vrot.lane.b32.xlu0 %v469, 127
      %v475 = vpop.permute.xlu0 %474
      %vm476 = vcmask 1039360
      %v477 = vsel %vm476, %v471, %v473
      %v478 = vsel %vm476, %v473, %v475
      %481 = vst [vmem:[#allocation3] sm:$0xf0] %v477
      %482 = vst [vmem:[#allocation3 + $0x8] sm:$0xf0] %v478
      %v483 = vld [vmem:[#allocation2] sm:$0xf]
      %v484 = vld [vmem:[#allocation2 + $0x8] sm:$0xf]
      %v485 = vld [vmem:[#allocation2 + $0x10] sm:$0xf]
      %v486 = vsel %vm419, 1, 0
      %v487 = vsel %vm420, 1, 0
      %vm488 = vcmp.eq.s32.totalorder %v486, 1
      %vm489 = vcmp.eq.s32.totalorder %v487, 1
      %493 = vrot.lane.b32.xlu0 %v483, 126
      %v494 = vpop.permute.xlu0 %493
      %495 = vrot.lane.b32.xlu0 %v484, 126
      %v496 = vpop.permute.xlu0 %495
      %497 = vrot.lane.b32.xlu0 %v485, 126
      %v498 = vpop.permute.xlu0 %497
      %vm499 = vcmask 1031168
      %v500 = vsel %vm499, %v494, %v496
      %v501 = vsel %vm499, %v496, %v498
      %v504 = vsel %vm488, %v500, 0.0
      %v505 = vsel %vm489, %v501, 0.0
      %506 = vst [vmem:[#allocation3 + $0x10] sm:$0xf] %v504
      %507 = vst [vmem:[#allocation3 + $0x18] sm:$0xf] %v505
      %v508 = vld [vmem:[#allocation2] sm:$0xf]
      %v509 = vld [vmem:[#allocation2 + $0x8] sm:$0xf]
      %v510 = vld [vmem:[#allocation2 + $0x10] sm:$0xf]
      %514 = vrot.lane.b32.xlu0 %v508, 112
      %v515 = vpop.permute.xlu0 %514
      %516 = vrot.lane.b32.xlu0 %v509, 112
      %v517 = vpop.permute.xlu0 %516
      %518 = vrot.lane.b32.xlu0 %v510, 112
      %v519 = vpop.permute.xlu0 %518
      %vm520 = vcmask 916480
      %v521 = vsel %vm520, %v515, %v517
      %v522 = vsel %vm520, %v517, %v519
      %v525 = vsel %vm455, %v521, 0.0
      %v526 = vsel %vm456, %v522, 0.0
      %v529 = vrot.slane %v525, 4
      %v530 = vrot.slane %v526, 4
      %533 = vst [vmem:[#allocation3 + $0x10] sm:$0xf0] %v529
      %534 = vst [vmem:[#allocation3 + $0x18] sm:$0xf0] %v530
      %v535 = vld [vmem:[#allocation2] sm:$0xf]
      %v536 = vld [vmem:[#allocation2 + $0x8] sm:$0xf]
      %v537 = vld [vmem:[#allocation2 + $0x10] sm:$0xf]
      %541 = vrot.lane.b32.xlu0 %v535, 111
      %v542 = vpop.permute.xlu0 %541
      %543 = vrot.lane.b32.xlu0 %v536, 111
      %v544 = vpop.permute.xlu0 %543
      %545 = vrot.lane.b32.xlu0 %v537, 111
      %v546 = vpop.permute.xlu0 %545
      %vm547 = vcmask 908288
      %v548 = vsel %vm547, %v542, %v544
      %v549 = vsel %vm547, %v544, %v546
      %552 = vst [vmem:[#allocation3 + $0x20] sm:$0xf] %v548
      %553 = vst [vmem:[#allocation3 + $0x28] sm:$0xf] %v549
      %v554 = vld [vmem:[#allocation2] sm:$0xf]
      %v555 = vld [vmem:[#allocation2 + $0x8] sm:$0xf]
      %v556 = vld [vmem:[#allocation2 + $0x10] sm:$0xf]
      %560 = vrot.lane.b32.xlu0 %v554, 110
      %v561 = vpop.permute.xlu0 %560
      %562 = vrot.lane.b32.xlu0 %v555, 110
      %v563 = vpop.permute.xlu0 %562
      %564 = vrot.lane.b32.xlu0 %v556, 110
      %v565 = vpop.permute.xlu0 %564
      %vm566 = vcmask 900096
      %v567 = vsel %vm566, %v561, %v563
      %v568 = vsel %vm566, %v563, %v565
      %v571 = vsel %vm488, %v567, 0.0
      %v572 = vsel %vm489, %v568, 0.0
      %v575 = vrot.slane %v571, 4
      %v576 = vrot.slane %v572, 4
      %579 = vst [vmem:[#allocation3 + $0x20] sm:$0xf0] %v575
      %580 = vst [vmem:[#allocation3 + $0x28] sm:$0xf0] %v576
      %v581 = vld [vmem:[#allocation2] sm:$0xf]
      %v582 = vld [vmem:[#allocation2 + $0x8] sm:$0xf]
      %v583 = vld [vmem:[#allocation2 + $0x10] sm:$0xf]
      %587 = vrot.lane.b32.xlu0 %v581, 96
      %v588 = vpop.permute.xlu0 %587
      %589 = vrot.lane.b32.xlu0 %v582, 96
      %v590 = vpop.permute.xlu0 %589
      %591 = vrot.lane.b32.xlu0 %v583, 96
      %v592 = vpop.permute.xlu0 %591
      %vm593 = vcmask 785408
      %v594 = vsel %vm593, %v588, %v590
      %v595 = vsel %vm593, %v590, %v592
      %v598 = vsel %vm455, %v594, 0.0
      %v599 = vsel %vm456, %v595, 0.0
      %600 = vst [vmem:[#allocation3 + $0x30] sm:$0xf] %v598
      %601 = vst [vmem:[#allocation3 + $0x38] sm:$0xf] %v599
      %v602 = vld [vmem:[#allocation2] sm:$0xf]
      %v603 = vld [vmem:[#allocation2 + $0x8] sm:$0xf]
      %v604 = vld [vmem:[#allocation2 + $0x10] sm:$0xf]
      %v608 = vrot.slane %v602, 4
      %v609 = vrot.slane %v603, 4
      %v610 = vrot.slane %v604, 4
      %611 = vrot.lane.b32.xlu0 %v608, 95
      %v612 = vpop.permute.xlu0 %611
      %613 = vrot.lane.b32.xlu0 %v609, 95
      %v614 = vpop.permute.xlu0 %613
      %615 = vrot.lane.b32.xlu0 %v610, 95
      %v616 = vpop.permute.xlu0 %615
      %vm617 = vcmask 777216
      %v618 = vsel %vm617, %v612, %v614
      %v619 = vsel %vm617, %v614, %v616
      %622 = vst [vmem:[#allocation3 + $0x30] sm:$0xf0] %v618
      %623 = vst [vmem:[#allocation3 + $0x38] sm:$0xf0] %v619
      %v624 = vld [vmem:[#allocation2] sm:$0xf]
      %v625 = vld [vmem:[#allocation2 + $0x8] sm:$0xf]
      %v626 = vld [vmem:[#allocation2 + $0x10] sm:$0xf]
      %630 = vrot.lane.b32.xlu0 %v624, 94
      %v631 = vpop.permute.xlu0 %630
      %632 = vrot.lane.b32.xlu0 %v625, 94
      %v633 = vpop.permute.xlu0 %632
      %634 = vrot.lane.b32.xlu0 %v626, 94
      %v635 = vpop.permute.xlu0 %634
      %vm636 = vcmask 769024
      %v637 = vsel %vm636, %v631, %v633
      %v638 = vsel %vm636, %v633, %v635
      %v641 = vsel %vm488, %v637, 0.0
      %v642 = vsel %vm489, %v638, 0.0
      %643 = vst [vmem:[#allocation3 + $0x40] sm:$0xf] %v641
      %644 = vst [vmem:[#allocation3 + $0x48] sm:$0xf] %v642
      %v645 = vld [vmem:[#allocation3] sm:$0xff]
      %v646 = vld [vmem:[#allocation3 + $0x8] sm:$0xff]
      %v647 = vld [vmem:[#allocation3 + $0x10] sm:$0xff]
      %v648 = vld [vmem:[#allocation3 + $0x18] sm:$0xff]
      %v649 = vld [vmem:[#allocation3 + $0x20] sm:$0xff]
      %v650 = vld [vmem:[#allocation3 + $0x28] sm:$0xff]
      %v651 = vld [vmem:[#allocation3 + $0x30] sm:$0xff]
      %v652 = vld [vmem:[#allocation3 + $0x38] sm:$0xff]
      %v653 = vld [vmem:[#allocation3 + $0x40] sm:$0xf]
      %v654 = vld [vmem:[#allocation3 + $0x48] sm:$0xf]
      %v655 = vpack.c.bf16 %v647, %v645
      %v656 = vpack.c.bf16 %v648, %v646
      %v657 = vpack.c.bf16 %v651, %v649
      %v658 = vpack.c.bf16 %v652, %v650
      %v659 = vpack.c.bf16 %v653, %v653
      %v660 = vpack.c.bf16 %v654, %v654
      %v661 = vld [vmem:[%s2] sm:$0xf]
      %v662 = vld [vmem:[%s2 + $0x4] sm:$0xf]
      %v663 = vld [vmem:[%s2 + $0x8] sm:$0xf]
      %v664 = vld [vmem:[%s2 + $0xc] sm:$0xf]
      %v665 = vld [vmem:[%s2 + $0x10] sm:$0xf]
      %v666 = vld [vmem:[%s2 + $0x14] sm:$0xf]
      %v667 = vld [vmem:[%s2 + $0x18] sm:$0xf]
      %v668 = vld [vmem:[%s2 + $0x1c] sm:$0xf]
      %v669 = vld [vmem:[%s3] sm:$0xff]
      %v670 = vld [vmem:[%s3 + $0x8] sm:$0xff]
      %v671 = vld [vmem:[%s3 + $0x10] sm:$0xff]
      %v672 = vld [vmem:[%s3 + $0x18] sm:$0xff]
      %v673 = vld [vmem:[%s3 + $0x20] sm:$0xff]
      %v674 = vld [vmem:[%s3 + $0x28] sm:$0xff]
      %v675 = vld [vmem:[%s3 + $0x30] sm:$0xff]
      %v676 = vld [vmem:[%s3 + $0x38] sm:$0xff]
      %678 = vset.pattern.permute.xlu0 0
      %679 = vperm.xlu0 %678, %v669
      %v680 = vpop.permute.xlu0 %679
      %683 = vset.pattern.permute.xlu0 0
      %684 = vperm.xlu0 %683, %v670
      %v685 = vpop.permute.xlu0 %684
      %688 = vset.pattern.permute.xlu0 0
      %689 = vperm.xlu0 %688, %v671
      %v690 = vpop.permute.xlu0 %689
      %693 = vset.pattern.permute.xlu0 0
      %694 = vperm.xlu0 %693, %v672
      %v695 = vpop.permute.xlu0 %694
      %698 = vset.pattern.permute.xlu0 0
      %699 = vperm.xlu0 %698, %v673
      %v700 = vpop.permute.xlu0 %699
      %703 = vset.pattern.permute.xlu0 0
      %704 = vperm.xlu0 %703, %v674
      %v705 = vpop.permute.xlu0 %704
      %708 = vset.pattern.permute.xlu0 0
      %709 = vperm.xlu0 %708, %v675
      %v710 = vpop.permute.xlu0 %709
      %713 = vset.pattern.permute.xlu0 0
      %714 = vperm.xlu0 %713, %v676
      %v715 = vpop.permute.xlu0 %714
      %v725 = vunpack.c.l.b16 %v661
      %v726 = vunpack.c.l.b16 %v662
      %v727 = vunpack.c.l.b16 %v663
      %v728 = vunpack.c.l.b16 %v664
      %v729 = vunpack.c.l.b16 %v665
      %v730 = vunpack.c.l.b16 %v666
      %v731 = vunpack.c.l.b16 %v667
      %v732 = vunpack.c.l.b16 %v668
      %v733 = vpack.c.b16 %v726, %v725
      %v734 = vpack.c.b16 %v728, %v727
      %v735 = vpack.c.b16 %v730, %v729
      %v736 = vpack.c.b16 %v732, %v731
      %vm737 = vcmask 293888
      %v739 = vsel %vm737, %v733, 0
      %v742 = vsel %vm737, %v734, 0
      %v745 = vsel %vm737, %v735, 0
      %v748 = vsel %vm737, %v736, 0
      %vm750 = vcmask 1041408
      %v752 = vsel %vm750, %v659, 0
      %v755 = vsel %vm750, %v660, 0
      %757 = vmatprep.subr.bf16.mxu0 %v656
      %758 = vmatpush1.bf16.msra.mxu0 %v655
      %759 = vmatprep.subr.bf16.mxu0 %v658
      %760 = vmatpush1.bf16.msra.mxu0 %v657
      %761 = vmatprep.subr.bf16.mxu0 %v755
      %762 = vmatpush1.bf16.msra.mxu0 %v752
      %763 = vmatprep.subr.bf16.mxu0 0
      %764 = vmatpush1.bf16.msra.mxu0 0
      %765 = vmatprep.subr.bf16.mxu0 0
      %766 = vmatpush1.bf16.msra.mxu0 0
      %767 = vmatprep.subr.bf16.mxu0 0
      %768 = vmatpush1.bf16.msra.mxu0 0
      %769 = vmatprep.subr.bf16.mxu0 0
      %770 = vmatpush1.bf16.msra.mxu0 0
      %771 = vmatprep.subr.bf16.mxu0 0
      %772 = vmatpush1.bf16.msra.mxu0 0
      %773 = vmatprep.subr.bf16.mxu0 0
      %774 = vmatpush1.bf16.msra.mxu0 0
      %775 = vmatprep.subr.bf16.mxu0 0
      %776 = vmatpush1.bf16.msra.mxu0 0
      %777 = vmatprep.subr.bf16.mxu0 0
      %778 = vmatpush1.bf16.msra.mxu0 0
      %779 = vmatprep.subr.bf16.mxu0 0
      %780 = vmatpush1.bf16.msra.mxu0 0
      %781 = vmatprep.subr.bf16.mxu0 0
      %782 = vmatpush1.bf16.msra.mxu0 0
      %783 = vmatprep.subr.bf16.mxu0 0
      %784 = vmatpush1.bf16.msra.mxu0 0
      %785 = vmatprep.subr.bf16.mxu0 0
      %786 = vmatpush1.bf16.msra.mxu0 0
      %787 = vmatprep.subr.bf16.mxu0 0
      %788 = vmatpush1.bf16.msra.mxu0 0
      %789 = vmatprep.mubr.bf16.mxu0 0
      %790 = vmatmul.mubr.bf16.gmra.mrb[0].mxu0 %v739
      %v791 = vpop.f32.mrb[0].mxu0
      %v792 = vadd.f32 %v680, %v791
      %v793 = vpop.f32.mrb[0].mxu0
      %v794 = vadd.f32 %v680, %v793
      %v795 = vpop.f32.mrb[0].mxu0
      %v796 = vadd.f32 %v685, %v795
      %v797 = vpop.f32.mrb[0].mxu0
      %v798 = vadd.f32 %v685, %v797
      %799 = vmatprep.mubr.bf16.mxu0 0
      %800 = vmatmul.mubr.bf16.gmra.mrb[0].mxu0 %v742
      %v801 = vpop.f32.mrb[0].mxu0
      %v802 = vadd.f32 %v690, %v801
      %v803 = vpop.f32.mrb[0].mxu0
      %v804 = vadd.f32 %v690, %v803
      %v805 = vpop.f32.mrb[0].mxu0
      %v806 = vadd.f32 %v695, %v805
      %v807 = vpop.f32.mrb[0].mxu0
      %v808 = vadd.f32 %v695, %v807
      %809 = vmatprep.mubr.bf16.mxu0 0
      %810 = vmatmul.mubr.bf16.gmra.mrb[0].mxu0 %v745
      %v811 = vpop.f32.mrb[0].mxu0
      %v812 = vadd.f32 %v700, %v811
      %v813 = vpop.f32.mrb[0].mxu0
      %v814 = vadd.f32 %v700, %v813
      %v815 = vpop.f32.mrb[0].mxu0
      %v816 = vadd.f32 %v705, %v815
      %v817 = vpop.f32.mrb[0].mxu0
      %v818 = vadd.f32 %v705, %v817
      %819 = vmatprep.mubr.bf16.mxu0 0
      %820 = vmatmul.mubr.bf16.gmra.mrb[0].mxu0 %v748
      %v821 = vpop.f32.mrb[0].mxu0
      %v822 = vadd.f32 %v710, %v821
      %v823 = vpop.f32.mrb[0].mxu0
      %v824 = vadd.f32 %v710, %v823
      %v825 = vpop.f32.mrb[0].mxu0
      %v826 = vadd.f32 %v715, %v825
      %v827 = vpop.f32.mrb[0].mxu0
      %v828 = vadd.f32 %v715, %v827
      %829 = vdwg.mxu0
      %v830 = vmax.f32 %v792, 0.0
      %v831 = vmax.f32 %v794, 0.0
      %v832 = vmax.f32 %v796, 0.0
      %v833 = vmax.f32 %v798, 0.0
      %v834 = vmax.f32 %v802, 0.0
      %v835 = vmax.f32 %v804, 0.0
      %v836 = vmax.f32 %v806, 0.0
      %v837 = vmax.f32 %v808, 0.0
      %v838 = vmax.f32 %v812, 0.0
      %v839 = vmax.f32 %v814, 0.0
      %v840 = vmax.f32 %v816, 0.0
      %v841 = vmax.f32 %v818, 0.0
      %v842 = vmax.f32 %v822, 0.0
      %v843 = vmax.f32 %v824, 0.0
      %v844 = vmax.f32 %v826, 0.0
      %v845 = vmax.f32 %v828, 0.0
      %862 = vrot.lane.b32.xlu0 %v830, 17
      %v863 = vpop.permute.xlu0 %862
      %864 = vrot.lane.b32.xlu0 %v831, 17
      %v865 = vpop.permute.xlu0 %864
      %866 = vrot.lane.b32.xlu0 %v832, 17
      %v867 = vpop.permute.xlu0 %866
      %868 = vrot.lane.b32.xlu0 %v833, 17
      %v869 = vpop.permute.xlu0 %868
      %870 = vrot.lane.b32.xlu0 %v834, 17
      %v871 = vpop.permute.xlu0 %870
      %872 = vrot.lane.b32.xlu0 %v835, 17
      %v873 = vpop.permute.xlu0 %872
      %874 = vrot.lane.b32.xlu0 %v836, 17
      %v875 = vpop.permute.xlu0 %874
      %876 = vrot.lane.b32.xlu0 %v837, 17
      %v877 = vpop.permute.xlu0 %876
      %878 = vrot.lane.b32.xlu0 %v838, 17
      %v879 = vpop.permute.xlu0 %878
      %880 = vrot.lane.b32.xlu0 %v839, 17
      %v881 = vpop.permute.xlu0 %880
      %882 = vrot.lane.b32.xlu0 %v840, 17
      %v883 = vpop.permute.xlu0 %882
      %884 = vrot.lane.b32.xlu0 %v841, 17
      %v885 = vpop.permute.xlu0 %884
      %886 = vrot.lane.b32.xlu0 %v842, 17
      %v887 = vpop.permute.xlu0 %886
      %888 = vrot.lane.b32.xlu0 %v843, 17
      %v889 = vpop.permute.xlu0 %888
      %890 = vrot.lane.b32.xlu0 %v844, 17
      %v891 = vpop.permute.xlu0 %890
      %892 = vrot.lane.b32.xlu0 %v845, 17
      %v893 = vpop.permute.xlu0 %892
      %v894 = vsel %vm433, %v863, %v865
      %v895 = vsel %vm433, %v867, %v869
      %v896 = vsel %vm433, %v871, %v873
      %v897 = vsel %vm433, %v875, %v877
      %v898 = vsel %vm433, %v879, %v881
      %v899 = vsel %vm433, %v883, %v885
      %v900 = vsel %vm433, %v887, %v889
      %v901 = vsel %vm433, %v891, %v893
      %vm926 = vcmask 1047688
      %927 = vst.msk [vmem:[#allocation2] sm:$0xff] %vm926, %v863
      %928 = vst [vmem:[#allocation2 + $0x8] sm:$0xff] %v894
      %929 = vst.msk [vmem:[#allocation2 + $0x10] sm:$0xff] %vm433, %v865
      %930 = vst.msk [vmem:[#allocation2 + $0x18] sm:$0xff] %vm926, %v867
      %931 = vst [vmem:[#allocation2 + $0x20] sm:$0xff] %v895
      %932 = vst.msk [vmem:[#allocation2 + $0x28] sm:$0xff] %vm433, %v869
      %933 = vst.msk [vmem:[#allocation2 + $0x30] sm:$0xff] %vm926, %v871
      %934 = vst [vmem:[#allocation2 + $0x38] sm:$0xff] %v896
      %935 = vst.msk [vmem:[#allocation2 + $0x40] sm:$0xff] %vm433, %v873
      %936 = vst.msk [vmem:[#allocation2 + $0x48] sm:$0xff] %vm926, %v875
      %937 = vst [vmem:[#allocation2 + $0x50] sm:$0xff] %v897
      %938 = vst.msk [vmem:[#allocation2 + $0x58] sm:$0xff] %vm433, %v877
      %939 = vst.msk [vmem:[#allocation2 + $0x60] sm:$0xff] %vm926, %v879
      %940 = vst [vmem:[#allocation2 + $0x68] sm:$0xff] %v898
      %941 = vst.msk [vmem:[#allocation2 + $0x70] sm:$0xff] %vm433, %v881
      %942 = vst.msk [vmem:[#allocation2 + $0x78] sm:$0xff] %vm926, %v883
      %943 = vst [vmem:[#allocation2 + $0x80] sm:$0xff] %v899
      %944 = vst.msk [vmem:[#allocation2 + $0x88] sm:$0xff] %vm433, %v885
      %945 = vst.msk [vmem:[#allocation2 + $0x90] sm:$0xff] %vm926, %v887
      %946 = vst [vmem:[#allocation2 + $0x98] sm:$0xff] %v900
      %947 = vst.msk [vmem:[#allocation2 + $0xa0] sm:$0xff] %vm433, %v889
      %948 = vst.msk [vmem:[#allocation2 + $0xa8] sm:$0xff] %vm926, %v891
      %949 = vst [vmem:[#allocation2 + $0xb0] sm:$0xff] %v901
      %950 = vst.msk [vmem:[#allocation2 + $0xb8] sm:$0xff] %vm433, %v893
      %v951 = vld [vmem:[#allocation2] sm:$0xff]
      %v952 = vld [vmem:[#allocation2 + $0x8] sm:$0xff]
      %v953 = vld [vmem:[#allocation2 + $0x18] sm:$0xff]
      %v954 = vld [vmem:[#allocation2 + $0x20] sm:$0xff]
      %v955 = vld [vmem:[#allocation2 + $0x30] sm:$0xff]
      %v956 = vld [vmem:[#allocation2 + $0x38] sm:$0xff]
      %v957 = vld [vmem:[#allocation2 + $0x48] sm:$0xff]
      %v958 = vld [vmem:[#allocation2 + $0x50] sm:$0xff]
      %v959 = vld [vmem:[#allocation2 + $0x60] sm:$0xff]
      %v960 = vld [vmem:[#allocation2 + $0x68] sm:$0xff]
      %v961 = vld [vmem:[#allocation2 + $0x78] sm:$0xff]
      %v962 = vld [vmem:[#allocation2 + $0x80] sm:$0xff]
      %v963 = vld [vmem:[#allocation2 + $0x90] sm:$0xff]
      %v964 = vld [vmem:[#allocation2 + $0x98] sm:$0xff]
      %v965 = vld [vmem:[#allocation2 + $0xa8] sm:$0xff]
      %v966 = vld [vmem:[#allocation2 + $0xb0] sm:$0xff]
      %v967 = vsel %vm455, %v951, 0.0
      %v968 = vsel %vm456, %v952, 0.0
      %v969 = vsel %vm455, %v953, 0.0
      %v970 = vsel %vm456, %v954, 0.0
      %v971 = vsel %vm455, %v955, 0.0
      %v972 = vsel %vm456, %v956, 0.0
      %v973 = vsel %vm455, %v957, 0.0
      %v974 = vsel %vm456, %v958, 0.0
      %v975 = vsel %vm455, %v959, 0.0
      %v976 = vsel %vm456, %v960, 0.0
      %v977 = vsel %vm455, %v961, 0.0
      %v978 = vsel %vm456, %v962, 0.0
      %v979 = vsel %vm455, %v963, 0.0
      %v980 = vsel %vm456, %v964, 0.0
      %v981 = vsel %vm455, %v965, 0.0
      %v982 = vsel %vm456, %v966, 0.0
      %983 = vst [vmem:[#allocation3] sm:$0xff] %v967
      %984 = vst [vmem:[#allocation3 + $0x8] sm:$0xff] %v968
      %985 = vst [vmem:[#allocation3 + $0x10] sm:$0xff] %v969
      %986 = vst [vmem:[#allocation3 + $0x18] sm:$0xff] %v970
      %987 = vst [vmem:[#allocation3 + $0x20] sm:$0xff] %v971
      %988 = vst [vmem:[#allocation3 + $0x28] sm:$0xff] %v972
      %989 = vst [vmem:[#allocation3 + $0x30] sm:$0xff] %v973
      %990 = vst [vmem:[#allocation3 + $0x38] sm:$0xff] %v974
      %991 = vst [vmem:[#allocation3 + $0x40] sm:$0xff] %v975
      %992 = vst [vmem:[#allocation3 + $0x48] sm:$0xff] %v976
      %993 = vst [vmem:[#allocation3 + $0x50] sm:$0xff] %v977
      %994 = vst [vmem:[#allocation3 + $0x58] sm:$0xff] %v978
      %995 = vst [vmem:[#allocation3 + $0x60] sm:$0xff] %v979
      %996 = vst [vmem:[#allocation3 + $0x68] sm:$0xff] %v980
      %997 = vst [vmem:[#allocation3 + $0x70] sm:$0xff] %v981
      %998 = vst [vmem:[#allocation3 + $0x78] sm:$0xff] %v982
      %v999 = vld [vmem:[#allocation2] sm:$0xff]
      %v1000 = vld [vmem:[#allocation2 + $0x8] sm:$0xff]
      %v1001 = vld [vmem:[#allocation2 + $0x10] sm:$0xff]
      %v1002 = vld [vmem:[#allocation2 + $0x18] sm:$0xff]
      %v1003 = vld [vmem:[#allocation2 + $0x20] sm:$0xff]
      %v1004 = vld [vmem:[#allocation2 + $0x28] sm:$0xff]
      %v1005 = vld [vmem:[#allocation2 + $0x30] sm:$0xff]
      %v1006 = vld [vmem:[#allocation2 + $0x38] sm:$0xff]
      %v1007 = vld [vmem:[#allocation2 + $0x40] sm:$0xff]
      %v1008 = vld [vmem:[#allocation2 + $0x48] sm:$0xff]
      %v1009 = vld [vmem:[#allocation2 + $0x50] sm:$0xff]
      %v1010 = vld [vmem:[#allocation2 + $0x58] sm:$0xff]
      %v1011 = vld [vmem:[#allocation2 + $0x60] sm:$0xff]
      %v1012 = vld [vmem:[#allocation2 + $0x68] sm:$0xff]
      %v1013 = vld [vmem:[#allocation2 + $0x70] sm:$0xff]
      %v1014 = vld [vmem:[#allocation2 + $0x78] sm:$0xff]
      %v1015 = vld [vmem:[#allocation2 + $0x80] sm:$0xff]
      %v1016 = vld [vmem:[#allocation2 + $0x88] sm:$0xff]
      %v1017 = vld [vmem:[#allocation2 + $0x90] sm:$0xff]
      %v1018 = vld [vmem:[#allocation2 + $0x98] sm:$0xff]
      %v1019 = vld [vmem:[#allocation2 + $0xa0] sm:$0xff]
      %v1020 = vld [vmem:[#allocation2 + $0xa8] sm:$0xff]
      %v1021 = vld [vmem:[#allocation2 + $0xb0] sm:$0xff]
      %v1022 = vld [vmem:[#allocation2 + $0xb8] sm:$0xff]
      %1047 = vrot.lane.b32.xlu0 %v999, 127
      %v1048 = vpop.permute.xlu0 %1047
      %1049 = vrot.lane.b32.xlu0 %v1000, 127
      %v1050 = vpop.permute.xlu0 %1049
      %1051 = vrot.lane.b32.xlu0 %v1001, 127
      %v1052 = vpop.permute.xlu0 %1051
      %1053 = vrot.lane.b32.xlu0 %v1002, 127
      %v1054 = vpop.permute.xlu0 %1053
      %1055 = vrot.lane.b32.xlu0 %v1003, 127
      %v1056 = vpop.permute.xlu0 %1055
      %1057 = vrot.lane.b32.xlu0 %v1004, 127
      %v1058 = vpop.permute.xlu0 %1057
      %1059 = vrot.lane.b32.xlu0 %v1005, 127
      %v1060 = vpop.permute.xlu0 %1059
      %1061 = vrot.lane.b32.xlu0 %v1006, 127
      %v1062 = vpop.permute.xlu0 %1061
      %1063 = vrot.lane.b32.xlu0 %v1007, 127
      %v1064 = vpop.permute.xlu0 %1063
      %1065 = vrot.lane.b32.xlu0 %v1008, 127
      %v1066 = vpop.permute.xlu0 %1065
      %1067 = vrot.lane.b32.xlu0 %v1009, 127
      %v1068 = vpop.permute.xlu0 %1067
      %1069 = vrot.lane.b32.xlu0 %v1010, 127
      %v1070 = vpop.permute.xlu0 %1069
      %1071 = vrot.lane.b32.xlu0 %v1011, 127
      %v1072 = vpop.permute.xlu0 %1071
      %1073 = vrot.lane.b32.xlu0 %v1012, 127
      %v1074 = vpop.permute.xlu0 %1073
      %1075 = vrot.lane.b32.xlu0 %v1013, 127
      %v1076 = vpop.permute.xlu0 %1075
      %1077 = vrot.lane.b32.xlu0 %v1014, 127
      %v1078 = vpop.permute.xlu0 %1077
      %1079 = vrot.lane.b32.xlu0 %v1015, 127
      %v1080 = vpop.permute.xlu0 %1079
      %1081 = vrot.lane.b32.xlu0 %v1016, 127
      %v1082 = vpop.permute.xlu0 %1081
      %1083 = vrot.lane.b32.xlu0 %v1017, 127
      %v1084 = vpop.permute.xlu0 %1083
      %1085 = vrot.lane.b32.xlu0 %v1018, 127
      %v1086 = vpop.permute.xlu0 %1085
      %1087 = vrot.lane.b32.xlu0 %v1019, 127
      %v1088 = vpop.permute.xlu0 %1087
      %1089 = vrot.lane.b32.xlu0 %v1020, 127
      %v1090 = vpop.permute.xlu0 %1089
      %1091 = vrot.lane.b32.xlu0 %v1021, 127
      %v1092 = vpop.permute.xlu0 %1091
      %1093 = vrot.lane.b32.xlu0 %v1022, 127
      %v1094 = vpop.permute.xlu0 %1093
      %v1095 = vsel %vm476, %v1048, %v1050
      %v1096 = vsel %vm476, %v1050, %v1052
      %v1097 = vsel %vm476, %v1054, %v1056
      %v1098 = vsel %vm476, %v1056, %v1058
      %v1099 = vsel %vm476, %v1060, %v1062
      %v1100 = vsel %vm476, %v1062, %v1064
      %v1101 = vsel %vm476, %v1066, %v1068
      %v1102 = vsel %vm476, %v1068, %v1070
      %v1103 = vsel %vm476, %v1072, %v1074
      %v1104 = vsel %vm476, %v1074, %v1076
      %v1105 = vsel %vm476, %v1078, %v1080
      %v1106 = vsel %vm476, %v1080, %v1082
      %v1107 = vsel %vm476, %v1084, %v1086
      %v1108 = vsel %vm476, %v1086, %v1088
      %v1109 = vsel %vm476, %v1090, %v1092
      %v1110 = vsel %vm476, %v1092, %v1094
      %1127 = vst [vmem:[#allocation3 + $0x80] sm:$0xff] %v1095
      %1128 = vst [vmem:[#allocation3 + $0x88] sm:$0xff] %v1096
      %1129 = vst [vmem:[#allocation3 + $0x90] sm:$0xff] %v1097
      %1130 = vst [vmem:[#allocation3 + $0x98] sm:$0xff] %v1098
      %1131 = vst [vmem:[#allocation3 + $0xa0] sm:$0xff] %v1099
      %1132 = vst [vmem:[#allocation3 + $0xa8] sm:$0xff] %v1100
      %1133 = vst [vmem:[#allocation3 + $0xb0] sm:$0xff] %v1101
      %1134 = vst [vmem:[#allocation3 + $0xb8] sm:$0xff] %v1102
      %1135 = vst [vmem:[#allocation3 + $0xc0] sm:$0xff] %v1103
      %1136 = vst [vmem:[#allocation3 + $0xc8] sm:$0xff] %v1104
      %1137 = vst [vmem:[#allocation3 + $0xd0] sm:$0xff] %v1105
      %1138 = vst [vmem:[#allocation3 + $0xd8] sm:$0xff] %v1106
      %1139 = vst [vmem:[#allocation3 + $0xe0] sm:$0xff] %v1107
      %1140 = vst [vmem:[#allocation3 + $0xe8] sm:$0xff] %v1108
      %1141 = vst [vmem:[#allocation3 + $0xf0] sm:$0xff] %v1109
      %1142 = vst [vmem:[#allocation3 + $0xf8] sm:$0xff] %v1110
      %v1143 = vld [vmem:[#allocation2] sm:$0xff]
      %v1144 = vld [vmem:[#allocation2 + $0x8] sm:$0xff]
      %v1145 = vld [vmem:[#allocation2 + $0x10] sm:$0xff]
      %v1146 = vld [vmem:[#allocation2 + $0x18] sm:$0xff]
      %v1147 = vld [vmem:[#allocation2 + $0x20] sm:$0xff]
      %v1148 = vld [vmem:[#allocation2 + $0x28] sm:$0xff]
      %v1149 = vld [vmem:[#allocation2 + $0x30] sm:$0xff]
      %v1150 = vld [vmem:[#allocation2 + $0x38] sm:$0xff]
      %v1151 = vld [vmem:[#allocation2 + $0x40] sm:$0xff]
      %v1152 = vld [vmem:[#allocation2 + $0x48] sm:$0xff]
      %v1153 = vld [vmem:[#allocation2 + $0x50] sm:$0xff]
      %v1154 = vld [vmem:[#allocation2 + $0x58] sm:$0xff]
      %v1155 = vld [vmem:[#allocation2 + $0x60] sm:$0xff]
      %v1156 = vld [vmem:[#allocation2 + $0x68] sm:$0xff]
      %v1157 = vld [vmem:[#allocation2 + $0x70] sm:$0xff]
      %v1158 = vld [vmem:[#allocation2 + $0x78] sm:$0xff]
      %v1159 = vld [vmem:[#allocation2 + $0x80] sm:$0xff]
      %v1160 = vld [vmem:[#allocation2 + $0x88] sm:$0xff]
      %v1161 = vld [vmem:[#allocation2 + $0x90] sm:$0xff]
      %v1162 = vld [vmem:[#allocation2 + $0x98] sm:$0xff]
      %v1163 = vld [vmem:[#allocation2 + $0xa0] sm:$0xff]
      %v1164 = vld [vmem:[#allocation2 + $0xa8] sm:$0xff]
      %v1165 = vld [vmem:[#allocation2 + $0xb0] sm:$0xff]
      %v1166 = vld [vmem:[#allocation2 + $0xb8] sm:$0xff]
      %1191 = vrot.lane.b32.xlu0 %v1143, 126
      %v1192 = vpop.permute.xlu0 %1191
      %1193 = vrot.lane.b32.xlu0 %v1144, 126
      %v1194 = vpop.permute.xlu0 %1193
      %1195 = vrot.lane.b32.xlu0 %v1145, 126
      %v1196 = vpop.permute.xlu0 %1195
      %1197 = vrot.lane.b32.xlu0 %v1146, 126
      %v1198 = vpop.permute.xlu0 %1197
      %1199 = vrot.lane.b32.xlu0 %v1147, 126
      %v1200 = vpop.permute.xlu0 %1199
      %1201 = vrot.lane.b32.xlu0 %v1148, 126
      %v1202 = vpop.permute.xlu0 %1201
      %1203 = vrot.lane.b32.xlu0 %v1149, 126
      %v1204 = vpop.permute.xlu0 %1203
      %1205 = vrot.lane.b32.xlu0 %v1150, 126
      %v1206 = vpop.permute.xlu0 %1205
      %1207 = vrot.lane.b32.xlu0 %v1151, 126
      %v1208 = vpop.permute.xlu0 %1207
      %1209 = vrot.lane.b32.xlu0 %v1152, 126
      %v1210 = vpop.permute.xlu0 %1209
      %1211 = vrot.lane.b32.xlu0 %v1153, 126
      %v1212 = vpop.permute.xlu0 %1211
      %1213 = vrot.lane.b32.xlu0 %v1154, 126
      %v1214 = vpop.permute.xlu0 %1213
      %1215 = vrot.lane.b32.xlu0 %v1155, 126
      %v1216 = vpop.permute.xlu0 %1215
      %1217 = vrot.lane.b32.xlu0 %v1156, 126
      %v1218 = vpop.permute.xlu0 %1217
      %1219 = vrot.lane.b32.xlu0 %v1157, 126
      %v1220 = vpop.permute.xlu0 %1219
      %1221 = vrot.lane.b32.xlu0 %v1158, 126
      %v1222 = vpop.permute.xlu0 %1221
      %1223 = vrot.lane.b32.xlu0 %v1159, 126
      %v1224 = vpop.permute.xlu0 %1223
      %1225 = vrot.lane.b32.xlu0 %v1160, 126
      %v1226 = vpop.permute.xlu0 %1225
      %1227 = vrot.lane.b32.xlu0 %v1161, 126
      %v1228 = vpop.permute.xlu0 %1227
      %1229 = vrot.lane.b32.xlu0 %v1162, 126
      %v1230 = vpop.permute.xlu0 %1229
      %1231 = vrot.lane.b32.xlu0 %v1163, 126
      %v1232 = vpop.permute.xlu0 %1231
      %1233 = vrot.lane.b32.xlu0 %v1164, 126
      %v1234 = vpop.permute.xlu0 %1233
      %1235 = vrot.lane.b32.xlu0 %v1165, 126
      %v1236 = vpop.permute.xlu0 %1235
      %1237 = vrot.lane.b32.xlu0 %v1166, 126
      %v1238 = vpop.permute.xlu0 %1237
      %v1239 = vsel %vm499, %v1192, %v1194
      %v1240 = vsel %vm499, %v1194, %v1196
      %v1241 = vsel %vm499, %v1198, %v1200
      %v1242 = vsel %vm499, %v1200, %v1202
      %v1243 = vsel %vm499, %v1204, %v1206
      %v1244 = vsel %vm499, %v1206, %v1208
      %v1245 = vsel %vm499, %v1210, %v1212
      %v1246 = vsel %vm499, %v1212, %v1214
      %v1247 = vsel %vm499, %v1216, %v1218
      %v1248 = vsel %vm499, %v1218, %v1220
      %v1249 = vsel %vm499, %v1222, %v1224
      %v1250 = vsel %vm499, %v1224, %v1226
      %v1251 = vsel %vm499, %v1228, %v1230
      %v1252 = vsel %vm499, %v1230, %v1232
      %v1253 = vsel %vm499, %v1234, %v1236
      %v1254 = vsel %vm499, %v1236, %v1238
      %v1271 = vsel %vm488, %v1239, 0.0
      %v1272 = vsel %vm489, %v1240, 0.0
      %v1273 = vsel %vm488, %v1241, 0.0
      %v1274 = vsel %vm489, %v1242, 0.0
      %v1275 = vsel %vm488, %v1243, 0.0
      %v1276 = vsel %vm489, %v1244, 0.0
      %v1277 = vsel %vm488, %v1245, 0.0
      %v1278 = vsel %vm489, %v1246, 0.0
      %v1279 = vsel %vm488, %v1247, 0.0
      %v1280 = vsel %vm489, %v1248, 0.0
      %v1281 = vsel %vm488, %v1249, 0.0
      %v1282 = vsel %vm489, %v1250, 0.0
      %v1283 = vsel %vm488, %v1251, 0.0
      %v1284 = vsel %vm489, %v1252, 0.0
      %v1285 = vsel %vm488, %v1253, 0.0
      %v1286 = vsel %vm489, %v1254, 0.0
      %1287 = vst [vmem:[#allocation3 + $0x100] sm:$0xff] %v1271
      %1288 = vst [vmem:[#allocation3 + $0x108] sm:$0xff] %v1272
      %1289 = vst [vmem:[#allocation3 + $0x110] sm:$0xff] %v1273
      %1290 = vst [vmem:[#allocation3 + $0x118] sm:$0xff] %v1274
      %1291 = vst [vmem:[#allocation3 + $0x120] sm:$0xff] %v1275
      %1292 = vst [vmem:[#allocation3 + $0x128] sm:$0xff] %v1276
      %1293 = vst [vmem:[#allocation3 + $0x130] sm:$0xff] %v1277
      %1294 = vst [vmem:[#allocation3 + $0x138] sm:$0xff] %v1278
      %1295 = vst [vmem:[#allocation3 + $0x140] sm:$0xff] %v1279
      %1296 = vst [vmem:[#allocation3 + $0x148] sm:$0xff] %v1280
      %1297 = vst [vmem:[#allocation3 + $0x150] sm:$0xff] %v1281
      %1298 = vst [vmem:[#allocation3 + $0x158] sm:$0xff] %v1282
      %1299 = vst [vmem:[#allocation3 + $0x160] sm:$0xff] %v1283
      %1300 = vst [vmem:[#allocation3 + $0x168] sm:$0xff] %v1284
      %1301 = vst [vmem:[#allocation3 + $0x170] sm:$0xff] %v1285
      %1302 = vst [vmem:[#allocation3 + $0x178] sm:$0xff] %v1286
      %v1303 = vld [vmem:[#allocation2] sm:$0xff]
      %v1304 = vld [vmem:[#allocation2 + $0x8] sm:$0xff]
      %v1305 = vld [vmem:[#allocation2 + $0x10] sm:$0xff]
      %v1306 = vld [vmem:[#allocation2 + $0x18] sm:$0xff]
      %v1307 = vld [vmem:[#allocation2 + $0x20] sm:$0xff]
      %v1308 = vld [vmem:[#allocation2 + $0x28] sm:$0xff]
      %v1309 = vld [vmem:[#allocation2 + $0x30] sm:$0xff]
      %v1310 = vld [vmem:[#allocation2 + $0x38] sm:$0xff]
      %v1311 = vld [vmem:[#allocation2 + $0x40] sm:$0xff]
      %v1312 = vld [vmem:[#allocation2 + $0x48] sm:$0xff]
      %v1313 = vld [vmem:[#allocation2 + $0x50] sm:$0xff]
      %v1314 = vld [vmem:[#allocation2 + $0x58] sm:$0xff]
      %v1315 = vld [vmem:[#allocation2 + $0x60] sm:$0xff]
      %v1316 = vld [vmem:[#allocation2 + $0x68] sm:$0xff]
      %v1317 = vld [vmem:[#allocation2 + $0x70] sm:$0xff]
      %v1318 = vld [vmem:[#allocation2 + $0x78] sm:$0xff]
      %v1319 = vld [vmem:[#allocation2 + $0x80] sm:$0xff]
      %v1320 = vld [vmem:[#allocation2 + $0x88] sm:$0xff]
      %v1321 = vld [vmem:[#allocation2 + $0x90] sm:$0xff]
      %v1322 = vld [vmem:[#allocation2 + $0x98] sm:$0xff]
      %v1323 = vld [vmem:[#allocation2 + $0xa0] sm:$0xff]
      %v1324 = vld [vmem:[#allocation2 + $0xa8] sm:$0xff]
      %v1325 = vld [vmem:[#allocation2 + $0xb0] sm:$0xff]
      %v1326 = vld [vmem:[#allocation2 + $0xb8] sm:$0xff]
      %1351 = vrot.lane.b32.xlu0 %v1303, 112
      %v1352 = vpop.permute.xlu0 %1351
      %1353 = vrot.lane.b32.xlu0 %v1304, 112
      %v1354 = vpop.permute.xlu0 %1353
      %1355 = vrot.lane.b32.xlu0 %v1305, 112
      %v1356 = vpop.permute.xlu0 %1355
      %1357 = vrot.lane.b32.xlu0 %v1306, 112
      %v1358 = vpop.permute.xlu0 %1357
      %1359 = vrot.lane.b32.xlu0 %v1307, 112
      %v1360 = vpop.permute.xlu0 %1359
      %1361 = vrot.lane.b32.xlu0 %v1308, 112
      %v1362 = vpop.permute.xlu0 %1361
      %1363 = vrot.lane.b32.xlu0 %v1309, 112
      %v1364 = vpop.permute.xlu0 %1363
      %1365 = vrot.lane.b32.xlu0 %v1310, 112
      %v1366 = vpop.permute.xlu0 %1365
      %1367 = vrot.lane.b32.xlu0 %v1311, 112
      %v1368 = vpop.permute.xlu0 %1367
      %1369 = vrot.lane.b32.xlu0 %v1312, 112
      %v1370 = vpop.permute.xlu0 %1369
      %1371 = vrot.lane.b32.xlu0 %v1313, 112
      %v1372 = vpop.permute.xlu0 %1371
      %1373 = vrot.lane.b32.xlu0 %v1314, 112
      %v1374 = vpop.permute.xlu0 %1373
      %1375 = vrot.lane.b32.xlu0 %v1315, 112
      %v1376 = vpop.permute.xlu0 %1375
      %1377 = vrot.lane.b32.xlu0 %v1316, 112
      %v1378 = vpop.permute.xlu0 %1377
      %1379 = vrot.lane.b32.xlu0 %v1317, 112
      %v1380 = vpop.permute.xlu0 %1379
      %1381 = vrot.lane.b32.xlu0 %v1318, 112
      %v1382 = vpop.permute.xlu0 %1381
      %1383 = vrot.lane.b32.xlu0 %v1319, 112
      %v1384 = vpop.permute.xlu0 %1383
      %1385 = vrot.lane.b32.xlu0 %v1320, 112
      %v1386 = vpop.permute.xlu0 %1385
      %1387 = vrot.lane.b32.xlu0 %v1321, 112
      %v1388 = vpop.permute.xlu0 %1387
      %1389 = vrot.lane.b32.xlu0 %v1322, 112
      %v1390 = vpop.permute.xlu0 %1389
      %1391 = vrot.lane.b32.xlu0 %v1323, 112
      %v1392 = vpop.permute.xlu0 %1391
      %1393 = vrot.lane.b32.xlu0 %v1324, 112
      %v1394 = vpop.permute.xlu0 %1393
      %1395 = vrot.lane.b32.xlu0 %v1325, 112
      %v1396 = vpop.permute.xlu0 %1395
      %1397 = vrot.lane.b32.xlu0 %v1326, 112
      %v1398 = vpop.permute.xlu0 %1397
      %v1399 = vsel %vm520, %v1352, %v1354
      %v1400 = vsel %vm520, %v1354, %v1356
      %v1401 = vsel %vm520, %v1358, %v1360
      %v1402 = vsel %vm520, %v1360, %v1362
      %v1403 = vsel %vm520, %v1364, %v1366
      %v1404 = vsel %vm520, %v1366, %v1368
      %v1405 = vsel %vm520, %v1370, %v1372
      %v1406 = vsel %vm520, %v1372, %v1374
      %v1407 = vsel %vm520, %v1376, %v1378
      %v1408 = vsel %vm520, %v1378, %v1380
      %v1409 = vsel %vm520, %v1382, %v1384
      %v1410 = vsel %vm520, %v1384, %v1386
      %v1411 = vsel %vm520, %v1388, %v1390
      %v1412 = vsel %vm520, %v1390, %v1392
      %v1413 = vsel %vm520, %v1394, %v1396
      %v1414 = vsel %vm520, %v1396, %v1398
      %v1431 = vsel %vm455, %v1399, 0.0
      %v1432 = vsel %vm456, %v1400, 0.0
      %v1433 = vsel %vm455, %v1401, 0.0
      %v1434 = vsel %vm456, %v1402, 0.0
      %v1435 = vsel %vm455, %v1403, 0.0
      %v1436 = vsel %vm456, %v1404, 0.0
      %v1437 = vsel %vm455, %v1405, 0.0
      %v1438 = vsel %vm456, %v1406, 0.0
      %v1439 = vsel %vm455, %v1407, 0.0
      %v1440 = vsel %vm456, %v1408, 0.0
      %v1441 = vsel %vm455, %v1409, 0.0
      %v1442 = vsel %vm456, %v1410, 0.0
      %v1443 = vsel %vm455, %v1411, 0.0
      %v1444 = vsel %vm456, %v1412, 0.0
      %v1445 = vsel %vm455, %v1413, 0.0
      %v1446 = vsel %vm456, %v1414, 0.0
      %1447 = vst [vmem:[#allocation3 + $0x180] sm:$0xff] %v1431
      %1448 = vst [vmem:[#allocation3 + $0x188] sm:$0xff] %v1432
      %1449 = vst [vmem:[#allocation3 + $0x190] sm:$0xff] %v1433
      %1450 = vst [vmem:[#allocation3 + $0x198] sm:$0xff] %v1434
      %1451 = vst [vmem:[#allocation3 + $0x1a0] sm:$0xff] %v1435
      %1452 = vst [vmem:[#allocation3 + $0x1a8] sm:$0xff] %v1436
      %1453 = vst [vmem:[#allocation3 + $0x1b0] sm:$0xff] %v1437
      %1454 = vst [vmem:[#allocation3 + $0x1b8] sm:$0xff] %v1438
      %1455 = vst [vmem:[#allocation3 + $0x1c0] sm:$0xff] %v1439
      %1456 = vst [vmem:[#allocation3 + $0x1c8] sm:$0xff] %v1440
      %1457 = vst [vmem:[#allocation3 + $0x1d0] sm:$0xff] %v1441
      %1458 = vst [vmem:[#allocation3 + $0x1d8] sm:$0xff] %v1442
      %1459 = vst [vmem:[#allocation3 + $0x1e0] sm:$0xff] %v1443
      %1460 = vst [vmem:[#allocation3 + $0x1e8] sm:$0xff] %v1444
      %1461 = vst [vmem:[#allocation3 + $0x1f0] sm:$0xff] %v1445
      %1462 = vst [vmem:[#allocation3 + $0x1f8] sm:$0xff] %v1446
      %v1463 = vld [vmem:[#allocation2] sm:$0xff]
      %v1464 = vld [vmem:[#allocation2 + $0x8] sm:$0xff]
      %v1465 = vld [vmem:[#allocation2 + $0x10] sm:$0xff]
      %v1466 = vld [vmem:[#allocation2 + $0x18] sm:$0xff]
      %v1467 = vld [vmem:[#allocation2 + $0x20] sm:$0xff]
      %v1468 = vld [vmem:[#allocation2 + $0x28] sm:$0xff]
      %v1469 = vld [vmem:[#allocation2 + $0x30] sm:$0xff]
      %v1470 = vld [vmem:[#allocation2 + $0x38] sm:$0xff]
      %v1471 = vld [vmem:[#allocation2 + $0x40] sm:$0xff]
      %v1472 = vld [vmem:[#allocation2 + $0x48] sm:$0xff]
      %v1473 = vld [vmem:[#allocation2 + $0x50] sm:$0xff]
      %v1474 = vld [vmem:[#allocation2 + $0x58] sm:$0xff]
      %v1475 = vld [vmem:[#allocation2 + $0x60] sm:$0xff]
      %v1476 = vld [vmem:[#allocation2 + $0x68] sm:$0xff]
      %v1477 = vld [vmem:[#allocation2 + $0x70] sm:$0xff]
      %v1478 = vld [vmem:[#allocation2 + $0x78] sm:$0xff]
      %v1479 = vld [vmem:[#allocation2 + $0x80] sm:$0xff]
      %v1480 = vld [vmem:[#allocation2 + $0x88] sm:$0xff]
      %v1481 = vld [vmem:[#allocation2 + $0x90] sm:$0xff]
      %v1482 = vld [vmem:[#allocation2 + $0x98] sm:$0xff]
      %v1483 = vld [vmem:[#allocation2 + $0xa0] sm:$0xff]
      %v1484 = vld [vmem:[#allocation2 + $0xa8] sm:$0xff]
      %v1485 = vld [vmem:[#allocation2 + $0xb0] sm:$0xff]
      %v1486 = vld [vmem:[#allocation2 + $0xb8] sm:$0xff]
      %1511 = vrot.lane.b32.xlu0 %v1463, 111
      %v1512 = vpop.permute.xlu0 %1511
      %1513 = vrot.lane.b32.xlu0 %v1464, 111
      %v1514 = vpop.permute.xlu0 %1513
      %1515 = vrot.lane.b32.xlu0 %v1465, 111
      %v1516 = vpop.permute.xlu0 %1515
      %1517 = vrot.lane.b32.xlu0 %v1466, 111
      %v1518 = vpop.permute.xlu0 %1517
      %1519 = vrot.lane.b32.xlu0 %v1467, 111
      %v1520 = vpop.permute.xlu0 %1519
      %1521 = vrot.lane.b32.xlu0 %v1468, 111
      %v1522 = vpop.permute.xlu0 %1521
      %1523 = vrot.lane.b32.xlu0 %v1469, 111
      %v1524 = vpop.permute.xlu0 %1523
      %1525 = vrot.lane.b32.xlu0 %v1470, 111
      %v1526 = vpop.permute.xlu0 %1525
      %1527 = vrot.lane.b32.xlu0 %v1471, 111
      %v1528 = vpop.permute.xlu0 %1527
      %1529 = vrot.lane.b32.xlu0 %v1472, 111
      %v1530 = vpop.permute.xlu0 %1529
      %1531 = vrot.lane.b32.xlu0 %v1473, 111
      %v1532 = vpop.permute.xlu0 %1531
      %1533 = vrot.lane.b32.xlu0 %v1474, 111
      %v1534 = vpop.permute.xlu0 %1533
      %1535 = vrot.lane.b32.xlu0 %v1475, 111
      %v1536 = vpop.permute.xlu0 %1535
      %1537 = vrot.lane.b32.xlu0 %v1476, 111
      %v1538 = vpop.permute.xlu0 %1537
      %1539 = vrot.lane.b32.xlu0 %v1477, 111
      %v1540 = vpop.permute.xlu0 %1539
      %1541 = vrot.lane.b32.xlu0 %v1478, 111
      %v1542 = vpop.permute.xlu0 %1541
      %1543 = vrot.lane.b32.xlu0 %v1479, 111
      %v1544 = vpop.permute.xlu0 %1543
      %1545 = vrot.lane.b32.xlu0 %v1480, 111
      %v1546 = vpop.permute.xlu0 %1545
      %1547 = vrot.lane.b32.xlu0 %v1481, 111
      %v1548 = vpop.permute.xlu0 %1547
      %1549 = vrot.lane.b32.xlu0 %v1482, 111
      %v1550 = vpop.permute.xlu0 %1549
      %1551 = vrot.lane.b32.xlu0 %v1483, 111
      %v1552 = vpop.permute.xlu0 %1551
      %1553 = vrot.lane.b32.xlu0 %v1484, 111
      %v1554 = vpop.permute.xlu0 %1553
      %1555 = vrot.lane.b32.xlu0 %v1485, 111
      %v1556 = vpop.permute.xlu0 %1555
      %1557 = vrot.lane.b32.xlu0 %v1486, 111
      %v1558 = vpop.permute.xlu0 %1557
      %v1559 = vsel %vm547, %v1512, %v1514
      %v1560 = vsel %vm547, %v1514, %v1516
      %v1561 = vsel %vm547, %v1518, %v1520
      %v1562 = vsel %vm547, %v1520, %v1522
      %v1563 = vsel %vm547, %v1524, %v1526
      %v1564 = vsel %vm547, %v1526, %v1528
      %v1565 = vsel %vm547, %v1530, %v1532
      %v1566 = vsel %vm547, %v1532, %v1534
      %v1567 = vsel %vm547, %v1536, %v1538
      %v1568 = vsel %vm547, %v1538, %v1540
      %v1569 = vsel %vm547, %v1542, %v1544
      %v1570 = vsel %vm547, %v1544, %v1546
      %v1571 = vsel %vm547, %v1548, %v1550
      %v1572 = vsel %vm547, %v1550, %v1552
      %v1573 = vsel %vm547, %v1554, %v1556
      %v1574 = vsel %vm547, %v1556, %v1558
      %1591 = vst [vmem:[#allocation3 + $0x200] sm:$0xff] %v1559
      %1592 = vst [vmem:[#allocation3 + $0x208] sm:$0xff] %v1560
      %1593 = vst [vmem:[#allocation3 + $0x210] sm:$0xff] %v1561
      %1594 = vst [vmem:[#allocation3 + $0x218] sm:$0xff] %v1562
      %1595 = vst [vmem:[#allocation3 + $0x220] sm:$0xff] %v1563
      %1596 = vst [vmem:[#allocation3 + $0x228] sm:$0xff] %v1564
      %1597 = vst [vmem:[#allocation3 + $0x230] sm:$0xff] %v1565
      %1598 = vst [vmem:[#allocation3 + $0x238] sm:$0xff] %v1566
      %1599 = vst [vmem:[#allocation3 + $0x240] sm:$0xff] %v1567
      %1600 = vst [vmem:[#allocation3 + $0x248] sm:$0xff] %v1568
      %1601 = vst [vmem:[#allocation3 + $0x250] sm:$0xff] %v1569
      %1602 = vst [vmem:[#allocation3 + $0x258] sm:$0xff] %v1570
      %1603 = vst [vmem:[#allocation3 + $0x260] sm:$0xff] %v1571
      %1604 = vst [vmem:[#allocation3 + $0x268] sm:$0xff] %v1572
      %1605 = vst [vmem:[#allocation3 + $0x270] sm:$0xff] %v1573
      %1606 = vst [vmem:[#allocation3 + $0x278] sm:$0xff] %v1574
      %v1607 = vld [vmem:[#allocation2] sm:$0xff]
      %v1608 = vld [vmem:[#allocation2 + $0x8] sm:$0xff]
      %v1609 = vld [vmem:[#allocation2 + $0x10] sm:$0xff]
      %v1610 = vld [vmem:[#allocation2 + $0x18] sm:$0xff]
      %v1611 = vld [vmem:[#allocation2 + $0x20] sm:$0xff]
      %v1612 = vld [vmem:[#allocation2 + $0x28] sm:$0xff]
      %v1613 = vld [vmem:[#allocation2 + $0x30] sm:$0xff]
      %v1614 = vld [vmem:[#allocation2 + $0x38] sm:$0xff]
      %v1615 = vld [vmem:[#allocation2 + $0x40] sm:$0xff]
      %v1616 = vld [vmem:[#allocation2 + $0x48] sm:$0xff]
      %v1617 = vld [vmem:[#allocation2 + $0x50] sm:$0xff]
      %v1618 = vld [vmem:[#allocation2 + $0x58] sm:$0xff]
      %v1619 = vld [vmem:[#allocation2 + $0x60] sm:$0xff]
      %v1620 = vld [vmem:[#allocation2 + $0x68] sm:$0xff]
      %v1621 = vld [vmem:[#allocation2 + $0x70] sm:$0xff]
      %v1622 = vld [vmem:[#allocation2 + $0x78] sm:$0xff]
      %v1623 = vld [vmem:[#allocation2 + $0x80] sm:$0xff]
      %v1624 = vld [vmem:[#allocation2 + $0x88] sm:$0xff]
      %v1625 = vld [vmem:[#allocation2 + $0x90] sm:$0xff]
      %v1626 = vld [vmem:[#allocation2 + $0x98] sm:$0xff]
      %v1627 = vld [vmem:[#allocation2 + $0xa0] sm:$0xff]
      %v1628 = vld [vmem:[#allocation2 + $0xa8] sm:$0xff]
      %v1629 = vld [vmem:[#allocation2 + $0xb0] sm:$0xff]
      %v1630 = vld [vmem:[#allocation2 + $0xb8] sm:$0xff]
      %1655 = vrot.lane.b32.xlu0 %v1607, 110
      %v1656 = vpop.permute.xlu0 %1655
      %1657 = vrot.lane.b32.xlu0 %v1608, 110
      %v1658 = vpop.permute.xlu0 %1657
      %1659 = vrot.lane.b32.xlu0 %v1609, 110
      %v1660 = vpop.permute.xlu0 %1659
      %1661 = vrot.lane.b32.xlu0 %v1610, 110
      %v1662 = vpop.permute.xlu0 %1661
      %1663 = vrot.lane.b32.xlu0 %v1611, 110
      %v1664 = vpop.permute.xlu0 %1663
      %1665 = vrot.lane.b32.xlu0 %v1612, 110
      %v1666 = vpop.permute.xlu0 %1665
      %1667 = vrot.lane.b32.xlu0 %v1613, 110
      %v1668 = vpop.permute.xlu0 %1667
      %1669 = vrot.lane.b32.xlu0 %v1614, 110
      %v1670 = vpop.permute.xlu0 %1669
      %1671 = vrot.lane.b32.xlu0 %v1615, 110
      %v1672 = vpop.permute.xlu0 %1671
      %1673 = vrot.lane.b32.xlu0 %v1616, 110
      %v1674 = vpop.permute.xlu0 %1673
      %1675 = vrot.lane.b32.xlu0 %v1617, 110
      %v1676 = vpop.permute.xlu0 %1675
      %1677 = vrot.lane.b32.xlu0 %v1618, 110
      %v1678 = vpop.permute.xlu0 %1677
      %1679 = vrot.lane.b32.xlu0 %v1619, 110
      %v1680 = vpop.permute.xlu0 %1679
      %1681 = vrot.lane.b32.xlu0 %v1620, 110
      %v1682 = vpop.permute.xlu0 %1681
      %1683 = vrot.lane.b32.xlu0 %v1621, 110
      %v1684 = vpop.permute.xlu0 %1683
      %1685 = vrot.lane.b32.xlu0 %v1622, 110
      %v1686 = vpop.permute.xlu0 %1685
      %1687 = vrot.lane.b32.xlu0 %v1623, 110
      %v1688 = vpop.permute.xlu0 %1687
      %1689 = vrot.lane.b32.xlu0 %v1624, 110
      %v1690 = vpop.permute.xlu0 %1689
      %1691 = vrot.lane.b32.xlu0 %v1625, 110
      %v1692 = vpop.permute.xlu0 %1691
      %1693 = vrot.lane.b32.xlu0 %v1626, 110
      %v1694 = vpop.permute.xlu0 %1693
      %1695 = vrot.lane.b32.xlu0 %v1627, 110
      %v1696 = vpop.permute.xlu0 %1695
      %1697 = vrot.lane.b32.xlu0 %v1628, 110
      %v1698 = vpop.permute.xlu0 %1697
      %1699 = vrot.lane.b32.xlu0 %v1629, 110
      %v1700 = vpop.permute.xlu0 %1699
      %1701 = vrot.lane.b32.xlu0 %v1630, 110
      %v1702 = vpop.permute.xlu0 %1701
      %v1703 = vsel %vm566, %v1656, %v1658
      %v1704 = vsel %vm566, %v1658, %v1660
      %v1705 = vsel %vm566, %v1662, %v1664
      %v1706 = vsel %vm566, %v1664, %v1666
      %v1707 = vsel %vm566, %v1668, %v1670
      %v1708 = vsel %vm566, %v1670, %v1672
      %v1709 = vsel %vm566, %v1674, %v1676
      %v1710 = vsel %vm566, %v1676, %v1678
      %v1711 = vsel %vm566, %v1680, %v1682
      %v1712 = vsel %vm566, %v1682, %v1684
      %v1713 = vsel %vm566, %v1686, %v1688
      %v1714 = vsel %vm566, %v1688, %v1690
      %v1715 = vsel %vm566, %v1692, %v1694
      %v1716 = vsel %vm566, %v1694, %v1696
      %v1717 = vsel %vm566, %v1698, %v1700
      %v1718 = vsel %vm566, %v1700, %v1702
      %v1735 = vsel %vm488, %v1703, 0.0
      %v1736 = vsel %vm489, %v1704, 0.0
      %v1737 = vsel %vm488, %v1705, 0.0
      %v1738 = vsel %vm489, %v1706, 0.0
      %v1739 = vsel %vm488, %v1707, 0.0
      %v1740 = vsel %vm489, %v1708, 0.0
      %v1741 = vsel %vm488, %v1709, 0.0
      %v1742 = vsel %vm489, %v1710, 0.0
      %v1743 = vsel %vm488, %v1711, 0.0
      %v1744 = vsel %vm489, %v1712, 0.0
      %v1745 = vsel %vm488, %v1713, 0.0
      %v1746 = vsel %vm489, %v1714, 0.0
      %v1747 = vsel %vm488, %v1715, 0.0
      %v1748 = vsel %vm489, %v1716, 0.0
      %v1749 = vsel %vm488, %v1717, 0.0
      %v1750 = vsel %vm489, %v1718, 0.0
      %1751 = vst [vmem:[#allocation3 + $0x280] sm:$0xff] %v1735
      %1752 = vst [vmem:[#allocation3 + $0x288] sm:$0xff] %v1736
      %1753 = vst [vmem:[#allocation3 + $0x290] sm:$0xff] %v1737
      %1754 = vst [vmem:[#allocation3 + $0x298] sm:$0xff] %v1738
      %1755 = vst [vmem:[#allocation3 + $0x2a0] sm:$0xff] %v1739
      %1756 = vst [vmem:[#allocation3 + $0x2a8] sm:$0xff] %v1740
      %1757 = vst [vmem:[#allocation3 + $0x2b0] sm:$0xff] %v1741
      %1758 = vst [vmem:[#allocation3 + $0x2b8] sm:$0xff] %v1742
      %1759 = vst [vmem:[#allocation3 + $0x2c0] sm:$0xff] %v1743
      %1760 = vst [vmem:[#allocation3 + $0x2c8] sm:$0xff] %v1744
      %1761 = vst [vmem:[#allocation3 + $0x2d0] sm:$0xff] %v1745
      %1762 = vst [vmem:[#allocation3 + $0x2d8] sm:$0xff] %v1746
      %1763 = vst [vmem:[#allocation3 + $0x2e0] sm:$0xff] %v1747
      %1764 = vst [vmem:[#allocation3 + $0x2e8] sm:$0xff] %v1748
      %1765 = vst [vmem:[#allocation3 + $0x2f0] sm:$0xff] %v1749
      %1766 = vst [vmem:[#allocation3 + $0x2f8] sm:$0xff] %v1750
      %v1767 = vld [vmem:[#allocation2] sm:$0xff]
      %v1768 = vld [vmem:[#allocation2 + $0x8] sm:$0xff]
      %v1769 = vld [vmem:[#allocation2 + $0x10] sm:$0xff]
      %v1770 = vld [vmem:[#allocation2 + $0x18] sm:$0xff]
      %v1771 = vld [vmem:[#allocation2 + $0x20] sm:$0xff]
      %v1772 = vld [vmem:[#allocation2 + $0x28] sm:$0xff]
      %v1773 = vld [vmem:[#allocation2 + $0x30] sm:$0xff]
      %v1774 = vld [vmem:[#allocation2 + $0x38] sm:$0xff]
      %v1775 = vld [vmem:[#allocation2 + $0x40] sm:$0xff]
      %v1776 = vld [vmem:[#allocation2 + $0x48] sm:$0xff]
      %v1777 = vld [vmem:[#allocation2 + $0x50] sm:$0xff]
      %v1778 = vld [vmem:[#allocation2 + $0x58] sm:$0xff]
      %v1779 = vld [vmem:[#allocation2 + $0x60] sm:$0xff]
      %v1780 = vld [vmem:[#allocation2 + $0x68] sm:$0xff]
      %v1781 = vld [vmem:[#allocation2 + $0x70] sm:$0xff]
      %v1782 = vld [vmem:[#allocation2 + $0x78] sm:$0xff]
      %v1783 = vld [vmem:[#allocation2 + $0x80] sm:$0xff]
      %v1784 = vld [vmem:[#allocation2 + $0x88] sm:$0xff]
      %v1785 = vld [vmem:[#allocation2 + $0x90] sm:$0xff]
      %v1786 = vld [vmem:[#allocation2 + $0x98] sm:$0xff]
      %v1787 = vld [vmem:[#allocation2 + $0xa0] sm:$0xff]
      %v1788 = vld [vmem:[#allocation2 + $0xa8] sm:$0xff]
      %v1789 = vld [vmem:[#allocation2 + $0xb0] sm:$0xff]
      %v1790 = vld [vmem:[#allocation2 + $0xb8] sm:$0xff]
      %1815 = vrot.lane.b32.xlu0 %v1767, 96
      %v1816 = vpop.permute.xlu0 %1815
      %1817 = vrot.lane.b32.xlu0 %v1768, 96
      %v1818 = vpop.permute.xlu0 %1817
      %1819 = vrot.lane.b32.xlu0 %v1769, 96
      %v1820 = vpop.permute.xlu0 %1819
      %1821 = vrot.lane.b32.xlu0 %v1770, 96
      %v1822 = vpop.permute.xlu0 %1821
      %1823 = vrot.lane.b32.xlu0 %v1771, 96
      %v1824 = vpop.permute.xlu0 %1823
      %1825 = vrot.lane.b32.xlu0 %v1772, 96
      %v1826 = vpop.permute.xlu0 %1825
      %1827 = vrot.lane.b32.xlu0 %v1773, 96
      %v1828 = vpop.permute.xlu0 %1827
      %1829 = vrot.lane.b32.xlu0 %v1774, 96
      %v1830 = vpop.permute.xlu0 %1829
      %1831 = vrot.lane.b32.xlu0 %v1775, 96
      %v1832 = vpop.permute.xlu0 %1831
      %1833 = vrot.lane.b32.xlu0 %v1776, 96
      %v1834 = vpop.permute.xlu0 %1833
      %1835 = vrot.lane.b32.xlu0 %v1777, 96
      %v1836 = vpop.permute.xlu0 %1835
      %1837 = vrot.lane.b32.xlu0 %v1778, 96
      %v1838 = vpop.permute.xlu0 %1837
      %1839 = vrot.lane.b32.xlu0 %v1779, 96
      %v1840 = vpop.permute.xlu0 %1839
      %1841 = vrot.lane.b32.xlu0 %v1780, 96
      %v1842 = vpop.permute.xlu0 %1841
      %1843 = vrot.lane.b32.xlu0 %v1781, 96
      %v1844 = vpop.permute.xlu0 %1843
      %1845 = vrot.lane.b32.xlu0 %v1782, 96
      %v1846 = vpop.permute.xlu0 %1845
      %1847 = vrot.lane.b32.xlu0 %v1783, 96
      %v1848 = vpop.permute.xlu0 %1847
      %1849 = vrot.lane.b32.xlu0 %v1784, 96
      %v1850 = vpop.permute.xlu0 %1849
      %1851 = vrot.lane.b32.xlu0 %v1785, 96
      %v1852 = vpop.permute.xlu0 %1851
      %1853 = vrot.lane.b32.xlu0 %v1786, 96
      %v1854 = vpop.permute.xlu0 %1853
      %1855 = vrot.lane.b32.xlu0 %v1787, 96
      %v1856 = vpop.permute.xlu0 %1855
      %1857 = vrot.lane.b32.xlu0 %v1788, 96
      %v1858 = vpop.permute.xlu0 %1857
      %1859 = vrot.lane.b32.xlu0 %v1789, 96
      %v1860 = vpop.permute.xlu0 %1859
      %1861 = vrot.lane.b32.xlu0 %v1790, 96
      %v1862 = vpop.permute.xlu0 %1861
      %v1863 = vsel %vm593, %v1816, %v1818
      %v1864 = vsel %vm593, %v1818, %v1820
      %v1865 = vsel %vm593, %v1822, %v1824
      %v1866 = vsel %vm593, %v1824, %v1826
      %v1867 = vsel %vm593, %v1828, %v1830
      %v1868 = vsel %vm593, %v1830, %v1832
      %v1869 = vsel %vm593, %v1834, %v1836
      %v1870 = vsel %vm593, %v1836, %v1838
      %v1871 = vsel %vm593, %v1840, %v1842
      %v1872 = vsel %vm593, %v1842, %v1844
      %v1873 = vsel %vm593, %v1846, %v1848
      %v1874 = vsel %vm593, %v1848, %v1850
      %v1875 = vsel %vm593, %v1852, %v1854
      %v1876 = vsel %vm593, %v1854, %v1856
      %v1877 = vsel %vm593, %v1858, %v1860
      %v1878 = vsel %vm593, %v1860, %v1862
      %v1895 = vsel %vm455, %v1863, 0.0
      %v1896 = vsel %vm456, %v1864, 0.0
      %v1897 = vsel %vm455, %v1865, 0.0
      %v1898 = vsel %vm456, %v1866, 0.0
      %v1899 = vsel %vm455, %v1867, 0.0
      %v1900 = vsel %vm456, %v1868, 0.0
      %v1901 = vsel %vm455, %v1869, 0.0
      %v1902 = vsel %vm456, %v1870, 0.0
      %v1903 = vsel %vm455, %v1871, 0.0
      %v1904 = vsel %vm456, %v1872, 0.0
      %v1905 = vsel %vm455, %v1873, 0.0
      %v1906 = vsel %vm456, %v1874, 0.0
      %v1907 = vsel %vm455, %v1875, 0.0
      %v1908 = vsel %vm456, %v1876, 0.0
      %v1909 = vsel %vm455, %v1877, 0.0
      %v1910 = vsel %vm456, %v1878, 0.0
      %1911 = vst [vmem:[#allocation3 + $0x300] sm:$0xff] %v1895
      %1912 = vst [vmem:[#allocation3 + $0x308] sm:$0xff] %v1896
      %1913 = vst [vmem:[#allocation3 + $0x310] sm:$0xff] %v1897
      %1914 = vst [vmem:[#allocation3 + $0x318] sm:$0xff] %v1898
      %1915 = vst [vmem:[#allocation3 + $0x320] sm:$0xff] %v1899
      %1916 = vst [vmem:[#allocation3 + $0x328] sm:$0xff] %v1900
      %1917 = vst [vmem:[#allocation3 + $0x330] sm:$0xff] %v1901
      %1918 = vst [vmem:[#allocation3 + $0x338] sm:$0xff] %v1902
      %1919 = vst [vmem:[#allocation3 + $0x340] sm:$0xff] %v1903
      %1920 = vst [vmem:[#allocation3 + $0x348] sm:$0xff] %v1904
      %1921 = vst [vmem:[#allocation3 + $0x350] sm:$0xff] %v1905
      %1922 = vst [vmem:[#allocation3 + $0x358] sm:$0xff] %v1906
      %1923 = vst [vmem:[#allocation3 + $0x360] sm:$0xff] %v1907
      %1924 = vst [vmem:[#allocation3 + $0x368] sm:$0xff] %v1908
      %1925 = vst [vmem:[#allocation3 + $0x370] sm:$0xff] %v1909
      %1926 = vst [vmem:[#allocation3 + $0x378] sm:$0xff] %v1910
      %v1927 = vld [vmem:[#allocation2] sm:$0xff]
      %v1928 = vld [vmem:[#allocation2 + $0x8] sm:$0xff]
      %v1929 = vld [vmem:[#allocation2 + $0x10] sm:$0xff]
      %v1930 = vld [vmem:[#allocation2 + $0x18] sm:$0xff]
      %v1931 = vld [vmem:[#allocation2 + $0x20] sm:$0xff]
      %v1932 = vld [vmem:[#allocation2 + $0x28] sm:$0xff]
      %v1933 = vld [vmem:[#allocation2 + $0x30] sm:$0xff]
      %v1934 = vld [vmem:[#allocation2 + $0x38] sm:$0xff]
      %v1935 = vld [vmem:[#allocation2 + $0x40] sm:$0xff]
      %v1936 = vld [vmem:[#allocation2 + $0x48] sm:$0xff]
      %v1937 = vld [vmem:[#allocation2 + $0x50] sm:$0xff]
      %v1938 = vld [vmem:[#allocation2 + $0x58] sm:$0xff]
      %v1939 = vld [vmem:[#allocation2 + $0x60] sm:$0xff]
      %v1940 = vld [vmem:[#allocation2 + $0x68] sm:$0xff]
      %v1941 = vld [vmem:[#allocation2 + $0x70] sm:$0xff]
      %v1942 = vld [vmem:[#allocation2 + $0x78] sm:$0xff]
      %v1943 = vld [vmem:[#allocation2 + $0x80] sm:$0xff]
      %v1944 = vld [vmem:[#allocation2 + $0x88] sm:$0xff]
      %v1945 = vld [vmem:[#allocation2 + $0x90] sm:$0xff]
      %v1946 = vld [vmem:[#allocation2 + $0x98] sm:$0xff]
      %v1947 = vld [vmem:[#allocation2 + $0xa0] sm:$0xff]
      %v1948 = vld [vmem:[#allocation2 + $0xa8] sm:$0xff]
      %v1949 = vld [vmem:[#allocation2 + $0xb0] sm:$0xff]
      %v1950 = vld [vmem:[#allocation2 + $0xb8] sm:$0xff]
      %1975 = vrot.lane.b32.xlu0 %v1927, 95
      %v1976 = vpop.permute.xlu0 %1975
      %1977 = vrot.lane.b32.xlu0 %v1928, 95
      %v1978 = vpop.permute.xlu0 %1977
      %1979 = vrot.lane.b32.xlu0 %v1929, 95
      %v1980 = vpop.permute.xlu0 %1979
      %1981 = vrot.lane.b32.xlu0 %v1930, 95
      %v1982 = vpop.permute.xlu0 %1981
      %1983 = vrot.lane.b32.xlu0 %v1931, 95
      %v1984 = vpop.permute.xlu0 %1983
      %1985 = vrot.lane.b32.xlu0 %v1932, 95
      %v1986 = vpop.permute.xlu0 %1985
      %1987 = vrot.lane.b32.xlu0 %v1933, 95
      %v1988 = vpop.permute.xlu0 %1987
      %1989 = vrot.lane.b32.xlu0 %v1934, 95
      %v1990 = vpop.permute.xlu0 %1989
      %1991 = vrot.lane.b32.xlu0 %v1935, 95
      %v1992 = vpop.permute.xlu0 %1991
      %1993 = vrot.lane.b32.xlu0 %v1936, 95
      %v1994 = vpop.permute.xlu0 %1993
      %1995 = vrot.lane.b32.xlu0 %v1937, 95
      %v1996 = vpop.permute.xlu0 %1995
      %1997 = vrot.lane.b32.xlu0 %v1938, 95
      %v1998 = vpop.permute.xlu0 %1997
      %1999 = vrot.lane.b32.xlu0 %v1939, 95
      %v2000 = vpop.permute.xlu0 %1999
      %2001 = vrot.lane.b32.xlu0 %v1940, 95
      %v2002 = vpop.permute.xlu0 %2001
      %2003 = vrot.lane.b32.xlu0 %v1941, 95
      %v2004 = vpop.permute.xlu0 %2003
      %2005 = vrot.lane.b32.xlu0 %v1942, 95
      %v2006 = vpop.permute.xlu0 %2005
      %2007 = vrot.lane.b32.xlu0 %v1943, 95
      %v2008 = vpop.permute.xlu0 %2007
      %2009 = vrot.lane.b32.xlu0 %v1944, 95
      %v2010 = vpop.permute.xlu0 %2009
      %2011 = vrot.lane.b32.xlu0 %v1945, 95
      %v2012 = vpop.permute.xlu0 %2011
      %2013 = vrot.lane.b32.xlu0 %v1946, 95
      %v2014 = vpop.permute.xlu0 %2013
      %2015 = vrot.lane.b32.xlu0 %v1947, 95
      %v2016 = vpop.permute.xlu0 %2015
      %2017 = vrot.lane.b32.xlu0 %v1948, 95
      %v2018 = vpop.permute.xlu0 %2017
      %2019 = vrot.lane.b32.xlu0 %v1949, 95
      %v2020 = vpop.permute.xlu0 %2019
      %2021 = vrot.lane.b32.xlu0 %v1950, 95
      %v2022 = vpop.permute.xlu0 %2021
      %v2023 = vsel %vm617, %v1976, %v1978
      %v2024 = vsel %vm617, %v1978, %v1980
      %v2025 = vsel %vm617, %v1982, %v1984
      %v2026 = vsel %vm617, %v1984, %v1986
      %v2027 = vsel %vm617, %v1988, %v1990
      %v2028 = vsel %vm617, %v1990, %v1992
      %v2029 = vsel %vm617, %v1994, %v1996
      %v2030 = vsel %vm617, %v1996, %v1998
      %v2031 = vsel %vm617, %v2000, %v2002
      %v2032 = vsel %vm617, %v2002, %v2004
      %v2033 = vsel %vm617, %v2006, %v2008
      %v2034 = vsel %vm617, %v2008, %v2010
      %v2035 = vsel %vm617, %v2012, %v2014
      %v2036 = vsel %vm617, %v2014, %v2016
      %v2037 = vsel %vm617, %v2018, %v2020
      %v2038 = vsel %vm617, %v2020, %v2022
      %2055 = vst [vmem:[#allocation3 + $0x380] sm:$0xff] %v2023
      %2056 = vst [vmem:[#allocation3 + $0x388] sm:$0xff] %v2024
      %2057 = vst [vmem:[#allocation3 + $0x390] sm:$0xff] %v2025
      %2058 = vst [vmem:[#allocation3 + $0x398] sm:$0xff] %v2026
      %2059 = vst [vmem:[#allocation3 + $0x3a0] sm:$0xff] %v2027
      %2060 = vst [vmem:[#allocation3 + $0x3a8] sm:$0xff] %v2028
      %2061 = vst [vmem:[#allocation3 + $0x3b0] sm:$0xff] %v2029
      %2062 = vst [vmem:[#allocation3 + $0x3b8] sm:$0xff] %v2030
      %2063 = vst [vmem:[#allocation3 + $0x3c0] sm:$0xff] %v2031
      %2064 = vst [vmem:[#allocation3 + $0x3c8] sm:$0xff] %v2032
      %2065 = vst [vmem:[#allocation3 + $0x3d0] sm:$0xff] %v2033
      %2066 = vst [vmem:[#allocation3 + $0x3d8] sm:$0xff] %v2034
      %2067 = vst [vmem:[#allocation3 + $0x3e0] sm:$0xff] %v2035
      %2068 = vst [vmem:[#allocation3 + $0x3e8] sm:$0xff] %v2036
      %2069 = vst [vmem:[#allocation3 + $0x3f0] sm:$0xff] %v2037
      %2070 = vst [vmem:[#allocation3 + $0x3f8] sm:$0xff] %v2038
      %v2071 = vld [vmem:[#allocation2] sm:$0xff]
      %v2072 = vld [vmem:[#allocation2 + $0x8] sm:$0xff]
      %v2073 = vld [vmem:[#allocation2 + $0x10] sm:$0xff]
      %v2074 = vld [vmem:[#allocation2 + $0x18] sm:$0xff]
      %v2075 = vld [vmem:[#allocation2 + $0x20] sm:$0xff]
      %v2076 = vld [vmem:[#allocation2 + $0x28] sm:$0xff]
      %v2077 = vld [vmem:[#allocation2 + $0x30] sm:$0xff]
      %v2078 = vld [vmem:[#allocation2 + $0x38] sm:$0xff]
      %v2079 = vld [vmem:[#allocation2 + $0x40] sm:$0xff]
      %v2080 = vld [vmem:[#allocation2 + $0x48] sm:$0xff]
      %v2081 = vld [vmem:[#allocation2 + $0x50] sm:$0xff]
      %v2082 = vld [vmem:[#allocation2 + $0x58] sm:$0xff]
      %v2083 = vld [vmem:[#allocation2 + $0x60] sm:$0xff]
      %v2084 = vld [vmem:[#allocation2 + $0x68] sm:$0xff]
      %v2085 = vld [vmem:[#allocation2 + $0x70] sm:$0xff]
      %v2086 = vld [vmem:[#allocation2 + $0x78] sm:$0xff]
      %v2087 = vld [vmem:[#allocation2 + $0x80] sm:$0xff]
      %v2088 = vld [vmem:[#allocation2 + $0x88] sm:$0xff]
      %v2089 = vld [vmem:[#allocation2 + $0x90] sm:$0xff]
      %v2090 = vld [vmem:[#allocation2 + $0x98] sm:$0xff]
      %v2091 = vld [vmem:[#allocation2 + $0xa0] sm:$0xff]
      %v2092 = vld [vmem:[#allocation2 + $0xa8] sm:$0xff]
      %v2093 = vld [vmem:[#allocation2 + $0xb0] sm:$0xff]
      %v2094 = vld [vmem:[#allocation2 + $0xb8] sm:$0xff]
      %2119 = vrot.lane.b32.xlu0 %v2071, 94
      %v2120 = vpop.permute.xlu0 %2119
      %2121 = vrot.lane.b32.xlu0 %v2072, 94
      %v2122 = vpop.permute.xlu0 %2121
      %2123 = vrot.lane.b32.xlu0 %v2073, 94
      %v2124 = vpop.permute.xlu0 %2123
      %2125 = vrot.lane.b32.xlu0 %v2074, 94
      %v2126 = vpop.permute.xlu0 %2125
      %2127 = vrot.lane.b32.xlu0 %v2075, 94
      %v2128 = vpop.permute.xlu0 %2127
      %2129 = vrot.lane.b32.xlu0 %v2076, 94
      %v2130 = vpop.permute.xlu0 %2129
      %2131 = vrot.lane.b32.xlu0 %v2077, 94
      %v2132 = vpop.permute.xlu0 %2131
      %2133 = vrot.lane.b32.xlu0 %v2078, 94
      %v2134 = vpop.permute.xlu0 %2133
      %2135 = vrot.lane.b32.xlu0 %v2079, 94
      %v2136 = vpop.permute.xlu0 %2135
      %2137 = vrot.lane.b32.xlu0 %v2080, 94
      %v2138 = vpop.permute.xlu0 %2137
      %2139 = vrot.lane.b32.xlu0 %v2081, 94
      %v2140 = vpop.permute.xlu0 %2139
      %2141 = vrot.lane.b32.xlu0 %v2082, 94
      %v2142 = vpop.permute.xlu0 %2141
      %2143 = vrot.lane.b32.xlu0 %v2083, 94
      %v2144 = vpop.permute.xlu0 %2143
      %2145 = vrot.lane.b32.xlu0 %v2084, 94
      %v2146 = vpop.permute.xlu0 %2145
      %2147 = vrot.lane.b32.xlu0 %v2085, 94
      %v2148 = vpop.permute.xlu0 %2147
      %2149 = vrot.lane.b32.xlu0 %v2086, 94
      %v2150 = vpop.permute.xlu0 %2149
      %2151 = vrot.lane.b32.xlu0 %v2087, 94
      %v2152 = vpop.permute.xlu0 %2151
      %2153 = vrot.lane.b32.xlu0 %v2088, 94
      %v2154 = vpop.permute.xlu0 %2153
      %2155 = vrot.lane.b32.xlu0 %v2089, 94
      %v2156 = vpop.permute.xlu0 %2155
      %2157 = vrot.lane.b32.xlu0 %v2090, 94
      %v2158 = vpop.permute.xlu0 %2157
      %2159 = vrot.lane.b32.xlu0 %v2091, 94
      %v2160 = vpop.permute.xlu0 %2159
      %2161 = vrot.lane.b32.xlu0 %v2092, 94
      %v2162 = vpop.permute.xlu0 %2161
      %2163 = vrot.lane.b32.xlu0 %v2093, 94
      %v2164 = vpop.permute.xlu0 %2163
      %2165 = vrot.lane.b32.xlu0 %v2094, 94
      %v2166 = vpop.permute.xlu0 %2165
      %v2167 = vsel %vm636, %v2120, %v2122
      %v2168 = vsel %vm636, %v2122, %v2124
      %v2169 = vsel %vm636, %v2126, %v2128
      %v2170 = vsel %vm636, %v2128, %v2130
      %v2171 = vsel %vm636, %v2132, %v2134
      %v2172 = vsel %vm636, %v2134, %v2136
      %v2173 = vsel %vm636, %v2138, %v2140
      %v2174 = vsel %vm636, %v2140, %v2142
      %v2175 = vsel %vm636, %v2144, %v2146
      %v2176 = vsel %vm636, %v2146, %v2148
      %v2177 = vsel %vm636, %v2150, %v2152
      %v2178 = vsel %vm636, %v2152, %v2154
      %v2179 = vsel %vm636, %v2156, %v2158
      %v2180 = vsel %vm636, %v2158, %v2160
      %v2181 = vsel %vm636, %v2162, %v2164
      %v2182 = vsel %vm636, %v2164, %v2166
      %v2199 = vsel %vm488, %v2167, 0.0
      %v2200 = vsel %vm489, %v2168, 0.0
      %v2201 = vsel %vm488, %v2169, 0.0
      %v2202 = vsel %vm489, %v2170, 0.0
      %v2203 = vsel %vm488, %v2171, 0.0
      %v2204 = vsel %vm489, %v2172, 0.0
      %v2205 = vsel %vm488, %v2173, 0.0
      %v2206 = vsel %vm489, %v2174, 0.0
      %v2207 = vsel %vm488, %v2175, 0.0
      %v2208 = vsel %vm489, %v2176, 0.0
      %v2209 = vsel %vm488, %v2177, 0.0
      %v2210 = vsel %vm489, %v2178, 0.0
      %v2211 = vsel %vm488, %v2179, 0.0
      %v2212 = vsel %vm489, %v2180, 0.0
      %v2213 = vsel %vm488, %v2181, 0.0
      %v2214 = vsel %vm489, %v2182, 0.0
      %2215 = vst [vmem:[#allocation3 + $0x400] sm:$0xff] %v2199
      %2216 = vst [vmem:[#allocation3 + $0x408] sm:$0xff] %v2200
      %2217 = vst [vmem:[#allocation3 + $0x410] sm:$0xff] %v2201
      %2218 = vst [vmem:[#allocation3 + $0x418] sm:$0xff] %v2202
      %2219 = vst [vmem:[#allocation3 + $0x420] sm:$0xff] %v2203
      %2220 = vst [vmem:[#allocation3 + $0x428] sm:$0xff] %v2204
      %2221 = vst [vmem:[#allocation3 + $0x430] sm:$0xff] %v2205
      %2222 = vst [vmem:[#allocation3 + $0x438] sm:$0xff] %v2206
      %2223 = vst [vmem:[#allocation3 + $0x440] sm:$0xff] %v2207
      %2224 = vst [vmem:[#allocation3 + $0x448] sm:$0xff] %v2208
      %2225 = vst [vmem:[#allocation3 + $0x450] sm:$0xff] %v2209
      %2226 = vst [vmem:[#allocation3 + $0x458] sm:$0xff] %v2210
      %2227 = vst [vmem:[#allocation3 + $0x460] sm:$0xff] %v2211
      %2228 = vst [vmem:[#allocation3 + $0x468] sm:$0xff] %v2212
      %2229 = vst [vmem:[#allocation3 + $0x470] sm:$0xff] %v2213
      %2230 = vst [vmem:[#allocation3 + $0x478] sm:$0xff] %v2214
      %v2231 = vld [vmem:[#allocation3] sm:$0xff]
      %v2232 = vld [vmem:[#allocation3 + $0x8] sm:$0xff]
      %v2233 = vld [vmem:[#allocation3 + $0x10] sm:$0xff]
      %v2234 = vld [vmem:[#allocation3 + $0x18] sm:$0xff]
      %v2235 = vld [vmem:[#allocation3 + $0x20] sm:$0xff]
      %v2236 = vld [vmem:[#allocation3 + $0x28] sm:$0xff]
      %v2237 = vld [vmem:[#allocation3 + $0x30] sm:$0xff]
      %v2238 = vld [vmem:[#allocation3 + $0x38] sm:$0xff]
      %v2239 = vld [vmem:[#allocation3 + $0x40] sm:$0xff]
      %v2240 = vld [vmem:[#allocation3 + $0x48] sm:$0xff]
      %v2241 = vld [vmem:[#allocation3 + $0x50] sm:$0xff]
      %v2242 = vld [vmem:[#allocation3 + $0x58] sm:$0xff]
      %v2243 = vld [vmem:[#allocation3 + $0x60] sm:$0xff]
      %v2244 = vld [vmem:[#allocation3 + $0x68] sm:$0xff]
      %v2245 = vld [vmem:[#allocation3 + $0x70] sm:$0xff]
      %v2246 = vld [vmem:[#allocation3 + $0x78] sm:$0xff]
      %v2247 = vld [vmem:[#allocation3 + $0x80] sm:$0xff]
      %v2248 = vld [vmem:[#allocation3 + $0x88] sm:$0xff]
      %v2249 = vld [vmem:[#allocation3 + $0x90] sm:$0xff]
      %v2250 = vld [vmem:[#allocation3 + $0x98] sm:$0xff]
      %v2251 = vld [vmem:[#allocation3 + $0xa0] sm:$0xff]
      %v2252 = vld [vmem:[#allocation3 + $0xa8] sm:$0xff]
      %v2253 = vld [vmem:[#allocation3 + $0xb0] sm:$0xff]
      %v2254 = vld [vmem:[#allocation3 + $0xb8] sm:$0xff]
      %v2255 = vld [vmem:[#allocation3 + $0xc0] sm:$0xff]
      %v2256 = vld [vmem:[#allocation3 + $0xc8] sm:$0xff]
      %v2257 = vld [vmem:[#allocation3 + $0xd0] sm:$0xff]
      %v2258 = vld [vmem:[#allocation3 + $0xd8] sm:$0xff]
      %v2259 = vld [vmem:[#allocation3 + $0xe0] sm:$0xff]
      %v2260 = vld [vmem:[#allocation3 + $0xe8] sm:$0xff]
      %v2261 = vld [vmem:[#allocation3 + $0xf0] sm:$0xff]
      %v2262 = vld [vmem:[#allocation3 + $0xf8] sm:$0xff]
      %v2263 = vld [vmem:[#allocation3 + $0x100] sm:$0xff]
      %v2264 = vld [vmem:[#allocation3 + $0x108] sm:$0xff]
      %v2265 = vld [vmem:[#allocation3 + $0x110] sm:$0xff]
      %v2266 = vld [vmem:[#allocation3 + $0x118] sm:$0xff]
      %v2267 = vld [vmem:[#allocation3 + $0x120] sm:$0xff]
      %v2268 = vld [vmem:[#allocation3 + $0x128] sm:$0xff]
      %v2269 = vld [vmem:[#allocation3 + $0x130] sm:$0xff]
      %v2270 = vld [vmem:[#allocation3 + $0x138] sm:$0xff]
      %v2271 = vld [vmem:[#allocation3 + $0x140] sm:$0xff]
      %v2272 = vld [vmem:[#allocation3 + $0x148] sm:$0xff]
      %v2273 = vld [vmem:[#allocation3 + $0x150] sm:$0xff]
      %v2274 = vld [vmem:[#allocation3 + $0x158] sm:$0xff]
      %v2275 = vld [vmem:[#allocation3 + $0x160] sm:$0xff]
      %v2276 = vld [vmem:[#allocation3 + $0x168] sm:$0xff]
      %v2277 = vld [vmem:[#allocation3 + $0x170] sm:$0xff]
      %v2278 = vld [vmem:[#allocation3 + $0x178] sm:$0xff]
      %v2279 = vld [vmem:[#allocation3 + $0x180] sm:$0xff]
      %v2280 = vld [vmem:[#allocation3 + $0x188] sm:$0xff]
      %v2281 = vld [vmem:[#allocation3 + $0x190] sm:$0xff]
      %v2282 = vld [vmem:[#allocation3 + $0x198] sm:$0xff]
      %v2283 = vld [vmem:[#allocation3 + $0x1a0] sm:$0xff]
      %v2284 = vld [vmem:[#allocation3 + $0x1a8] sm:$0xff]
      %v2285 = vld [vmem:[#allocation3 + $0x1b0] sm:$0xff]
      %v2286 = vld [vmem:[#allocation3 + $0x1b8] sm:$0xff]
      %v2287 = vld [vmem:[#allocation3 + $0x1c0] sm:$0xff]
      %v2288 = vld [vmem:[#allocation3 + $0x1c8] sm:$0xff]
      %v2289 = vld [vmem:[#allocation3 + $0x1d0] sm:$0xff]
      %v2290 = vld [vmem:[#allocation3 + $0x1d8] sm:$0xff]
      %v2291 = vld [vmem:[#allocation3 + $0x1e0] sm:$0xff]
      %v2292 = vld [vmem:[#allocation3 + $0x1e8] sm:$0xff]
      %v2293 = vld [vmem:[#allocation3 + $0x1f0] sm:$0xff]
      %v2294 = vld [vmem:[#allocation3 + $0x1f8] sm:$0xff]
      %v2295 = vld [vmem:[#allocation3 + $0x200] sm:$0xff]
      %v2296 = vld [vmem:[#allocation3 + $0x208] sm:$0xff]
      %v2297 = vld [vmem:[#allocation3 + $0x210] sm:$0xff]
      %v2298 = vld [vmem:[#allocation3 + $0x218] sm:$0xff]
      %v2299 = vld [vmem:[#allocation3 + $0x220] sm:$0xff]
      %v2300 = vld [vmem:[#allocation3 + $0x228] sm:$0xff]
      %v2301 = vld [vmem:[#allocation3 + $0x230] sm:$0xff]
      %v2302 = vld [vmem:[#allocation3 + $0x238] sm:$0xff]
      %v2303 = vld [vmem:[#allocation3 + $0x240] sm:$0xff]
      %v2304 = vld [vmem:[#allocation3 + $0x248] sm:$0xff]
      %v2305 = vld [vmem:[#allocation3 + $0x250] sm:$0xff]
      %v2306 = vld [vmem:[#allocation3 + $0x258] sm:$0xff]
      %v2307 = vld [vmem:[#allocation3 + $0x260] sm:$0xff]
      %v2308 = vld [vmem:[#allocation3 + $0x268] sm:$0xff]
      %v2309 = vld [vmem:[#allocation3 + $0x270] sm:$0xff]
      %v2310 = vld [vmem:[#allocation3 + $0x278] sm:$0xff]
      %v2311 = vld [vmem:[#allocation3 + $0x280] sm:$0xff]
      %v2312 = vld [vmem:[#allocation3 + $0x288] sm:$0xff]
      %v2313 = vld [vmem:[#allocation3 + $0x290] sm:$0xff]
      %v2314 = vld [vmem:[#allocation3 + $0x298] sm:$0xff]
      %v2315 = vld [vmem:[#allocation3 + $0x2a0] sm:$0xff]
      %v2316 = vld [vmem:[#allocation3 + $0x2a8] sm:$0xff]
      %v2317 = vld [vmem:[#allocation3 + $0x2b0] sm:$0xff]
      %v2318 = vld [vmem:[#allocation3 + $0x2b8] sm:$0xff]
      %v2319 = vld [vmem:[#allocation3 + $0x2c0] sm:$0xff]
      %v2320 = vld [vmem:[#allocation3 + $0x2c8] sm:$0xff]
      %v2321 = vld [vmem:[#allocation3 + $0x2d0] sm:$0xff]
      %v2322 = vld [vmem:[#allocation3 + $0x2d8] sm:$0xff]
      %v2323 = vld [vmem:[#allocation3 + $0x2e0] sm:$0xff]
      %v2324 = vld [vmem:[#allocation3 + $0x2e8] sm:$0xff]
      %v2325 = vld [vmem:[#allocation3 + $0x2f0] sm:$0xff]
      %v2326 = vld [vmem:[#allocation3 + $0x2f8] sm:$0xff]
      %v2327 = vld [vmem:[#allocation3 + $0x300] sm:$0xff]
      %v2328 = vld [vmem:[#allocation3 + $0x308] sm:$0xff]
      %v2329 = vld [vmem:[#allocation3 + $0x310] sm:$0xff]
      %v2330 = vld [vmem:[#allocation3 + $0x318] sm:$0xff]
      %v2331 = vld [vmem:[#allocation3 + $0x320] sm:$0xff]
      %v2332 = vld [vmem:[#allocation3 + $0x328] sm:$0xff]
      %v2333 = vld [vmem:[#allocation3 + $0x330] sm:$0xff]
      %v2334 = vld [vmem:[#allocation3 + $0x338] sm:$0xff]
      %v2335 = vld [vmem:[#allocation3 + $0x340] sm:$0xff]
      %v2336 = vld [vmem:[#allocation3 + $0x348] sm:$0xff]
      %v2337 = vld [vmem:[#allocation3 + $0x350] sm:$0xff]
      %v2338 = vld [vmem:[#allocation3 + $0x358] sm:$0xff]
      %v2339 = vld [vmem:[#allocation3 + $0x360] sm:$0xff]
      %v2340 = vld [vmem:[#allocation3 + $0x368] sm:$0xff]
      %v2341 = vld [vmem:[#allocation3 + $0x370] sm:$0xff]
      %v2342 = vld [vmem:[#allocation3 + $0x378] sm:$0xff]
      %v2343 = vld [vmem:[#allocation3 + $0x380] sm:$0xff]
      %v2344 = vld [vmem:[#allocation3 + $0x388] sm:$0xff]
      %v2345 = vld [vmem:[#allocation3 + $0x390] sm:$0xff]
      %v2346 = vld [vmem:[#allocation3 + $0x398] sm:$0xff]
      %v2347 = vld [vmem:[#allocation3 + $0x3a0] sm:$0xff]
      %v2348 = vld [vmem:[#allocation3 + $0x3a8] sm:$0xff]
      %v2349 = vld [vmem:[#allocation3 + $0x3b0] sm:$0xff]
      %v2350 = vld [vmem:[#allocation3 + $0x3b8] sm:$0xff]
      %v2351 = vld [vmem:[#allocation3 + $0x3c0] sm:$0xff]
      %v2352 = vld [vmem:[#allocation3 + $0x3c8] sm:$0xff]
      %v2353 = vld [vmem:[#allocation3 + $0x3d0] sm:$0xff]
      %v2354 = vld [vmem:[#allocation3 + $0x3d8] sm:$0xff]
      %v2355 = vld [vmem:[#allocation3 + $0x3e0] sm:$0xff]
      %v2356 = vld [vmem:[#allocation3 + $0x3e8] sm:$0xff]
      %v2357 = vld [vmem:[#allocation3 + $0x3f0] sm:$0xff]
      %v2358 = vld [vmem:[#allocation3 + $0x3f8] sm:$0xff]
      %v2359 = vld [vmem:[#allocation3 + $0x400] sm:$0xff]
      %v2360 = vld [vmem:[#allocation3 + $0x408] sm:$0xff]
      %v2361 = vld [vmem:[#allocation3 + $0x410] sm:$0xff]
      %v2362 = vld [vmem:[#allocation3 + $0x418] sm:$0xff]
      %v2363 = vld [vmem:[#allocation3 + $0x420] sm:$0xff]
      %v2364 = vld [vmem:[#allocation3 + $0x428] sm:$0xff]
      %v2365 = vld [vmem:[#allocation3 + $0x430] sm:$0xff]
      %v2366 = vld [vmem:[#allocation3 + $0x438] sm:$0xff]
      %v2367 = vld [vmem:[#allocation3 + $0x440] sm:$0xff]
      %v2368 = vld [vmem:[#allocation3 + $0x448] sm:$0xff]
      %v2369 = vld [vmem:[#allocation3 + $0x450] sm:$0xff]
      %v2370 = vld [vmem:[#allocation3 + $0x458] sm:$0xff]
      %v2371 = vld [vmem:[#allocation3 + $0x460] sm:$0xff]
      %v2372 = vld [vmem:[#allocation3 + $0x468] sm:$0xff]
      %v2373 = vld [vmem:[#allocation3 + $0x470] sm:$0xff]
      %v2374 = vld [vmem:[#allocation3 + $0x478] sm:$0xff]
      %v2375 = vpack.c.bf16 %v2233, %v2231
      %v2376 = vpack.c.bf16 %v2234, %v2232
      %v2377 = vpack.c.bf16 %v2237, %v2235
      %v2378 = vpack.c.bf16 %v2238, %v2236
      %v2379 = vpack.c.bf16 %v2241, %v2239
      %v2380 = vpack.c.bf16 %v2242, %v2240
      %v2381 = vpack.c.bf16 %v2245, %v2243
      %v2382 = vpack.c.bf16 %v2246, %v2244
      %v2383 = vpack.c.bf16 %v2249, %v2247
      %v2384 = vpack.c.bf16 %v2250, %v2248
      %v2385 = vpack.c.bf16 %v2253, %v2251
      %v2386 = vpack.c.bf16 %v2254, %v2252
      %v2387 = vpack.c.bf16 %v2257, %v2255
      %v2388 = vpack.c.bf16 %v2258, %v2256
      %v2389 = vpack.c.bf16 %v2261, %v2259
      %v2390 = vpack.c.bf16 %v2262, %v2260
      %v2391 = vpack.c.bf16 %v2265, %v2263
      %v2392 = vpack.c.bf16 %v2266, %v2264
      %v2393 = vpack.c.bf16 %v2269, %v2267
      %v2394 = vpack.c.bf16 %v2270, %v2268
      %v2395 = vpack.c.bf16 %v2273, %v2271
      %v2396 = vpack.c.bf16 %v2274, %v2272
      %v2397 = vpack.c.bf16 %v2277, %v2275
      %v2398 = vpack.c.bf16 %v2278, %v2276
      %v2399 = vpack.c.bf16 %v2281, %v2279
      %v2400 = vpack.c.bf16 %v2282, %v2280
      %v2401 = vpack.c.bf16 %v2285, %v2283
      %v2402 = vpack.c.bf16 %v2286, %v2284
      %v2403 = vpack.c.bf16 %v2289, %v2287
      %v2404 = vpack.c.bf16 %v2290, %v2288
      %v2405 = vpack.c.bf16 %v2293, %v2291
      %v2406 = vpack.c.bf16 %v2294, %v2292
      %v2407 = vpack.c.bf16 %v2297, %v2295
      %v2408 = vpack.c.bf16 %v2298, %v2296
      %v2409 = vpack.c.bf16 %v2301, %v2299
      %v2410 = vpack.c.bf16 %v2302, %v2300
      %v2411 = vpack.c.bf16 %v2305, %v2303
      %v2412 = vpack.c.bf16 %v2306, %v2304
      %v2413 = vpack.c.bf16 %v2309, %v2307
      %v2414 = vpack.c.bf16 %v2310, %v2308
      %v2415 = vpack.c.bf16 %v2313, %v2311
      %v2416 = vpack.c.bf16 %v2314, %v2312
      %v2417 = vpack.c.bf16 %v2317, %v2315
      %v2418 = vpack.c.bf16 %v2318, %v2316
      %v2419 = vpack.c.bf16 %v2321, %v2319
      %v2420 = vpack.c.bf16 %v2322, %v2320
      %v2421 = vpack.c.bf16 %v2325, %v2323
      %v2422 = vpack.c.bf16 %v2326, %v2324
      %v2423 = vpack.c.bf16 %v2329, %v2327
      %v2424 = vpack.c.bf16 %v2330, %v2328
      %v2425 = vpack.c.bf16 %v2333, %v2331
      %v2426 = vpack.c.bf16 %v2334, %v2332
      %v2427 = vpack.c.bf16 %v2337, %v2335
      %v2428 = vpack.c.bf16 %v2338, %v2336
      %v2429 = vpack.c.bf16 %v2341, %v2339
      %v2430 = vpack.c.bf16 %v2342, %v2340
      %v2431 = vpack.c.bf16 %v2345, %v2343
      %v2432 = vpack.c.bf16 %v2346, %v2344
      %v2433 = vpack.c.bf16 %v2349, %v2347
      %v2434 = vpack.c.bf16 %v2350, %v2348
      %v2435 = vpack.c.bf16 %v2353, %v2351
      %v2436 = vpack.c.bf16 %v2354, %v2352
      %v2437 = vpack.c.bf16 %v2357, %v2355
      %v2438 = vpack.c.bf16 %v2358, %v2356
      %v2439 = vpack.c.bf16 %v2361, %v2359
      %v2440 = vpack.c.bf16 %v2362, %v2360
      %v2441 = vpack.c.bf16 %v2365, %v2363
      %v2442 = vpack.c.bf16 %v2366, %v2364
      %v2443 = vpack.c.bf16 %v2369, %v2367
      %v2444 = vpack.c.bf16 %v2370, %v2368
      %v2445 = vpack.c.bf16 %v2373, %v2371
      %v2446 = vpack.c.bf16 %v2374, %v2372
      %v2447 = vld [vmem:[%s4] sm:$0xff]
      %v2448 = vld [vmem:[%s4 + $0x8] sm:$0xff]
      %v2449 = vld [vmem:[%s4 + $0x10] sm:$0xf]
      %v2450 = vld [vmem:[%s4 + $0x14] sm:$0xff]
      %v2451 = vld [vmem:[%s4 + $0x1c] sm:$0xff]
      %v2452 = vld [vmem:[%s4 + $0x24] sm:$0xf]
      %v2453 = vld [vmem:[%s4 + $0x28] sm:$0xff]
      %v2454 = vld [vmem:[%s4 + $0x30] sm:$0xff]
      %v2455 = vld [vmem:[%s4 + $0x38] sm:$0xf]
      %v2456 = vld [vmem:[%s4 + $0x3c] sm:$0xff]
      %v2457 = vld [vmem:[%s4 + $0x44] sm:$0xff]
      %v2458 = vld [vmem:[%s4 + $0x4c] sm:$0xf]
      %v2459 = vld [vmem:[%s4 + $0x50] sm:$0xff]
      %v2460 = vld [vmem:[%s4 + $0x58] sm:$0xff]
      %v2461 = vld [vmem:[%s4 + $0x60] sm:$0xf]
      %v2462 = vld [vmem:[%s4 + $0x64] sm:$0xff]
      %v2463 = vld [vmem:[%s4 + $0x6c] sm:$0xff]
      %v2464 = vld [vmem:[%s4 + $0x74] sm:$0xf]
      %v2465 = vld [vmem:[%s4 + $0x78] sm:$0xff]
      %v2466 = vld [vmem:[%s4 + $0x80] sm:$0xff]
      %v2467 = vld [vmem:[%s4 + $0x88] sm:$0xf]
      %v2468 = vld [vmem:[%s4 + $0x8c] sm:$0xff]
      %v2469 = vld [vmem:[%s4 + $0x94] sm:$0xff]
      %v2470 = vld [vmem:[%s4 + $0x9c] sm:$0xf]
      %v2471 = vld [vmem:[%s4 + $0xa0] sm:$0xff]
      %v2472 = vld [vmem:[%s4 + $0xa8] sm:$0xff]
      %v2473 = vld [vmem:[%s4 + $0xb0] sm:$0xf]
      %v2474 = vld [vmem:[%s4 + $0xb4] sm:$0xff]
      %v2475 = vld [vmem:[%s4 + $0xbc] sm:$0xff]
      %v2476 = vld [vmem:[%s4 + $0xc4] sm:$0xf]
      %v2477 = vld [vmem:[%s4 + $0xc8] sm:$0xff]
      %v2478 = vld [vmem:[%s4 + $0xd0] sm:$0xff]
      %v2479 = vld [vmem:[%s4 + $0xd8] sm:$0xf]
      %v2480 = vld [vmem:[%s4 + $0xdc] sm:$0xff]
      %v2481 = vld [vmem:[%s4 + $0xe4] sm:$0xff]
      %v2482 = vld [vmem:[%s4 + $0xec] sm:$0xf]
      %v2483 = vld [vmem:[%s4 + $0xf0] sm:$0xff]
      %v2484 = vld [vmem:[%s4 + $0xf8] sm:$0xff]
      %v2485 = vld [vmem:[%s4 + $0x100] sm:$0xf]
      %v2486 = vld [vmem:[%s4 + $0x104] sm:$0xff]
      %v2487 = vld [vmem:[%s4 + $0x10c] sm:$0xff]
      %v2488 = vld [vmem:[%s4 + $0x114] sm:$0xf]
      %v2489 = vld [vmem:[%s4 + $0x118] sm:$0xff]
      %v2490 = vld [vmem:[%s4 + $0x120] sm:$0xff]
      %v2491 = vld [vmem:[%s4 + $0x128] sm:$0xf]
      %v2492 = vld [vmem:[%s4 + $0x12c] sm:$0xff]
      %v2493 = vld [vmem:[%s4 + $0x134] sm:$0xff]
      %v2494 = vld [vmem:[%s4 + $0x13c] sm:$0xf]
      %v2495 = vld [vmem:[%s5] sm:$0xff]
      %v2496 = vld [vmem:[%s5 + $0x8] sm:$0xff]
      %v2497 = vld [vmem:[%s5 + $0x10] sm:$0xff]
      %v2498 = vld [vmem:[%s5 + $0x18] sm:$0xff]
      %v2499 = vld [vmem:[%s5 + $0x20] sm:$0xff]
      %v2500 = vld [vmem:[%s5 + $0x28] sm:$0xff]
      %v2501 = vld [vmem:[%s5 + $0x30] sm:$0xff]
      %v2502 = vld [vmem:[%s5 + $0x38] sm:$0xff]
      %v2503 = vld [vmem:[%s5 + $0x40] sm:$0xff]
      %v2504 = vld [vmem:[%s5 + $0x48] sm:$0xff]
      %v2505 = vld [vmem:[%s5 + $0x50] sm:$0xff]
      %v2506 = vld [vmem:[%s5 + $0x58] sm:$0xff]
      %v2507 = vld [vmem:[%s5 + $0x60] sm:$0xff]
      %v2508 = vld [vmem:[%s5 + $0x68] sm:$0xff]
      %v2509 = vld [vmem:[%s5 + $0x70] sm:$0xff]
      %v2510 = vld [vmem:[%s5 + $0x78] sm:$0xff]
      %2512 = vset.pattern.permute.xlu0 0
      %2513 = vperm.xlu0 %2512, %v2495
      %v2514 = vpop.permute.xlu0 %2513
      %2517 = vset.pattern.permute.xlu0 0
      %2518 = vperm.xlu0 %2517, %v2496
      %v2519 = vpop.permute.xlu0 %2518
      %2522 = vset.pattern.permute.xlu0 0
      %2523 = vperm.xlu0 %2522, %v2497
      %v2524 = vpop.permute.xlu0 %2523
      %2527 = vset.pattern.permute.xlu0 0
      %2528 = vperm.xlu0 %2527, %v2498
      %v2529 = vpop.permute.xlu0 %2528
      %2532 = vset.pattern.permute.xlu0 0
      %2533 = vperm.xlu0 %2532, %v2499
      %v2534 = vpop.permute.xlu0 %2533
      %2537 = vset.pattern.permute.xlu0 0
      %2538 = vperm.xlu0 %2537, %v2500
      %v2539 = vpop.permute.xlu0 %2538
      %2542 = vset.pattern.permute.xlu0 0
      %2543 = vperm.xlu0 %2542, %v2501
      %v2544 = vpop.permute.xlu0 %2543
      %2547 = vset.pattern.permute.xlu0 0
      %2548 = vperm.xlu0 %2547, %v2502
      %v2549 = vpop.permute.xlu0 %2548
      %2552 = vset.pattern.permute.xlu0 0
      %2553 = vperm.xlu0 %2552, %v2503
      %v2554 = vpop.permute.xlu0 %2553
      %2557 = vset.pattern.permute.xlu0 0
      %2558 = vperm.xlu0 %2557, %v2504
      %v2559 = vpop.permute.xlu0 %2558
      %2562 = vset.pattern.permute.xlu0 0
      %2563 = vperm.xlu0 %2562, %v2505
      %v2564 = vpop.permute.xlu0 %2563
      %2567 = vset.pattern.permute.xlu0 0
      %2568 = vperm.xlu0 %2567, %v2506
      %v2569 = vpop.permute.xlu0 %2568
      %2572 = vset.pattern.permute.xlu0 0
      %2573 = vperm.xlu0 %2572, %v2507
      %v2574 = vpop.permute.xlu0 %2573
      %2577 = vset.pattern.permute.xlu0 0
      %2578 = vperm.xlu0 %2577, %v2508
      %v2579 = vpop.permute.xlu0 %2578
      %2582 = vset.pattern.permute.xlu0 0
      %2583 = vperm.xlu0 %2582, %v2509
      %v2584 = vpop.permute.xlu0 %2583
      %2587 = vset.pattern.permute.xlu0 0
      %2588 = vperm.xlu0 %2587, %v2510
      %v2589 = vpop.permute.xlu0 %2588
      %v2639 = vunpack.c.l.b16 %v2447
      %v2640 = vunpack.c.h.b16 %v2447
      %v2641 = vunpack.c.l.b16 %v2448
      %v2642 = vunpack.c.h.b16 %v2448
      %v2643 = vunpack.c.l.b16 %v2449
      %v2644 = vunpack.c.l.b16 %v2450
      %v2645 = vunpack.c.h.b16 %v2450
      %v2646 = vunpack.c.l.b16 %v2451
      %v2647 = vunpack.c.h.b16 %v2451
      %v2648 = vunpack.c.l.b16 %v2452
      %v2649 = vunpack.c.l.b16 %v2453
      %v2650 = vunpack.c.h.b16 %v2453
      %v2651 = vunpack.c.l.b16 %v2454
      %v2652 = vunpack.c.h.b16 %v2454
      %v2653 = vunpack.c.l.b16 %v2455
      %v2654 = vunpack.c.l.b16 %v2456
      %v2655 = vunpack.c.h.b16 %v2456
      %v2656 = vunpack.c.l.b16 %v2457
      %v2657 = vunpack.c.h.b16 %v2457
      %v2658 = vunpack.c.l.b16 %v2458
      %v2659 = vunpack.c.l.b16 %v2459
      %v2660 = vunpack.c.h.b16 %v2459
      %v2661 = vunpack.c.l.b16 %v2460
      %v2662 = vunpack.c.h.b16 %v2460
      %v2663 = vunpack.c.l.b16 %v2461
      %v2664 = vunpack.c.l.b16 %v2462
      %v2665 = vunpack.c.h.b16 %v2462
      %v2666 = vunpack.c.l.b16 %v2463
      %v2667 = vunpack.c.h.b16 %v2463
      %v2668 = vunpack.c.l.b16 %v2464
      %v2669 = vunpack.c.l.b16 %v2465
      %v2670 = vunpack.c.h.b16 %v2465
      %v2671 = vunpack.c.l.b16 %v2466
      %v2672 = vunpack.c.h.b16 %v2466
      %v2673 = vunpack.c.l.b16 %v2467
      %v2674 = vunpack.c.l.b16 %v2468
      %v2675 = vunpack.c.h.b16 %v2468
      %v2676 = vunpack.c.l.b16 %v2469
      %v2677 = vunpack.c.h.b16 %v2469
      %v2678 = vunpack.c.l.b16 %v2470
      %v2679 = vunpack.c.l.b16 %v2471
      %v2680 = vunpack.c.h.b16 %v2471
      %v2681 = vunpack.c.l.b16 %v2472
      %v2682 = vunpack.c.h.b16 %v2472
      %v2683 = vunpack.c.l.b16 %v2473
      %v2684 = vunpack.c.l.b16 %v2474
      %v2685 = vunpack.c.h.b16 %v2474
      %v2686 = vunpack.c.l.b16 %v2475
      %v2687 = vunpack.c.h.b16 %v2475
      %v2688 = vunpack.c.l.b16 %v2476
      %v2689 = vunpack.c.l.b16 %v2477
      %v2690 = vunpack.c.h.b16 %v2477
      %v2691 = vunpack.c.l.b16 %v2478
      %v2692 = vunpack.c.h.b16 %v2478
      %v2693 = vunpack.c.l.b16 %v2479
      %v2694 = vunpack.c.l.b16 %v2480
      %v2695 = vunpack.c.h.b16 %v2480
      %v2696 = vunpack.c.l.b16 %v2481
      %v2697 = vunpack.c.h.b16 %v2481
      %v2698 = vunpack.c.l.b16 %v2482
      %v2699 = vunpack.c.l.b16 %v2483
      %v2700 = vunpack.c.h.b16 %v2483
      %v2701 = vunpack.c.l.b16 %v2484
      %v2702 = vunpack.c.h.b16 %v2484
      %v2703 = vunpack.c.l.b16 %v2485
      %v2704 = vunpack.c.l.b16 %v2486
      %v2705 = vunpack.c.h.b16 %v2486
      %v2706 = vunpack.c.l.b16 %v2487
      %v2707 = vunpack.c.h.b16 %v2487
      %v2708 = vunpack.c.l.b16 %v2488
      %v2709 = vunpack.c.l.b16 %v2489
      %v2710 = vunpack.c.h.b16 %v2489
      %v2711 = vunpack.c.l.b16 %v2490
      %v2712 = vunpack.c.h.b16 %v2490
      %v2713 = vunpack.c.l.b16 %v2491
      %v2714 = vunpack.c.l.b16 %v2492
      %v2715 = vunpack.c.h.b16 %v2492
      %v2716 = vunpack.c.l.b16 %v2493
      %v2717 = vunpack.c.h.b16 %v2493
      %v2718 = vunpack.c.l.b16 %v2494
      %v2719 = vpack.c.b16 %v2644, %v2639
      %v2720 = vpack.c.b16 %v2645, %v2640
      %v2721 = vpack.c.b16 %v2646, %v2641
      %v2722 = vpack.c.b16 %v2647, %v2642
      %v2723 = vpack.c.b16 %v2648, %v2643
      %v2724 = vpack.c.b16 %v2654, %v2649
      %v2725 = vpack.c.b16 %v2655, %v2650
      %v2726 = vpack.c.b16 %v2656, %v2651
      %v2727 = vpack.c.b16 %v2657, %v2652
      %v2728 = vpack.c.b16 %v2658, %v2653
      %v2729 = vpack.c.b16 %v2664, %v2659
      %v2730 = vpack.c.b16 %v2665, %v2660
      %v2731 = vpack.c.b16 %v2666, %v2661
      %v2732 = vpack.c.b16 %v2667, %v2662
      %v2733 = vpack.c.b16 %v2668, %v2663
      %v2734 = vpack.c.b16 %v2674, %v2669
      %v2735 = vpack.c.b16 %v2675, %v2670
      %v2736 = vpack.c.b16 %v2676, %v2671
      %v2737 = vpack.c.b16 %v2677, %v2672
      %v2738 = vpack.c.b16 %v2678, %v2673
      %v2739 = vpack.c.b16 %v2684, %v2679
      %v2740 = vpack.c.b16 %v2685, %v2680
      %v2741 = vpack.c.b16 %v2686, %v2681
      %v2742 = vpack.c.b16 %v2687, %v2682
      %v2743 = vpack.c.b16 %v2688, %v2683
      %v2744 = vpack.c.b16 %v2694, %v2689
      %v2745 = vpack.c.b16 %v2695, %v2690
      %v2746 = vpack.c.b16 %v2696, %v2691
      %v2747 = vpack.c.b16 %v2697, %v2692
      %v2748 = vpack.c.b16 %v2698, %v2693
      %v2749 = vpack.c.b16 %v2704, %v2699
      %v2750 = vpack.c.b16 %v2705, %v2700
      %v2751 = vpack.c.b16 %v2706, %v2701
      %v2752 = vpack.c.b16 %v2707, %v2702
      %v2753 = vpack.c.b16 %v2708, %v2703
      %v2754 = vpack.c.b16 %v2714, %v2709
      %v2755 = vpack.c.b16 %v2715, %v2710
      %v2756 = vpack.c.b16 %v2716, %v2711
      %v2757 = vpack.c.b16 %v2717, %v2712
      %v2758 = vpack.c.b16 %v2718, %v2713
      %vm2791 = vcmask 523264
      %v2793 = vsel %vm2791, %v2723, 0
      %v2796 = vsel %vm2791, %v2728, 0
      %v2799 = vsel %vm2791, %v2733, 0
      %v2802 = vsel %vm2791, %v2738, 0
      %v2805 = vsel %vm2791, %v2743, 0
      %v2808 = vsel %vm2791, %v2748, 0
      %v2811 = vsel %vm2791, %v2753, 0
      %v2814 = vsel %vm2791, %v2758, 0
      %2816 = vmatprep.subr.bf16.mxu0 %v2376
      %2817 = vmatpush1.bf16.msra.mxu0 %v2375
      %2818 = vmatprep.subr.bf16.mxu0 %v2378
      %2819 = vmatpush1.bf16.msra.mxu0 %v2377
      %2820 = vmatprep.subr.bf16.mxu0 %v2380
      %2821 = vmatpush1.bf16.msra.mxu0 %v2379
      %2822 = vmatprep.subr.bf16.mxu0 %v2382
      %2823 = vmatpush1.bf16.msra.mxu0 %v2381
      %2824 = vmatprep.subr.bf16.mxu0 %v2384
      %2825 = vmatpush1.bf16.msra.mxu0 %v2383
      %2826 = vmatprep.subr.bf16.mxu0 %v2386
      %2827 = vmatpush1.bf16.msra.mxu0 %v2385
      %2828 = vmatprep.subr.bf16.mxu0 %v2388
      %2829 = vmatpush1.bf16.msra.mxu0 %v2387
      %2830 = vmatprep.subr.bf16.mxu0 %v2390
      %2831 = vmatpush1.bf16.msra.mxu0 %v2389
      %2832 = vmatprep.subr.bf16.mxu0 %v2392
      %2833 = vmatpush1.bf16.msra.mxu0 %v2391
      %2834 = vmatprep.subr.bf16.mxu0 %v2394
      %2835 = vmatpush1.bf16.msra.mxu0 %v2393
      %2836 = vmatprep.subr.bf16.mxu0 %v2396
      %2837 = vmatpush1.bf16.msra.mxu0 %v2395
      %2838 = vmatprep.subr.bf16.mxu0 %v2398
      %2839 = vmatpush1.bf16.msra.mxu0 %v2397
      %2840 = vmatprep.subr.bf16.mxu0 %v2400
      %2841 = vmatpush1.bf16.msra.mxu0 %v2399
      %2842 = vmatprep.subr.bf16.mxu0 %v2402
      %2843 = vmatpush1.bf16.msra.mxu0 %v2401
      %2844 = vmatprep.subr.bf16.mxu0 %v2404
      %2845 = vmatpush1.bf16.msra.mxu0 %v2403
      %2846 = vmatprep.subr.bf16.mxu0 %v2406
      %2847 = vmatpush1.bf16.msra.mxu0 %v2405
      %2848 = vmatprep.mubr.bf16.mxu0 %v2720
      %2849 = vmatmul.mubr.bf16.gmra.mrb[0].mxu0 %v2719
      %v2850 = vpop.f32.mrb[0].mxu0
      %v2851 = vadd.f32 %v2514, %v2850
      %v2852 = vpop.f32.mrb[0].mxu0
      %v2853 = vadd.f32 %v2514, %v2852
      %v2854 = vpop.f32.mrb[0].mxu0
      %v2855 = vadd.f32 %v2519, %v2854
      %v2856 = vpop.f32.mrb[0].mxu0
      %v2857 = vadd.f32 %v2519, %v2856
      %2858 = vmatprep.mubr.bf16.mxu0 %v2725
      %2859 = vmatmul.mubr.bf16.gmra.mrb[0].mxu0 %v2724
      %v2860 = vpop.f32.mrb[0].mxu0
      %v2861 = vadd.f32 %v2524, %v2860
      %v2862 = vpop.f32.mrb[0].mxu0
      %v2863 = vadd.f32 %v2524, %v2862
      %v2864 = vpop.f32.mrb[0].mxu0
      %v2865 = vadd.f32 %v2529, %v2864
      %v2866 = vpop.f32.mrb[0].mxu0
      %v2867 = vadd.f32 %v2529, %v2866
      %2868 = vmatprep.mubr.bf16.mxu0 %v2730
      %2869 = vmatmul.mubr.bf16.gmra.mrb[0].mxu0 %v2729
      %v2870 = vpop.f32.mrb[0].mxu0
      %v2871 = vadd.f32 %v2534, %v2870
      %v2872 = vpop.f32.mrb[0].mxu0
      %v2873 = vadd.f32 %v2534, %v2872
      %v2874 = vpop.f32.mrb[0].mxu0
      %v2875 = vadd.f32 %v2539, %v2874
      %v2876 = vpop.f32.mrb[0].mxu0
      %v2877 = vadd.f32 %v2539, %v2876
      %2878 = vmatprep.mubr.bf16.mxu0 %v2735
      %2879 = vmatmul.mubr.bf16.gmra.mrb[0].mxu0 %v2734
      %v2880 = vpop.f32.mrb[0].mxu0
      %v2881 = vadd.f32 %v2544, %v2880
      %v2882 = vpop.f32.mrb[0].mxu0
      %v2883 = vadd.f32 %v2544, %v2882
      %v2884 = vpop.f32.mrb[0].mxu0
      %v2885 = vadd.f32 %v2549, %v2884
      %v2886 = vpop.f32.mrb[0].mxu0
      %v2887 = vadd.f32 %v2549, %v2886
      %2888 = vmatprep.mubr.bf16.mxu0 %v2740
      %2889 = vmatmul.mubr.bf16.gmra.mrb[0].mxu0 %v2739
      %v2890 = vpop.f32.mrb[0].mxu0
      %v2891 = vadd.f32 %v2554, %v2890
      %v2892 = vpop.f32.mrb[0].mxu0
      %v2893 = vadd.f32 %v2554, %v2892
      %v2894 = vpop.f32.mrb[0].mxu0
      %v2895 = vadd.f32 %v2559, %v2894
      %v2896 = vpop.f32.mrb[0].mxu0
      %v2897 = vadd.f32 %v2559, %v2896
      %2898 = vmatprep.mubr.bf16.mxu0 %v2745
      %2899 = vmatmul.mubr.bf16.gmra.mrb[0].mxu0 %v2744
      %v2900 = vpop.f32.mrb[0].mxu0
      %v2901 = vadd.f32 %v2564, %v2900
      %v2902 = vpop.f32.mrb[0].mxu0
      %v2903 = vadd.f32 %v2564, %v2902
      %v2904 = vpop.f32.mrb[0].mxu0
      %v2905 = vadd.f32 %v2569, %v2904
      %v2906 = vpop.f32.mrb[0].mxu0
      %v2907 = vadd.f32 %v2569, %v2906
      %2908 = vmatprep.mubr.bf16.mxu0 %v2750
      %2909 = vmatmul.mubr.bf16.gmra.mrb[0].mxu0 %v2749
      %v2910 = vpop.f32.mrb[0].mxu0
      %v2911 = vadd.f32 %v2574, %v2910
      %v2912 = vpop.f32.mrb[0].mxu0
      %v2913 = vadd.f32 %v2574, %v2912
      %v2914 = vpop.f32.mrb[0].mxu0
      %v2915 = vadd.f32 %v2579, %v2914
      %v2916 = vpop.f32.mrb[0].mxu0
      %v2917 = vadd.f32 %v2579, %v2916
      %2918 = vmatprep.mubr.bf16.mxu0 %v2755
      %2919 = vmatmul.mubr.bf16.gmra.mrb[0].mxu0 %v2754
      %v2920 = vpop.f32.mrb[0].mxu0
      %v2921 = vadd.f32 %v2584, %v2920
      %v2922 = vpop.f32.mrb[0].mxu0
      %v2923 = vadd.f32 %v2584, %v2922
      %v2924 = vpop.f32.mrb[0].mxu0
      %v2925 = vadd.f32 %v2589, %v2924
      %v2926 = vpop.f32.mrb[0].mxu0
      %v2927 = vadd.f32 %v2589, %v2926
      %2928 = vdwg.mxu0
      %2929 = vmatprep.subr.bf16.mxu0 %v2408
      %2930 = vmatpush1.bf16.msra.mxu0 %v2407
      %2931 = vmatprep.subr.bf16.mxu0 %v2410
      %2932 = vmatpush1.bf16.msra.mxu0 %v2409
      %2933 = vmatprep.subr.bf16.mxu0 %v2412
      %2934 = vmatpush1.bf16.msra.mxu0 %v2411
      %2935 = vmatprep.subr.bf16.mxu0 %v2414
      %2936 = vmatpush1.bf16.msra.mxu0 %v2413
      %2937 = vmatprep.subr.bf16.mxu0 %v2416
      %2938 = vmatpush1.bf16.msra.mxu0 %v2415
      %2939 = vmatprep.subr.bf16.mxu0 %v2418
      %2940 = vmatpush1.bf16.msra.mxu0 %v2417
      %2941 = vmatprep.subr.bf16.mxu0 %v2420
      %2942 = vmatpush1.bf16.msra.mxu0 %v2419
      %2943 = vmatprep.subr.bf16.mxu0 %v2422
      %2944 = vmatpush1.bf16.msra.mxu0 %v2421
      %2945 = vmatprep.subr.bf16.mxu0 %v2424
      %2946 = vmatpush1.bf16.msra.mxu0 %v2423
      %2947 = vmatprep.subr.bf16.mxu0 %v2426
      %2948 = vmatpush1.bf16.msra.mxu0 %v2425
      %2949 = vmatprep.subr.bf16.mxu0 %v2428
      %2950 = vmatpush1.bf16.msra.mxu0 %v2427
      %2951 = vmatprep.subr.bf16.mxu0 %v2430
      %2952 = vmatpush1.bf16.msra.mxu0 %v2429
      %2953 = vmatprep.subr.bf16.mxu0 %v2432
      %2954 = vmatpush1.bf16.msra.mxu0 %v2431
      %2955 = vmatprep.subr.bf16.mxu0 %v2434
      %2956 = vmatpush1.bf16.msra.mxu0 %v2433
      %2957 = vmatprep.subr.bf16.mxu0 %v2436
      %2958 = vmatpush1.bf16.msra.mxu0 %v2435
      %2959 = vmatprep.subr.bf16.mxu0 %v2438
      %2960 = vmatpush1.bf16.msra.mxu0 %v2437
      %2961 = vmatprep.mubr.bf16.mxu0 %v2722
      %2962 = vmatmul.mubr.bf16.gmra.mrb[0].mxu0 %v2721
      %v2963 = vpop.f32.mrb[0].mxu0
      %v2964 = vadd.f32 %v2851, %v2963
      %v2965 = vpop.f32.mrb[0].mxu0
      %v2966 = vadd.f32 %v2853, %v2965
      %v2967 = vpop.f32.mrb[0].mxu0
      %v2968 = vadd.f32 %v2855, %v2967
      %v2969 = vpop.f32.mrb[0].mxu0
      %v2970 = vadd.f32 %v2857, %v2969
      %2971 = vmatprep.mubr.bf16.mxu0 %v2727
      %2972 = vmatmul.mubr.bf16.gmra.mrb[0].mxu0 %v2726
      %v2973 = vpop.f32.mrb[0].mxu0
      %v2974 = vadd.f32 %v2861, %v2973
      %v2975 = vpop.f32.mrb[0].mxu0
      %v2976 = vadd.f32 %v2863, %v2975
      %v2977 = vpop.f32.mrb[0].mxu0
      %v2978 = vadd.f32 %v2865, %v2977
      %v2979 = vpop.f32.mrb[0].mxu0
      %v2980 = vadd.f32 %v2867, %v2979
      %2981 = vmatprep.mubr.bf16.mxu0 %v2732
      %2982 = vmatmul.mubr.bf16.gmra.mrb[0].mxu0 %v2731
      %v2983 = vpop.f32.mrb[0].mxu0
      %v2984 = vadd.f32 %v2871, %v2983
      %v2985 = vpop.f32.mrb[0].mxu0
      %v2986 = vadd.f32 %v2873, %v2985
      %v2987 = vpop.f32.mrb[0].mxu0
      %v2988 = vadd.f32 %v2875, %v2987
      %v2989 = vpop.f32.mrb[0].mxu0
      %v2990 = vadd.f32 %v2877, %v2989
      %2991 = vmatprep.mubr.bf16.mxu0 %v2737
      %2992 = vmatmul.mubr.bf16.gmra.mrb[0].mxu0 %v2736
      %v2993 = vpop.f32.mrb[0].mxu0
      %v2994 = vadd.f32 %v2881, %v2993
      %v2995 = vpop.f32.mrb[0].mxu0
      %v2996 = vadd.f32 %v2883, %v2995
      %v2997 = vpop.f32.mrb[0].mxu0
      %v2998 = vadd.f32 %v2885, %v2997
      %v2999 = vpop.f32.mrb[0].mxu0
      %v3000 = vadd.f32 %v2887, %v2999
      %3001 = vmatprep.mubr.bf16.mxu0 %v2742
      %3002 = vmatmul.mubr.bf16.gmra.mrb[0].mxu0 %v2741
      %v3003 = vpop.f32.mrb[0].mxu0
      %v3004 = vadd.f32 %v2891, %v3003
      %v3005 = vpop.f32.mrb[0].mxu0
      %v3006 = vadd.f32 %v2893, %v3005
      %v3007 = vpop.f32.mrb[0].mxu0
      %v3008 = vadd.f32 %v2895, %v3007
      %v3009 = vpop.f32.mrb[0].mxu0
      %v3010 = vadd.f32 %v2897, %v3009
      %3011 = vmatprep.mubr.bf16.mxu0 %v2747
      %3012 = vmatmul.mubr.bf16.gmra.mrb[0].mxu0 %v2746
      %v3013 = vpop.f32.mrb[0].mxu0
      %v3014 = vadd.f32 %v2901, %v3013
      %v3015 = vpop.f32.mrb[0].mxu0
      %v3016 = vadd.f32 %v2903, %v3015
      %v3017 = vpop.f32.mrb[0].mxu0
      %v3018 = vadd.f32 %v2905, %v3017
      %v3019 = vpop.f32.mrb[0].mxu0
      %v3020 = vadd.f32 %v2907, %v3019
      %3021 = vmatprep.mubr.bf16.mxu0 %v2752
      %3022 = vmatmul.mubr.bf16.gmra.mrb[0].mxu0 %v2751
      %v3023 = vpop.f32.mrb[0].mxu0
      %v3024 = vadd.f32 %v2911, %v3023
      %v3025 = vpop.f32.mrb[0].mxu0
      %v3026 = vadd.f32 %v2913, %v3025
      %v3027 = vpop.f32.mrb[0].mxu0
      %v3028 = vadd.f32 %v2915, %v3027
      %v3029 = vpop.f32.mrb[0].mxu0
      %v3030 = vadd.f32 %v2917, %v3029
      %3031 = vmatprep.mubr.bf16.mxu0 %v2757
      %3032 = vmatmul.mubr.bf16.gmra.mrb[0].mxu0 %v2756
      %v3033 = vpop.f32.mrb[0].mxu0
      %v3034 = vadd.f32 %v2921, %v3033
      %v3035 = vpop.f32.mrb[0].mxu0
      %v3036 = vadd.f32 %v2923, %v3035
      %v3037 = vpop.f32.mrb[0].mxu0
      %v3038 = vadd.f32 %v2925, %v3037
      %v3039 = vpop.f32.mrb[0].mxu0
      %v3040 = vadd.f32 %v2927, %v3039
      %3041 = vdwg.mxu0
      %3042 = vmatprep.subr.bf16.mxu0 %v2440
      %3043 = vmatpush1.bf16.msra.mxu0 %v2439
      %3044 = vmatprep.subr.bf16.mxu0 %v2442
      %3045 = vmatpush1.bf16.msra.mxu0 %v2441
      %3046 = vmatprep.subr.bf16.mxu0 %v2444
      %3047 = vmatpush1.bf16.msra.mxu0 %v2443
      %3048 = vmatprep.subr.bf16.mxu0 %v2446
      %3049 = vmatpush1.bf16.msra.mxu0 %v2445
      %3050 = vmatprep.subr.bf16.mxu0 0
      %3051 = vmatpush1.bf16.msra.mxu0 0
      %3052 = vmatprep.subr.bf16.mxu0 0
      %3053 = vmatpush1.bf16.msra.mxu0 0
      %3054 = vmatprep.subr.bf16.mxu0 0
      %3055 = vmatpush1.bf16.msra.mxu0 0
      %3056 = vmatprep.subr.bf16.mxu0 0
      %3057 = vmatpush1.bf16.msra.mxu0 0
      %3058 = vmatprep.subr.bf16.mxu0 0
      %3059 = vmatpush1.bf16.msra.mxu0 0
      %3060 = vmatprep.subr.bf16.mxu0 0
      %3061 = vmatpush1.bf16.msra.mxu0 0
      %3062 = vmatprep.subr.bf16.mxu0 0
      %3063 = vmatpush1.bf16.msra.mxu0 0
      %3064 = vmatprep.subr.bf16.mxu0 0
      %3065 = vmatpush1.bf16.msra.mxu0 0
      %3066 = vmatprep.subr.bf16.mxu0 0
      %3067 = vmatpush1.bf16.msra.mxu0 0
      %3068 = vmatprep.subr.bf16.mxu0 0
      %3069 = vmatpush1.bf16.msra.mxu0 0
      %3070 = vmatprep.subr.bf16.mxu0 0
      %3071 = vmatpush1.bf16.msra.mxu0 0
      %3072 = vmatprep.subr.bf16.mxu0 0
      %3073 = vmatpush1.bf16.msra.mxu0 0
      %3074 = vmatprep.mubr.bf16.mxu0 0
      %3075 = vmatmul.mubr.bf16.gmra.mrb[0].mxu0 %v2793
      %v3076 = vpop.f32.mrb[0].mxu0
      %v3077 = vadd.f32 %v2964, %v3076
      %v3078 = vpop.f32.mrb[0].mxu0
      %v3079 = vadd.f32 %v2966, %v3078
      %v3080 = vpop.f32.mrb[0].mxu0
      %v3081 = vadd.f32 %v2968, %v3080
      %v3082 = vpop.f32.mrb[0].mxu0
      %v3083 = vadd.f32 %v2970, %v3082
      %3084 = vmatprep.mubr.bf16.mxu0 0
      %3085 = vmatmul.mubr.bf16.gmra.mrb[0].mxu0 %v2796
      %v3086 = vpop.f32.mrb[0].mxu0
      %v3087 = vadd.f32 %v2974, %v3086
      %v3088 = vpop.f32.mrb[0].mxu0
      %v3089 = vadd.f32 %v2976, %v3088
      %v3090 = vpop.f32.mrb[0].mxu0
      %v3091 = vadd.f32 %v2978, %v3090
      %v3092 = vpop.f32.mrb[0].mxu0
      %v3093 = vadd.f32 %v2980, %v3092
      %3094 = vmatprep.mubr.bf16.mxu0 0
      %3095 = vmatmul.mubr.bf16.gmra.mrb[0].mxu0 %v2799
      %v3096 = vpop.f32.mrb[0].mxu0
      %v3097 = vadd.f32 %v2984, %v3096
      %v3098 = vpop.f32.mrb[0].mxu0
      %v3099 = vadd.f32 %v2986, %v3098
      %v3100 = vpop.f32.mrb[0].mxu0
      %v3101 = vadd.f32 %v2988, %v3100
      %v3102 = vpop.f32.mrb[0].mxu0
      %v3103 = vadd.f32 %v2990, %v3102
      %3104 = vmatprep.mubr.bf16.mxu0 0
      %3105 = vmatmul.mubr.bf16.gmra.mrb[0].mxu0 %v2802
      %v3106 = vpop.f32.mrb[0].mxu0
      %v3107 = vadd.f32 %v2994, %v3106
      %v3108 = vpop.f32.mrb[0].mxu0
      %v3109 = vadd.f32 %v2996, %v3108
      %v3110 = vpop.f32.mrb[0].mxu0
      %v3111 = vadd.f32 %v2998, %v3110
      %v3112 = vpop.f32.mrb[0].mxu0
      %v3113 = vadd.f32 %v3000, %v3112
      %3114 = vmatprep.mubr.bf16.mxu0 0
      %3115 = vmatmul.mubr.bf16.gmra.mrb[0].mxu0 %v2805
      %v3116 = vpop.f32.mrb[0].mxu0
      %v3117 = vadd.f32 %v3004, %v3116
      %v3118 = vpop.f32.mrb[0].mxu0
      %v3119 = vadd.f32 %v3006, %v3118
      %v3120 = vpop.f32.mrb[0].mxu0
      %v3121 = vadd.f32 %v3008, %v3120
      %v3122 = vpop.f32.mrb[0].mxu0
      %v3123 = vadd.f32 %v3010, %v3122
      %3124 = vmatprep.mubr.bf16.mxu0 0
      %3125 = vmatmul.mubr.bf16.gmra.mrb[0].mxu0 %v2808
      %v3126 = vpop.f32.mrb[0].mxu0
      %v3127 = vadd.f32 %v3014, %v3126
      %v3128 = vpop.f32.mrb[0].mxu0
      %v3129 = vadd.f32 %v3016, %v3128
      %v3130 = vpop.f32.mrb[0].mxu0
      %v3131 = vadd.f32 %v3018, %v3130
      %v3132 = vpop.f32.mrb[0].mxu0
      %v3133 = vadd.f32 %v3020, %v3132
      %3134 = vmatprep.mubr.bf16.mxu0 0
      %3135 = vmatmul.mubr.bf16.gmra.mrb[0].mxu0 %v2811
      %v3136 = vpop.f32.mrb[0].mxu0
      %v3137 = vadd.f32 %v3024, %v3136
      %v3138 = vpop.f32.mrb[0].mxu0
      %v3139 = vadd.f32 %v3026, %v3138
      %v3140 = vpop.f32.mrb[0].mxu0
      %v3141 = vadd.f32 %v3028, %v3140
      %v3142 = vpop.f32.mrb[0].mxu0
      %v3143 = vadd.f32 %v3030, %v3142
      %3144 = vmatprep.mubr.bf16.mxu0 0
      %3145 = vmatmul.mubr.bf16.gmra.mrb[0].mxu0 %v2814
      %v3146 = vpop.f32.mrb[0].mxu0
      %v3147 = vadd.f32 %v3034, %v3146
      %v3148 = vpop.f32.mrb[0].mxu0
      %v3149 = vadd.f32 %v3036, %v3148
      %v3150 = vpop.f32.mrb[0].mxu0
      %v3151 = vadd.f32 %v3038, %v3150
      %v3152 = vpop.f32.mrb[0].mxu0
      %v3153 = vadd.f32 %v3040, %v3152
      %3154 = vdwg.mxu0
      %v3155 = vmax.f32 %v3077, 0.0
      %v3156 = vmax.f32 %v3079, 0.0
      %v3157 = vmax.f32 %v3081, 0.0
      %v3158 = vmax.f32 %v3083, 0.0
      %v3159 = vmax.f32 %v3087, 0.0
      %v3160 = vmax.f32 %v3089, 0.0
      %v3161 = vmax.f32 %v3091, 0.0
      %v3162 = vmax.f32 %v3093, 0.0
      %v3163 = vmax.f32 %v3097, 0.0
      %v3164 = vmax.f32 %v3099, 0.0
      %v3165 = vmax.f32 %v3101, 0.0
      %v3166 = vmax.f32 %v3103, 0.0
      %v3167 = vmax.f32 %v3107, 0.0
      %v3168 = vmax.f32 %v3109, 0.0
      %v3169 = vmax.f32 %v3111, 0.0
      %v3170 = vmax.f32 %v3113, 0.0
      %v3171 = vmax.f32 %v3117, 0.0
      %v3172 = vmax.f32 %v3119, 0.0
      %v3173 = vmax.f32 %v3121, 0.0
      %v3174 = vmax.f32 %v3123, 0.0
      %v3175 = vmax.f32 %v3127, 0.0
      %v3176 = vmax.f32 %v3129, 0.0
      %v3177 = vmax.f32 %v3131, 0.0
      %v3178 = vmax.f32 %v3133, 0.0
      %v3179 = vmax.f32 %v3137, 0.0
      %v3180 = vmax.f32 %v3139, 0.0
      %v3181 = vmax.f32 %v3141, 0.0
      %v3182 = vmax.f32 %v3143, 0.0
      %v3183 = vmax.f32 %v3147, 0.0
      %v3184 = vmax.f32 %v3149, 0.0
      %v3185 = vmax.f32 %v3151, 0.0
      %v3186 = vmax.f32 %v3153, 0.0
      %3219 = vrot.lane.b32.xlu0 %v3155, 17
      %v3220 = vpop.permute.xlu0 %3219
      %3221 = vrot.lane.b32.xlu0 %v3156, 17
      %v3222 = vpop.permute.xlu0 %3221
      %3223 = vrot.lane.b32.xlu0 %v3157, 17
      %v3224 = vpop.permute.xlu0 %3223
      %3225 = vrot.lane.b32.xlu0 %v3158, 17
      %v3226 = vpop.permute.xlu0 %3225
      %3227 = vrot.lane.b32.xlu0 %v3159, 17
      %v3228 = vpop.permute.xlu0 %3227
      %3229 = vrot.lane.b32.xlu0 %v3160, 17
      %v3230 = vpop.permute.xlu0 %3229
      %3231 = vrot.lane.b32.xlu0 %v3161, 17
      %v3232 = vpop.permute.xlu0 %3231
      %3233 = vrot.lane.b32.xlu0 %v3162, 17
      %v3234 = vpop.permute.xlu0 %3233
      %3235 = vrot.lane.b32.xlu0 %v3163, 17
      %v3236 = vpop.permute.xlu0 %3235
      %3237 = vrot.lane.b32.xlu0 %v3164, 17
      %v3238 = vpop.permute.xlu0 %3237
      %3239 = vrot.lane.b32.xlu0 %v3165, 17
      %v3240 = vpop.permute.xlu0 %3239
      %3241 = vrot.lane.b32.xlu0 %v3166, 17
      %v3242 = vpop.permute.xlu0 %3241
      %3243 = vrot.lane.b32.xlu0 %v3167, 17
      %v3244 = vpop.permute.xlu0 %3243
      %3245 = vrot.lane.b32.xlu0 %v3168, 17
      %v3246 = vpop.permute.xlu0 %3245
      %3247 = vrot.lane.b32.xlu0 %v3169, 17
      %v3248 = vpop.permute.xlu0 %3247
      %3249 = vrot.lane.b32.xlu0 %v3170, 17
      %v3250 = vpop.permute.xlu0 %3249
      %3251 = vrot.lane.b32.xlu0 %v3171, 17
      %v3252 = vpop.permute.xlu0 %3251
      %3253 = vrot.lane.b32.xlu0 %v3172, 17
      %v3254 = vpop.permute.xlu0 %3253
      %3255 = vrot.lane.b32.xlu0 %v3173, 17
      %v3256 = vpop.permute.xlu0 %3255
      %3257 = vrot.lane.b32.xlu0 %v3174, 17
      %v3258 = vpop.permute.xlu0 %3257
      %3259 = vrot.lane.b32.xlu0 %v3175, 17
      %v3260 = vpop.permute.xlu0 %3259
      %3261 = vrot.lane.b32.xlu0 %v3176, 17
      %v3262 = vpop.permute.xlu0 %3261
      %3263 = vrot.lane.b32.xlu0 %v3177, 17
      %v3264 = vpop.permute.xlu0 %3263
      %3265 = vrot.lane.b32.xlu0 %v3178, 17
      %v3266 = vpop.permute.xlu0 %3265
      %3267 = vrot.lane.b32.xlu0 %v3179, 17
      %v3268 = vpop.permute.xlu0 %3267
      %3269 = vrot.lane.b32.xlu0 %v3180, 17
      %v3270 = vpop.permute.xlu0 %3269
      %3271 = vrot.lane.b32.xlu0 %v3181, 17
      %v3272 = vpop.permute.xlu0 %3271
      %3273 = vrot.lane.b32.xlu0 %v3182, 17
      %v3274 = vpop.permute.xlu0 %3273
      %3275 = vrot.lane.b32.xlu0 %v3183, 17
      %v3276 = vpop.permute.xlu0 %3275
      %3277 = vrot.lane.b32.xlu0 %v3184, 17
      %v3278 = vpop.permute.xlu0 %3277
      %3279 = vrot.lane.b32.xlu0 %v3185, 17
      %v3280 = vpop.permute.xlu0 %3279
      %3281 = vrot.lane.b32.xlu0 %v3186, 17
      %v3282 = vpop.permute.xlu0 %3281
      %v3283 = vsel %vm433, %v3220, %v3222
      %v3284 = vsel %vm433, %v3224, %v3226
      %v3285 = vsel %vm433, %v3228, %v3230
      %v3286 = vsel %vm433, %v3232, %v3234
      %v3287 = vsel %vm433, %v3236, %v3238
      %v3288 = vsel %vm433, %v3240, %v3242
      %v3289 = vsel %vm433, %v3244, %v3246
      %v3290 = vsel %vm433, %v3248, %v3250
      %v3291 = vsel %vm433, %v3252, %v3254
      %v3292 = vsel %vm433, %v3256, %v3258
      %v3293 = vsel %vm433, %v3260, %v3262
      %v3294 = vsel %vm433, %v3264, %v3266
      %v3295 = vsel %vm433, %v3268, %v3270
      %v3296 = vsel %vm433, %v3272, %v3274
      %v3297 = vsel %vm433, %v3276, %v3278
      %v3298 = vsel %vm433, %v3280, %v3282
      %3347 = vst.msk [vmem:[#allocation2] sm:$0xff] %vm926, %v3220
      %3348 = vst [vmem:[#allocation2 + $0x8] sm:$0xff] %v3283
      %3349 = vst.msk [vmem:[#allocation2 + $0x10] sm:$0xff] %vm433, %v3222
      %3350 = vst.msk [vmem:[#allocation2 + $0x18] sm:$0xff] %vm926, %v3224
      %3351 = vst [vmem:[#allocation2 + $0x20] sm:$0xff] %v3284
      %3352 = vst.msk [vmem:[#allocation2 + $0x28] sm:$0xff] %vm433, %v3226
      %3353 = vst.msk [vmem:[#allocation2 + $0x30] sm:$0xff] %vm926, %v3228
      %3354 = vst [vmem:[#allocation2 + $0x38] sm:$0xff] %v3285
      %3355 = vst.msk [vmem:[#allocation2 + $0x40] sm:$0xff] %vm433, %v3230
      %3356 = vst.msk [vmem:[#allocation2 + $0x48] sm:$0xff] %vm926, %v3232
      %3357 = vst [vmem:[#allocation2 + $0x50] sm:$0xff] %v3286
      %3358 = vst.msk [vmem:[#allocation2 + $0x58] sm:$0xff] %vm433, %v3234
      %3359 = vst.msk [vmem:[#allocation2 + $0x60] sm:$0xff] %vm926, %v3236
      %3360 = vst [vmem:[#allocation2 + $0x68] sm:$0xff] %v3287
      %3361 = vst.msk [vmem:[#allocation2 + $0x70] sm:$0xff] %vm433, %v3238
      %3362 = vst.msk [vmem:[#allocation2 + $0x78] sm:$0xff] %vm926, %v3240
      %3363 = vst [vmem:[#allocation2 + $0x80] sm:$0xff] %v3288
      %3364 = vst.msk [vmem:[#allocation2 + $0x88] sm:$0xff] %vm433, %v3242
      %3365 = vst.msk [vmem:[#allocation2 + $0x90] sm:$0xff] %vm926, %v3244
      %3366 = vst [vmem:[#allocation2 + $0x98] sm:$0xff] %v3289
      %3367 = vst.msk [vmem:[#allocation2 + $0xa0] sm:$0xff] %vm433, %v3246
      %3368 = vst.msk [vmem:[#allocation2 + $0xa8] sm:$0xff] %vm926, %v3248
      %3369 = vst [vmem:[#allocation2 + $0xb0] sm:$0xff] %v3290
      %3370 = vst.msk [vmem:[#allocation2 + $0xb8] sm:$0xff] %vm433, %v3250
      %3371 = vst.msk [vmem:[#allocation2 + $0xc0] sm:$0xff] %vm926, %v3252
      %3372 = vst [vmem:[#allocation2 + $0xc8] sm:$0xff] %v3291
      %3373 = vst.msk [vmem:[#allocation2 + $0xd0] sm:$0xff] %vm433, %v3254
      %3374 = vst.msk [vmem:[#allocation2 + $0xd8] sm:$0xff] %vm926, %v3256
      %3375 = vst [vmem:[#allocation2 + $0xe0] sm:$0xff] %v3292
      %3376 = vst.msk [vmem:[#allocation2 + $0xe8] sm:$0xff] %vm433, %v3258
      %3377 = vst.msk [vmem:[#allocation2 + $0xf0] sm:$0xff] %vm926, %v3260
      %3378 = vst [vmem:[#allocation2 + $0xf8] sm:$0xff] %v3293
      %3379 = vst.msk [vmem:[#allocation2 + $0x100] sm:$0xff] %vm433, %v3262
      %3380 = vst.msk [vmem:[#allocation2 + $0x108] sm:$0xff] %vm926, %v3264
      %3381 = vst [vmem:[#allocation2 + $0x110] sm:$0xff] %v3294
      %3382 = vst.msk [vmem:[#allocation2 + $0x118] sm:$0xff] %vm433, %v3266
      %3383 = vst.msk [vmem:[#allocation2 + $0x120] sm:$0xff] %vm926, %v3268
      %3384 = vst [vmem:[#allocation2 + $0x128] sm:$0xff] %v3295
      %3385 = vst.msk [vmem:[#allocation2 + $0x130] sm:$0xff] %vm433, %v3270
      %3386 = vst.msk [vmem:[#allocation2 + $0x138] sm:$0xff] %vm926, %v3272
      %3387 = vst [vmem:[#allocation2 + $0x140] sm:$0xff] %v3296
      %3388 = vst.msk [vmem:[#allocation2 + $0x148] sm:$0xff] %vm433, %v3274
      %3389 = vst.msk [vmem:[#allocation2 + $0x150] sm:$0xff] %vm926, %v3276
      %3390 = vst [vmem:[#allocation2 + $0x158] sm:$0xff] %v3297
      %3391 = vst.msk [vmem:[#allocation2 + $0x160] sm:$0xff] %vm433, %v3278
      %3392 = vst.msk [vmem:[#allocation2 + $0x168] sm:$0xff] %vm926, %v3280
      %3393 = vst [vmem:[#allocation2 + $0x170] sm:$0xff] %v3298
      %3394 = vst.msk [vmem:[#allocation2 + $0x178] sm:$0xff] %vm433, %v3282
      %v3395 = vld [vmem:[#allocation2] sm:$0xff]
      %v3396 = vld [vmem:[#allocation2 + $0x8] sm:$0xff]
      %v3397 = vld [vmem:[#allocation2 + $0x18] sm:$0xff]
      %v3398 = vld [vmem:[#allocation2 + $0x20] sm:$0xff]
      %v3399 = vld [vmem:[#allocation2 + $0x30] sm:$0xff]
      %v3400 = vld [vmem:[#allocation2 + $0x38] sm:$0xff]
      %v3401 = vld [vmem:[#allocation2 + $0x48] sm:$0xff]
      %v3402 = vld [vmem:[#allocation2 + $0x50] sm:$0xff]
      %v3403 = vld [vmem:[#allocation2 + $0x60] sm:$0xff]
      %v3404 = vld [vmem:[#allocation2 + $0x68] sm:$0xff]
      %v3405 = vld [vmem:[#allocation2 + $0x78] sm:$0xff]
      %v3406 = vld [vmem:[#allocation2 + $0x80] sm:$0xff]
      %v3407 = vld [vmem:[#allocation2 + $0x90] sm:$0xff]
      %v3408 = vld [vmem:[#allocation2 + $0x98] sm:$0xff]
      %v3409 = vld [vmem:[#allocation2 + $0xa8] sm:$0xff]
      %v3410 = vld [vmem:[#allocation2 + $0xb0] sm:$0xff]
      %v3411 = vld [vmem:[#allocation2 + $0xc0] sm:$0xff]
      %v3412 = vld [vmem:[#allocation2 + $0xc8] sm:$0xff]
      %v3413 = vld [vmem:[#allocation2 + $0xd8] sm:$0xff]
      %v3414 = vld [vmem:[#allocation2 + $0xe0] sm:$0xff]
      %v3415 = vld [vmem:[#allocation2 + $0xf0] sm:$0xff]
      %v3416 = vld [vmem:[#allocation2 + $0xf8] sm:$0xff]
      %v3417 = vld [vmem:[#allocation2 + $0x108] sm:$0xff]
      %v3418 = vld [vmem:[#allocation2 + $0x110] sm:$0xff]
      %v3419 = vld [vmem:[#allocation2 + $0x120] sm:$0xff]
      %v3420 = vld [vmem:[#allocation2 + $0x128] sm:$0xff]
      %v3421 = vld [vmem:[#allocation2 + $0x138] sm:$0xff]
      %v3422 = vld [vmem:[#allocation2 + $0x140] sm:$0xff]
      %v3423 = vld [vmem:[#allocation2 + $0x150] sm:$0xff]
      %v3424 = vld [vmem:[#allocation2 + $0x158] sm:$0xff]
      %v3425 = vld [vmem:[#allocation2 + $0x168] sm:$0xff]
      %v3426 = vld [vmem:[#allocation2 + $0x170] sm:$0xff]
      %v3427 = vsel %vm455, %v3395, 0.0
      %v3428 = vsel %vm456, %v3396, 0.0
      %v3429 = vsel %vm455, %v3397, 0.0
      %v3430 = vsel %vm456, %v3398, 0.0
      %v3431 = vsel %vm455, %v3399, 0.0
      %v3432 = vsel %vm456, %v3400, 0.0
      %v3433 = vsel %vm455, %v3401, 0.0
      %v3434 = vsel %vm456, %v3402, 0.0
      %v3435 = vsel %vm455, %v3403, 0.0
      %v3436 = vsel %vm456, %v3404, 0.0
      %v3437 = vsel %vm455, %v3405, 0.0
      %v3438 = vsel %vm456, %v3406, 0.0
      %v3439 = vsel %vm455, %v3407, 0.0
      %v3440 = vsel %vm456, %v3408, 0.0
      %v3441 = vsel %vm455, %v3409, 0.0
      %v3442 = vsel %vm456, %v3410, 0.0
      %v3443 = vsel %vm455, %v3411, 0.0
      %v3444 = vsel %vm456, %v3412, 0.0
      %v3445 = vsel %vm455, %v3413, 0.0
      %v3446 = vsel %vm456, %v3414, 0.0
      %v3447 = vsel %vm455, %v3415, 0.0
      %v3448 = vsel %vm456, %v3416, 0.0
      %v3449 = vsel %vm455, %v3417, 0.0
      %v3450 = vsel %vm456, %v3418, 0.0
      %v3451 = vsel %vm455, %v3419, 0.0
      %v3452 = vsel %vm456, %v3420, 0.0
      %v3453 = vsel %vm455, %v3421, 0.0
      %v3454 = vsel %vm456, %v3422, 0.0
      %v3455 = vsel %vm455, %v3423, 0.0
      %v3456 = vsel %vm456, %v3424, 0.0
      %v3457 = vsel %vm455, %v3425, 0.0
      %v3458 = vsel %vm456, %v3426, 0.0
      %3459 = vst [vmem:[#allocation3] sm:$0xff] %v3427
      %3460 = vst [vmem:[#allocation3 + $0x8] sm:$0xff] %v3428
      %3461 = vst [vmem:[#allocation3 + $0x10] sm:$0xff] %v3429
      %3462 = vst [vmem:[#allocation3 + $0x18] sm:$0xff] %v3430
      %3463 = vst [vmem:[#allocation3 + $0x20] sm:$0xff] %v3431
      %3464 = vst [vmem:[#allocation3 + $0x28] sm:$0xff] %v3432
      %3465 = vst [vmem:[#allocation3 + $0x30] sm:$0xff] %v3433
      %3466 = vst [vmem:[#allocation3 + $0x38] sm:$0xff] %v3434
      %3467 = vst [vmem:[#allocation3 + $0x40] sm:$0xff] %v3435
      %3468 = vst [vmem:[#allocation3 + $0x48] sm:$0xff] %v3436
      %3469 = vst [vmem:[#allocation3 + $0x50] sm:$0xff] %v3437
      %3470 = vst [vmem:[#allocation3 + $0x58] sm:$0xff] %v3438
      %3471 = vst [vmem:[#allocation3 + $0x60] sm:$0xff] %v3439
      %3472 = vst [vmem:[#allocation3 + $0x68] sm:$0xff] %v3440
      %3473 = vst [vmem:[#allocation3 + $0x70] sm:$0xff] %v3441
      %3474 = vst [vmem:[#allocation3 + $0x78] sm:$0xff] %v3442
      %3475 = vst [vmem:[#allocation3 + $0x80] sm:$0xff] %v3443
      %3476 = vst [vmem:[#allocation3 + $0x88] sm:$0xff] %v3444
      %3477 = vst [vmem:[#allocation3 + $0x90] sm:$0xff] %v3445
      %3478 = vst [vmem:[#allocation3 + $0x98] sm:$0xff] %v3446
      %3479 = vst [vmem:[#allocation3 + $0xa0] sm:$0xff] %v3447
      %3480 = vst [vmem:[#allocation3 + $0xa8] sm:$0xff] %v3448
      %3481 = vst [vmem:[#allocation3 + $0xb0] sm:$0xff] %v3449
      %3482 = vst [vmem:[#allocation3 + $0xb8] sm:$0xff] %v3450
      %3483 = vst [vmem:[#allocation3 + $0xc0] sm:$0xff] %v3451
      %3484 = vst [vmem:[#allocation3 + $0xc8] sm:$0xff] %v3452
      %3485 = vst [vmem:[#allocation3 + $0xd0] sm:$0xff] %v3453
      %3486 = vst [vmem:[#allocation3 + $0xd8] sm:$0xff] %v3454
      %3487 = vst [vmem:[#allocation3 + $0xe0] sm:$0xff] %v3455
      %3488 = vst [vmem:[#allocation3 + $0xe8] sm:$0xff] %v3456
      %3489 = vst [vmem:[#allocation3 + $0xf0] sm:$0xff] %v3457
      %3490 = vst [vmem:[#allocation3 + $0xf8] sm:$0xff] %v3458
      %v3491 = vld [vmem:[#allocation2] sm:$0xff]
      %v3492 = vld [vmem:[#allocation2 + $0x8] sm:$0xff]
      %v3493 = vld [vmem:[#allocation2 + $0x10] sm:$0xff]
      %v3494 = vld [vmem:[#allocation2 + $0x18] sm:$0xff]
      %v3495 = vld [vmem:[#allocation2 + $0x20] sm:$0xff]
      %v3496 = vld [vmem:[#allocation2 + $0x28] sm:$0xff]
      %v3497 = vld [vmem:[#allocation2 + $0x30] sm:$0xff]
      %v3498 = vld [vmem:[#allocation2 + $0x38] sm:$0xff]
      %v3499 = vld [vmem:[#allocation2 + $0x40] sm:$0xff]
      %v3500 = vld [vmem:[#allocation2 + $0x48] sm:$0xff]
      %v3501 = vld [vmem:[#allocation2 + $0x50] sm:$0xff]
      %v3502 = vld [vmem:[#allocation2 + $0x58] sm:$0xff]
      %v3503 = vld [vmem:[#allocation2 + $0x60] sm:$0xff]
      %v3504 = vld [vmem:[#allocation2 + $0x68] sm:$0xff]
      %v3505 = vld [vmem:[#allocation2 + $0x70] sm:$0xff]
      %v3506 = vld [vmem:[#allocation2 + $0x78] sm:$0xff]
      %v3507 = vld [vmem:[#allocation2 + $0x80] sm:$0xff]
      %v3508 = vld [vmem:[#allocation2 + $0x88] sm:$0xff]
      %v3509 = vld [vmem:[#allocation2 + $0x90] sm:$0xff]
      %v3510 = vld [vmem:[#allocation2 + $0x98] sm:$0xff]
      %v3511 = vld [vmem:[#allocation2 + $0xa0] sm:$0xff]
      %v3512 = vld [vmem:[#allocation2 + $0xa8] sm:$0xff]
      %v3513 = vld [vmem:[#allocation2 + $0xb0] sm:$0xff]
      %v3514 = vld [vmem:[#allocation2 + $0xb8] sm:$0xff]
      %v3515 = vld [vmem:[#allocation2 + $0xc0] sm:$0xff]
      %v3516 = vld [vmem:[#allocation2 + $0xc8] sm:$0xff]
      %v3517 = vld [vmem:[#allocation2 + $0xd0] sm:$0xff]
      %v3518 = vld [vmem:[#allocation2 + $0xd8] sm:$0xff]
      %v3519 = vld [vmem:[#allocation2 + $0xe0] sm:$0xff]
      %v3520 = vld [vmem:[#allocation2 + $0xe8] sm:$0xff]
      %v3521 = vld [vmem:[#allocation2 + $0xf0] sm:$0xff]
      %v3522 = vld [vmem:[#allocation2 + $0xf8] sm:$0xff]
      %v3523 = vld [vmem:[#allocation2 + $0x100] sm:$0xff]
      %v3524 = vld [vmem:[#allocation2 + $0x108] sm:$0xff]
      %v3525 = vld [vmem:[#allocation2 + $0x110] sm:$0xff]
      %v3526 = vld [vmem:[#allocation2 + $0x118] sm:$0xff]
      %v3527 = vld [vmem:[#allocation2 + $0x120] sm:$0xff]
      %v3528 = vld [vmem:[#allocation2 + $0x128] sm:$0xff]
      %v3529 = vld [vmem:[#allocation2 + $0x130] sm:$0xff]
      %v3530 = vld [vmem:[#allocation2 + $0x138] sm:$0xff]
      %v3531 = vld [vmem:[#allocation2 + $0x140] sm:$0xff]
      %v3532 = vld [vmem:[#allocation2 + $0x148] sm:$0xff]
      %v3533 = vld [vmem:[#allocation2 + $0x150] sm:$0xff]
      %v3534 = vld [vmem:[#allocation2 + $0x158] sm:$0xff]
      %v3535 = vld [vmem:[#allocation2 + $0x160] sm:$0xff]
      %v3536 = vld [vmem:[#allocation2 + $0x168] sm:$0xff]
      %v3537 = vld [vmem:[#allocation2 + $0x170] sm:$0xff]
      %v3538 = vld [vmem:[#allocation2 + $0x178] sm:$0xff]
      %3587 = vrot.lane.b32.xlu0 %v3491, 127
      %v3588 = vpop.permute.xlu0 %3587
      %3589 = vrot.lane.b32.xlu0 %v3492, 127
      %v3590 = vpop.permute.xlu0 %3589
      %3591 = vrot.lane.b32.xlu0 %v3493, 127
      %v3592 = vpop.permute.xlu0 %3591
      %3593 = vrot.lane.b32.xlu0 %v3494, 127
      %v3594 = vpop.permute.xlu0 %3593
      %3595 = vrot.lane.b32.xlu0 %v3495, 127
      %v3596 = vpop.permute.xlu0 %3595
      %3597 = vrot.lane.b32.xlu0 %v3496, 127
      %v3598 = vpop.permute.xlu0 %3597
      %3599 = vrot.lane.b32.xlu0 %v3497, 127
      %v3600 = vpop.permute.xlu0 %3599
      %3601 = vrot.lane.b32.xlu0 %v3498, 127
      %v3602 = vpop.permute.xlu0 %3601
      %3603 = vrot.lane.b32.xlu0 %v3499, 127
      %v3604 = vpop.permute.xlu0 %3603
      %3605 = vrot.lane.b32.xlu0 %v3500, 127
      %v3606 = vpop.permute.xlu0 %3605
      %3607 = vrot.lane.b32.xlu0 %v3501, 127
      %v3608 = vpop.permute.xlu0 %3607
      %3609 = vrot.lane.b32.xlu0 %v3502, 127
      %v3610 = vpop.permute.xlu0 %3609
      %3611 = vrot.lane.b32.xlu0 %v3503, 127
      %v3612 = vpop.permute.xlu0 %3611
      %3613 = vrot.lane.b32.xlu0 %v3504, 127
      %v3614 = vpop.permute.xlu0 %3613
      %3615 = vrot.lane.b32.xlu0 %v3505, 127
      %v3616 = vpop.permute.xlu0 %3615
      %3617 = vrot.lane.b32.xlu0 %v3506, 127
      %v3618 = vpop.permute.xlu0 %3617
      %3619 = vrot.lane.b32.xlu0 %v3507, 127
      %v3620 = vpop.permute.xlu0 %3619
      %3621 = vrot.lane.b32.xlu0 %v3508, 127
      %v3622 = vpop.permute.xlu0 %3621
      %3623 = vrot.lane.b32.xlu0 %v3509, 127
      %v3624 = vpop.permute.xlu0 %3623
      %3625 = vrot.lane.b32.xlu0 %v3510, 127
      %v3626 = vpop.permute.xlu0 %3625
      %3627 = vrot.lane.b32.xlu0 %v3511, 127
      %v3628 = vpop.permute.xlu0 %3627
      %3629 = vrot.lane.b32.xlu0 %v3512, 127
      %v3630 = vpop.permute.xlu0 %3629
      %3631 = vrot.lane.b32.xlu0 %v3513, 127
      %v3632 = vpop.permute.xlu0 %3631
      %3633 = vrot.lane.b32.xlu0 %v3514, 127
      %v3634 = vpop.permute.xlu0 %3633
      %3635 = vrot.lane.b32.xlu0 %v3515, 127
      %v3636 = vpop.permute.xlu0 %3635
      %3637 = vrot.lane.b32.xlu0 %v3516, 127
      %v3638 = vpop.permute.xlu0 %3637
      %3639 = vrot.lane.b32.xlu0 %v3517, 127
      %v3640 = vpop.permute.xlu0 %3639
      %3641 = vrot.lane.b32.xlu0 %v3518, 127
      %v3642 = vpop.permute.xlu0 %3641
      %3643 = vrot.lane.b32.xlu0 %v3519, 127
      %v3644 = vpop.permute.xlu0 %3643
      %3645 = vrot.lane.b32.xlu0 %v3520, 127
      %v3646 = vpop.permute.xlu0 %3645
      %3647 = vrot.lane.b32.xlu0 %v3521, 127
      %v3648 = vpop.permute.xlu0 %3647
      %3649 = vrot.lane.b32.xlu0 %v3522, 127
      %v3650 = vpop.permute.xlu0 %3649
      %3651 = vrot.lane.b32.xlu0 %v3523, 127
      %v3652 = vpop.permute.xlu0 %3651
      %3653 = vrot.lane.b32.xlu0 %v3524, 127
      %v3654 = vpop.permute.xlu0 %3653
      %3655 = vrot.lane.b32.xlu0 %v3525, 127
      %v3656 = vpop.permute.xlu0 %3655
      %3657 = vrot.lane.b32.xlu0 %v3526, 127
      %v3658 = vpop.permute.xlu0 %3657
      %3659 = vrot.lane.b32.xlu0 %v3527, 127
      %v3660 = vpop.permute.xlu0 %3659
      %3661 = vrot.lane.b32.xlu0 %v3528, 127
      %v3662 = vpop.permute.xlu0 %3661
      %3663 = vrot.lane.b32.xlu0 %v3529, 127
      %v3664 = vpop.permute.xlu0 %3663
      %3665 = vrot.lane.b32.xlu0 %v3530, 127
      %v3666 = vpop.permute.xlu0 %3665
      %3667 = vrot.lane.b32.xlu0 %v3531, 127
      %v3668 = vpop.permute.xlu0 %3667
      %3669 = vrot.lane.b32.xlu0 %v3532, 127
      %v3670 = vpop.permute.xlu0 %3669
      %3671 = vrot.lane.b32.xlu0 %v3533, 127
      %v3672 = vpop.permute.xlu0 %3671
      %3673 = vrot.lane.b32.xlu0 %v3534, 127
      %v3674 = vpop.permute.xlu0 %3673
      %3675 = vrot.lane.b32.xlu0 %v3535, 127
      %v3676 = vpop.permute.xlu0 %3675
      %3677 = vrot.lane.b32.xlu0 %v3536, 127
      %v3678 = vpop.permute.xlu0 %3677
      %3679 = vrot.lane.b32.xlu0 %v3537, 127
      %v3680 = vpop.permute.xlu0 %3679
      %3681 = vrot.lane.b32.xlu0 %v3538, 127
      %v3682 = vpop.permute.xlu0 %3681
      %v3683 = vsel %vm476, %v3588, %v3590
      %v3684 = vsel %vm476, %v3590, %v3592
      %v3685 = vsel %vm476, %v3594, %v3596
      %v3686 = vsel %vm476, %v3596, %v3598
      %v3687 = vsel %vm476, %v3600, %v3602
      %v3688 = vsel %vm476, %v3602, %v3604
      %v3689 = vsel %vm476, %v3606, %v3608
      %v3690 = vsel %vm476, %v3608, %v3610
      %v3691 = vsel %vm476, %v3612, %v3614
      %v3692 = vsel %vm476, %v3614, %v3616
      %v3693 = vsel %vm476, %v3618, %v3620
      %v3694 = vsel %vm476, %v3620, %v3622
      %v3695 = vsel %vm476, %v3624, %v3626
      %v3696 = vsel %vm476, %v3626, %v3628
      %v3697 = vsel %vm476, %v3630, %v3632
      %v3698 = vsel %vm476, %v3632, %v3634
      %v3699 = vsel %vm476, %v3636, %v3638
      %v3700 = vsel %vm476, %v3638, %v3640
      %v3701 = vsel %vm476, %v3642, %v3644
      %v3702 = vsel %vm476, %v3644, %v3646
      %v3703 = vsel %vm476, %v3648, %v3650
      %v3704 = vsel %vm476, %v3650, %v3652
      %v3705 = vsel %vm476, %v3654, %v3656
      %v3706 = vsel %vm476, %v3656, %v3658
      %v3707 = vsel %vm476, %v3660, %v3662
      %v3708 = vsel %vm476, %v3662, %v3664
      %v3709 = vsel %vm476, %v3666, %v3668
      %v3710 = vsel %vm476, %v3668, %v3670
      %v3711 = vsel %vm476, %v3672, %v3674
      %v3712 = vsel %vm476, %v3674, %v3676
      %v3713 = vsel %vm476, %v3678, %v3680
      %v3714 = vsel %vm476, %v3680, %v3682
      %3747 = vst [vmem:[#allocation3 + $0x100] sm:$0xff] %v3683
      %3748 = vst [vmem:[#allocation3 + $0x108] sm:$0xff] %v3684
      %3749 = vst [vmem:[#allocation3 + $0x110] sm:$0xff] %v3685
      %3750 = vst [vmem:[#allocation3 + $0x118] sm:$0xff] %v3686
      %3751 = vst [vmem:[#allocation3 + $0x120] sm:$0xff] %v3687
      %3752 = vst [vmem:[#allocation3 + $0x128] sm:$0xff] %v3688
      %3753 = vst [vmem:[#allocation3 + $0x130] sm:$0xff] %v3689
      %3754 = vst [vmem:[#allocation3 + $0x138] sm:$0xff] %v3690
      %3755 = vst [vmem:[#allocation3 + $0x140] sm:$0xff] %v3691
      %3756 = vst [vmem:[#allocation3 + $0x148] sm:$0xff] %v3692
      %3757 = vst [vmem:[#allocation3 + $0x150] sm:$0xff] %v3693
      %3758 = vst [vmem:[#allocation3 + $0x158] sm:$0xff] %v3694
      %3759 = vst [vmem:[#allocation3 + $0x160] sm:$0xff] %v3695
      %3760 = vst [vmem:[#allocation3 + $0x168] sm:$0xff] %v3696
      %3761 = vst [vmem:[#allocation3 + $0x170] sm:$0xff] %v3697
      %3762 = vst [vmem:[#allocation3 + $0x178] sm:$0xff] %v3698
      %3763 = vst [vmem:[#allocation3 + $0x180] sm:$0xff] %v3699
      %3764 = vst [vmem:[#allocation3 + $0x188] sm:$0xff] %v3700
      %3765 = vst [vmem:[#allocation3 + $0x190] sm:$0xff] %v3701
      %3766 = vst [vmem:[#allocation3 + $0x198] sm:$0xff] %v3702
      %3767 = vst [vmem:[#allocation3 + $0x1a0] sm:$0xff] %v3703
      %3768 = vst [vmem:[#allocation3 + $0x1a8] sm:$0xff] %v3704
      %3769 = vst [vmem:[#allocation3 + $0x1b0] sm:$0xff] %v3705
      %3770 = vst [vmem:[#allocation3 + $0x1b8] sm:$0xff] %v3706
      %3771 = vst [vmem:[#allocation3 + $0x1c0] sm:$0xff] %v3707
      %3772 = vst [vmem:[#allocation3 + $0x1c8] sm:$0xff] %v3708
      %3773 = vst [vmem:[#allocation3 + $0x1d0] sm:$0xff] %v3709
      %3774 = vst [vmem:[#allocation3 + $0x1d8] sm:$0xff] %v3710
      %3775 = vst [vmem:[#allocation3 + $0x1e0] sm:$0xff] %v3711
      %3776 = vst [vmem:[#allocation3 + $0x1e8] sm:$0xff] %v3712
      %3777 = vst [vmem:[#allocation3 + $0x1f0] sm:$0xff] %v3713
      %3778 = vst [vmem:[#allocation3 + $0x1f8] sm:$0xff] %v3714
      %v3779 = vld [vmem:[#allocation2] sm:$0xff]
      %v3780 = vld [vmem:[#allocation2 + $0x8] sm:$0xff]
      %v3781 = vld [vmem:[#allocation2 + $0x10] sm:$0xff]
      %v3782 = vld [vmem:[#allocation2 + $0x18] sm:$0xff]
      %v3783 = vld [vmem:[#allocation2 + $0x20] sm:$0xff]
      %v3784 = vld [vmem:[#allocation2 + $0x28] sm:$0xff]
      %v3785 = vld [vmem:[#allocation2 + $0x30] sm:$0xff]
      %v3786 = vld [vmem:[#allocation2 + $0x38] sm:$0xff]
      %v3787 = vld [vmem:[#allocation2 + $0x40] sm:$0xff]
      %v3788 = vld [vmem:[#allocation2 + $0x48] sm:$0xff]
      %v3789 = vld [vmem:[#allocation2 + $0x50] sm:$0xff]
      %v3790 = vld [vmem:[#allocation2 + $0x58] sm:$0xff]
      %v3791 = vld [vmem:[#allocation2 + $0x60] sm:$0xff]
      %v3792 = vld [vmem:[#allocation2 + $0x68] sm:$0xff]
      %v3793 = vld [vmem:[#allocation2 + $0x70] sm:$0xff]
      %v3794 = vld [vmem:[#allocation2 + $0x78] sm:$0xff]
      %v3795 = vld [vmem:[#allocation2 + $0x80] sm:$0xff]
      %v3796 = vld [vmem:[#allocation2 + $0x88] sm:$0xff]
      %v3797 = vld [vmem:[#allocation2 + $0x90] sm:$0xff]
      %v3798 = vld [vmem:[#allocation2 + $0x98] sm:$0xff]
      %v3799 = vld [vmem:[#allocation2 + $0xa0] sm:$0xff]
      %v3800 = vld [vmem:[#allocation2 + $0xa8] sm:$0xff]
      %v3801 = vld [vmem:[#allocation2 + $0xb0] sm:$0xff]
      %v3802 = vld [vmem:[#allocation2 + $0xb8] sm:$0xff]
      %v3803 = vld [vmem:[#allocation2 + $0xc0] sm:$0xff]
      %v3804 = vld [vmem:[#allocation2 + $0xc8] sm:$0xff]
      %v3805 = vld [vmem:[#allocation2 + $0xd0] sm:$0xff]
      %v3806 = vld [vmem:[#allocation2 + $0xd8] sm:$0xff]
      %v3807 = vld [vmem:[#allocation2 + $0xe0] sm:$0xff]
      %v3808 = vld [vmem:[#allocation2 + $0xe8] sm:$0xff]
      %v3809 = vld [vmem:[#allocation2 + $0xf0] sm:$0xff]
      %v3810 = vld [vmem:[#allocation2 + $0xf8] sm:$0xff]
      %v3811 = vld [vmem:[#allocation2 + $0x100] sm:$0xff]
      %v3812 = vld [vmem:[#allocation2 + $0x108] sm:$0xff]
      %v3813 = vld [vmem:[#allocation2 + $0x110] sm:$0xff]
      %v3814 = vld [vmem:[#allocation2 + $0x118] sm:$0xff]
      %v3815 = vld [vmem:[#allocation2 + $0x120] sm:$0xff]
      %v3816 = vld [vmem:[#allocation2 + $0x128] sm:$0xff]
      %v3817 = vld [vmem:[#allocation2 + $0x130] sm:$0xff]
      %v3818 = vld [vmem:[#allocation2 + $0x138] sm:$0xff]
      %v3819 = vld [vmem:[#allocation2 + $0x140] sm:$0xff]
      %v3820 = vld [vmem:[#allocation2 + $0x148] sm:$0xff]
      %v3821 = vld [vmem:[#allocation2 + $0x150] sm:$0xff]
      %v3822 = vld [vmem:[#allocation2 + $0x158] sm:$0xff]
      %v3823 = vld [vmem:[#allocation2 + $0x160] sm:$0xff]
      %v3824 = vld [vmem:[#allocation2 + $0x168] sm:$0xff]
      %v3825 = vld [vmem:[#allocation2 + $0x170] sm:$0xff]
      %v3826 = vld [vmem:[#allocation2 + $0x178] sm:$0xff]
      %3875 = vrot.lane.b32.xlu0 %v3779, 126
      %v3876 = vpop.permute.xlu0 %3875
      %3877 = vrot.lane.b32.xlu0 %v3780, 126
      %v3878 = vpop.permute.xlu0 %3877
      %3879 = vrot.lane.b32.xlu0 %v3781, 126
      %v3880 = vpop.permute.xlu0 %3879
      %3881 = vrot.lane.b32.xlu0 %v3782, 126
      %v3882 = vpop.permute.xlu0 %3881
      %3883 = vrot.lane.b32.xlu0 %v3783, 126
      %v3884 = vpop.permute.xlu0 %3883
      %3885 = vrot.lane.b32.xlu0 %v3784, 126
      %v3886 = vpop.permute.xlu0 %3885
      %3887 = vrot.lane.b32.xlu0 %v3785, 126
      %v3888 = vpop.permute.xlu0 %3887
      %3889 = vrot.lane.b32.xlu0 %v3786, 126
      %v3890 = vpop.permute.xlu0 %3889
      %3891 = vrot.lane.b32.xlu0 %v3787, 126
      %v3892 = vpop.permute.xlu0 %3891
      %3893 = vrot.lane.b32.xlu0 %v3788, 126
      %v3894 = vpop.permute.xlu0 %3893
      %3895 = vrot.lane.b32.xlu0 %v3789, 126
      %v3896 = vpop.permute.xlu0 %3895
      %3897 = vrot.lane.b32.xlu0 %v3790, 126
      %v3898 = vpop.permute.xlu0 %3897
      %3899 = vrot.lane.b32.xlu0 %v3791, 126
      %v3900 = vpop.permute.xlu0 %3899
      %3901 = vrot.lane.b32.xlu0 %v3792, 126
      %v3902 = vpop.permute.xlu0 %3901
      %3903 = vrot.lane.b32.xlu0 %v3793, 126
      %v3904 = vpop.permute.xlu0 %3903
      %3905 = vrot.lane.b32.xlu0 %v3794, 126
      %v3906 = vpop.permute.xlu0 %3905
      %3907 = vrot.lane.b32.xlu0 %v3795, 126
      %v3908 = vpop.permute.xlu0 %3907
      %3909 = vrot.lane.b32.xlu0 %v3796, 126
      %v3910 = vpop.permute.xlu0 %3909
      %3911 = vrot.lane.b32.xlu0 %v3797, 126
      %v3912 = vpop.permute.xlu0 %3911
      %3913 = vrot.lane.b32.xlu0 %v3798, 126
      %v3914 = vpop.permute.xlu0 %3913
      %3915 = vrot.lane.b32.xlu0 %v3799, 126
      %v3916 = vpop.permute.xlu0 %3915
      %3917 = vrot.lane.b32.xlu0 %v3800, 126
      %v3918 = vpop.permute.xlu0 %3917
      %3919 = vrot.lane.b32.xlu0 %v3801, 126
      %v3920 = vpop.permute.xlu0 %3919
      %3921 = vrot.lane.b32.xlu0 %v3802, 126
      %v3922 = vpop.permute.xlu0 %3921
      %3923 = vrot.lane.b32.xlu0 %v3803, 126
      %v3924 = vpop.permute.xlu0 %3923
      %3925 = vrot.lane.b32.xlu0 %v3804, 126
      %v3926 = vpop.permute.xlu0 %3925
      %3927 = vrot.lane.b32.xlu0 %v3805, 126
      %v3928 = vpop.permute.xlu0 %3927
      %3929 = vrot.lane.b32.xlu0 %v3806, 126
      %v3930 = vpop.permute.xlu0 %3929
      %3931 = vrot.lane.b32.xlu0 %v3807, 126
      %v3932 = vpop.permute.xlu0 %3931
      %3933 = vrot.lane.b32.xlu0 %v3808, 126
      %v3934 = vpop.permute.xlu0 %3933
      %3935 = vrot.lane.b32.xlu0 %v3809, 126
      %v3936 = vpop.permute.xlu0 %3935
      %3937 = vrot.lane.b32.xlu0 %v3810, 126
      %v3938 = vpop.permute.xlu0 %3937
      %3939 = vrot.lane.b32.xlu0 %v3811, 126
      %v3940 = vpop.permute.xlu0 %3939
      %3941 = vrot.lane.b32.xlu0 %v3812, 126
      %v3942 = vpop.permute.xlu0 %3941
      %3943 = vrot.lane.b32.xlu0 %v3813, 126
      %v3944 = vpop.permute.xlu0 %3943
      %3945 = vrot.lane.b32.xlu0 %v3814, 126
      %v3946 = vpop.permute.xlu0 %3945
      %3947 = vrot.lane.b32.xlu0 %v3815, 126
      %v3948 = vpop.permute.xlu0 %3947
      %3949 = vrot.lane.b32.xlu0 %v3816, 126
      %v3950 = vpop.permute.xlu0 %3949
      %3951 = vrot.lane.b32.xlu0 %v3817, 126
      %v3952 = vpop.permute.xlu0 %3951
      %3953 = vrot.lane.b32.xlu0 %v3818, 126
      %v3954 = vpop.permute.xlu0 %3953
      %3955 = vrot.lane.b32.xlu0 %v3819, 126
      %v3956 = vpop.permute.xlu0 %3955
      %3957 = vrot.lane.b32.xlu0 %v3820, 126
      %v3958 = vpop.permute.xlu0 %3957
      %3959 = vrot.lane.b32.xlu0 %v3821, 126
      %v3960 = vpop.permute.xlu0 %3959
      %3961 = vrot.lane.b32.xlu0 %v3822, 126
      %v3962 = vpop.permute.xlu0 %3961
      %3963 = vrot.lane.b32.xlu0 %v3823, 126
      %v3964 = vpop.permute.xlu0 %3963
      %3965 = vrot.lane.b32.xlu0 %v3824, 126
      %v3966 = vpop.permute.xlu0 %3965
      %3967 = vrot.lane.b32.xlu0 %v3825, 126
      %v3968 = vpop.permute.xlu0 %3967
      %3969 = vrot.lane.b32.xlu0 %v3826, 126
      %v3970 = vpop.permute.xlu0 %3969
      %v3971 = vsel %vm499, %v3876, %v3878
      %v3972 = vsel %vm499, %v3878, %v3880
      %v3973 = vsel %vm499, %v3882, %v3884
      %v3974 = vsel %vm499, %v3884, %v3886
      %v3975 = vsel %vm499, %v3888, %v3890
      %v3976 = vsel %vm499, %v3890, %v3892
      %v3977 = vsel %vm499, %v3894, %v3896
      %v3978 = vsel %vm499, %v3896, %v3898
      %v3979 = vsel %vm499, %v3900, %v3902
      %v3980 = vsel %vm499, %v3902, %v3904
      %v3981 = vsel %vm499, %v3906, %v3908
      %v3982 = vsel %vm499, %v3908, %v3910
      %v3983 = vsel %vm499, %v3912, %v3914
      %v3984 = vsel %vm499, %v3914, %v3916
      %v3985 = vsel %vm499, %v3918, %v3920
      %v3986 = vsel %vm499, %v3920, %v3922
      %v3987 = vsel %vm499, %v3924, %v3926
      %v3988 = vsel %vm499, %v3926, %v3928
      %v3989 = vsel %vm499, %v3930, %v3932
      %v3990 = vsel %vm499, %v3932, %v3934
      %v3991 = vsel %vm499, %v3936, %v3938
      %v3992 = vsel %vm499, %v3938, %v3940
      %v3993 = vsel %vm499, %v3942, %v3944
      %v3994 = vsel %vm499, %v3944, %v3946
      %v3995 = vsel %vm499, %v3948, %v3950
      %v3996 = vsel %vm499, %v3950, %v3952
      %v3997 = vsel %vm499, %v3954, %v3956
      %v3998 = vsel %vm499, %v3956, %v3958
      %v3999 = vsel %vm499, %v3960, %v3962
      %v4000 = vsel %vm499, %v3962, %v3964
      %v4001 = vsel %vm499, %v3966, %v3968
      %v4002 = vsel %vm499, %v3968, %v3970
      %v4035 = vsel %vm488, %v3971, 0.0
      %v4036 = vsel %vm489, %v3972, 0.0
      %v4037 = vsel %vm488, %v3973, 0.0
      %v4038 = vsel %vm489, %v3974, 0.0
      %v4039 = vsel %vm488, %v3975, 0.0
      %v4040 = vsel %vm489, %v3976, 0.0
      %v4041 = vsel %vm488, %v3977, 0.0
      %v4042 = vsel %vm489, %v3978, 0.0
      %v4043 = vsel %vm488, %v3979, 0.0
      %v4044 = vsel %vm489, %v3980, 0.0
      %v4045 = vsel %vm488, %v3981, 0.0
      %v4046 = vsel %vm489, %v3982, 0.0
      %v4047 = vsel %vm488, %v3983, 0.0
      %v4048 = vsel %vm489, %v3984, 0.0
      %v4049 = vsel %vm488, %v3985, 0.0
      %v4050 = vsel %vm489, %v3986, 0.0
      %v4051 = vsel %vm488, %v3987, 0.0
      %v4052 = vsel %vm489, %v3988, 0.0
      %v4053 = vsel %vm488, %v3989, 0.0
      %v4054 = vsel %vm489, %v3990, 0.0
      %v4055 = vsel %vm488, %v3991, 0.0
      %v4056 = vsel %vm489, %v3992, 0.0
      %v4057 = vsel %vm488, %v3993, 0.0
      %v4058 = vsel %vm489, %v3994, 0.0
      %v4059 = vsel %vm488, %v3995, 0.0
      %v4060 = vsel %vm489, %v3996, 0.0
      %v4061 = vsel %vm488, %v3997, 0.0
      %v4062 = vsel %vm489, %v3998, 0.0
      %v4063 = vsel %vm488, %v3999, 0.0
      %v4064 = vsel %vm489, %v4000, 0.0
      %v4065 = vsel %vm488, %v4001, 0.0
      %v4066 = vsel %vm489, %v4002, 0.0
      %4067 = vst [vmem:[#allocation3 + $0x200] sm:$0xff] %v4035
      %4068 = vst [vmem:[#allocation3 + $0x208] sm:$0xff] %v4036
      %4069 = vst [vmem:[#allocation3 + $0x210] sm:$0xff] %v4037
      %4070 = vst [vmem:[#allocation3 + $0x218] sm:$0xff] %v4038
      %4071 = vst [vmem:[#allocation3 + $0x220] sm:$0xff] %v4039
      %4072 = vst [vmem:[#allocation3 + $0x228] sm:$0xff] %v4040
      %4073 = vst [vmem:[#allocation3 + $0x230] sm:$0xff] %v4041
      %4074 = vst [vmem:[#allocation3 + $0x238] sm:$0xff] %v4042
      %4075 = vst [vmem:[#allocation3 + $0x240] sm:$0xff] %v4043
      %4076 = vst [vmem:[#allocation3 + $0x248] sm:$0xff] %v4044
      %4077 = vst [vmem:[#allocation3 + $0x250] sm:$0xff] %v4045
      %4078 = vst [vmem:[#allocation3 + $0x258] sm:$0xff] %v4046
      %4079 = vst [vmem:[#allocation3 + $0x260] sm:$0xff] %v4047
      %4080 = vst [vmem:[#allocation3 + $0x268] sm:$0xff] %v4048
      %4081 = vst [vmem:[#allocation3 + $0x270] sm:$0xff] %v4049
      %4082 = vst [vmem:[#allocation3 + $0x278] sm:$0xff] %v4050
      %4083 = vst [vmem:[#allocation3 + $0x280] sm:$0xff] %v4051
      %4084 = vst [vmem:[#allocation3 + $0x288] sm:$0xff] %v4052
      %4085 = vst [vmem:[#allocation3 + $0x290] sm:$0xff] %v4053
      %4086 = vst [vmem:[#allocation3 + $0x298] sm:$0xff] %v4054
      %4087 = vst [vmem:[#allocation3 + $0x2a0] sm:$0xff] %v4055
      %4088 = vst [vmem:[#allocation3 + $0x2a8] sm:$0xff] %v4056
      %4089 = vst [vmem:[#allocation3 + $0x2b0] sm:$0xff] %v4057
      %4090 = vst [vmem:[#allocation3 + $0x2b8] sm:$0xff] %v4058
      %4091 = vst [vmem:[#allocation3 + $0x2c0] sm:$0xff] %v4059
      %4092 = vst [vmem:[#allocation3 + $0x2c8] sm:$0xff] %v4060
      %4093 = vst [vmem:[#allocation3 + $0x2d0] sm:$0xff] %v4061
      %4094 = vst [vmem:[#allocation3 + $0x2d8] sm:$0xff] %v4062
      %4095 = vst [vmem:[#allocation3 + $0x2e0] sm:$0xff] %v4063
      %4096 = vst [vmem:[#allocation3 + $0x2e8] sm:$0xff] %v4064
      %4097 = vst [vmem:[#allocation3 + $0x2f0] sm:$0xff] %v4065
      %4098 = vst [vmem:[#allocation3 + $0x2f8] sm:$0xff] %v4066
      %v4099 = vld [vmem:[#allocation2] sm:$0xff]
      %v4100 = vld [vmem:[#allocation2 + $0x8] sm:$0xff]
      %v4101 = vld [vmem:[#allocation2 + $0x10] sm:$0xff]
      %v4102 = vld [vmem:[#allocation2 + $0x18] sm:$0xff]
      %v4103 = vld [vmem:[#allocation2 + $0x20] sm:$0xff]
      %v4104 = vld [vmem:[#allocation2 + $0x28] sm:$0xff]
      %v4105 = vld [vmem:[#allocation2 + $0x30] sm:$0xff]
      %v4106 = vld [vmem:[#allocation2 + $0x38] sm:$0xff]
      %v4107 = vld [vmem:[#allocation2 + $0x40] sm:$0xff]
      %v4108 = vld [vmem:[#allocation2 + $0x48] sm:$0xff]
      %v4109 = vld [vmem:[#allocation2 + $0x50] sm:$0xff]
      %v4110 = vld [vmem:[#allocation2 + $0x58] sm:$0xff]
      %v4111 = vld [vmem:[#allocation2 + $0x60] sm:$0xff]
      %v4112 = vld [vmem:[#allocation2 + $0x68] sm:$0xff]
      %v4113 = vld [vmem:[#allocation2 + $0x70] sm:$0xff]
      %v4114 = vld [vmem:[#allocation2 + $0x78] sm:$0xff]
      %v4115 = vld [vmem:[#allocation2 + $0x80] sm:$0xff]
      %v4116 = vld [vmem:[#allocation2 + $0x88] sm:$0xff]
      %v4117 = vld [vmem:[#allocation2 + $0x90] sm:$0xff]
      %v4118 = vld [vmem:[#allocation2 + $0x98] sm:$0xff]
      %v4119 = vld [vmem:[#allocation2 + $0xa0] sm:$0xff]
      %v4120 = vld [vmem:[#allocation2 + $0xa8] sm:$0xff]
      %v4121 = vld [vmem:[#allocation2 + $0xb0] sm:$0xff]
      %v4122 = vld [vmem:[#allocation2 + $0xb8] sm:$0xff]
      %v4123 = vld [vmem:[#allocation2 + $0xc0] sm:$0xff]
      %v4124 = vld [vmem:[#allocation2 + $0xc8] sm:$0xff]
      %v4125 = vld [vmem:[#allocation2 + $0xd0] sm:$0xff]
      %v4126 = vld [vmem:[#allocation2 + $0xd8] sm:$0xff]
      %v4127 = vld [vmem:[#allocation2 + $0xe0] sm:$0xff]
      %v4128 = vld [vmem:[#allocation2 + $0xe8] sm:$0xff]
      %v4129 = vld [vmem:[#allocation2 + $0xf0] sm:$0xff]
      %v4130 = vld [vmem:[#allocation2 + $0xf8] sm:$0xff]
      %v4131 = vld [vmem:[#allocation2 + $0x100] sm:$0xff]
      %v4132 = vld [vmem:[#allocation2 + $0x108] sm:$0xff]
      %v4133 = vld [vmem:[#allocation2 + $0x110] sm:$0xff]
      %v4134 = vld [vmem:[#allocation2 + $0x118] sm:$0xff]
      %v4135 = vld [vmem:[#allocation2 + $0x120] sm:$0xff]
      %v4136 = vld [vmem:[#allocation2 + $0x128] sm:$0xff]
      %v4137 = vld [vmem:[#allocation2 + $0x130] sm:$0xff]
      %v4138 = vld [vmem:[#allocation2 + $0x138] sm:$0xff]
      %v4139 = vld [vmem:[#allocation2 + $0x140] sm:$0xff]
      %v4140 = vld [vmem:[#allocation2 + $0x148] sm:$0xff]
      %v4141 = vld [vmem:[#allocation2 + $0x150] sm:$0xff]
      %v4142 = vld [vmem:[#allocation2 + $0x158] sm:$0xff]
      %v4143 = vld [vmem:[#allocation2 + $0x160] sm:$0xff]
      %v4144 = vld [vmem:[#allocation2 + $0x168] sm:$0xff]
      %v4145 = vld [vmem:[#allocation2 + $0x170] sm:$0xff]
      %v4146 = vld [vmem:[#allocation2 + $0x178] sm:$0xff]
      %4195 = vrot.lane.b32.xlu0 %v4099, 112
      %v4196 = vpop.permute.xlu0 %4195
      %4197 = vrot.lane.b32.xlu0 %v4100, 112
      %v4198 = vpop.permute.xlu0 %4197
      %4199 = vrot.lane.b32.xlu0 %v4101, 112
      %v4200 = vpop.permute.xlu0 %4199
      %4201 = vrot.lane.b32.xlu0 %v4102, 112
      %v4202 = vpop.permute.xlu0 %4201
      %4203 = vrot.lane.b32.xlu0 %v4103, 112
      %v4204 = vpop.permute.xlu0 %4203
      %4205 = vrot.lane.b32.xlu0 %v4104, 112
      %v4206 = vpop.permute.xlu0 %4205
      %4207 = vrot.lane.b32.xlu0 %v4105, 112
      %v4208 = vpop.permute.xlu0 %4207
      %4209 = vrot.lane.b32.xlu0 %v4106, 112
      %v4210 = vpop.permute.xlu0 %4209
      %4211 = vrot.lane.b32.xlu0 %v4107, 112
      %v4212 = vpop.permute.xlu0 %4211
      %4213 = vrot.lane.b32.xlu0 %v4108, 112
      %v4214 = vpop.permute.xlu0 %4213
      %4215 = vrot.lane.b32.xlu0 %v4109, 112
      %v4216 = vpop.permute.xlu0 %4215
      %4217 = vrot.lane.b32.xlu0 %v4110, 112
      %v4218 = vpop.permute.xlu0 %4217
      %4219 = vrot.lane.b32.xlu0 %v4111, 112
      %v4220 = vpop.permute.xlu0 %4219
      %4221 = vrot.lane.b32.xlu0 %v4112, 112
      %v4222 = vpop.permute.xlu0 %4221
      %4223 = vrot.lane.b32.xlu0 %v4113, 112
      %v4224 = vpop.permute.xlu0 %4223
      %4225 = vrot.lane.b32.xlu0 %v4114, 112
      %v4226 = vpop.permute.xlu0 %4225
      %4227 = vrot.lane.b32.xlu0 %v4115, 112
      %v4228 = vpop.permute.xlu0 %4227
      %4229 = vrot.lane.b32.xlu0 %v4116, 112
      %v4230 = vpop.permute.xlu0 %4229
      %4231 = vrot.lane.b32.xlu0 %v4117, 112
      %v4232 = vpop.permute.xlu0 %4231
      %4233 = vrot.lane.b32.xlu0 %v4118, 112
      %v4234 = vpop.permute.xlu0 %4233
      %4235 = vrot.lane.b32.xlu0 %v4119, 112
      %v4236 = vpop.permute.xlu0 %4235
      %4237 = vrot.lane.b32.xlu0 %v4120, 112
      %v4238 = vpop.permute.xlu0 %4237
      %4239 = vrot.lane.b32.xlu0 %v4121, 112
      %v4240 = vpop.permute.xlu0 %4239
      %4241 = vrot.lane.b32.xlu0 %v4122, 112
      %v4242 = vpop.permute.xlu0 %4241
      %4243 = vrot.lane.b32.xlu0 %v4123, 112
      %v4244 = vpop.permute.xlu0 %4243
      %4245 = vrot.lane.b32.xlu0 %v4124, 112
      %v4246 = vpop.permute.xlu0 %4245
      %4247 = vrot.lane.b32.xlu0 %v4125, 112
      %v4248 = vpop.permute.xlu0 %4247
      %4249 = vrot.lane.b32.xlu0 %v4126, 112
      %v4250 = vpop.permute.xlu0 %4249
      %4251 = vrot.lane.b32.xlu0 %v4127, 112
      %v4252 = vpop.permute.xlu0 %4251
      %4253 = vrot.lane.b32.xlu0 %v4128, 112
      %v4254 = vpop.permute.xlu0 %4253
      %4255 = vrot.lane.b32.xlu0 %v4129, 112
      %v4256 = vpop.permute.xlu0 %4255
      %4257 = vrot.lane.b32.xlu0 %v4130, 112
      %v4258 = vpop.permute.xlu0 %4257
      %4259 = vrot.lane.b32.xlu0 %v4131, 112
      %v4260 = vpop.permute.xlu0 %4259
      %4261 = vrot.lane.b32.xlu0 %v4132, 112
      %v4262 = vpop.permute.xlu0 %4261
      %4263 = vrot.lane.b32.xlu0 %v4133, 112
      %v4264 = vpop.permute.xlu0 %4263
      %4265 = vrot.lane.b32.xlu0 %v4134, 112
      %v4266 = vpop.permute.xlu0 %4265
      %4267 = vrot.lane.b32.xlu0 %v4135, 112
      %v4268 = vpop.permute.xlu0 %4267
      %4269 = vrot.lane.b32.xlu0 %v4136, 112
      %v4270 = vpop.permute.xlu0 %4269
      %4271 = vrot.lane.b32.xlu0 %v4137, 112
      %v4272 = vpop.permute.xlu0 %4271
      %4273 = vrot.lane.b32.xlu0 %v4138, 112
      %v4274 = vpop.permute.xlu0 %4273
      %4275 = vrot.lane.b32.xlu0 %v4139, 112
      %v4276 = vpop.permute.xlu0 %4275
      %4277 = vrot.lane.b32.xlu0 %v4140, 112
      %v4278 = vpop.permute.xlu0 %4277
      %4279 = vrot.lane.b32.xlu0 %v4141, 112
      %v4280 = vpop.permute.xlu0 %4279
      %4281 = vrot.lane.b32.xlu0 %v4142, 112
      %v4282 = vpop.permute.xlu0 %4281
      %4283 = vrot.lane.b32.xlu0 %v4143, 112
      %v4284 = vpop.permute.xlu0 %4283
      %4285 = vrot.lane.b32.xlu0 %v4144, 112
      %v4286 = vpop.permute.xlu0 %4285
      %4287 = vrot.lane.b32.xlu0 %v4145, 112
      %v4288 = vpop.permute.xlu0 %4287
      %4289 = vrot.lane.b32.xlu0 %v4146, 112
      %v4290 = vpop.permute.xlu0 %4289
      %v4291 = vsel %vm520, %v4196, %v4198
      %v4292 = vsel %vm520, %v4198, %v4200
      %v4293 = vsel %vm520, %v4202, %v4204
      %v4294 = vsel %vm520, %v4204, %v4206
      %v4295 = vsel %vm520, %v4208, %v4210
      %v4296 = vsel %vm520, %v4210, %v4212
      %v4297 = vsel %vm520, %v4214, %v4216
      %v4298 = vsel %vm520, %v4216, %v4218
      %v4299 = vsel %vm520, %v4220, %v4222
      %v4300 = vsel %vm520, %v4222, %v4224
      %v4301 = vsel %vm520, %v4226, %v4228
      %v4302 = vsel %vm520, %v4228, %v4230
      %v4303 = vsel %vm520, %v4232, %v4234
      %v4304 = vsel %vm520, %v4234, %v4236
      %v4305 = vsel %vm520, %v4238, %v4240
      %v4306 = vsel %vm520, %v4240, %v4242
      %v4307 = vsel %vm520, %v4244, %v4246
      %v4308 = vsel %vm520, %v4246, %v4248
      %v4309 = vsel %vm520, %v4250, %v4252
      %v4310 = vsel %vm520, %v4252, %v4254
      %v4311 = vsel %vm520, %v4256, %v4258
      %v4312 = vsel %vm520, %v4258, %v4260
      %v4313 = vsel %vm520, %v4262, %v4264
      %v4314 = vsel %vm520, %v4264, %v4266
      %v4315 = vsel %vm520, %v4268, %v4270
      %v4316 = vsel %vm520, %v4270, %v4272
      %v4317 = vsel %vm520, %v4274, %v4276
      %v4318 = vsel %vm520, %v4276, %v4278
      %v4319 = vsel %vm520, %v4280, %v4282
      %v4320 = vsel %vm520, %v4282, %v4284
      %v4321 = vsel %vm520, %v4286, %v4288
      %v4322 = vsel %vm520, %v4288, %v4290
      %v4355 = vsel %vm455, %v4291, 0.0
      %v4356 = vsel %vm456, %v4292, 0.0
      %v4357 = vsel %vm455, %v4293, 0.0
      %v4358 = vsel %vm456, %v4294, 0.0
      %v4359 = vsel %vm455, %v4295, 0.0
      %v4360 = vsel %vm456, %v4296, 0.0
      %v4361 = vsel %vm455, %v4297, 0.0
      %v4362 = vsel %vm456, %v4298, 0.0
      %v4363 = vsel %vm455, %v4299, 0.0
      %v4364 = vsel %vm456, %v4300, 0.0
      %v4365 = vsel %vm455, %v4301, 0.0
      %v4366 = vsel %vm456, %v4302, 0.0
      %v4367 = vsel %vm455, %v4303, 0.0
      %v4368 = vsel %vm456, %v4304, 0.0
      %v4369 = vsel %vm455, %v4305, 0.0
      %v4370 = vsel %vm456, %v4306, 0.0
      %v4371 = vsel %vm455, %v4307, 0.0
      %v4372 = vsel %vm456, %v4308, 0.0
      %v4373 = vsel %vm455, %v4309, 0.0
      %v4374 = vsel %vm456, %v4310, 0.0
      %v4375 = vsel %vm455, %v4311, 0.0
      %v4376 = vsel %vm456, %v4312, 0.0
      %v4377 = vsel %vm455, %v4313, 0.0
      %v4378 = vsel %vm456, %v4314, 0.0
      %v4379 = vsel %vm455, %v4315, 0.0
      %v4380 = vsel %vm456, %v4316, 0.0
      %v4381 = vsel %vm455, %v4317, 0.0
      %v4382 = vsel %vm456, %v4318, 0.0
      %v4383 = vsel %vm455, %v4319, 0.0
      %v4384 = vsel %vm456, %v4320, 0.0
      %v4385 = vsel %vm455, %v4321, 0.0
      %v4386 = vsel %vm456, %v4322, 0.0
      %4387 = vst [vmem:[#allocation3 + $0x300] sm:$0xff] %v4355
      %4388 = vst [vmem:[#allocation3 + $0x308] sm:$0xff] %v4356
      %4389 = vst [vmem:[#allocation3 + $0x310] sm:$0xff] %v4357
      %4390 = vst [vmem:[#allocation3 + $0x318] sm:$0xff] %v4358
      %4391 = vst [vmem:[#allocation3 + $0x320] sm:$0xff] %v4359
      %4392 = vst [vmem:[#allocation3 + $0x328] sm:$0xff] %v4360
      %4393 = vst [vmem:[#allocation3 + $0x330] sm:$0xff] %v4361
      %4394 = vst [vmem:[#allocation3 + $0x338] sm:$0xff] %v4362
      %4395 = vst [vmem:[#allocation3 + $0x340] sm:$0xff] %v4363
      %4396 = vst [vmem:[#allocation3 + $0x348] sm:$0xff] %v4364
      %4397 = vst [vmem:[#allocation3 + $0x350] sm:$0xff] %v4365
      %4398 = vst [vmem:[#allocation3 + $0x358] sm:$0xff] %v4366
      %4399 = vst [vmem:[#allocation3 + $0x360] sm:$0xff] %v4367
      %4400 = vst [vmem:[#allocation3 + $0x368] sm:$0xff] %v4368
      %4401 = vst [vmem:[#allocation3 + $0x370] sm:$0xff] %v4369
      %4402 = vst [vmem:[#allocation3 + $0x378] sm:$0xff] %v4370
      %4403 = vst [vmem:[#allocation3 + $0x380] sm:$0xff] %v4371
      %4404 = vst [vmem:[#allocation3 + $0x388] sm:$0xff] %v4372
      %4405 = vst [vmem:[#allocation3 + $0x390] sm:$0xff] %v4373
      %4406 = vst [vmem:[#allocation3 + $0x398] sm:$0xff] %v4374
      %4407 = vst [vmem:[#allocation3 + $0x3a0] sm:$0xff] %v4375
      %4408 = vst [vmem:[#allocation3 + $0x3a8] sm:$0xff] %v4376
      %4409 = vst [vmem:[#allocation3 + $0x3b0] sm:$0xff] %v4377
      %4410 = vst [vmem:[#allocation3 + $0x3b8] sm:$0xff] %v4378
      %4411 = vst [vmem:[#allocation3 + $0x3c0] sm:$0xff] %v4379
      %4412 = vst [vmem:[#allocation3 + $0x3c8] sm:$0xff] %v4380
      %4413 = vst [vmem:[#allocation3 + $0x3d0] sm:$0xff] %v4381
      %4414 = vst [vmem:[#allocation3 + $0x3d8] sm:$0xff] %v4382
      %4415 = vst [vmem:[#allocation3 + $0x3e0] sm:$0xff] %v4383
      %4416 = vst [vmem:[#allocation3 + $0x3e8] sm:$0xff] %v4384
      %4417 = vst [vmem:[#allocation3 + $0x3f0] sm:$0xff] %v4385
      %4418 = vst [vmem:[#allocation3 + $0x3f8] sm:$0xff] %v4386
      %v4419 = vld [vmem:[#allocation2] sm:$0xff]
      %v4420 = vld [vmem:[#allocation2 + $0x8] sm:$0xff]
      %v4421 = vld [vmem:[#allocation2 + $0x10] sm:$0xff]
      %v4422 = vld [vmem:[#allocation2 + $0x18] sm:$0xff]
      %v4423 = vld [vmem:[#allocation2 + $0x20] sm:$0xff]
      %v4424 = vld [vmem:[#allocation2 + $0x28] sm:$0xff]
      %v4425 = vld [vmem:[#allocation2 + $0x30] sm:$0xff]
      %v4426 = vld [vmem:[#allocation2 + $0x38] sm:$0xff]
      %v4427 = vld [vmem:[#allocation2 + $0x40] sm:$0xff]
      %v4428 = vld [vmem:[#allocation2 + $0x48] sm:$0xff]
      %v4429 = vld [vmem:[#allocation2 + $0x50] sm:$0xff]
      %v4430 = vld [vmem:[#allocation2 + $0x58] sm:$0xff]
      %v4431 = vld [vmem:[#allocation2 + $0x60] sm:$0xff]
      %v4432 = vld [vmem:[#allocation2 + $0x68] sm:$0xff]
      %v4433 = vld [vmem:[#allocation2 + $0x70] sm:$0xff]
      %v4434 = vld [vmem:[#allocation2 + $0x78] sm:$0xff]
      %v4435 = vld [vmem:[#allocation2 + $0x80] sm:$0xff]
      %v4436 = vld [vmem:[#allocation2 + $0x88] sm:$0xff]
      %v4437 = vld [vmem:[#allocation2 + $0x90] sm:$0xff]
      %v4438 = vld [vmem:[#allocation2 + $0x98] sm:$0xff]
      %v4439 = vld [vmem:[#allocation2 + $0xa0] sm:$0xff]
      %v4440 = vld [vmem:[#allocation2 + $0xa8] sm:$0xff]
      %v4441 = vld [vmem:[#allocation2 + $0xb0] sm:$0xff]
      %v4442 = vld [vmem:[#allocation2 + $0xb8] sm:$0xff]
      %v4443 = vld [vmem:[#allocation2 + $0xc0] sm:$0xff]
      %v4444 = vld [vmem:[#allocation2 + $0xc8] sm:$0xff]
      %v4445 = vld [vmem:[#allocation2 + $0xd0] sm:$0xff]
      %v4446 = vld [vmem:[#allocation2 + $0xd8] sm:$0xff]
      %v4447 = vld [vmem:[#allocation2 + $0xe0] sm:$0xff]
      %v4448 = vld [vmem:[#allocation2 + $0xe8] sm:$0xff]
      %v4449 = vld [vmem:[#allocation2 + $0xf0] sm:$0xff]
      %v4450 = vld [vmem:[#allocation2 + $0xf8] sm:$0xff]
      %v4451 = vld [vmem:[#allocation2 + $0x100] sm:$0xff]
      %v4452 = vld [vmem:[#allocation2 + $0x108] sm:$0xff]
      %v4453 = vld [vmem:[#allocation2 + $0x110] sm:$0xff]
      %v4454 = vld [vmem:[#allocation2 + $0x118] sm:$0xff]
      %v4455 = vld [vmem:[#allocation2 + $0x120] sm:$0xff]
      %v4456 = vld [vmem:[#allocation2 + $0x128] sm:$0xff]
      %v4457 = vld [vmem:[#allocation2 + $0x130] sm:$0xff]
      %v4458 = vld [vmem:[#allocation2 + $0x138] sm:$0xff]
      %v4459 = vld [vmem:[#allocation2 + $0x140] sm:$0xff]
      %v4460 = vld [vmem:[#allocation2 + $0x148] sm:$0xff]
      %v4461 = vld [vmem:[#allocation2 + $0x150] sm:$0xff]
      %v4462 = vld [vmem:[#allocation2 + $0x158] sm:$0xff]
      %v4463 = vld [vmem:[#allocation2 + $0x160] sm:$0xff]
      %v4464 = vld [vmem:[#allocation2 + $0x168] sm:$0xff]
      %v4465 = vld [vmem:[#allocation2 + $0x170] sm:$0xff]
      %v4466 = vld [vmem:[#allocation2 + $0x178] sm:$0xff]
      %4515 = vrot.lane.b32.xlu0 %v4419, 111
      %v4516 = vpop.permute.xlu0 %4515
      %4517 = vrot.lane.b32.xlu0 %v4420, 111
      %v4518 = vpop.permute.xlu0 %4517
      %4519 = vrot.lane.b32.xlu0 %v4421, 111
      %v4520 = vpop.permute.xlu0 %4519
      %4521 = vrot.lane.b32.xlu0 %v4422, 111
      %v4522 = vpop.permute.xlu0 %4521
      %4523 = vrot.lane.b32.xlu0 %v4423, 111
      %v4524 = vpop.permute.xlu0 %4523
      %4525 = vrot.lane.b32.xlu0 %v4424, 111
      %v4526 = vpop.permute.xlu0 %4525
      %4527 = vrot.lane.b32.xlu0 %v4425, 111
      %v4528 = vpop.permute.xlu0 %4527
      %4529 = vrot.lane.b32.xlu0 %v4426, 111
      %v4530 = vpop.permute.xlu0 %4529
      %4531 = vrot.lane.b32.xlu0 %v4427, 111
      %v4532 = vpop.permute.xlu0 %4531
      %4533 = vrot.lane.b32.xlu0 %v4428, 111
      %v4534 = vpop.permute.xlu0 %4533
      %4535 = vrot.lane.b32.xlu0 %v4429, 111
      %v4536 = vpop.permute.xlu0 %4535
      %4537 = vrot.lane.b32.xlu0 %v4430, 111
      %v4538 = vpop.permute.xlu0 %4537
      %4539 = vrot.lane.b32.xlu0 %v4431, 111
      %v4540 = vpop.permute.xlu0 %4539
      %4541 = vrot.lane.b32.xlu0 %v4432, 111
      %v4542 = vpop.permute.xlu0 %4541
      %4543 = vrot.lane.b32.xlu0 %v4433, 111
      %v4544 = vpop.permute.xlu0 %4543
      %4545 = vrot.lane.b32.xlu0 %v4434, 111
      %v4546 = vpop.permute.xlu0 %4545
      %4547 = vrot.lane.b32.xlu0 %v4435, 111
      %v4548 = vpop.permute.xlu0 %4547
      %4549 = vrot.lane.b32.xlu0 %v4436, 111
      %v4550 = vpop.permute.xlu0 %4549
      %4551 = vrot.lane.b32.xlu0 %v4437, 111
      %v4552 = vpop.permute.xlu0 %4551
      %4553 = vrot.lane.b32.xlu0 %v4438, 111
      %v4554 = vpop.permute.xlu0 %4553
      %4555 = vrot.lane.b32.xlu0 %v4439, 111
      %v4556 = vpop.permute.xlu0 %4555
      %4557 = vrot.lane.b32.xlu0 %v4440, 111
      %v4558 = vpop.permute.xlu0 %4557
      %4559 = vrot.lane.b32.xlu0 %v4441, 111
      %v4560 = vpop.permute.xlu0 %4559
      %4561 = vrot.lane.b32.xlu0 %v4442, 111
      %v4562 = vpop.permute.xlu0 %4561
      %4563 = vrot.lane.b32.xlu0 %v4443, 111
      %v4564 = vpop.permute.xlu0 %4563
      %4565 = vrot.lane.b32.xlu0 %v4444, 111
      %v4566 = vpop.permute.xlu0 %4565
      %4567 = vrot.lane.b32.xlu0 %v4445, 111
      %v4568 = vpop.permute.xlu0 %4567
      %4569 = vrot.lane.b32.xlu0 %v4446, 111
      %v4570 = vpop.permute.xlu0 %4569
      %4571 = vrot.lane.b32.xlu0 %v4447, 111
      %v4572 = vpop.permute.xlu0 %4571
      %4573 = vrot.lane.b32.xlu0 %v4448, 111
      %v4574 = vpop.permute.xlu0 %4573
      %4575 = vrot.lane.b32.xlu0 %v4449, 111
      %v4576 = vpop.permute.xlu0 %4575
      %4577 = vrot.lane.b32.xlu0 %v4450, 111
      %v4578 = vpop.permute.xlu0 %4577
      %4579 = vrot.lane.b32.xlu0 %v4451, 111
      %v4580 = vpop.permute.xlu0 %4579
      %4581 = vrot.lane.b32.xlu0 %v4452, 111
      %v4582 = vpop.permute.xlu0 %4581
      %4583 = vrot.lane.b32.xlu0 %v4453, 111
      %v4584 = vpop.permute.xlu0 %4583
      %4585 = vrot.lane.b32.xlu0 %v4454, 111
      %v4586 = vpop.permute.xlu0 %4585
      %4587 = vrot.lane.b32.xlu0 %v4455, 111
      %v4588 = vpop.permute.xlu0 %4587
      %4589 = vrot.lane.b32.xlu0 %v4456, 111
      %v4590 = vpop.permute.xlu0 %4589
      %4591 = vrot.lane.b32.xlu0 %v4457, 111
      %v4592 = vpop.permute.xlu0 %4591
      %4593 = vrot.lane.b32.xlu0 %v4458, 111
      %v4594 = vpop.permute.xlu0 %4593
      %4595 = vrot.lane.b32.xlu0 %v4459, 111
      %v4596 = vpop.permute.xlu0 %4595
      %4597 = vrot.lane.b32.xlu0 %v4460, 111
      %v4598 = vpop.permute.xlu0 %4597
      %4599 = vrot.lane.b32.xlu0 %v4461, 111
      %v4600 = vpop.permute.xlu0 %4599
      %4601 = vrot.lane.b32.xlu0 %v4462, 111
      %v4602 = vpop.permute.xlu0 %4601
      %4603 = vrot.lane.b32.xlu0 %v4463, 111
      %v4604 = vpop.permute.xlu0 %4603
      %4605 = vrot.lane.b32.xlu0 %v4464, 111
      %v4606 = vpop.permute.xlu0 %4605
      %4607 = vrot.lane.b32.xlu0 %v4465, 111
      %v4608 = vpop.permute.xlu0 %4607
      %4609 = vrot.lane.b32.xlu0 %v4466, 111
      %v4610 = vpop.permute.xlu0 %4609
      %v4611 = vsel %vm547, %v4516, %v4518
      %v4612 = vsel %vm547, %v4518, %v4520
      %v4613 = vsel %vm547, %v4522, %v4524
      %v4614 = vsel %vm547, %v4524, %v4526
      %v4615 = vsel %vm547, %v4528, %v4530
      %v4616 = vsel %vm547, %v4530, %v4532
      %v4617 = vsel %vm547, %v4534, %v4536
      %v4618 = vsel %vm547, %v4536, %v4538
      %v4619 = vsel %vm547, %v4540, %v4542
      %v4620 = vsel %vm547, %v4542, %v4544
      %v4621 = vsel %vm547, %v4546, %v4548
      %v4622 = vsel %vm547, %v4548, %v4550
      %v4623 = vsel %vm547, %v4552, %v4554
      %v4624 = vsel %vm547, %v4554, %v4556
      %v4625 = vsel %vm547, %v4558, %v4560
      %v4626 = vsel %vm547, %v4560, %v4562
      %v4627 = vsel %vm547, %v4564, %v4566
      %v4628 = vsel %vm547, %v4566, %v4568
      %v4629 = vsel %vm547, %v4570, %v4572
      %v4630 = vsel %vm547, %v4572, %v4574
      %v4631 = vsel %vm547, %v4576, %v4578
      %v4632 = vsel %vm547, %v4578, %v4580
      %v4633 = vsel %vm547, %v4582, %v4584
      %v4634 = vsel %vm547, %v4584, %v4586
      %v4635 = vsel %vm547, %v4588, %v4590
      %v4636 = vsel %vm547, %v4590, %v4592
      %v4637 = vsel %vm547, %v4594, %v4596
      %v4638 = vsel %vm547, %v4596, %v4598
      %v4639 = vsel %vm547, %v4600, %v4602
      %v4640 = vsel %vm547, %v4602, %v4604
      %v4641 = vsel %vm547, %v4606, %v4608
      %v4642 = vsel %vm547, %v4608, %v4610
      %4675 = vst [vmem:[#allocation3 + $0x400] sm:$0xff] %v4611
      %4676 = vst [vmem:[#allocation3 + $0x408] sm:$0xff] %v4612
      %4677 = vst [vmem:[#allocation3 + $0x410] sm:$0xff] %v4613
      %4678 = vst [vmem:[#allocation3 + $0x418] sm:$0xff] %v4614
      %4679 = vst [vmem:[#allocation3 + $0x420] sm:$0xff] %v4615
      %4680 = vst [vmem:[#allocation3 + $0x428] sm:$0xff] %v4616
      %4681 = vst [vmem:[#allocation3 + $0x430] sm:$0xff] %v4617
      %4682 = vst [vmem:[#allocation3 + $0x438] sm:$0xff] %v4618
      %4683 = vst [vmem:[#allocation3 + $0x440] sm:$0xff] %v4619
      %4684 = vst [vmem:[#allocation3 + $0x448] sm:$0xff] %v4620
      %4685 = vst [vmem:[#allocation3 + $0x450] sm:$0xff] %v4621
      %4686 = vst [vmem:[#allocation3 + $0x458] sm:$0xff] %v4622
      %4687 = vst [vmem:[#allocation3 + $0x460] sm:$0xff] %v4623
      %4688 = vst [vmem:[#allocation3 + $0x468] sm:$0xff] %v4624
      %4689 = vst [vmem:[#allocation3 + $0x470] sm:$0xff] %v4625
      %4690 = vst [vmem:[#allocation3 + $0x478] sm:$0xff] %v4626
      %4691 = vst [vmem:[#allocation3 + $0x480] sm:$0xff] %v4627
      %4692 = vst [vmem:[#allocation3 + $0x488] sm:$0xff] %v4628
      %4693 = vst [vmem:[#allocation3 + $0x490] sm:$0xff] %v4629
      %4694 = vst [vmem:[#allocation3 + $0x498] sm:$0xff] %v4630
      %4695 = vst [vmem:[#allocation3 + $0x4a0] sm:$0xff] %v4631
      %4696 = vst [vmem:[#allocation3 + $0x4a8] sm:$0xff] %v4632
      %4697 = vst [vmem:[#allocation3 + $0x4b0] sm:$0xff] %v4633
      %4698 = vst [vmem:[#allocation3 + $0x4b8] sm:$0xff] %v4634
      %4699 = vst [vmem:[#allocation3 + $0x4c0] sm:$0xff] %v4635
      %4700 = vst [vmem:[#allocation3 + $0x4c8] sm:$0xff] %v4636
      %4701 = vst [vmem:[#allocation3 + $0x4d0] sm:$0xff] %v4637
      %4702 = vst [vmem:[#allocation3 + $0x4d8] sm:$0xff] %v4638
      %4703 = vst [vmem:[#allocation3 + $0x4e0] sm:$0xff] %v4639
      %4704 = vst [vmem:[#allocation3 + $0x4e8] sm:$0xff] %v4640
      %4705 = vst [vmem:[#allocation3 + $0x4f0] sm:$0xff] %v4641
      %4706 = vst [vmem:[#allocation3 + $0x4f8] sm:$0xff] %v4642
      %v4707 = vld [vmem:[#allocation2] sm:$0xff]
      %v4708 = vld [vmem:[#allocation2 + $0x8] sm:$0xff]
      %v4709 = vld [vmem:[#allocation2 + $0x10] sm:$0xff]
      %v4710 = vld [vmem:[#allocation2 + $0x18] sm:$0xff]
      %v4711 = vld [vmem:[#allocation2 + $0x20] sm:$0xff]
      %v4712 = vld [vmem:[#allocation2 + $0x28] sm:$0xff]
      %v4713 = vld [vmem:[#allocation2 + $0x30] sm:$0xff]
      %v4714 = vld [vmem:[#allocation2 + $0x38] sm:$0xff]
      %v4715 = vld [vmem:[#allocation2 + $0x40] sm:$0xff]
      %v4716 = vld [vmem:[#allocation2 + $0x48] sm:$0xff]
      %v4717 = vld [vmem:[#allocation2 + $0x50] sm:$0xff]
      %v4718 = vld [vmem:[#allocation2 + $0x58] sm:$0xff]
      %v4719 = vld [vmem:[#allocation2 + $0x60] sm:$0xff]
      %v4720 = vld [vmem:[#allocation2 + $0x68] sm:$0xff]
      %v4721 = vld [vmem:[#allocation2 + $0x70] sm:$0xff]
      %v4722 = vld [vmem:[#allocation2 + $0x78] sm:$0xff]
      %v4723 = vld [vmem:[#allocation2 + $0x80] sm:$0xff]
      %v4724 = vld [vmem:[#allocation2 + $0x88] sm:$0xff]
      %v4725 = vld [vmem:[#allocation2 + $0x90] sm:$0xff]
      %v4726 = vld [vmem:[#allocation2 + $0x98] sm:$0xff]
      %v4727 = vld [vmem:[#allocation2 + $0xa0] sm:$0xff]
      %v4728 = vld [vmem:[#allocation2 + $0xa8] sm:$0xff]
      %v4729 = vld [vmem:[#allocation2 + $0xb0] sm:$0xff]
      %v4730 = vld [vmem:[#allocation2 + $0xb8] sm:$0xff]
      %v4731 = vld [vmem:[#allocation2 + $0xc0] sm:$0xff]
      %v4732 = vld [vmem:[#allocation2 + $0xc8] sm:$0xff]
      %v4733 = vld [vmem:[#allocation2 + $0xd0] sm:$0xff]
      %v4734 = vld [vmem:[#allocation2 + $0xd8] sm:$0xff]
      %v4735 = vld [vmem:[#allocation2 + $0xe0] sm:$0xff]
      %v4736 = vld [vmem:[#allocation2 + $0xe8] sm:$0xff]
      %v4737 = vld [vmem:[#allocation2 + $0xf0] sm:$0xff]
      %v4738 = vld [vmem:[#allocation2 + $0xf8] sm:$0xff]
      %v4739 = vld [vmem:[#allocation2 + $0x100] sm:$0xff]
      %v4740 = vld [vmem:[#allocation2 + $0x108] sm:$0xff]
      %v4741 = vld [vmem:[#allocation2 + $0x110] sm:$0xff]
      %v4742 = vld [vmem:[#allocation2 + $0x118] sm:$0xff]
      %v4743 = vld [vmem:[#allocation2 + $0x120] sm:$0xff]
      %v4744 = vld [vmem:[#allocation2 + $0x128] sm:$0xff]
      %v4745 = vld [vmem:[#allocation2 + $0x130] sm:$0xff]
      %v4746 = vld [vmem:[#allocation2 + $0x138] sm:$0xff]
      %v4747 = vld [vmem:[#allocation2 + $0x140] sm:$0xff]
      %v4748 = vld [vmem:[#allocation2 + $0x148] sm:$0xff]
      %v4749 = vld [vmem:[#allocation2 + $0x150] sm:$0xff]
      %v4750 = vld [vmem:[#allocation2 + $0x158] sm:$0xff]
      %v4751 = vld [vmem:[#allocation2 + $0x160] sm:$0xff]
      %v4752 = vld [vmem:[#allocation2 + $0x168] sm:$0xff]
      %v4753 = vld [vmem:[#allocation2 + $0x170] sm:$0xff]
      %v4754 = vld [vmem:[#allocation2 + $0x178] sm:$0xff]
      %4803 = vrot.lane.b32.xlu0 %v4707, 110
      %v4804 = vpop.permute.xlu0 %4803
      %4805 = vrot.lane.b32.xlu0 %v4708, 110
      %v4806 = vpop.permute.xlu0 %4805
      %4807 = vrot.lane.b32.xlu0 %v4709, 110
      %v4808 = vpop.permute.xlu0 %4807
      %4809 = vrot.lane.b32.xlu0 %v4710, 110
      %v4810 = vpop.permute.xlu0 %4809
      %4811 = vrot.lane.b32.xlu0 %v4711, 110
      %v4812 = vpop.permute.xlu0 %4811
      %4813 = vrot.lane.b32.xlu0 %v4712, 110
      %v4814 = vpop.permute.xlu0 %4813
      %4815 = vrot.lane.b32.xlu0 %v4713, 110
      %v4816 = vpop.permute.xlu0 %4815
      %4817 = vrot.lane.b32.xlu0 %v4714, 110
      %v4818 = vpop.permute.xlu0 %4817
      %4819 = vrot.lane.b32.xlu0 %v4715, 110
      %v4820 = vpop.permute.xlu0 %4819
      %4821 = vrot.lane.b32.xlu0 %v4716, 110
      %v4822 = vpop.permute.xlu0 %4821
      %4823 = vrot.lane.b32.xlu0 %v4717, 110
      %v4824 = vpop.permute.xlu0 %4823
      %4825 = vrot.lane.b32.xlu0 %v4718, 110
      %v4826 = vpop.permute.xlu0 %4825
      %4827 = vrot.lane.b32.xlu0 %v4719, 110
      %v4828 = vpop.permute.xlu0 %4827
      %4829 = vrot.lane.b32.xlu0 %v4720, 110
      %v4830 = vpop.permute.xlu0 %4829
      %4831 = vrot.lane.b32.xlu0 %v4721, 110
      %v4832 = vpop.permute.xlu0 %4831
      %4833 = vrot.lane.b32.xlu0 %v4722, 110
      %v4834 = vpop.permute.xlu0 %4833
      %4835 = vrot.lane.b32.xlu0 %v4723, 110
      %v4836 = vpop.permute.xlu0 %4835
      %4837 = vrot.lane.b32.xlu0 %v4724, 110
      %v4838 = vpop.permute.xlu0 %4837
      %4839 = vrot.lane.b32.xlu0 %v4725, 110
      %v4840 = vpop.permute.xlu0 %4839
      %4841 = vrot.lane.b32.xlu0 %v4726, 110
      %v4842 = vpop.permute.xlu0 %4841
      %4843 = vrot.lane.b32.xlu0 %v4727, 110
      %v4844 = vpop.permute.xlu0 %4843
      %4845 = vrot.lane.b32.xlu0 %v4728, 110
      %v4846 = vpop.permute.xlu0 %4845
      %4847 = vrot.lane.b32.xlu0 %v4729, 110
      %v4848 = vpop.permute.xlu0 %4847
      %4849 = vrot.lane.b32.xlu0 %v4730, 110
      %v4850 = vpop.permute.xlu0 %4849
      %4851 = vrot.lane.b32.xlu0 %v4731, 110
      %v4852 = vpop.permute.xlu0 %4851
      %4853 = vrot.lane.b32.xlu0 %v4732, 110
      %v4854 = vpop.permute.xlu0 %4853
      %4855 = vrot.lane.b32.xlu0 %v4733, 110
      %v4856 = vpop.permute.xlu0 %4855
      %4857 = vrot.lane.b32.xlu0 %v4734, 110
      %v4858 = vpop.permute.xlu0 %4857
      %4859 = vrot.lane.b32.xlu0 %v4735, 110
      %v4860 = vpop.permute.xlu0 %4859
      %4861 = vrot.lane.b32.xlu0 %v4736, 110
      %v4862 = vpop.permute.xlu0 %4861
      %4863 = vrot.lane.b32.xlu0 %v4737, 110
      %v4864 = vpop.permute.xlu0 %4863
      %4865 = vrot.lane.b32.xlu0 %v4738, 110
      %v4866 = vpop.permute.xlu0 %4865
      %4867 = vrot.lane.b32.xlu0 %v4739, 110
      %v4868 = vpop.permute.xlu0 %4867
      %4869 = vrot.lane.b32.xlu0 %v4740, 110
      %v4870 = vpop.permute.xlu0 %4869
      %4871 = vrot.lane.b32.xlu0 %v4741, 110
      %v4872 = vpop.permute.xlu0 %4871
      %4873 = vrot.lane.b32.xlu0 %v4742, 110
      %v4874 = vpop.permute.xlu0 %4873
      %4875 = vrot.lane.b32.xlu0 %v4743, 110
      %v4876 = vpop.permute.xlu0 %4875
      %4877 = vrot.lane.b32.xlu0 %v4744, 110
      %v4878 = vpop.permute.xlu0 %4877
      %4879 = vrot.lane.b32.xlu0 %v4745, 110
      %v4880 = vpop.permute.xlu0 %4879
      %4881 = vrot.lane.b32.xlu0 %v4746, 110
      %v4882 = vpop.permute.xlu0 %4881
      %4883 = vrot.lane.b32.xlu0 %v4747, 110
      %v4884 = vpop.permute.xlu0 %4883
      %4885 = vrot.lane.b32.xlu0 %v4748, 110
      %v4886 = vpop.permute.xlu0 %4885
      %4887 = vrot.lane.b32.xlu0 %v4749, 110
      %v4888 = vpop.permute.xlu0 %4887
      %4889 = vrot.lane.b32.xlu0 %v4750, 110
      %v4890 = vpop.permute.xlu0 %4889
      %4891 = vrot.lane.b32.xlu0 %v4751, 110
      %v4892 = vpop.permute.xlu0 %4891
      %4893 = vrot.lane.b32.xlu0 %v4752, 110
      %v4894 = vpop.permute.xlu0 %4893
      %4895 = vrot.lane.b32.xlu0 %v4753, 110
      %v4896 = vpop.permute.xlu0 %4895
      %4897 = vrot.lane.b32.xlu0 %v4754, 110
      %v4898 = vpop.permute.xlu0 %4897
      %v4899 = vsel %vm566, %v4804, %v4806
      %v4900 = vsel %vm566, %v4806, %v4808
      %v4901 = vsel %vm566, %v4810, %v4812
      %v4902 = vsel %vm566, %v4812, %v4814
      %v4903 = vsel %vm566, %v4816, %v4818
      %v4904 = vsel %vm566, %v4818, %v4820
      %v4905 = vsel %vm566, %v4822, %v4824
      %v4906 = vsel %vm566, %v4824, %v4826
      %v4907 = vsel %vm566, %v4828, %v4830
      %v4908 = vsel %vm566, %v4830, %v4832
      %v4909 = vsel %vm566, %v4834, %v4836
      %v4910 = vsel %vm566, %v4836, %v4838
      %v4911 = vsel %vm566, %v4840, %v4842
      %v4912 = vsel %vm566, %v4842, %v4844
      %v4913 = vsel %vm566, %v4846, %v4848
      %v4914 = vsel %vm566, %v4848, %v4850
      %v4915 = vsel %vm566, %v4852, %v4854
      %v4916 = vsel %vm566, %v4854, %v4856
      %v4917 = vsel %vm566, %v4858, %v4860
      %v4918 = vsel %vm566, %v4860, %v4862
      %v4919 = vsel %vm566, %v4864, %v4866
      %v4920 = vsel %vm566, %v4866, %v4868
      %v4921 = vsel %vm566, %v4870, %v4872
      %v4922 = vsel %vm566, %v4872, %v4874
      %v4923 = vsel %vm566, %v4876, %v4878
      %v4924 = vsel %vm566, %v4878, %v4880
      %v4925 = vsel %vm566, %v4882, %v4884
      %v4926 = vsel %vm566, %v4884, %v4886
      %v4927 = vsel %vm566, %v4888, %v4890
      %v4928 = vsel %vm566, %v4890, %v4892
      %v4929 = vsel %vm566, %v4894, %v4896
      %v4930 = vsel %vm566, %v4896, %v4898
      %v4963 = vsel %vm488, %v4899, 0.0
      %v4964 = vsel %vm489, %v4900, 0.0
      %v4965 = vsel %vm488, %v4901, 0.0
      %v4966 = vsel %vm489, %v4902, 0.0
      %v4967 = vsel %vm488, %v4903, 0.0
      %v4968 = vsel %vm489, %v4904, 0.0
      %v4969 = vsel %vm488, %v4905, 0.0
      %v4970 = vsel %vm489, %v4906, 0.0
      %v4971 = vsel %vm488, %v4907, 0.0
      %v4972 = vsel %vm489, %v4908, 0.0
      %v4973 = vsel %vm488, %v4909, 0.0
      %v4974 = vsel %vm489, %v4910, 0.0
      %v4975 = vsel %vm488, %v4911, 0.0
      %v4976 = vsel %vm489, %v4912, 0.0
      %v4977 = vsel %vm488, %v4913, 0.0
      %v4978 = vsel %vm489, %v4914, 0.0
      %v4979 = vsel %vm488, %v4915, 0.0
      %v4980 = vsel %vm489, %v4916, 0.0
      %v4981 = vsel %vm488, %v4917, 0.0
      %v4982 = vsel %vm489, %v4918, 0.0
      %v4983 = vsel %vm488, %v4919, 0.0
      %v4984 = vsel %vm489, %v4920, 0.0
      %v4985 = vsel %vm488, %v4921, 0.0
      %v4986 = vsel %vm489, %v4922, 0.0
      %v4987 = vsel %vm488, %v4923, 0.0
      %v4988 = vsel %vm489, %v4924, 0.0
      %v4989 = vsel %vm488, %v4925, 0.0
      %v4990 = vsel %vm489, %v4926, 0.0
      %v4991 = vsel %vm488, %v4927, 0.0
      %v4992 = vsel %vm489, %v4928, 0.0
      %v4993 = vsel %vm488, %v4929, 0.0
      %v4994 = vsel %vm489, %v4930, 0.0
      %4995 = vst [vmem:[#allocation3 + $0x500] sm:$0xff] %v4963
      %4996 = vst [vmem:[#allocation3 + $0x508] sm:$0xff] %v4964
      %4997 = vst [vmem:[#allocation3 + $0x510] sm:$0xff] %v4965
      %4998 = vst [vmem:[#allocation3 + $0x518] sm:$0xff] %v4966
      %4999 = vst [vmem:[#allocation3 + $0x520] sm:$0xff] %v4967
      %5000 = vst [vmem:[#allocation3 + $0x528] sm:$0xff] %v4968
      %5001 = vst [vmem:[#allocation3 + $0x530] sm:$0xff] %v4969
      %5002 = vst [vmem:[#allocation3 + $0x538] sm:$0xff] %v4970
      %5003 = vst [vmem:[#allocation3 + $0x540] sm:$0xff] %v4971
      %5004 = vst [vmem:[#allocation3 + $0x548] sm:$0xff] %v4972
      %5005 = vst [vmem:[#allocation3 + $0x550] sm:$0xff] %v4973
      %5006 = vst [vmem:[#allocation3 + $0x558] sm:$0xff] %v4974
      %5007 = vst [vmem:[#allocation3 + $0x560] sm:$0xff] %v4975
      %5008 = vst [vmem:[#allocation3 + $0x568] sm:$0xff] %v4976
      %5009 = vst [vmem:[#allocation3 + $0x570] sm:$0xff] %v4977
      %5010 = vst [vmem:[#allocation3 + $0x578] sm:$0xff] %v4978
      %5011 = vst [vmem:[#allocation3 + $0x580] sm:$0xff] %v4979
      %5012 = vst [vmem:[#allocation3 + $0x588] sm:$0xff] %v4980
      %5013 = vst [vmem:[#allocation3 + $0x590] sm:$0xff] %v4981
      %5014 = vst [vmem:[#allocation3 + $0x598] sm:$0xff] %v4982
      %5015 = vst [vmem:[#allocation3 + $0x5a0] sm:$0xff] %v4983
      %5016 = vst [vmem:[#allocation3 + $0x5a8] sm:$0xff] %v4984
      %5017 = vst [vmem:[#allocation3 + $0x5b0] sm:$0xff] %v4985
      %5018 = vst [vmem:[#allocation3 + $0x5b8] sm:$0xff] %v4986
      %5019 = vst [vmem:[#allocation3 + $0x5c0] sm:$0xff] %v4987
      %5020 = vst [vmem:[#allocation3 + $0x5c8] sm:$0xff] %v4988
      %5021 = vst [vmem:[#allocation3 + $0x5d0] sm:$0xff] %v4989
      %5022 = vst [vmem:[#allocation3 + $0x5d8] sm:$0xff] %v4990
      %5023 = vst [vmem:[#allocation3 + $0x5e0] sm:$0xff] %v4991
      %5024 = vst [vmem:[#allocation3 + $0x5e8] sm:$0xff] %v4992
      %5025 = vst [vmem:[#allocation3 + $0x5f0] sm:$0xff] %v4993
      %5026 = vst [vmem:[#allocation3 + $0x5f8] sm:$0xff] %v4994
      %v5027 = vld [vmem:[#allocation2] sm:$0xff]
      %v5028 = vld [vmem:[#allocation2 + $0x8] sm:$0xff]
      %v5029 = vld [vmem:[#allocation2 + $0x10] sm:$0xff]
      %v5030 = vld [vmem:[#allocation2 + $0x18] sm:$0xff]
      %v5031 = vld [vmem:[#allocation2 + $0x20] sm:$0xff]
      %v5032 = vld [vmem:[#allocation2 + $0x28] sm:$0xff]
      %v5033 = vld [vmem:[#allocation2 + $0x30] sm:$0xff]
      %v5034 = vld [vmem:[#allocation2 + $0x38] sm:$0xff]
      %v5035 = vld [vmem:[#allocation2 + $0x40] sm:$0xff]
      %v5036 = vld [vmem:[#allocation2 + $0x48] sm:$0xff]
      %v5037 = vld [vmem:[#allocation2 + $0x50] sm:$0xff]
      %v5038 = vld [vmem:[#allocation2 + $0x58] sm:$0xff]
      %v5039 = vld [vmem:[#allocation2 + $0x60] sm:$0xff]
      %v5040 = vld [vmem:[#allocation2 + $0x68] sm:$0xff]
      %v5041 = vld [vmem:[#allocation2 + $0x70] sm:$0xff]
      %v5042 = vld [vmem:[#allocation2 + $0x78] sm:$0xff]
      %v5043 = vld [vmem:[#allocation2 + $0x80] sm:$0xff]
      %v5044 = vld [vmem:[#allocation2 + $0x88] sm:$0xff]
      %v5045 = vld [vmem:[#allocation2 + $0x90] sm:$0xff]
      %v5046 = vld [vmem:[#allocation2 + $0x98] sm:$0xff]
      %v5047 = vld [vmem:[#allocation2 + $0xa0] sm:$0xff]
      %v5048 = vld [vmem:[#allocation2 + $0xa8] sm:$0xff]
      %v5049 = vld [vmem:[#allocation2 + $0xb0] sm:$0xff]
      %v5050 = vld [vmem:[#allocation2 + $0xb8] sm:$0xff]
      %v5051 = vld [vmem:[#allocation2 + $0xc0] sm:$0xff]
      %v5052 = vld [vmem:[#allocation2 + $0xc8] sm:$0xff]
      %v5053 = vld [vmem:[#allocation2 + $0xd0] sm:$0xff]
      %v5054 = vld [vmem:[#allocation2 + $0xd8] sm:$0xff]
      %v5055 = vld [vmem:[#allocation2 + $0xe0] sm:$0xff]
      %v5056 = vld [vmem:[#allocation2 + $0xe8] sm:$0xff]
      %v5057 = vld [vmem:[#allocation2 + $0xf0] sm:$0xff]
      %v5058 = vld [vmem:[#allocation2 + $0xf8] sm:$0xff]
      %v5059 = vld [vmem:[#allocation2 + $0x100] sm:$0xff]
      %v5060 = vld [vmem:[#allocation2 + $0x108] sm:$0xff]
      %v5061 = vld [vmem:[#allocation2 + $0x110] sm:$0xff]
      %v5062 = vld [vmem:[#allocation2 + $0x118] sm:$0xff]
      %v5063 = vld [vmem:[#allocation2 + $0x120] sm:$0xff]
      %v5064 = vld [vmem:[#allocation2 + $0x128] sm:$0xff]
      %v5065 = vld [vmem:[#allocation2 + $0x130] sm:$0xff]
      %v5066 = vld [vmem:[#allocation2 + $0x138] sm:$0xff]
      %v5067 = vld [vmem:[#allocation2 + $0x140] sm:$0xff]
      %v5068 = vld [vmem:[#allocation2 + $0x148] sm:$0xff]
      %v5069 = vld [vmem:[#allocation2 + $0x150] sm:$0xff]
      %v5070 = vld [vmem:[#allocation2 + $0x158] sm:$0xff]
      %v5071 = vld [vmem:[#allocation2 + $0x160] sm:$0xff]
      %v5072 = vld [vmem:[#allocation2 + $0x168] sm:$0xff]
      %v5073 = vld [vmem:[#allocation2 + $0x170] sm:$0xff]
      %v5074 = vld [vmem:[#allocation2 + $0x178] sm:$0xff]
      %5123 = vrot.lane.b32.xlu0 %v5027, 96
      %v5124 = vpop.permute.xlu0 %5123
      %5125 = vrot.lane.b32.xlu0 %v5028, 96
      %v5126 = vpop.permute.xlu0 %5125
      %5127 = vrot.lane.b32.xlu0 %v5029, 96
      %v5128 = vpop.permute.xlu0 %5127
      %5129 = vrot.lane.b32.xlu0 %v5030, 96
      %v5130 = vpop.permute.xlu0 %5129
      %5131 = vrot.lane.b32.xlu0 %v5031, 96
      %v5132 = vpop.permute.xlu0 %5131
      %5133 = vrot.lane.b32.xlu0 %v5032, 96
      %v5134 = vpop.permute.xlu0 %5133
      %5135 = vrot.lane.b32.xlu0 %v5033, 96
      %v5136 = vpop.permute.xlu0 %5135
      %5137 = vrot.lane.b32.xlu0 %v5034, 96
      %v5138 = vpop.permute.xlu0 %5137
      %5139 = vrot.lane.b32.xlu0 %v5035, 96
      %v5140 = vpop.permute.xlu0 %5139
      %5141 = vrot.lane.b32.xlu0 %v5036, 96
      %v5142 = vpop.permute.xlu0 %5141
      %5143 = vrot.lane.b32.xlu0 %v5037, 96
      %v5144 = vpop.permute.xlu0 %5143
      %5145 = vrot.lane.b32.xlu0 %v5038, 96
      %v5146 = vpop.permute.xlu0 %5145
      %5147 = vrot.lane.b32.xlu0 %v5039, 96
      %v5148 = vpop.permute.xlu0 %5147
      %5149 = vrot.lane.b32.xlu0 %v5040, 96
      %v5150 = vpop.permute.xlu0 %5149
      %5151 = vrot.lane.b32.xlu0 %v5041, 96
      %v5152 = vpop.permute.xlu0 %5151
      %5153 = vrot.lane.b32.xlu0 %v5042, 96
      %v5154 = vpop.permute.xlu0 %5153
      %5155 = vrot.lane.b32.xlu0 %v5043, 96
      %v5156 = vpop.permute.xlu0 %5155
      %5157 = vrot.lane.b32.xlu0 %v5044, 96
      %v5158 = vpop.permute.xlu0 %5157
      %5159 = vrot.lane.b32.xlu0 %v5045, 96
      %v5160 = vpop.permute.xlu0 %5159
      %5161 = vrot.lane.b32.xlu0 %v5046, 96
      %v5162 = vpop.permute.xlu0 %5161
      %5163 = vrot.lane.b32.xlu0 %v5047, 96
      %v5164 = vpop.permute.xlu0 %5163
      %5165 = vrot.lane.b32.xlu0 %v5048, 96
      %v5166 = vpop.permute.xlu0 %5165
      %5167 = vrot.lane.b32.xlu0 %v5049, 96
      %v5168 = vpop.permute.xlu0 %5167
      %5169 = vrot.lane.b32.xlu0 %v5050, 96
      %v5170 = vpop.permute.xlu0 %5169
      %5171 = vrot.lane.b32.xlu0 %v5051, 96
      %v5172 = vpop.permute.xlu0 %5171
      %5173 = vrot.lane.b32.xlu0 %v5052, 96
      %v5174 = vpop.permute.xlu0 %5173
      %5175 = vrot.lane.b32.xlu0 %v5053, 96
      %v5176 = vpop.permute.xlu0 %5175
      %5177 = vrot.lane.b32.xlu0 %v5054, 96
      %v5178 = vpop.permute.xlu0 %5177
      %5179 = vrot.lane.b32.xlu0 %v5055, 96
      %v5180 = vpop.permute.xlu0 %5179
      %5181 = vrot.lane.b32.xlu0 %v5056, 96
      %v5182 = vpop.permute.xlu0 %5181
      %5183 = vrot.lane.b32.xlu0 %v5057, 96
      %v5184 = vpop.permute.xlu0 %5183
      %5185 = vrot.lane.b32.xlu0 %v5058, 96
      %v5186 = vpop.permute.xlu0 %5185
      %5187 = vrot.lane.b32.xlu0 %v5059, 96
      %v5188 = vpop.permute.xlu0 %5187
      %5189 = vrot.lane.b32.xlu0 %v5060, 96
      %v5190 = vpop.permute.xlu0 %5189
      %5191 = vrot.lane.b32.xlu0 %v5061, 96
      %v5192 = vpop.permute.xlu0 %5191
      %5193 = vrot.lane.b32.xlu0 %v5062, 96
      %v5194 = vpop.permute.xlu0 %5193
      %5195 = vrot.lane.b32.xlu0 %v5063, 96
      %v5196 = vpop.permute.xlu0 %5195
      %5197 = vrot.lane.b32.xlu0 %v5064, 96
      %v5198 = vpop.permute.xlu0 %5197
      %5199 = vrot.lane.b32.xlu0 %v5065, 96
      %v5200 = vpop.permute.xlu0 %5199
      %5201 = vrot.lane.b32.xlu0 %v5066, 96
      %v5202 = vpop.permute.xlu0 %5201
      %5203 = vrot.lane.b32.xlu0 %v5067, 96
      %v5204 = vpop.permute.xlu0 %5203
      %5205 = vrot.lane.b32.xlu0 %v5068, 96
      %v5206 = vpop.permute.xlu0 %5205
      %5207 = vrot.lane.b32.xlu0 %v5069, 96
      %v5208 = vpop.permute.xlu0 %5207
      %5209 = vrot.lane.b32.xlu0 %v5070, 96
      %v5210 = vpop.permute.xlu0 %5209
      %5211 = vrot.lane.b32.xlu0 %v5071, 96
      %v5212 = vpop.permute.xlu0 %5211
      %5213 = vrot.lane.b32.xlu0 %v5072, 96
      %v5214 = vpop.permute.xlu0 %5213
      %5215 = vrot.lane.b32.xlu0 %v5073, 96
      %v5216 = vpop.permute.xlu0 %5215
      %5217 = vrot.lane.b32.xlu0 %v5074, 96
      %v5218 = vpop.permute.xlu0 %5217
      %v5219 = vsel %vm593, %v5124, %v5126
      %v5220 = vsel %vm593, %v5126, %v5128
      %v5221 = vsel %vm593, %v5130, %v5132
      %v5222 = vsel %vm593, %v5132, %v5134
      %v5223 = vsel %vm593, %v5136, %v5138
      %v5224 = vsel %vm593, %v5138, %v5140
      %v5225 = vsel %vm593, %v5142, %v5144
      %v5226 = vsel %vm593, %v5144, %v5146
      %v5227 = vsel %vm593, %v5148, %v5150
      %v5228 = vsel %vm593, %v5150, %v5152
      %v5229 = vsel %vm593, %v5154, %v5156
      %v5230 = vsel %vm593, %v5156, %v5158
      %v5231 = vsel %vm593, %v5160, %v5162
      %v5232 = vsel %vm593, %v5162, %v5164
      %v5233 = vsel %vm593, %v5166, %v5168
      %v5234 = vsel %vm593, %v5168, %v5170
      %v5235 = vsel %vm593, %v5172, %v5174
      %v5236 = vsel %vm593, %v5174, %v5176
      %v5237 = vsel %vm593, %v5178, %v5180
      %v5238 = vsel %vm593, %v5180, %v5182
      %v5239 = vsel %vm593, %v5184, %v5186
      %v5240 = vsel %vm593, %v5186, %v5188
      %v5241 = vsel %vm593, %v5190, %v5192
      %v5242 = vsel %vm593, %v5192, %v5194
      %v5243 = vsel %vm593, %v5196, %v5198
      %v5244 = vsel %vm593, %v5198, %v5200
      %v5245 = vsel %vm593, %v5202, %v5204
      %v5246 = vsel %vm593, %v5204, %v5206
      %v5247 = vsel %vm593, %v5208, %v5210
      %v5248 = vsel %vm593, %v5210, %v5212
      %v5249 = vsel %vm593, %v5214, %v5216
      %v5250 = vsel %vm593, %v5216, %v5218
      %v5283 = vsel %vm455, %v5219, 0.0
      %v5284 = vsel %vm456, %v5220, 0.0
      %v5285 = vsel %vm455, %v5221, 0.0
      %v5286 = vsel %vm456, %v5222, 0.0
      %v5287 = vsel %vm455, %v5223, 0.0
      %v5288 = vsel %vm456, %v5224, 0.0
      %v5289 = vsel %vm455, %v5225, 0.0
      %v5290 = vsel %vm456, %v5226, 0.0
      %v5291 = vsel %vm455, %v5227, 0.0
      %v5292 = vsel %vm456, %v5228, 0.0
      %v5293 = vsel %vm455, %v5229, 0.0
      %v5294 = vsel %vm456, %v5230, 0.0
      %v5295 = vsel %vm455, %v5231, 0.0
      %v5296 = vsel %vm456, %v5232, 0.0
      %v5297 = vsel %vm455, %v5233, 0.0
      %v5298 = vsel %vm456, %v5234, 0.0
      %v5299 = vsel %vm455, %v5235, 0.0
      %v5300 = vsel %vm456, %v5236, 0.0
      %v5301 = vsel %vm455, %v5237, 0.0
      %v5302 = vsel %vm456, %v5238, 0.0
      %v5303 = vsel %vm455, %v5239, 0.0
      %v5304 = vsel %vm456, %v5240, 0.0
      %v5305 = vsel %vm455, %v5241, 0.0
      %v5306 = vsel %vm456, %v5242, 0.0
      %v5307 = vsel %vm455, %v5243, 0.0
      %v5308 = vsel %vm456, %v5244, 0.0
      %v5309 = vsel %vm455, %v5245, 0.0
      %v5310 = vsel %vm456, %v5246, 0.0
      %v5311 = vsel %vm455, %v5247, 0.0
      %v5312 = vsel %vm456, %v5248, 0.0
      %v5313 = vsel %vm455, %v5249, 0.0
      %v5314 = vsel %vm456, %v5250, 0.0
      %5315 = vst [vmem:[#allocation3 + $0x600] sm:$0xff] %v5283
      %5316 = vst [vmem:[#allocation3 + $0x608] sm:$0xff] %v5284
      %5317 = vst [vmem:[#allocation3 + $0x610] sm:$0xff] %v5285
      %5318 = vst [vmem:[#allocation3 + $0x618] sm:$0xff] %v5286
      %5319 = vst [vmem:[#allocation3 + $0x620] sm:$0xff] %v5287
      %5320 = vst [vmem:[#allocation3 + $0x628] sm:$0xff] %v5288
      %5321 = vst [vmem:[#allocation3 + $0x630] sm:$0xff] %v5289
      %5322 = vst [vmem:[#allocation3 + $0x638] sm:$0xff] %v5290
      %5323 = vst [vmem:[#allocation3 + $0x640] sm:$0xff] %v5291
      %5324 = vst [vmem:[#allocation3 + $0x648] sm:$0xff] %v5292
      %5325 = vst [vmem:[#allocation3 + $0x650] sm:$0xff] %v5293
      %5326 = vst [vmem:[#allocation3 + $0x658] sm:$0xff] %v5294
      %5327 = vst [vmem:[#allocation3 + $0x660] sm:$0xff] %v5295
      %5328 = vst [vmem:[#allocation3 + $0x668] sm:$0xff] %v5296
      %5329 = vst [vmem:[#allocation3 + $0x670] sm:$0xff] %v5297
      %5330 = vst [vmem:[#allocation3 + $0x678] sm:$0xff] %v5298
      %5331 = vst [vmem:[#allocation3 + $0x680] sm:$0xff] %v5299
      %5332 = vst [vmem:[#allocation3 + $0x688] sm:$0xff] %v5300
      %5333 = vst [vmem:[#allocation3 + $0x690] sm:$0xff] %v5301
      %5334 = vst [vmem:[#allocation3 + $0x698] sm:$0xff] %v5302
      %5335 = vst [vmem:[#allocation3 + $0x6a0] sm:$0xff] %v5303
      %5336 = vst [vmem:[#allocation3 + $0x6a8] sm:$0xff] %v5304
      %5337 = vst [vmem:[#allocation3 + $0x6b0] sm:$0xff] %v5305
      %5338 = vst [vmem:[#allocation3 + $0x6b8] sm:$0xff] %v5306
      %5339 = vst [vmem:[#allocation3 + $0x6c0] sm:$0xff] %v5307
      %5340 = vst [vmem:[#allocation3 + $0x6c8] sm:$0xff] %v5308
      %5341 = vst [vmem:[#allocation3 + $0x6d0] sm:$0xff] %v5309
      %5342 = vst [vmem:[#allocation3 + $0x6d8] sm:$0xff] %v5310
      %5343 = vst [vmem:[#allocation3 + $0x6e0] sm:$0xff] %v5311
      %5344 = vst [vmem:[#allocation3 + $0x6e8] sm:$0xff] %v5312
      %5345 = vst [vmem:[#allocation3 + $0x6f0] sm:$0xff] %v5313
      %5346 = vst [vmem:[#allocation3 + $0x6f8] sm:$0xff] %v5314
      %v5347 = vld [vmem:[#allocation2] sm:$0xff]
      %v5348 = vld [vmem:[#allocation2 + $0x8] sm:$0xff]
      %v5349 = vld [vmem:[#allocation2 + $0x10] sm:$0xff]
      %v5350 = vld [vmem:[#allocation2 + $0x18] sm:$0xff]
      %v5351 = vld [vmem:[#allocation2 + $0x20] sm:$0xff]
      %v5352 = vld [vmem:[#allocation2 + $0x28] sm:$0xff]
      %v5353 = vld [vmem:[#allocation2 + $0x30] sm:$0xff]
      %v5354 = vld [vmem:[#allocation2 + $0x38] sm:$0xff]
      %v5355 = vld [vmem:[#allocation2 + $0x40] sm:$0xff]
      %v5356 = vld [vmem:[#allocation2 + $0x48] sm:$0xff]
      %v5357 = vld [vmem:[#allocation2 + $0x50] sm:$0xff]
      %v5358 = vld [vmem:[#allocation2 + $0x58] sm:$0xff]
      %v5359 = vld [vmem:[#allocation2 + $0x60] sm:$0xff]
      %v5360 = vld [vmem:[#allocation2 + $0x68] sm:$0xff]
      %v5361 = vld [vmem:[#allocation2 + $0x70] sm:$0xff]
      %v5362 = vld [vmem:[#allocation2 + $0x78] sm:$0xff]
      %v5363 = vld [vmem:[#allocation2 + $0x80] sm:$0xff]
      %v5364 = vld [vmem:[#allocation2 + $0x88] sm:$0xff]
      %v5365 = vld [vmem:[#allocation2 + $0x90] sm:$0xff]
      %v5366 = vld [vmem:[#allocation2 + $0x98] sm:$0xff]
      %v5367 = vld [vmem:[#allocation2 + $0xa0] sm:$0xff]
      %v5368 = vld [vmem:[#allocation2 + $0xa8] sm:$0xff]
      %v5369 = vld [vmem:[#allocation2 + $0xb0] sm:$0xff]
      %v5370 = vld [vmem:[#allocation2 + $0xb8] sm:$0xff]
      %v5371 = vld [vmem:[#allocation2 + $0xc0] sm:$0xff]
      %v5372 = vld [vmem:[#allocation2 + $0xc8] sm:$0xff]
      %v5373 = vld [vmem:[#allocation2 + $0xd0] sm:$0xff]
      %v5374 = vld [vmem:[#allocation2 + $0xd8] sm:$0xff]
      %v5375 = vld [vmem:[#allocation2 + $0xe0] sm:$0xff]
      %v5376 = vld [vmem:[#allocation2 + $0xe8] sm:$0xff]
      %v5377 = vld [vmem:[#allocation2 + $0xf0] sm:$0xff]
      %v5378 = vld [vmem:[#allocation2 + $0xf8] sm:$0xff]
      %v5379 = vld [vmem:[#allocation2 + $0x100] sm:$0xff]
      %v5380 = vld [vmem:[#allocation2 + $0x108] sm:$0xff]
      %v5381 = vld [vmem:[#allocation2 + $0x110] sm:$0xff]
      %v5382 = vld [vmem:[#allocation2 + $0x118] sm:$0xff]
      %v5383 = vld [vmem:[#allocation2 + $0x120] sm:$0xff]
      %v5384 = vld [vmem:[#allocation2 + $0x128] sm:$0xff]
      %v5385 = vld [vmem:[#allocation2 + $0x130] sm:$0xff]
      %v5386 = vld [vmem:[#allocation2 + $0x138] sm:$0xff]
      %v5387 = vld [vmem:[#allocation2 + $0x140] sm:$0xff]
      %v5388 = vld [vmem:[#allocation2 + $0x148] sm:$0xff]
      %v5389 = vld [vmem:[#allocation2 + $0x150] sm:$0xff]
      %v5390 = vld [vmem:[#allocation2 + $0x158] sm:$0xff]
      %v5391 = vld [vmem:[#allocation2 + $0x160] sm:$0xff]
      %v5392 = vld [vmem:[#allocation2 + $0x168] sm:$0xff]
      %v5393 = vld [vmem:[#allocation2 + $0x170] sm:$0xff]
      %v5394 = vld [vmem:[#allocation2 + $0x178] sm:$0xff]
      %5443 = vrot.lane.b32.xlu0 %v5347, 95
      %v5444 = vpop.permute.xlu0 %5443
      %5445 = vrot.lane.b32.xlu0 %v5348, 95
      %v5446 = vpop.permute.xlu0 %5445
      %5447 = vrot.lane.b32.xlu0 %v5349, 95
      %v5448 = vpop.permute.xlu0 %5447
      %5449 = vrot.lane.b32.xlu0 %v5350, 95
      %v5450 = vpop.permute.xlu0 %5449
      %5451 = vrot.lane.b32.xlu0 %v5351, 95
      %v5452 = vpop.permute.xlu0 %5451
      %5453 = vrot.lane.b32.xlu0 %v5352, 95
      %v5454 = vpop.permute.xlu0 %5453
      %5455 = vrot.lane.b32.xlu0 %v5353, 95
      %v5456 = vpop.permute.xlu0 %5455
      %5457 = vrot.lane.b32.xlu0 %v5354, 95
      %v5458 = vpop.permute.xlu0 %5457
      %5459 = vrot.lane.b32.xlu0 %v5355, 95
      %v5460 = vpop.permute.xlu0 %5459
      %5461 = vrot.lane.b32.xlu0 %v5356, 95
      %v5462 = vpop.permute.xlu0 %5461
      %5463 = vrot.lane.b32.xlu0 %v5357, 95
      %v5464 = vpop.permute.xlu0 %5463
      %5465 = vrot.lane.b32.xlu0 %v5358, 95
      %v5466 = vpop.permute.xlu0 %5465
      %5467 = vrot.lane.b32.xlu0 %v5359, 95
      %v5468 = vpop.permute.xlu0 %5467
      %5469 = vrot.lane.b32.xlu0 %v5360, 95
      %v5470 = vpop.permute.xlu0 %5469
      %5471 = vrot.lane.b32.xlu0 %v5361, 95
      %v5472 = vpop.permute.xlu0 %5471
      %5473 = vrot.lane.b32.xlu0 %v5362, 95
      %v5474 = vpop.permute.xlu0 %5473
      %5475 = vrot.lane.b32.xlu0 %v5363, 95
      %v5476 = vpop.permute.xlu0 %5475
      %5477 = vrot.lane.b32.xlu0 %v5364, 95
      %v5478 = vpop.permute.xlu0 %5477
      %5479 = vrot.lane.b32.xlu0 %v5365, 95
      %v5480 = vpop.permute.xlu0 %5479
      %5481 = vrot.lane.b32.xlu0 %v5366, 95
      %v5482 = vpop.permute.xlu0 %5481
      %5483 = vrot.lane.b32.xlu0 %v5367, 95
      %v5484 = vpop.permute.xlu0 %5483
      %5485 = vrot.lane.b32.xlu0 %v5368, 95
      %v5486 = vpop.permute.xlu0 %5485
      %5487 = vrot.lane.b32.xlu0 %v5369, 95
      %v5488 = vpop.permute.xlu0 %5487
      %5489 = vrot.lane.b32.xlu0 %v5370, 95
      %v5490 = vpop.permute.xlu0 %5489
      %5491 = vrot.lane.b32.xlu0 %v5371, 95
      %v5492 = vpop.permute.xlu0 %5491
      %5493 = vrot.lane.b32.xlu0 %v5372, 95
      %v5494 = vpop.permute.xlu0 %5493
      %5495 = vrot.lane.b32.xlu0 %v5373, 95
      %v5496 = vpop.permute.xlu0 %5495
      %5497 = vrot.lane.b32.xlu0 %v5374, 95
      %v5498 = vpop.permute.xlu0 %5497
      %5499 = vrot.lane.b32.xlu0 %v5375, 95
      %v5500 = vpop.permute.xlu0 %5499
      %5501 = vrot.lane.b32.xlu0 %v5376, 95
      %v5502 = vpop.permute.xlu0 %5501
      %5503 = vrot.lane.b32.xlu0 %v5377, 95
      %v5504 = vpop.permute.xlu0 %5503
      %5505 = vrot.lane.b32.xlu0 %v5378, 95
      %v5506 = vpop.permute.xlu0 %5505
      %5507 = vrot.lane.b32.xlu0 %v5379, 95
      %v5508 = vpop.permute.xlu0 %5507
      %5509 = vrot.lane.b32.xlu0 %v5380, 95
      %v5510 = vpop.permute.xlu0 %5509
      %5511 = vrot.lane.b32.xlu0 %v5381, 95
      %v5512 = vpop.permute.xlu0 %5511
      %5513 = vrot.lane.b32.xlu0 %v5382, 95
      %v5514 = vpop.permute.xlu0 %5513
      %5515 = vrot.lane.b32.xlu0 %v5383, 95
      %v5516 = vpop.permute.xlu0 %5515
      %5517 = vrot.lane.b32.xlu0 %v5384, 95
      %v5518 = vpop.permute.xlu0 %5517
      %5519 = vrot.lane.b32.xlu0 %v5385, 95
      %v5520 = vpop.permute.xlu0 %5519
      %5521 = vrot.lane.b32.xlu0 %v5386, 95
      %v5522 = vpop.permute.xlu0 %5521
      %5523 = vrot.lane.b32.xlu0 %v5387, 95
      %v5524 = vpop.permute.xlu0 %5523
      %5525 = vrot.lane.b32.xlu0 %v5388, 95
      %v5526 = vpop.permute.xlu0 %5525
      %5527 = vrot.lane.b32.xlu0 %v5389, 95
      %v5528 = vpop.permute.xlu0 %5527
      %5529 = vrot.lane.b32.xlu0 %v5390, 95
      %v5530 = vpop.permute.xlu0 %5529
      %5531 = vrot.lane.b32.xlu0 %v5391, 95
      %v5532 = vpop.permute.xlu0 %5531
      %5533 = vrot.lane.b32.xlu0 %v5392, 95
      %v5534 = vpop.permute.xlu0 %5533
      %5535 = vrot.lane.b32.xlu0 %v5393, 95
      %v5536 = vpop.permute.xlu0 %5535
      %5537 = vrot.lane.b32.xlu0 %v5394, 95
      %v5538 = vpop.permute.xlu0 %5537
      %v5539 = vsel %vm617, %v5444, %v5446
      %v5540 = vsel %vm617, %v5446, %v5448
      %v5541 = vsel %vm617, %v5450, %v5452
      %v5542 = vsel %vm617, %v5452, %v5454
      %v5543 = vsel %vm617, %v5456, %v5458
      %v5544 = vsel %vm617, %v5458, %v5460
      %v5545 = vsel %vm617, %v5462, %v5464
      %v5546 = vsel %vm617, %v5464, %v5466
      %v5547 = vsel %vm617, %v5468, %v5470
      %v5548 = vsel %vm617, %v5470, %v5472
      %v5549 = vsel %vm617, %v5474, %v5476
      %v5550 = vsel %vm617, %v5476, %v5478
      %v5551 = vsel %vm617, %v5480, %v5482
      %v5552 = vsel %vm617, %v5482, %v5484
      %v5553 = vsel %vm617, %v5486, %v5488
      %v5554 = vsel %vm617, %v5488, %v5490
      %v5555 = vsel %vm617, %v5492, %v5494
      %v5556 = vsel %vm617, %v5494, %v5496
      %v5557 = vsel %vm617, %v5498, %v5500
      %v5558 = vsel %vm617, %v5500, %v5502
      %v5559 = vsel %vm617, %v5504, %v5506
      %v5560 = vsel %vm617, %v5506, %v5508
      %v5561 = vsel %vm617, %v5510, %v5512
      %v5562 = vsel %vm617, %v5512, %v5514
      %v5563 = vsel %vm617, %v5516, %v5518
      %v5564 = vsel %vm617, %v5518, %v5520
      %v5565 = vsel %vm617, %v5522, %v5524
      %v5566 = vsel %vm617, %v5524, %v5526
      %v5567 = vsel %vm617, %v5528, %v5530
      %v5568 = vsel %vm617, %v5530, %v5532
      %v5569 = vsel %vm617, %v5534, %v5536
      %v5570 = vsel %vm617, %v5536, %v5538
      %5603 = vst [vmem:[#allocation3 + $0x700] sm:$0xff] %v5539
      %5604 = vst [vmem:[#allocation3 + $0x708] sm:$0xff] %v5540
      %5605 = vst [vmem:[#allocation3 + $0x710] sm:$0xff] %v5541
      %5606 = vst [vmem:[#allocation3 + $0x718] sm:$0xff] %v5542
      %5607 = vst [vmem:[#allocation3 + $0x720] sm:$0xff] %v5543
      %5608 = vst [vmem:[#allocation3 + $0x728] sm:$0xff] %v5544
      %5609 = vst [vmem:[#allocation3 + $0x730] sm:$0xff] %v5545
      %5610 = vst [vmem:[#allocation3 + $0x738] sm:$0xff] %v5546
      %5611 = vst [vmem:[#allocation3 + $0x740] sm:$0xff] %v5547
      %5612 = vst [vmem:[#allocation3 + $0x748] sm:$0xff] %v5548
      %5613 = vst [vmem:[#allocation3 + $0x750] sm:$0xff] %v5549
      %5614 = vst [vmem:[#allocation3 + $0x758] sm:$0xff] %v5550
      %5615 = vst [vmem:[#allocation3 + $0x760] sm:$0xff] %v5551
      %5616 = vst [vmem:[#allocation3 + $0x768] sm:$0xff] %v5552
      %5617 = vst [vmem:[#allocation3 + $0x770] sm:$0xff] %v5553
      %5618 = vst [vmem:[#allocation3 + $0x778] sm:$0xff] %v5554
      %5619 = vst [vmem:[#allocation3 + $0x780] sm:$0xff] %v5555
      %5620 = vst [vmem:[#allocation3 + $0x788] sm:$0xff] %v5556
      %5621 = vst [vmem:[#allocation3 + $0x790] sm:$0xff] %v5557
      %5622 = vst [vmem:[#allocation3 + $0x798] sm:$0xff] %v5558
      %5623 = vst [vmem:[#allocation3 + $0x7a0] sm:$0xff] %v5559
      %5624 = vst [vmem:[#allocation3 + $0x7a8] sm:$0xff] %v5560
      %5625 = vst [vmem:[#allocation3 + $0x7b0] sm:$0xff] %v5561
      %5626 = vst [vmem:[#allocation3 + $0x7b8] sm:$0xff] %v5562
      %5627 = vst [vmem:[#allocation3 + $0x7c0] sm:$0xff] %v5563
      %5628 = vst [vmem:[#allocation3 + $0x7c8] sm:$0xff] %v5564
      %5629 = vst [vmem:[#allocation3 + $0x7d0] sm:$0xff] %v5565
      %5630 = vst [vmem:[#allocation3 + $0x7d8] sm:$0xff] %v5566
      %5631 = vst [vmem:[#allocation3 + $0x7e0] sm:$0xff] %v5567
      %5632 = vst [vmem:[#allocation3 + $0x7e8] sm:$0xff] %v5568
      %5633 = vst [vmem:[#allocation3 + $0x7f0] sm:$0xff] %v5569
      %5634 = vst [vmem:[#allocation3 + $0x7f8] sm:$0xff] %v5570
      %v5635 = vld [vmem:[#allocation2] sm:$0xff]
      %v5636 = vld [vmem:[#allocation2 + $0x8] sm:$0xff]
      %v5637 = vld [vmem:[#allocation2 + $0x10] sm:$0xff]
      %v5638 = vld [vmem:[#allocation2 + $0x18] sm:$0xff]
      %v5639 = vld [vmem:[#allocation2 + $0x20] sm:$0xff]
      %v5640 = vld [vmem:[#allocation2 + $0x28] sm:$0xff]
      %v5641 = vld [vmem:[#allocation2 + $0x30] sm:$0xff]
      %v5642 = vld [vmem:[#allocation2 + $0x38] sm:$0xff]
      %v5643 = vld [vmem:[#allocation2 + $0x40] sm:$0xff]
      %v5644 = vld [vmem:[#allocation2 + $0x48] sm:$0xff]
      %v5645 = vld [vmem:[#allocation2 + $0x50] sm:$0xff]
      %v5646 = vld [vmem:[#allocation2 + $0x58] sm:$0xff]
      %v5647 = vld [vmem:[#allocation2 + $0x60] sm:$0xff]
      %v5648 = vld [vmem:[#allocation2 + $0x68] sm:$0xff]
      %v5649 = vld [vmem:[#allocation2 + $0x70] sm:$0xff]
      %v5650 = vld [vmem:[#allocation2 + $0x78] sm:$0xff]
      %v5651 = vld [vmem:[#allocation2 + $0x80] sm:$0xff]
      %v5652 = vld [vmem:[#allocation2 + $0x88] sm:$0xff]
      %v5653 = vld [vmem:[#allocation2 + $0x90] sm:$0xff]
      %v5654 = vld [vmem:[#allocation2 + $0x98] sm:$0xff]
      %v5655 = vld [vmem:[#allocation2 + $0xa0] sm:$0xff]
      %v5656 = vld [vmem:[#allocation2 + $0xa8] sm:$0xff]
      %v5657 = vld [vmem:[#allocation2 + $0xb0] sm:$0xff]
      %v5658 = vld [vmem:[#allocation2 + $0xb8] sm:$0xff]
      %v5659 = vld [vmem:[#allocation2 + $0xc0] sm:$0xff]
      %v5660 = vld [vmem:[#allocation2 + $0xc8] sm:$0xff]
      %v5661 = vld [vmem:[#allocation2 + $0xd0] sm:$0xff]
      %v5662 = vld [vmem:[#allocation2 + $0xd8] sm:$0xff]
      %v5663 = vld [vmem:[#allocation2 + $0xe0] sm:$0xff]
      %v5664 = vld [vmem:[#allocation2 + $0xe8] sm:$0xff]
      %v5665 = vld [vmem:[#allocation2 + $0xf0] sm:$0xff]
      %v5666 = vld [vmem:[#allocation2 + $0xf8] sm:$0xff]
      %v5667 = vld [vmem:[#allocation2 + $0x100] sm:$0xff]
      %v5668 = vld [vmem:[#allocation2 + $0x108] sm:$0xff]
      %v5669 = vld [vmem:[#allocation2 + $0x110] sm:$0xff]
      %v5670 = vld [vmem:[#allocation2 + $0x118] sm:$0xff]
      %v5671 = vld [vmem:[#allocation2 + $0x120] sm:$0xff]
      %v5672 = vld [vmem:[#allocation2 + $0x128] sm:$0xff]
      %v5673 = vld [vmem:[#allocation2 + $0x130] sm:$0xff]
      %v5674 = vld [vmem:[#allocation2 + $0x138] sm:$0xff]
      %v5675 = vld [vmem:[#allocation2 + $0x140] sm:$0xff]
      %v5676 = vld [vmem:[#allocation2 + $0x148] sm:$0xff]
      %v5677 = vld [vmem:[#allocation2 + $0x150] sm:$0xff]
      %v5678 = vld [vmem:[#allocation2 + $0x158] sm:$0xff]
      %v5679 = vld [vmem:[#allocation2 + $0x160] sm:$0xff]
      %v5680 = vld [vmem:[#allocation2 + $0x168] sm:$0xff]
      %v5681 = vld [vmem:[#allocation2 + $0x170] sm:$0xff]
      %v5682 = vld [vmem:[#allocation2 + $0x178] sm:$0xff]
      %5731 = vrot.lane.b32.xlu0 %v5635, 94
      %v5732 = vpop.permute.xlu0 %5731
      %5733 = vrot.lane.b32.xlu0 %v5636, 94
      %v5734 = vpop.permute.xlu0 %5733
      %5735 = vrot.lane.b32.xlu0 %v5637, 94
      %v5736 = vpop.permute.xlu0 %5735
      %5737 = vrot.lane.b32.xlu0 %v5638, 94
      %v5738 = vpop.permute.xlu0 %5737
      %5739 = vrot.lane.b32.xlu0 %v5639, 94
      %v5740 = vpop.permute.xlu0 %5739
      %5741 = vrot.lane.b32.xlu0 %v5640, 94
      %v5742 = vpop.permute.xlu0 %5741
      %5743 = vrot.lane.b32.xlu0 %v5641, 94
      %v5744 = vpop.permute.xlu0 %5743
      %5745 = vrot.lane.b32.xlu0 %v5642, 94
      %v5746 = vpop.permute.xlu0 %5745
      %5747 = vrot.lane.b32.xlu0 %v5643, 94
      %v5748 = vpop.permute.xlu0 %5747
      %5749 = vrot.lane.b32.xlu0 %v5644, 94
      %v5750 = vpop.permute.xlu0 %5749
      %5751 = vrot.lane.b32.xlu0 %v5645, 94
      %v5752 = vpop.permute.xlu0 %5751
      %5753 = vrot.lane.b32.xlu0 %v5646, 94
      %v5754 = vpop.permute.xlu0 %5753
      %5755 = vrot.lane.b32.xlu0 %v5647, 94
      %v5756 = vpop.permute.xlu0 %5755
      %5757 = vrot.lane.b32.xlu0 %v5648, 94
      %v5758 = vpop.permute.xlu0 %5757
      %5759 = vrot.lane.b32.xlu0 %v5649, 94
      %v5760 = vpop.permute.xlu0 %5759
      %5761 = vrot.lane.b32.xlu0 %v5650, 94
      %v5762 = vpop.permute.xlu0 %5761
      %5763 = vrot.lane.b32.xlu0 %v5651, 94
      %v5764 = vpop.permute.xlu0 %5763
      %5765 = vrot.lane.b32.xlu0 %v5652, 94
      %v5766 = vpop.permute.xlu0 %5765
      %5767 = vrot.lane.b32.xlu0 %v5653, 94
      %v5768 = vpop.permute.xlu0 %5767
      %5769 = vrot.lane.b32.xlu0 %v5654, 94
      %v5770 = vpop.permute.xlu0 %5769
      %5771 = vrot.lane.b32.xlu0 %v5655, 94
      %v5772 = vpop.permute.xlu0 %5771
      %5773 = vrot.lane.b32.xlu0 %v5656, 94
      %v5774 = vpop.permute.xlu0 %5773
      %5775 = vrot.lane.b32.xlu0 %v5657, 94
      %v5776 = vpop.permute.xlu0 %5775
      %5777 = vrot.lane.b32.xlu0 %v5658, 94
      %v5778 = vpop.permute.xlu0 %5777
      %5779 = vrot.lane.b32.xlu0 %v5659, 94
      %v5780 = vpop.permute.xlu0 %5779
      %5781 = vrot.lane.b32.xlu0 %v5660, 94
      %v5782 = vpop.permute.xlu0 %5781
      %5783 = vrot.lane.b32.xlu0 %v5661, 94
      %v5784 = vpop.permute.xlu0 %5783
      %5785 = vrot.lane.b32.xlu0 %v5662, 94
      %v5786 = vpop.permute.xlu0 %5785
      %5787 = vrot.lane.b32.xlu0 %v5663, 94
      %v5788 = vpop.permute.xlu0 %5787
      %5789 = vrot.lane.b32.xlu0 %v5664, 94
      %v5790 = vpop.permute.xlu0 %5789
      %5791 = vrot.lane.b32.xlu0 %v5665, 94
      %v5792 = vpop.permute.xlu0 %5791
      %5793 = vrot.lane.b32.xlu0 %v5666, 94
      %v5794 = vpop.permute.xlu0 %5793
      %5795 = vrot.lane.b32.xlu0 %v5667, 94
      %v5796 = vpop.permute.xlu0 %5795
      %5797 = vrot.lane.b32.xlu0 %v5668, 94
      %v5798 = vpop.permute.xlu0 %5797
      %5799 = vrot.lane.b32.xlu0 %v5669, 94
      %v5800 = vpop.permute.xlu0 %5799
      %5801 = vrot.lane.b32.xlu0 %v5670, 94
      %v5802 = vpop.permute.xlu0 %5801
      %5803 = vrot.lane.b32.xlu0 %v5671, 94
      %v5804 = vpop.permute.xlu0 %5803
      %5805 = vrot.lane.b32.xlu0 %v5672, 94
      %v5806 = vpop.permute.xlu0 %5805
      %5807 = vrot.lane.b32.xlu0 %v5673, 94
      %v5808 = vpop.permute.xlu0 %5807
      %5809 = vrot.lane.b32.xlu0 %v5674, 94
      %v5810 = vpop.permute.xlu0 %5809
      %5811 = vrot.lane.b32.xlu0 %v5675, 94
      %v5812 = vpop.permute.xlu0 %5811
      %5813 = vrot.lane.b32.xlu0 %v5676, 94
      %v5814 = vpop.permute.xlu0 %5813
      %5815 = vrot.lane.b32.xlu0 %v5677, 94
      %v5816 = vpop.permute.xlu0 %5815
      %5817 = vrot.lane.b32.xlu0 %v5678, 94
      %v5818 = vpop.permute.xlu0 %5817
      %5819 = vrot.lane.b32.xlu0 %v5679, 94
      %v5820 = vpop.permute.xlu0 %5819
      %5821 = vrot.lane.b32.xlu0 %v5680, 94
      %v5822 = vpop.permute.xlu0 %5821
      %5823 = vrot.lane.b32.xlu0 %v5681, 94
      %v5824 = vpop.permute.xlu0 %5823
      %5825 = vrot.lane.b32.xlu0 %v5682, 94
      %v5826 = vpop.permute.xlu0 %5825
      %v5827 = vsel %vm636, %v5732, %v5734
      %v5828 = vsel %vm636, %v5734, %v5736
      %v5829 = vsel %vm636, %v5738, %v5740
      %v5830 = vsel %vm636, %v5740, %v5742
      %v5831 = vsel %vm636, %v5744, %v5746
      %v5832 = vsel %vm636, %v5746, %v5748
      %v5833 = vsel %vm636, %v5750, %v5752
      %v5834 = vsel %vm636, %v5752, %v5754
      %v5835 = vsel %vm636, %v5756, %v5758
      %v5836 = vsel %vm636, %v5758, %v5760
      %v5837 = vsel %vm636, %v5762, %v5764
      %v5838 = vsel %vm636, %v5764, %v5766
      %v5839 = vsel %vm636, %v5768, %v5770
      %v5840 = vsel %vm636, %v5770, %v5772
      %v5841 = vsel %vm636, %v5774, %v5776
      %v5842 = vsel %vm636, %v5776, %v5778
      %v5843 = vsel %vm636, %v5780, %v5782
      %v5844 = vsel %vm636, %v5782, %v5784
      %v5845 = vsel %vm636, %v5786, %v5788
      %v5846 = vsel %vm636, %v5788, %v5790
      %v5847 = vsel %vm636, %v5792, %v5794
      %v5848 = vsel %vm636, %v5794, %v5796
      %v5849 = vsel %vm636, %v5798, %v5800
      %v5850 = vsel %vm636, %v5800, %v5802
      %v5851 = vsel %vm636, %v5804, %v5806
      %v5852 = vsel %vm636, %v5806, %v5808
      %v5853 = vsel %vm636, %v5810, %v5812
      %v5854 = vsel %vm636, %v5812, %v5814
      %v5855 = vsel %vm636, %v5816, %v5818
      %v5856 = vsel %vm636, %v5818, %v5820
      %v5857 = vsel %vm636, %v5822, %v5824
      %v5858 = vsel %vm636, %v5824, %v5826
      %v5891 = vsel %vm488, %v5827, 0.0
      %v5892 = vsel %vm489, %v5828, 0.0
      %v5893 = vsel %vm488, %v5829, 0.0
      %v5894 = vsel %vm489, %v5830, 0.0
      %v5895 = vsel %vm488, %v5831, 0.0
      %v5896 = vsel %vm489, %v5832, 0.0
      %v5897 = vsel %vm488, %v5833, 0.0
      %v5898 = vsel %vm489, %v5834, 0.0
      %v5899 = vsel %vm488, %v5835, 0.0
      %v5900 = vsel %vm489, %v5836, 0.0
      %v5901 = vsel %vm488, %v5837, 0.0
      %v5902 = vsel %vm489, %v5838, 0.0
      %v5903 = vsel %vm488, %v5839, 0.0
      %v5904 = vsel %vm489, %v5840, 0.0
      %v5905 = vsel %vm488, %v5841, 0.0
      %v5906 = vsel %vm489, %v5842, 0.0
      %v5907 = vsel %vm488, %v5843, 0.0
      %v5908 = vsel %vm489, %v5844, 0.0
      %v5909 = vsel %vm488, %v5845, 0.0
      %v5910 = vsel %vm489, %v5846, 0.0
      %v5911 = vsel %vm488, %v5847, 0.0
      %v5912 = vsel %vm489, %v5848, 0.0
      %v5913 = vsel %vm488, %v5849, 0.0
      %v5914 = vsel %vm489, %v5850, 0.0
      %v5915 = vsel %vm488, %v5851, 0.0
      %v5916 = vsel %vm489, %v5852, 0.0
      %v5917 = vsel %vm488, %v5853, 0.0
      %v5918 = vsel %vm489, %v5854, 0.0
      %v5919 = vsel %vm488, %v5855, 0.0
      %v5920 = vsel %vm489, %v5856, 0.0
      %v5921 = vsel %vm488, %v5857, 0.0
      %v5922 = vsel %vm489, %v5858, 0.0
      %5923 = vst [vmem:[#allocation3 + $0x800] sm:$0xff] %v5891
      %5924 = vst [vmem:[#allocation3 + $0x808] sm:$0xff] %v5892
      %5925 = vst [vmem:[#allocation3 + $0x810] sm:$0xff] %v5893
      %5926 = vst [vmem:[#allocation3 + $0x818] sm:$0xff] %v5894
      %5927 = vst [vmem:[#allocation3 + $0x820] sm:$0xff] %v5895
      %5928 = vst [vmem:[#allocation3 + $0x828] sm:$0xff] %v5896
      %5929 = vst [vmem:[#allocation3 + $0x830] sm:$0xff] %v5897
      %5930 = vst [vmem:[#allocation3 + $0x838] sm:$0xff] %v5898
      %5931 = vst [vmem:[#allocation3 + $0x840] sm:$0xff] %v5899
      %5932 = vst [vmem:[#allocation3 + $0x848] sm:$0xff] %v5900
      %5933 = vst [vmem:[#allocation3 + $0x850] sm:$0xff] %v5901
      %5934 = vst [vmem:[#allocation3 + $0x858] sm:$0xff] %v5902
      %5935 = vst [vmem:[#allocation3 + $0x860] sm:$0xff] %v5903
      %5936 = vst [vmem:[#allocation3 + $0x868] sm:$0xff] %v5904
      %5937 = vst [vmem:[#allocation3 + $0x870] sm:$0xff] %v5905
      %5938 = vst [vmem:[#allocation3 + $0x878] sm:$0xff] %v5906
      %5939 = vst [vmem:[#allocation3 + $0x880] sm:$0xff] %v5907
      %5940 = vst [vmem:[#allocation3 + $0x888] sm:$0xff] %v5908
      %5941 = vst [vmem:[#allocation3 + $0x890] sm:$0xff] %v5909
      %5942 = vst [vmem:[#allocation3 + $0x898] sm:$0xff] %v5910
      %5943 = vst [vmem:[#allocation3 + $0x8a0] sm:$0xff] %v5911
      %5944 = vst [vmem:[#allocation3 + $0x8a8] sm:$0xff] %v5912
      %5945 = vst [vmem:[#allocation3 + $0x8b0] sm:$0xff] %v5913
      %5946 = vst [vmem:[#allocation3 + $0x8b8] sm:$0xff] %v5914
      %5947 = vst [vmem:[#allocation3 + $0x8c0] sm:$0xff] %v5915
      %5948 = vst [vmem:[#allocation3 + $0x8c8] sm:$0xff] %v5916
      %5949 = vst [vmem:[#allocation3 + $0x8d0] sm:$0xff] %v5917
      %5950 = vst [vmem:[#allocation3 + $0x8d8] sm:$0xff] %v5918
      %5951 = vst [vmem:[#allocation3 + $0x8e0] sm:$0xff] %v5919
      %5952 = vst [vmem:[#allocation3 + $0x8e8] sm:$0xff] %v5920
      %5953 = vst [vmem:[#allocation3 + $0x8f0] sm:$0xff] %v5921
      %5954 = vst [vmem:[#allocation3 + $0x8f8] sm:$0xff] %v5922
      %v5955 = vld [vmem:[#allocation3] sm:$0xff]
      %v5956 = vld [vmem:[#allocation3 + $0x8] sm:$0xff]
      %v5957 = vld [vmem:[#allocation3 + $0x10] sm:$0xff]
      %v5958 = vld [vmem:[#allocation3 + $0x18] sm:$0xff]
      %v5959 = vld [vmem:[#allocation3 + $0x20] sm:$0xff]
      %v5960 = vld [vmem:[#allocation3 + $0x28] sm:$0xff]
      %v5961 = vld [vmem:[#allocation3 + $0x30] sm:$0xff]
      %v5962 = vld [vmem:[#allocation3 + $0x38] sm:$0xff]
      %v5963 = vld [vmem:[#allocation3 + $0x40] sm:$0xff]
      %v5964 = vld [vmem:[#allocation3 + $0x48] sm:$0xff]
      %v5965 = vld [vmem:[#allocation3 + $0x50] sm:$0xff]
      %v5966 = vld [vmem:[#allocation3 + $0x58] sm:$0xff]
      %v5967 = vld [vmem:[#allocation3 + $0x60] sm:$0xff]
      %v5968 = vld [vmem:[#allocation3 + $0x68] sm:$0xff]
      %v5969 = vld [vmem:[#allocation3 + $0x70] sm:$0xff]
      %v5970 = vld [vmem:[#allocation3 + $0x78] sm:$0xff]
      %v5971 = vld [vmem:[#allocation3 + $0x80] sm:$0xff]
      %v5972 = vld [vmem:[#allocation3 + $0x88] sm:$0xff]
      %v5973 = vld [vmem:[#allocation3 + $0x90] sm:$0xff]
      %v5974 = vld [vmem:[#allocation3 + $0x98] sm:$0xff]
      %v5975 = vld [vmem:[#allocation3 + $0xa0] sm:$0xff]
      %v5976 = vld [vmem:[#allocation3 + $0xa8] sm:$0xff]
      %v5977 = vld [vmem:[#allocation3 + $0xb0] sm:$0xff]
      %v5978 = vld [vmem:[#allocation3 + $0xb8] sm:$0xff]
      %v5979 = vld [vmem:[#allocation3 + $0xc0] sm:$0xff]
      %v5980 = vld [vmem:[#allocation3 + $0xc8] sm:$0xff]
      %v5981 = vld [vmem:[#allocation3 + $0xd0] sm:$0xff]
      %v5982 = vld [vmem:[#allocation3 + $0xd8] sm:$0xff]
      %v5983 = vld [vmem:[#allocation3 + $0xe0] sm:$0xff]
      %v5984 = vld [vmem:[#allocation3 + $0xe8] sm:$0xff]
      %v5985 = vld [vmem:[#allocation3 + $0xf0] sm:$0xff]
      %v5986 = vld [vmem:[#allocation3 + $0xf8] sm:$0xff]
      %v5987 = vld [vmem:[#allocation3 + $0x100] sm:$0xff]
      %v5988 = vld [vmem:[#allocation3 + $0x108] sm:$0xff]
      %v5989 = vld [vmem:[#allocation3 + $0x110] sm:$0xff]
      %v5990 = vld [vmem:[#allocation3 + $0x118] sm:$0xff]
      %v5991 = vld [vmem:[#allocation3 + $0x120] sm:$0xff]
      %v5992 = vld [vmem:[#allocation3 + $0x128] sm:$0xff]
      %v5993 = vld [vmem:[#allocation3 + $0x130] sm:$0xff]
      %v5994 = vld [vmem:[#allocation3 + $0x138] sm:$0xff]
      %v5995 = vld [vmem:[#allocation3 + $0x140] sm:$0xff]
      %v5996 = vld [vmem:[#allocation3 + $0x148] sm:$0xff]
      %v5997 = vld [vmem:[#allocation3 + $0x150] sm:$0xff]
      %v5998 = vld [vmem:[#allocation3 + $0x158] sm:$0xff]
      %v5999 = vld [vmem:[#allocation3 + $0x160] sm:$0xff]
      %v6000 = vld [vmem:[#allocation3 + $0x168] sm:$0xff]
      %v6001 = vld [vmem:[#allocation3 + $0x170] sm:$0xff]
      %v6002 = vld [vmem:[#allocation3 + $0x178] sm:$0xff]
      %v6003 = vld [vmem:[#allocation3 + $0x180] sm:$0xff]
      %v6004 = vld [vmem:[#allocation3 + $0x188] sm:$0xff]
      %v6005 = vld [vmem:[#allocation3 + $0x190] sm:$0xff]
      %v6006 = vld [vmem:[#allocation3 + $0x198] sm:$0xff]
      %v6007 = vld [vmem:[#allocation3 + $0x1a0] sm:$0xff]
      %v6008 = vld [vmem:[#allocation3 + $0x1a8] sm:$0xff]
      %v6009 = vld [vmem:[#allocation3 + $0x1b0] sm:$0xff]
      %v6010 = vld [vmem:[#allocation3 + $0x1b8] sm:$0xff]
      %v6011 = vld [vmem:[#allocation3 + $0x1c0] sm:$0xff]
      %v6012 = vld [vmem:[#allocation3 + $0x1c8] sm:$0xff]
      %v6013 = vld [vmem:[#allocation3 + $0x1d0] sm:$0xff]
      %v6014 = vld [vmem:[#allocation3 + $0x1d8] sm:$0xff]
      %v6015 = vld [vmem:[#allocation3 + $0x1e0] sm:$0xff]
      %v6016 = vld [vmem:[#allocation3 + $0x1e8] sm:$0xff]
      %v6017 = vld [vmem:[#allocation3 + $0x1f0] sm:$0xff]
      %v6018 = vld [vmem:[#allocation3 + $0x1f8] sm:$0xff]
      %v6019 = vld [vmem:[#allocation3 + $0x200] sm:$0xff]
      %v6020 = vld [vmem:[#allocation3 + $0x208] sm:$0xff]
      %v6021 = vld [vmem:[#allocation3 + $0x210] sm:$0xff]
      %v6022 = vld [vmem:[#allocation3 + $0x218] sm:$0xff]
      %v6023 = vld [vmem:[#allocation3 + $0x220] sm:$0xff]
      %v6024 = vld [vmem:[#allocation3 + $0x228] sm:$0xff]
      %v6025 = vld [vmem:[#allocation3 + $0x230] sm:$0xff]
      %v6026 = vld [vmem:[#allocation3 + $0x238] sm:$0xff]
      %v6027 = vld [vmem:[#allocation3 + $0x240] sm:$0xff]
      %v6028 = vld [vmem:[#allocation3 + $0x248] sm:$0xff]
      %v6029 = vld [vmem:[#allocation3 + $0x250] sm:$0xff]
      %v6030 = vld [vmem:[#allocation3 + $0x258] sm:$0xff]
      %v6031 = vld [vmem:[#allocation3 + $0x260] sm:$0xff]
      %v6032 = vld [vmem:[#allocation3 + $0x268] sm:$0xff]
      %v6033 = vld [vmem:[#allocation3 + $0x270] sm:$0xff]
      %v6034 = vld [vmem:[#allocation3 + $0x278] sm:$0xff]
      %v6035 = vld [vmem:[#allocation3 + $0x280] sm:$0xff]
      %v6036 = vld [vmem:[#allocation3 + $0x288] sm:$0xff]
      %v6037 = vld [vmem:[#allocation3 + $0x290] sm:$0xff]
      %v6038 = vld [vmem:[#allocation3 + $0x298] sm:$0xff]
      %v6039 = vld [vmem:[#allocation3 + $0x2a0] sm:$0xff]
      %v6040 = vld [vmem:[#allocation3 + $0x2a8] sm:$0xff]
      %v6041 = vld [vmem:[#allocation3 + $0x2b0] sm:$0xff]
      %v6042 = vld [vmem:[#allocation3 + $0x2b8] sm:$0xff]
      %v6043 = vld [vmem:[#allocation3 + $0x2c0] sm:$0xff]
      %v6044 = vld [vmem:[#allocation3 + $0x2c8] sm:$0xff]
      %v6045 = vld [vmem:[#allocation3 + $0x2d0] sm:$0xff]
      %v6046 = vld [vmem:[#allocation3 + $0x2d8] sm:$0xff]
      %v6047 = vld [vmem:[#allocation3 + $0x2e0] sm:$0xff]
      %v6048 = vld [vmem:[#allocation3 + $0x2e8] sm:$0xff]
      %v6049 = vld [vmem:[#allocation3 + $0x2f0] sm:$0xff]
      %v6050 = vld [vmem:[#allocation3 + $0x2f8] sm:$0xff]
      %v6051 = vld [vmem:[#allocation3 + $0x300] sm:$0xff]
      %v6052 = vld [vmem:[#allocation3 + $0x308] sm:$0xff]
      %v6053 = vld [vmem:[#allocation3 + $0x310] sm:$0xff]
      %v6054 = vld [vmem:[#allocation3 + $0x318] sm:$0xff]
      %v6055 = vld [vmem:[#allocation3 + $0x320] sm:$0xff]
      %v6056 = vld [vmem:[#allocation3 + $0x328] sm:$0xff]
      %v6057 = vld [vmem:[#allocation3 + $0x330] sm:$0xff]
      %v6058 = vld [vmem:[#allocation3 + $0x338] sm:$0xff]
      %v6059 = vld [vmem:[#allocation3 + $0x340] sm:$0xff]
      %v6060 = vld [vmem:[#allocation3 + $0x348] sm:$0xff]
      %v6061 = vld [vmem:[#allocation3 + $0x350] sm:$0xff]
      %v6062 = vld [vmem:[#allocation3 + $0x358] sm:$0xff]
      %v6063 = vld [vmem:[#allocation3 + $0x360] sm:$0xff]
      %v6064 = vld [vmem:[#allocation3 + $0x368] sm:$0xff]
      %v6065 = vld [vmem:[#allocation3 + $0x370] sm:$0xff]
      %v6066 = vld [vmem:[#allocation3 + $0x378] sm:$0xff]
      %v6067 = vld [vmem:[#allocation3 + $0x380] sm:$0xff]
      %v6068 = vld [vmem:[#allocation3 + $0x388] sm:$0xff]
      %v6069 = vld [vmem:[#allocation3 + $0x390] sm:$0xff]
      %v6070 = vld [vmem:[#allocation3 + $0x398] sm:$0xff]
      %v6071 = vld [vmem:[#allocation3 + $0x3a0] sm:$0xff]
      %v6072 = vld [vmem:[#allocation3 + $0x3a8] sm:$0xff]
      %v6073 = vld [vmem:[#allocation3 + $0x3b0] sm:$0xff]
      %v6074 = vld [vmem:[#allocation3 + $0x3b8] sm:$0xff]
      %v6075 = vld [vmem:[#allocation3 + $0x3c0] sm:$0xff]
      %v6076 = vld [vmem:[#allocation3 + $0x3c8] sm:$0xff]
      %v6077 = vld [vmem:[#allocation3 + $0x3d0] sm:$0xff]
      %v6078 = vld [vmem:[#allocation3 + $0x3d8] sm:$0xff]
      %v6079 = vld [vmem:[#allocation3 + $0x3e0] sm:$0xff]
      %v6080 = vld [vmem:[#allocation3 + $0x3e8] sm:$0xff]
      %v6081 = vld [vmem:[#allocation3 + $0x3f0] sm:$0xff]
      %v6082 = vld [vmem:[#allocation3 + $0x3f8] sm:$0xff]
      %v6083 = vld [vmem:[#allocation3 + $0x400] sm:$0xff]
      %v6084 = vld [vmem:[#allocation3 + $0x408] sm:$0xff]
      %v6085 = vld [vmem:[#allocation3 + $0x410] sm:$0xff]
      %v6086 = vld [vmem:[#allocation3 + $0x418] sm:$0xff]
      %v6087 = vld [vmem:[#allocation3 + $0x420] sm:$0xff]
      %v6088 = vld [vmem:[#allocation3 + $0x428] sm:$0xff]
      %v6089 = vld [vmem:[#allocation3 + $0x430] sm:$0xff]
      %v6090 = vld [vmem:[#allocation3 + $0x438] sm:$0xff]
      %v6091 = vld [vmem:[#allocation3 + $0x440] sm:$0xff]
      %v6092 = vld [vmem:[#allocation3 + $0x448] sm:$0xff]
      %v6093 = vld [vmem:[#allocation3 + $0x450] sm:$0xff]
      %v6094 = vld [vmem:[#allocation3 + $0x458] sm:$0xff]
      %v6095 = vld [vmem:[#allocation3 + $0x460] sm:$0xff]
      %v6096 = vld [vmem:[#allocation3 + $0x468] sm:$0xff]
      %v6097 = vld [vmem:[#allocation3 + $0x470] sm:$0xff]
      %v6098 = vld [vmem:[#allocation3 + $0x478] sm:$0xff]
      %v6099 = vld [vmem:[#allocation3 + $0x480] sm:$0xff]
      %v6100 = vld [vmem:[#allocation3 + $0x488] sm:$0xff]
      %v6101 = vld [vmem:[#allocation3 + $0x490] sm:$0xff]
      %v6102 = vld [vmem:[#allocation3 + $0x498] sm:$0xff]
      %v6103 = vld [vmem:[#allocation3 + $0x4a0] sm:$0xff]
      %v6104 = vld [vmem:[#allocation3 + $0x4a8] sm:$0xff]
      %v6105 = vld [vmem:[#allocation3 + $0x4b0] sm:$0xff]
      %v6106 = vld [vmem:[#allocation3 + $0x4b8] sm:$0xff]
      %v6107 = vld [vmem:[#allocation3 + $0x4c0] sm:$0xff]
      %v6108 = vld [vmem:[#allocation3 + $0x4c8] sm:$0xff]
      %v6109 = vld [vmem:[#allocation3 + $0x4d0] sm:$0xff]
      %v6110 = vld [vmem:[#allocation3 + $0x4d8] sm:$0xff]
      %v6111 = vld [vmem:[#allocation3 + $0x4e0] sm:$0xff]
      %v6112 = vld [vmem:[#allocation3 + $0x4e8] sm:$0xff]
      %v6113 = vld [vmem:[#allocation3 + $0x4f0] sm:$0xff]
      %v6114 = vld [vmem:[#allocation3 + $0x4f8] sm:$0xff]
      %v6115 = vld [vmem:[#allocation3 + $0x500] sm:$0xff]
      %v6116 = vld [vmem:[#allocation3 + $0x508] sm:$0xff]
      %v6117 = vld [vmem:[#allocation3 + $0x510] sm:$0xff]
      %v6118 = vld [vmem:[#allocation3 + $0x518] sm:$0xff]
      %v6119 = vld [vmem:[#allocation3 + $0x520] sm:$0xff]
      %v6120 = vld [vmem:[#allocation3 + $0x528] sm:$0xff]
      %v6121 = vld [vmem:[#allocation3 + $0x530] sm:$0xff]
      %v6122 = vld [vmem:[#allocation3 + $0x538] sm:$0xff]
      %v6123 = vld [vmem:[#allocation3 + $0x540] sm:$0xff]
      %v6124 = vld [vmem:[#allocation3 + $0x548] sm:$0xff]
      %v6125 = vld [vmem:[#allocation3 + $0x550] sm:$0xff]
      %v6126 = vld [vmem:[#allocation3 + $0x558] sm:$0xff]
      %v6127 = vld [vmem:[#allocation3 + $0x560] sm:$0xff]
      %v6128 = vld [vmem:[#allocation3 + $0x568] sm:$0xff]
      %v6129 = vld [vmem:[#allocation3 + $0x570] sm:$0xff]
      %v6130 = vld [vmem:[#allocation3 + $0x578] sm:$0xff]
      %v6131 = vld [vmem:[#allocation3 + $0x580] sm:$0xff]
      %v6132 = vld [vmem:[#allocation3 + $0x588] sm:$0xff]
      %v6133 = vld [vmem:[#allocation3 + $0x590] sm:$0xff]
      %v6134 = vld [vmem:[#allocation3 + $0x598] sm:$0xff]
      %v6135 = vld [vmem:[#allocation3 + $0x5a0] sm:$0xff]
      %v6136 = vld [vmem:[#allocation3 + $0x5a8] sm:$0xff]
      %v6137 = vld [vmem:[#allocation3 + $0x5b0] sm:$0xff]
      %v6138 = vld [vmem:[#allocation3 + $0x5b8] sm:$0xff]
      %v6139 = vld [vmem:[#allocation3 + $0x5c0] sm:$0xff]
      %v6140 = vld [vmem:[#allocation3 + $0x5c8] sm:$0xff]
      %v6141 = vld [vmem:[#allocation3 + $0x5d0] sm:$0xff]
      %v6142 = vld [vmem:[#allocation3 + $0x5d8] sm:$0xff]
      %v6143 = vld [vmem:[#allocation3 + $0x5e0] sm:$0xff]
      %v6144 = vld [vmem:[#allocation3 + $0x5e8] sm:$0xff]
      %v6145 = vld [vmem:[#allocation3 + $0x5f0] sm:$0xff]
      %v6146 = vld [vmem:[#allocation3 + $0x5f8] sm:$0xff]
      %v6147 = vld [vmem:[#allocation3 + $0x600] sm:$0xff]
      %v6148 = vld [vmem:[#allocation3 + $0x608] sm:$0xff]
      %v6149 = vld [vmem:[#allocation3 + $0x610] sm:$0xff]
      %v6150 = vld [vmem:[#allocation3 + $0x618] sm:$0xff]
      %v6151 = vld [vmem:[#allocation3 + $0x620] sm:$0xff]
      %v6152 = vld [vmem:[#allocation3 + $0x628] sm:$0xff]
      %v6153 = vld [vmem:[#allocation3 + $0x630] sm:$0xff]
      %v6154 = vld [vmem:[#allocation3 + $0x638] sm:$0xff]
      %v6155 = vld [vmem:[#allocation3 + $0x640] sm:$0xff]
      %v6156 = vld [vmem:[#allocation3 + $0x648] sm:$0xff]
      %v6157 = vld [vmem:[#allocation3 + $0x650] sm:$0xff]
      %v6158 = vld [vmem:[#allocation3 + $0x658] sm:$0xff]
      %v6159 = vld [vmem:[#allocation3 + $0x660] sm:$0xff]
      %v6160 = vld [vmem:[#allocation3 + $0x668] sm:$0xff]
      %v6161 = vld [vmem:[#allocation3 + $0x670] sm:$0xff]
      %v6162 = vld [vmem:[#allocation3 + $0x678] sm:$0xff]
      %v6163 = vld [vmem:[#allocation3 + $0x680] sm:$0xff]
      %v6164 = vld [vmem:[#allocation3 + $0x688] sm:$0xff]
      %v6165 = vld [vmem:[#allocation3 + $0x690] sm:$0xff]
      %v6166 = vld [vmem:[#allocation3 + $0x698] sm:$0xff]
      %v6167 = vld [vmem:[#allocation3 + $0x6a0] sm:$0xff]
      %v6168 = vld [vmem:[#allocation3 + $0x6a8] sm:$0xff]
      %v6169 = vld [vmem:[#allocation3 + $0x6b0] sm:$0xff]
      %v6170 = vld [vmem:[#allocation3 + $0x6b8] sm:$0xff]
      %v6171 = vld [vmem:[#allocation3 + $0x6c0] sm:$0xff]
      %v6172 = vld [vmem:[#allocation3 + $0x6c8] sm:$0xff]
      %v6173 = vld [vmem:[#allocation3 + $0x6d0] sm:$0xff]
      %v6174 = vld [vmem:[#allocation3 + $0x6d8] sm:$0xff]
      %v6175 = vld [vmem:[#allocation3 + $0x6e0] sm:$0xff]
      %v6176 = vld [vmem:[#allocation3 + $0x6e8] sm:$0xff]
      %v6177 = vld [vmem:[#allocation3 + $0x6f0] sm:$0xff]
      %v6178 = vld [vmem:[#allocation3 + $0x6f8] sm:$0xff]
      %v6179 = vld [vmem:[#allocation3 + $0x700] sm:$0xff]
      %v6180 = vld [vmem:[#allocation3 + $0x708] sm:$0xff]
      %v6181 = vld [vmem:[#allocation3 + $0x710] sm:$0xff]
      %v6182 = vld [vmem:[#allocation3 + $0x718] sm:$0xff]
      %v6183 = vld [vmem:[#allocation3 + $0x720] sm:$0xff]
      %v6184 = vld [vmem:[#allocation3 + $0x728] sm:$0xff]
      %v6185 = vld [vmem:[#allocation3 + $0x730] sm:$0xff]
      %v6186 = vld [vmem:[#allocation3 + $0x738] sm:$0xff]
      %v6187 = vld [vmem:[#allocation3 + $0x740] sm:$0xff]
      %v6188 = vld [vmem:[#allocation3 + $0x748] sm:$0xff]
      %v6189 = vld [vmem:[#allocation3 + $0x750] sm:$0xff]
      %v6190 = vld [vmem:[#allocation3 + $0x758] sm:$0xff]
      %v6191 = vld [vmem:[#allocation3 + $0x760] sm:$0xff]
      %v6192 = vld [vmem:[#allocation3 + $0x768] sm:$0xff]
      %v6193 = vld [vmem:[#allocation3 + $0x770] sm:$0xff]
      %v6194 = vld [vmem:[#allocation3 + $0x778] sm:$0xff]
      %v6195 = vld [vmem:[#allocation3 + $0x780] sm:$0xff]
      %v6196 = vld [vmem:[#allocation3 + $0x788] sm:$0xff]
      %v6197 = vld [vmem:[#allocation3 + $0x790] sm:$0xff]
      %v6198 = vld [vmem:[#allocation3 + $0x798] sm:$0xff]
      %v6199 = vld [vmem:[#allocation3 + $0x7a0] sm:$0xff]
      %v6200 = vld [vmem:[#allocation3 + $0x7a8] sm:$0xff]
      %v6201 = vld [vmem:[#allocation3 + $0x7b0] sm:$0xff]
      %v6202 = vld [vmem:[#allocation3 + $0x7b8] sm:$0xff]
      %v6203 = vld [vmem:[#allocation3 + $0x7c0] sm:$0xff]
      %v6204 = vld [vmem:[#allocation3 + $0x7c8] sm:$0xff]
      %v6205 = vld [vmem:[#allocation3 + $0x7d0] sm:$0xff]
      %v6206 = vld [vmem:[#allocation3 + $0x7d8] sm:$0xff]
      %v6207 = vld [vmem:[#allocation3 + $0x7e0] sm:$0xff]
      %v6208 = vld [vmem:[#allocation3 + $0x7e8] sm:$0xff]
      %v6209 = vld [vmem:[#allocation3 + $0x7f0] sm:$0xff]
      %v6210 = vld [vmem:[#allocation3 + $0x7f8] sm:$0xff]
      %v6211 = vld [vmem:[#allocation3 + $0x800] sm:$0xff]
      %v6212 = vld [vmem:[#allocation3 + $0x808] sm:$0xff]
      %v6213 = vld [vmem:[#allocation3 + $0x810] sm:$0xff]
      %v6214 = vld [vmem:[#allocation3 + $0x818] sm:$0xff]
      %v6215 = vld [vmem:[#allocation3 + $0x820] sm:$0xff]
      %v6216 = vld [vmem:[#allocation3 + $0x828] sm:$0xff]
      %v6217 = vld [vmem:[#allocation3 + $0x830] sm:$0xff]
      %v6218 = vld [vmem:[#allocation3 + $0x838] sm:$0xff]
      %v6219 = vld [vmem:[#allocation3 + $0x840] sm:$0xff]
      %v6220 = vld [vmem:[#allocation3 + $0x848] sm:$0xff]
      %v6221 = vld [vmem:[#allocation3 + $0x850] sm:$0xff]
      %v6222 = vld [vmem:[#allocation3 + $0x858] sm:$0xff]
      %v6223 = vld [vmem:[#allocation3 + $0x860] sm:$0xff]
      %v6224 = vld [vmem:[#allocation3 + $0x868] sm:$0xff]
      %v6225 = vld [vmem:[#allocation3 + $0x870] sm:$0xff]
      %v6226 = vld [vmem:[#allocation3 + $0x878] sm:$0xff]
      %v6227 = vld [vmem:[#allocation3 + $0x880] sm:$0xff]
      %v6228 = vld [vmem:[#allocation3 + $0x888] sm:$0xff]
      %v6229 = vld [vmem:[#allocation3 + $0x890] sm:$0xff]
      %v6230 = vld [vmem:[#allocation3 + $0x898] sm:$0xff]
      %v6231 = vld [vmem:[#allocation3 + $0x8a0] sm:$0xff]
      %v6232 = vld [vmem:[#allocation3 + $0x8a8] sm:$0xff]
      %v6233 = vld [vmem:[#allocation3 + $0x8b0] sm:$0xff]
      %v6234 = vld [vmem:[#allocation3 + $0x8b8] sm:$0xff]
      %v6235 = vld [vmem:[#allocation3 + $0x8c0] sm:$0xff]
      %v6236 = vld [vmem:[#allocation3 + $0x8c8] sm:$0xff]
      %v6237 = vld [vmem:[#allocation3 + $0x8d0] sm:$0xff]
      %v6238 = vld [vmem:[#allocation3 + $0x8d8] sm:$0xff]
      %v6239 = vld [vmem:[#allocation3 + $0x8e0] sm:$0xff]
      %v6240 = vld [vmem:[#allocation3 + $0x8e8] sm:$0xff]
      %v6241 = vld [vmem:[#allocation3 + $0x8f0] sm:$0xff]
      %v6242 = vld [vmem:[#allocation3 + $0x8f8] sm:$0xff]
      %v6243 = vpack.c.bf16 %v5957, %v5955
      %v6244 = vpack.c.bf16 %v5958, %v5956
      %v6245 = vpack.c.bf16 %v5961, %v5959
      %v6246 = vpack.c.bf16 %v5962, %v5960
      %v6247 = vpack.c.bf16 %v5965, %v5963
      %v6248 = vpack.c.bf16 %v5966, %v5964
      %v6249 = vpack.c.bf16 %v5969, %v5967
      %v6250 = vpack.c.bf16 %v5970, %v5968
      %v6251 = vpack.c.bf16 %v5973, %v5971
      %v6252 = vpack.c.bf16 %v5974, %v5972
      %v6253 = vpack.c.bf16 %v5977, %v5975
      %v6254 = vpack.c.bf16 %v5978, %v5976
      %v6255 = vpack.c.bf16 %v5981, %v5979
      %v6256 = vpack.c.bf16 %v5982, %v5980
      %v6257 = vpack.c.bf16 %v5985, %v5983
      %v6258 = vpack.c.bf16 %v5986, %v5984
      %v6259 = vpack.c.bf16 %v5989, %v5987
      %v6260 = vpack.c.bf16 %v5990, %v5988
      %v6261 = vpack.c.bf16 %v5993, %v5991
      %v6262 = vpack.c.bf16 %v5994, %v5992
      %v6263 = vpack.c.bf16 %v5997, %v5995
      %v6264 = vpack.c.bf16 %v5998, %v5996
      %v6265 = vpack.c.bf16 %v6001, %v5999
      %v6266 = vpack.c.bf16 %v6002, %v6000
      %v6267 = vpack.c.bf16 %v6005, %v6003
      %v6268 = vpack.c.bf16 %v6006, %v6004
      %v6269 = vpack.c.bf16 %v6009, %v6007
      %v6270 = vpack.c.bf16 %v6010, %v6008
      %v6271 = vpack.c.bf16 %v6013, %v6011
      %v6272 = vpack.c.bf16 %v6014, %v6012
      %v6273 = vpack.c.bf16 %v6017, %v6015
      %v6274 = vpack.c.bf16 %v6018, %v6016
      %v6275 = vpack.c.bf16 %v6021, %v6019
      %v6276 = vpack.c.bf16 %v6022, %v6020
      %v6277 = vpack.c.bf16 %v6025, %v6023
      %v6278 = vpack.c.bf16 %v6026, %v6024
      %v6279 = vpack.c.bf16 %v6029, %v6027
      %v6280 = vpack.c.bf16 %v6030, %v6028
      %v6281 = vpack.c.bf16 %v6033, %v6031
      %v6282 = vpack.c.bf16 %v6034, %v6032
      %v6283 = vpack.c.bf16 %v6037, %v6035
      %v6284 = vpack.c.bf16 %v6038, %v6036
      %v6285 = vpack.c.bf16 %v6041, %v6039
      %v6286 = vpack.c.bf16 %v6042, %v6040
      %v6287 = vpack.c.bf16 %v6045, %v6043
      %v6288 = vpack.c.bf16 %v6046, %v6044
      %v6289 = vpack.c.bf16 %v6049, %v6047
      %v6290 = vpack.c.bf16 %v6050, %v6048
      %v6291 = vpack.c.bf16 %v6053, %v6051
      %v6292 = vpack.c.bf16 %v6054, %v6052
      %v6293 = vpack.c.bf16 %v6057, %v6055
      %v6294 = vpack.c.bf16 %v6058, %v6056
      %v6295 = vpack.c.bf16 %v6061, %v6059
      %v6296 = vpack.c.bf16 %v6062, %v6060
      %v6297 = vpack.c.bf16 %v6065, %v6063
      %v6298 = vpack.c.bf16 %v6066, %v6064
      %v6299 = vpack.c.bf16 %v6069, %v6067
      %v6300 = vpack.c.bf16 %v6070, %v6068
      %v6301 = vpack.c.bf16 %v6073, %v6071
      %v6302 = vpack.c.bf16 %v6074, %v6072
      %v6303 = vpack.c.bf16 %v6077, %v6075
      %v6304 = vpack.c.bf16 %v6078, %v6076
      %v6305 = vpack.c.bf16 %v6081, %v6079
      %v6306 = vpack.c.bf16 %v6082, %v6080
      %v6307 = vpack.c.bf16 %v6085, %v6083
      %v6308 = vpack.c.bf16 %v6086, %v6084
      %v6309 = vpack.c.bf16 %v6089, %v6087
      %v6310 = vpack.c.bf16 %v6090, %v6088
      %v6311 = vpack.c.bf16 %v6093, %v6091
      %v6312 = vpack.c.bf16 %v6094, %v6092
      %v6313 = vpack.c.bf16 %v6097, %v6095
      %v6314 = vpack.c.bf16 %v6098, %v6096
      %v6315 = vpack.c.bf16 %v6101, %v6099
      %v6316 = vpack.c.bf16 %v6102, %v6100
      %v6317 = vpack.c.bf16 %v6105, %v6103
      %v6318 = vpack.c.bf16 %v6106, %v6104
      %v6319 = vpack.c.bf16 %v6109, %v6107
      %v6320 = vpack.c.bf16 %v6110, %v6108
      %v6321 = vpack.c.bf16 %v6113, %v6111
      %v6322 = vpack.c.bf16 %v6114, %v6112
      %v6323 = vpack.c.bf16 %v6117, %v6115
      %v6324 = vpack.c.bf16 %v6118, %v6116
      %v6325 = vpack.c.bf16 %v6121, %v6119
      %v6326 = vpack.c.bf16 %v6122, %v6120
      %v6327 = vpack.c.bf16 %v6125, %v6123
      %v6328 = vpack.c.bf16 %v6126, %v6124
      %v6329 = vpack.c.bf16 %v6129, %v6127
      %v6330 = vpack.c.bf16 %v6130, %v6128
      %v6331 = vpack.c.bf16 %v6133, %v6131
      %v6332 = vpack.c.bf16 %v6134, %v6132
      %v6333 = vpack.c.bf16 %v6137, %v6135
      %v6334 = vpack.c.bf16 %v6138, %v6136
      %v6335 = vpack.c.bf16 %v6141, %v6139
      %v6336 = vpack.c.bf16 %v6142, %v6140
      %v6337 = vpack.c.bf16 %v6145, %v6143
      %v6338 = vpack.c.bf16 %v6146, %v6144
      %v6339 = vpack.c.bf16 %v6149, %v6147
      %v6340 = vpack.c.bf16 %v6150, %v6148
      %v6341 = vpack.c.bf16 %v6153, %v6151
      %v6342 = vpack.c.bf16 %v6154, %v6152
      %v6343 = vpack.c.bf16 %v6157, %v6155
      %v6344 = vpack.c.bf16 %v6158, %v6156
      %v6345 = vpack.c.bf16 %v6161, %v6159
      %v6346 = vpack.c.bf16 %v6162, %v6160
      %v6347 = vpack.c.bf16 %v6165, %v6163
      %v6348 = vpack.c.bf16 %v6166, %v6164
      %v6349 = vpack.c.bf16 %v6169, %v6167
      %v6350 = vpack.c.bf16 %v6170, %v6168
      %v6351 = vpack.c.bf16 %v6173, %v6171
      %v6352 = vpack.c.bf16 %v6174, %v6172
      %v6353 = vpack.c.bf16 %v6177, %v6175
      %v6354 = vpack.c.bf16 %v6178, %v6176
      %v6355 = vpack.c.bf16 %v6181, %v6179
      %v6356 = vpack.c.bf16 %v6182, %v6180
      %v6357 = vpack.c.bf16 %v6185, %v6183
      %v6358 = vpack.c.bf16 %v6186, %v6184
      %v6359 = vpack.c.bf16 %v6189, %v6187
      %v6360 = vpack.c.bf16 %v6190, %v6188
      %v6361 = vpack.c.bf16 %v6193, %v6191
      %v6362 = vpack.c.bf16 %v6194, %v6192
      %v6363 = vpack.c.bf16 %v6197, %v6195
      %v6364 = vpack.c.bf16 %v6198, %v6196
      %v6365 = vpack.c.bf16 %v6201, %v6199
      %v6366 = vpack.c.bf16 %v6202, %v6200
      %v6367 = vpack.c.bf16 %v6205, %v6203
      %v6368 = vpack.c.bf16 %v6206, %v6204
      %v6369 = vpack.c.bf16 %v6209, %v6207
      %v6370 = vpack.c.bf16 %v6210, %v6208
      %v6371 = vpack.c.bf16 %v6213, %v6211
      %v6372 = vpack.c.bf16 %v6214, %v6212
      %v6373 = vpack.c.bf16 %v6217, %v6215
      %v6374 = vpack.c.bf16 %v6218, %v6216
      %v6375 = vpack.c.bf16 %v6221, %v6219
      %v6376 = vpack.c.bf16 %v6222, %v6220
      %v6377 = vpack.c.bf16 %v6225, %v6223
      %v6378 = vpack.c.bf16 %v6226, %v6224
      %v6379 = vpack.c.bf16 %v6229, %v6227
      %v6380 = vpack.c.bf16 %v6230, %v6228
      %v6381 = vpack.c.bf16 %v6233, %v6231
      %v6382 = vpack.c.bf16 %v6234, %v6232
      %v6383 = vpack.c.bf16 %v6237, %v6235
      %v6384 = vpack.c.bf16 %v6238, %v6236
      %v6385 = vpack.c.bf16 %v6241, %v6239
      %v6386 = vpack.c.bf16 %v6242, %v6240
      %v6387 = vld [vmem:[%s6] sm:$0xff]
      %v6388 = vld [vmem:[%s6 + $0x8] sm:$0xff]
      %v6389 = vld [vmem:[%s6 + $0x10] sm:$0xff]
      %v6390 = vld [vmem:[%s6 + $0x18] sm:$0xff]
      %v6391 = vld [vmem:[%s6 + $0x20] sm:$0xf]
      %v6392 = vld [vmem:[%s6 + $0x24] sm:$0xff]
      %v6393 = vld [vmem:[%s6 + $0x2c] sm:$0xff]
      %v6394 = vld [vmem:[%s6 + $0x34] sm:$0xff]
      %v6395 = vld [vmem:[%s6 + $0x3c] sm:$0xff]
      %v6396 = vld [vmem:[%s6 + $0x44] sm:$0xf]
      %v6397 = vld [vmem:[%s6 + $0x48] sm:$0xff]
      %v6398 = vld [vmem:[%s6 + $0x50] sm:$0xff]
      %v6399 = vld [vmem:[%s6 + $0x58] sm:$0xff]
      %v6400 = vld [vmem:[%s6 + $0x60] sm:$0xff]
      %v6401 = vld [vmem:[%s6 + $0x68] sm:$0xf]
      %v6402 = vld [vmem:[%s6 + $0x6c] sm:$0xff]
      %v6403 = vld [vmem:[%s6 + $0x74] sm:$0xff]
      %v6404 = vld [vmem:[%s6 + $0x7c] sm:$0xff]
      %v6405 = vld [vmem:[%s6 + $0x84] sm:$0xff]
      %v6406 = vld [vmem:[%s6 + $0x8c] sm:$0xf]
      %v6407 = vld [vmem:[%s6 + $0x90] sm:$0xff]
      %v6408 = vld [vmem:[%s6 + $0x98] sm:$0xff]
      %v6409 = vld [vmem:[%s6 + $0xa0] sm:$0xff]
      %v6410 = vld [vmem:[%s6 + $0xa8] sm:$0xff]
      %v6411 = vld [vmem:[%s6 + $0xb0] sm:$0xf]
      %v6412 = vld [vmem:[%s6 + $0xb4] sm:$0xff]
      %v6413 = vld [vmem:[%s6 + $0xbc] sm:$0xff]
      %v6414 = vld [vmem:[%s6 + $0xc4] sm:$0xff]
      %v6415 = vld [vmem:[%s6 + $0xcc] sm:$0xff]
      %v6416 = vld [vmem:[%s6 + $0xd4] sm:$0xf]
      %v6417 = vld [vmem:[%s6 + $0xd8] sm:$0xff]
      %v6418 = vld [vmem:[%s6 + $0xe0] sm:$0xff]
      %v6419 = vld [vmem:[%s6 + $0xe8] sm:$0xff]
      %v6420 = vld [vmem:[%s6 + $0xf0] sm:$0xff]
      %v6421 = vld [vmem:[%s6 + $0xf8] sm:$0xf]
      %v6422 = vld [vmem:[%s6 + $0xfc] sm:$0xff]
      %v6423 = vld [vmem:[%s6 + $0x104] sm:$0xff]
      %v6424 = vld [vmem:[%s6 + $0x10c] sm:$0xff]
      %v6425 = vld [vmem:[%s6 + $0x114] sm:$0xff]
      %v6426 = vld [vmem:[%s6 + $0x11c] sm:$0xf]
      %v6427 = vld [vmem:[%s7] sm:$0xff]
      %v6428 = vld [vmem:[%s7 + $0x8] sm:$0xff]
      %v6429 = vld [vmem:[%s7 + $0x10] sm:$0xff]
      %v6430 = vld [vmem:[%s7 + $0x18] sm:$0xff]
      %v6431 = vld [vmem:[%s7 + $0x20] sm:$0xff]
      %v6432 = vld [vmem:[%s7 + $0x28] sm:$0xff]
      %v6433 = vld [vmem:[%s7 + $0x30] sm:$0xff]
      %v6434 = vld [vmem:[%s7 + $0x38] sm:$0xff]
      %6436 = vset.pattern.permute.xlu0 0
      %6437 = vperm.xlu0 %6436, %v6427
      %v6438 = vpop.permute.xlu0 %6437
      %6441 = vset.pattern.permute.xlu0 0
      %6442 = vperm.xlu0 %6441, %v6428
      %v6443 = vpop.permute.xlu0 %6442
      %6446 = vset.pattern.permute.xlu0 0
      %6447 = vperm.xlu0 %6446, %v6429
      %v6448 = vpop.permute.xlu0 %6447
      %6451 = vset.pattern.permute.xlu0 0
      %6452 = vperm.xlu0 %6451, %v6430
      %v6453 = vpop.permute.xlu0 %6452
      %6456 = vset.pattern.permute.xlu0 0
      %6457 = vperm.xlu0 %6456, %v6431
      %v6458 = vpop.permute.xlu0 %6457
      %6461 = vset.pattern.permute.xlu0 0
      %6462 = vperm.xlu0 %6461, %v6432
      %v6463 = vpop.permute.xlu0 %6462
      %6466 = vset.pattern.permute.xlu0 0
      %6467 = vperm.xlu0 %6466, %v6433
      %v6468 = vpop.permute.xlu0 %6467
      %6471 = vset.pattern.permute.xlu0 0
      %6472 = vperm.xlu0 %6471, %v6434
      %v6473 = vpop.permute.xlu0 %6472
      %v6515 = vunpack.c.l.b16 %v6387
      %v6516 = vunpack.c.h.b16 %v6387
      %v6517 = vunpack.c.l.b16 %v6388
      %v6518 = vunpack.c.h.b16 %v6388
      %v6519 = vunpack.c.l.b16 %v6389
      %v6520 = vunpack.c.h.b16 %v6389
      %v6521 = vunpack.c.l.b16 %v6390
      %v6522 = vunpack.c.h.b16 %v6390
      %v6523 = vunpack.c.l.b16 %v6391
      %v6524 = vunpack.c.l.b16 %v6392
      %v6525 = vunpack.c.h.b16 %v6392
      %v6526 = vunpack.c.l.b16 %v6393
      %v6527 = vunpack.c.h.b16 %v6393
      %v6528 = vunpack.c.l.b16 %v6394
      %v6529 = vunpack.c.h.b16 %v6394
      %v6530 = vunpack.c.l.b16 %v6395
      %v6531 = vunpack.c.h.b16 %v6395
      %v6532 = vunpack.c.l.b16 %v6396
      %v6533 = vunpack.c.l.b16 %v6397
      %v6534 = vunpack.c.h.b16 %v6397
      %v6535 = vunpack.c.l.b16 %v6398
      %v6536 = vunpack.c.h.b16 %v6398
      %v6537 = vunpack.c.l.b16 %v6399
      %v6538 = vunpack.c.h.b16 %v6399
      %v6539 = vunpack.c.l.b16 %v6400
      %v6540 = vunpack.c.h.b16 %v6400
      %v6541 = vunpack.c.l.b16 %v6401
      %v6542 = vunpack.c.l.b16 %v6402
      %v6543 = vunpack.c.h.b16 %v6402
      %v6544 = vunpack.c.l.b16 %v6403
      %v6545 = vunpack.c.h.b16 %v6403
      %v6546 = vunpack.c.l.b16 %v6404
      %v6547 = vunpack.c.h.b16 %v6404
      %v6548 = vunpack.c.l.b16 %v6405
      %v6549 = vunpack.c.h.b16 %v6405
      %v6550 = vunpack.c.l.b16 %v6406
      %v6551 = vunpack.c.l.b16 %v6407
      %v6552 = vunpack.c.h.b16 %v6407
      %v6553 = vunpack.c.l.b16 %v6408
      %v6554 = vunpack.c.h.b16 %v6408
      %v6555 = vunpack.c.l.b16 %v6409
      %v6556 = vunpack.c.h.b16 %v6409
      %v6557 = vunpack.c.l.b16 %v6410
      %v6558 = vunpack.c.h.b16 %v6410
      %v6559 = vunpack.c.l.b16 %v6411
      %v6560 = vunpack.c.l.b16 %v6412
      %v6561 = vunpack.c.h.b16 %v6412
      %v6562 = vunpack.c.l.b16 %v6413
      %v6563 = vunpack.c.h.b16 %v6413
      %v6564 = vunpack.c.l.b16 %v6414
      %v6565 = vunpack.c.h.b16 %v6414
      %v6566 = vunpack.c.l.b16 %v6415
      %v6567 = vunpack.c.h.b16 %v6415
      %v6568 = vunpack.c.l.b16 %v6416
      %v6569 = vunpack.c.l.b16 %v6417
      %v6570 = vunpack.c.h.b16 %v6417
      %v6571 = vunpack.c.l.b16 %v6418
      %v6572 = vunpack.c.h.b16 %v6418
      %v6573 = vunpack.c.l.b16 %v6419
      %v6574 = vunpack.c.h.b16 %v6419
      %v6575 = vunpack.c.l.b16 %v6420
      %v6576 = vunpack.c.h.b16 %v6420
      %v6577 = vunpack.c.l.b16 %v6421
      %v6578 = vunpack.c.l.b16 %v6422
      %v6579 = vunpack.c.h.b16 %v6422
      %v6580 = vunpack.c.l.b16 %v6423
      %v6581 = vunpack.c.h.b16 %v6423
      %v6582 = vunpack.c.l.b16 %v6424
      %v6583 = vunpack.c.h.b16 %v6424
      %v6584 = vunpack.c.l.b16 %v6425
      %v6585 = vunpack.c.h.b16 %v6425
      %v6586 = vunpack.c.l.b16 %v6426
      %v6587 = vpack.c.b16 %v6524, %v6515
      %v6588 = vpack.c.b16 %v6525, %v6516
      %v6589 = vpack.c.b16 %v6526, %v6517
      %v6590 = vpack.c.b16 %v6527, %v6518
      %v6591 = vpack.c.b16 %v6528, %v6519
      %v6592 = vpack.c.b16 %v6529, %v6520
      %v6593 = vpack.c.b16 %v6530, %v6521
      %v6594 = vpack.c.b16 %v6531, %v6522
      %v6595 = vpack.c.b16 %v6532, %v6523
      %v6596 = vpack.c.b16 %v6542, %v6533
      %v6597 = vpack.c.b16 %v6543, %v6534
      %v6598 = vpack.c.b16 %v6544, %v6535
      %v6599 = vpack.c.b16 %v6545, %v6536
      %v6600 = vpack.c.b16 %v6546, %v6537
      %v6601 = vpack.c.b16 %v6547, %v6538
      %v6602 = vpack.c.b16 %v6548, %v6539
      %v6603 = vpack.c.b16 %v6549, %v6540
      %v6604 = vpack.c.b16 %v6550, %v6541
      %v6605 = vpack.c.b16 %v6560, %v6551
      %v6606 = vpack.c.b16 %v6561, %v6552
      %v6607 = vpack.c.b16 %v6562, %v6553
      %v6608 = vpack.c.b16 %v6563, %v6554
      %v6609 = vpack.c.b16 %v6564, %v6555
      %v6610 = vpack.c.b16 %v6565, %v6556
      %v6611 = vpack.c.b16 %v6566, %v6557
      %v6612 = vpack.c.b16 %v6567, %v6558
      %v6613 = vpack.c.b16 %v6568, %v6559
      %v6614 = vpack.c.b16 %v6578, %v6569
      %v6615 = vpack.c.b16 %v6579, %v6570
      %v6616 = vpack.c.b16 %v6580, %v6571
      %v6617 = vpack.c.b16 %v6581, %v6572
      %v6618 = vpack.c.b16 %v6582, %v6573
      %v6619 = vpack.c.b16 %v6583, %v6574
      %v6620 = vpack.c.b16 %v6584, %v6575
      %v6621 = vpack.c.b16 %v6585, %v6576
      %v6622 = vpack.c.b16 %v6586, %v6577
      %6659 = vmatprep.subr.bf16.mxu0 %v6244
      %6660 = vmatpush1.bf16.msra.mxu0 %v6243
      %6661 = vmatprep.subr.bf16.mxu0 %v6246
      %6662 = vmatpush1.bf16.msra.mxu0 %v6245
      %6663 = vmatprep.subr.bf16.mxu0 %v6248
      %6664 = vmatpush1.bf16.msra.mxu0 %v6247
      %6665 = vmatprep.subr.bf16.mxu0 %v6250
      %6666 = vmatpush1.bf16.msra.mxu0 %v6249
      %6667 = vmatprep.subr.bf16.mxu0 %v6252
      %6668 = vmatpush1.bf16.msra.mxu0 %v6251
      %6669 = vmatprep.subr.bf16.mxu0 %v6254
      %6670 = vmatpush1.bf16.msra.mxu0 %v6253
      %6671 = vmatprep.subr.bf16.mxu0 %v6256
      %6672 = vmatpush1.bf16.msra.mxu0 %v6255
      %6673 = vmatprep.subr.bf16.mxu0 %v6258
      %6674 = vmatpush1.bf16.msra.mxu0 %v6257
      %6675 = vmatprep.subr.bf16.mxu0 %v6260
      %6676 = vmatpush1.bf16.msra.mxu0 %v6259
      %6677 = vmatprep.subr.bf16.mxu0 %v6262
      %6678 = vmatpush1.bf16.msra.mxu0 %v6261
      %6679 = vmatprep.subr.bf16.mxu0 %v6264
      %6680 = vmatpush1.bf16.msra.mxu0 %v6263
      %6681 = vmatprep.subr.bf16.mxu0 %v6266
      %6682 = vmatpush1.bf16.msra.mxu0 %v6265
      %6683 = vmatprep.subr.bf16.mxu0 %v6268
      %6684 = vmatpush1.bf16.msra.mxu0 %v6267
      %6685 = vmatprep.subr.bf16.mxu0 %v6270
      %6686 = vmatpush1.bf16.msra.mxu0 %v6269
      %6687 = vmatprep.subr.bf16.mxu0 %v6272
      %6688 = vmatpush1.bf16.msra.mxu0 %v6271
      %6689 = vmatprep.subr.bf16.mxu0 %v6274
      %6690 = vmatpush1.bf16.msra.mxu0 %v6273
      %6691 = vmatprep.mubr.bf16.mxu0 %v6588
      %6692 = vmatmul.mubr.bf16.gmra.mrb[0].mxu0 %v6587
      %v6693 = vpop.f32.mrb[0].mxu0
      %v6694 = vadd.f32 %v6438, %v6693
      %v6695 = vpop.f32.mrb[0].mxu0
      %v6696 = vadd.f32 %v6438, %v6695
      %v6697 = vpop.f32.mrb[0].mxu0
      %v6698 = vadd.f32 %v6443, %v6697
      %v6699 = vpop.f32.mrb[0].mxu0
      %v6700 = vadd.f32 %v6443, %v6699
      %6701 = vmatprep.mubr.bf16.mxu0 %v6597
      %6702 = vmatmul.mubr.bf16.gmra.mrb[0].mxu0 %v6596
      %v6703 = vpop.f32.mrb[0].mxu0
      %v6704 = vadd.f32 %v6448, %v6703
      %v6705 = vpop.f32.mrb[0].mxu0
      %v6706 = vadd.f32 %v6448, %v6705
      %v6707 = vpop.f32.mrb[0].mxu0
      %v6708 = vadd.f32 %v6453, %v6707
      %v6709 = vpop.f32.mrb[0].mxu0
      %v6710 = vadd.f32 %v6453, %v6709
      %6711 = vmatprep.mubr.bf16.mxu0 %v6606
      %6712 = vmatmul.mubr.bf16.gmra.mrb[0].mxu0 %v6605
      %v6713 = vpop.f32.mrb[0].mxu0
      %v6714 = vadd.f32 %v6458, %v6713
      %v6715 = vpop.f32.mrb[0].mxu0
      %v6716 = vadd.f32 %v6458, %v6715
      %v6717 = vpop.f32.mrb[0].mxu0
      %v6718 = vadd.f32 %v6463, %v6717
      %v6719 = vpop.f32.mrb[0].mxu0
      %v6720 = vadd.f32 %v6463, %v6719
      %6721 = vmatprep.mubr.bf16.mxu0 %v6615
      %6722 = vmatmul.mubr.bf16.gmra.mrb[0].mxu0 %v6614
      %v6723 = vpop.f32.mrb[0].mxu0
      %v6724 = vadd.f32 %v6468, %v6723
      %v6725 = vpop.f32.mrb[0].mxu0
      %v6726 = vadd.f32 %v6468, %v6725
      %v6727 = vpop.f32.mrb[0].mxu0
      %v6728 = vadd.f32 %v6473, %v6727
      %v6729 = vpop.f32.mrb[0].mxu0
      %v6730 = vadd.f32 %v6473, %v6729
      %6731 = vdwg.mxu0
      %6732 = vmatprep.subr.bf16.mxu0 %v6276
      %6733 = vmatpush1.bf16.msra.mxu0 %v6275
      %6734 = vmatprep.subr.bf16.mxu0 %v6278
      %6735 = vmatpush1.bf16.msra.mxu0 %v6277
      %6736 = vmatprep.subr.bf16.mxu0 %v6280
      %6737 = vmatpush1.bf16.msra.mxu0 %v6279
      %6738 = vmatprep.subr.bf16.mxu0 %v6282
      %6739 = vmatpush1.bf16.msra.mxu0 %v6281
      %6740 = vmatprep.subr.bf16.mxu0 %v6284
      %6741 = vmatpush1.bf16.msra.mxu0 %v6283
      %6742 = vmatprep.subr.bf16.mxu0 %v6286
      %6743 = vmatpush1.bf16.msra.mxu0 %v6285
      %6744 = vmatprep.subr.bf16.mxu0 %v6288
      %6745 = vmatpush1.bf16.msra.mxu0 %v6287
      %6746 = vmatprep.subr.bf16.mxu0 %v6290
      %6747 = vmatpush1.bf16.msra.mxu0 %v6289
      %6748 = vmatprep.subr.bf16.mxu0 %v6292
      %6749 = vmatpush1.bf16.msra.mxu0 %v6291
      %6750 = vmatprep.subr.bf16.mxu0 %v6294
      %6751 = vmatpush1.bf16.msra.mxu0 %v6293
      %6752 = vmatprep.subr.bf16.mxu0 %v6296
      %6753 = vmatpush1.bf16.msra.mxu0 %v6295
      %6754 = vmatprep.subr.bf16.mxu0 %v6298
      %6755 = vmatpush1.bf16.msra.mxu0 %v6297
      %6756 = vmatprep.subr.bf16.mxu0 %v6300
      %6757 = vmatpush1.bf16.msra.mxu0 %v6299
      %6758 = vmatprep.subr.bf16.mxu0 %v6302
      %6759 = vmatpush1.bf16.msra.mxu0 %v6301
      %6760 = vmatprep.subr.bf16.mxu0 %v6304
      %6761 = vmatpush1.bf16.msra.mxu0 %v6303
      %6762 = vmatprep.subr.bf16.mxu0 %v6306
      %6763 = vmatpush1.bf16.msra.mxu0 %v6305
      %6764 = vmatprep.mubr.bf16.mxu0 %v6590
      %6765 = vmatmul.mubr.bf16.gmra.mrb[0].mxu0 %v6589
      %v6766 = vpop.f32.mrb[0].mxu0
      %v6767 = vadd.f32 %v6694, %v6766
      %v6768 = vpop.f32.mrb[0].mxu0
      %v6769 = vadd.f32 %v6696, %v6768
      %v6770 = vpop.f32.mrb[0].mxu0
      %v6771 = vadd.f32 %v6698, %v6770
      %v6772 = vpop.f32.mrb[0].mxu0
      %v6773 = vadd.f32 %v6700, %v6772
      %6774 = vmatprep.mubr.bf16.mxu0 %v6599
      %6775 = vmatmul.mubr.bf16.gmra.mrb[0].mxu0 %v6598
      %v6776 = vpop.f32.mrb[0].mxu0
      %v6777 = vadd.f32 %v6704, %v6776
      %v6778 = vpop.f32.mrb[0].mxu0
      %v6779 = vadd.f32 %v6706, %v6778
      %v6780 = vpop.f32.mrb[0].mxu0
      %v6781 = vadd.f32 %v6708, %v6780
      %v6782 = vpop.f32.mrb[0].mxu0
      %v6783 = vadd.f32 %v6710, %v6782
      %6784 = vmatprep.mubr.bf16.mxu0 %v6608
      %6785 = vmatmul.mubr.bf16.gmra.mrb[0].mxu0 %v6607
      %v6786 = vpop.f32.mrb[0].mxu0
      %v6787 = vadd.f32 %v6714, %v6786
      %v6788 = vpop.f32.mrb[0].mxu0
      %v6789 = vadd.f32 %v6716, %v6788
      %v6790 = vpop.f32.mrb[0].mxu0
      %v6791 = vadd.f32 %v6718, %v6790
      %v6792 = vpop.f32.mrb[0].mxu0
      %v6793 = vadd.f32 %v6720, %v6792
      %6794 = vmatprep.mubr.bf16.mxu0 %v6617
      %6795 = vmatmul.mubr.bf16.gmra.mrb[0].mxu0 %v6616
      %v6796 = vpop.f32.mrb[0].mxu0
      %v6797 = vadd.f32 %v6724, %v6796
      %v6798 = vpop.f32.mrb[0].mxu0
      %v6799 = vadd.f32 %v6726, %v6798
      %v6800 = vpop.f32.mrb[0].mxu0
      %v6801 = vadd.f32 %v6728, %v6800
      %v6802 = vpop.f32.mrb[0].mxu0
      %v6803 = vadd.f32 %v6730, %v6802
      %6804 = vdwg.mxu0
      %6805 = vmatprep.subr.bf16.mxu0 %v6308
      %6806 = vmatpush1.bf16.msra.mxu0 %v6307
      %6807 = vmatprep.subr.bf16.mxu0 %v6310
      %6808 = vmatpush1.bf16.msra.mxu0 %v6309
      %6809 = vmatprep.subr.bf16.mxu0 %v6312
      %6810 = vmatpush1.bf16.msra.mxu0 %v6311
      %6811 = vmatprep.subr.bf16.mxu0 %v6314
      %6812 = vmatpush1.bf16.msra.mxu0 %v6313
      %6813 = vmatprep.subr.bf16.mxu0 %v6316
      %6814 = vmatpush1.bf16.msra.mxu0 %v6315
      %6815 = vmatprep.subr.bf16.mxu0 %v6318
      %6816 = vmatpush1.bf16.msra.mxu0 %v6317
      %6817 = vmatprep.subr.bf16.mxu0 %v6320
      %6818 = vmatpush1.bf16.msra.mxu0 %v6319
      %6819 = vmatprep.subr.bf16.mxu0 %v6322
      %6820 = vmatpush1.bf16.msra.mxu0 %v6321
      %6821 = vmatprep.subr.bf16.mxu0 %v6324
      %6822 = vmatpush1.bf16.msra.mxu0 %v6323
      %6823 = vmatprep.subr.bf16.mxu0 %v6326
      %6824 = vmatpush1.bf16.msra.mxu0 %v6325
      %6825 = vmatprep.subr.bf16.mxu0 %v6328
      %6826 = vmatpush1.bf16.msra.mxu0 %v6327
      %6827 = vmatprep.subr.bf16.mxu0 %v6330
      %6828 = vmatpush1.bf16.msra.mxu0 %v6329
      %6829 = vmatprep.subr.bf16.mxu0 %v6332
      %6830 = vmatpush1.bf16.msra.mxu0 %v6331
      %6831 = vmatprep.subr.bf16.mxu0 %v6334
      %6832 = vmatpush1.bf16.msra.mxu0 %v6333
      %6833 = vmatprep.subr.bf16.mxu0 %v6336
      %6834 = vmatpush1.bf16.msra.mxu0 %v6335
      %6835 = vmatprep.subr.bf16.mxu0 %v6338
      %6836 = vmatpush1.bf16.msra.mxu0 %v6337
      %6837 = vmatprep.mubr.bf16.mxu0 %v6592
      %6838 = vmatmul.mubr.bf16.gmra.mrb[0].mxu0 %v6591
      %v6839 = vpop.f32.mrb[0].mxu0
      %v6840 = vadd.f32 %v6767, %v6839
      %v6841 = vpop.f32.mrb[0].mxu0
      %v6842 = vadd.f32 %v6769, %v6841
      %v6843 = vpop.f32.mrb[0].mxu0
      %v6844 = vadd.f32 %v6771, %v6843
      %v6845 = vpop.f32.mrb[0].mxu0
      %v6846 = vadd.f32 %v6773, %v6845
      %6847 = vmatprep.mubr.bf16.mxu0 %v6601
      %6848 = vmatmul.mubr.bf16.gmra.mrb[0].mxu0 %v6600
      %v6849 = vpop.f32.mrb[0].mxu0
      %v6850 = vadd.f32 %v6777, %v6849
      %v6851 = vpop.f32.mrb[0].mxu0
      %v6852 = vadd.f32 %v6779, %v6851
      %v6853 = vpop.f32.mrb[0].mxu0
      %v6854 = vadd.f32 %v6781, %v6853
      %v6855 = vpop.f32.mrb[0].mxu0
      %v6856 = vadd.f32 %v6783, %v6855
      %6857 = vmatprep.mubr.bf16.mxu0 %v6610
      %6858 = vmatmul.mubr.bf16.gmra.mrb[0].mxu0 %v6609
      %v6859 = vpop.f32.mrb[0].mxu0
      %v6860 = vadd.f32 %v6787, %v6859
      %v6861 = vpop.f32.mrb[0].mxu0
      %v6862 = vadd.f32 %v6789, %v6861
      %v6863 = vpop.f32.mrb[0].mxu0
      %v6864 = vadd.f32 %v6791, %v6863
      %v6865 = vpop.f32.mrb[0].mxu0
      %v6866 = vadd.f32 %v6793, %v6865
      %6867 = vmatprep.mubr.bf16.mxu0 %v6619
      %6868 = vmatmul.mubr.bf16.gmra.mrb[0].mxu0 %v6618
      %v6869 = vpop.f32.mrb[0].mxu0
      %v6870 = vadd.f32 %v6797, %v6869
      %v6871 = vpop.f32.mrb[0].mxu0
      %v6872 = vadd.f32 %v6799, %v6871
      %v6873 = vpop.f32.mrb[0].mxu0
      %v6874 = vadd.f32 %v6801, %v6873
      %v6875 = vpop.f32.mrb[0].mxu0
      %v6876 = vadd.f32 %v6803, %v6875
      %6877 = vdwg.mxu0
      %6878 = vmatprep.subr.bf16.mxu0 %v6340
      %6879 = vmatpush1.bf16.msra.mxu0 %v6339
      %6880 = vmatprep.subr.bf16.mxu0 %v6342
      %6881 = vmatpush1.bf16.msra.mxu0 %v6341
      %6882 = vmatprep.subr.bf16.mxu0 %v6344
      %6883 = vmatpush1.bf16.msra.mxu0 %v6343
      %6884 = vmatprep.subr.bf16.mxu0 %v6346
      %6885 = vmatpush1.bf16.msra.mxu0 %v6345
      %6886 = vmatprep.subr.bf16.mxu0 %v6348
      %6887 = vmatpush1.bf16.msra.mxu0 %v6347
      %6888 = vmatprep.subr.bf16.mxu0 %v6350
      %6889 = vmatpush1.bf16.msra.mxu0 %v6349
      %6890 = vmatprep.subr.bf16.mxu0 %v6352
      %6891 = vmatpush1.bf16.msra.mxu0 %v6351
      %6892 = vmatprep.subr.bf16.mxu0 %v6354
      %6893 = vmatpush1.bf16.msra.mxu0 %v6353
      %6894 = vmatprep.subr.bf16.mxu0 %v6356
      %6895 = vmatpush1.bf16.msra.mxu0 %v6355
      %6896 = vmatprep.subr.bf16.mxu0 %v6358
      %6897 = vmatpush1.bf16.msra.mxu0 %v6357
      %6898 = vmatprep.subr.bf16.mxu0 %v6360
      %6899 = vmatpush1.bf16.msra.mxu0 %v6359
      %6900 = vmatprep.subr.bf16.mxu0 %v6362
      %6901 = vmatpush1.bf16.msra.mxu0 %v6361
      %6902 = vmatprep.subr.bf16.mxu0 %v6364
      %6903 = vmatpush1.bf16.msra.mxu0 %v6363
      %6904 = vmatprep.subr.bf16.mxu0 %v6366
      %6905 = vmatpush1.bf16.msra.mxu0 %v6365
      %6906 = vmatprep.subr.bf16.mxu0 %v6368
      %6907 = vmatpush1.bf16.msra.mxu0 %v6367
      %6908 = vmatprep.subr.bf16.mxu0 %v6370
      %6909 = vmatpush1.bf16.msra.mxu0 %v6369
      %6910 = vmatprep.mubr.bf16.mxu0 %v6594
      %6911 = vmatmul.mubr.bf16.gmra.mrb[0].mxu0 %v6593
      %v6912 = vpop.f32.mrb[0].mxu0
      %v6913 = vadd.f32 %v6840, %v6912
      %v6914 = vpop.f32.mrb[0].mxu0
      %v6915 = vadd.f32 %v6842, %v6914
      %v6916 = vpop.f32.mrb[0].mxu0
      %v6917 = vadd.f32 %v6844, %v6916
      %v6918 = vpop.f32.mrb[0].mxu0
      %v6919 = vadd.f32 %v6846, %v6918
      %6920 = vmatprep.mubr.bf16.mxu0 %v6603
      %6921 = vmatmul.mubr.bf16.gmra.mrb[0].mxu0 %v6602
      %v6922 = vpop.f32.mrb[0].mxu0
      %v6923 = vadd.f32 %v6850, %v6922
      %v6924 = vpop.f32.mrb[0].mxu0
      %v6925 = vadd.f32 %v6852, %v6924
      %v6926 = vpop.f32.mrb[0].mxu0
      %v6927 = vadd.f32 %v6854, %v6926
      %v6928 = vpop.f32.mrb[0].mxu0
      %v6929 = vadd.f32 %v6856, %v6928
      %6930 = vmatprep.mubr.bf16.mxu0 %v6612
      %6931 = vmatmul.mubr.bf16.gmra.mrb[0].mxu0 %v6611
      %v6932 = vpop.f32.mrb[0].mxu0
      %v6933 = vadd.f32 %v6860, %v6932
      %v6934 = vpop.f32.mrb[0].mxu0
      %v6935 = vadd.f32 %v6862, %v6934
      %v6936 = vpop.f32.mrb[0].mxu0
      %v6937 = vadd.f32 %v6864, %v6936
      %v6938 = vpop.f32.mrb[0].mxu0
      %v6939 = vadd.f32 %v6866, %v6938
      %6940 = vmatprep.mubr.bf16.mxu0 %v6621
      %6941 = vmatmul.mubr.bf16.gmra.mrb[0].mxu0 %v6620
      %v6942 = vpop.f32.mrb[0].mxu0
      %v6943 = vadd.f32 %v6870, %v6942
      %v6944 = vpop.f32.mrb[0].mxu0
      %v6945 = vadd.f32 %v6872, %v6944
      %v6946 = vpop.f32.mrb[0].mxu0
      %v6947 = vadd.f32 %v6874, %v6946
      %v6948 = vpop.f32.mrb[0].mxu0
      %v6949 = vadd.f32 %v6876, %v6948
      %6950 = vdwg.mxu0
      %6951 = vmatprep.subr.bf16.mxu0 %v6372
      %6952 = vmatpush1.bf16.msra.mxu0 %v6371
      %6953 = vmatprep.subr.bf16.mxu0 %v6374
      %6954 = vmatpush1.bf16.msra.mxu0 %v6373
      %6955 = vmatprep.subr.bf16.mxu0 %v6376
      %6956 = vmatpush1.bf16.msra.mxu0 %v6375
      %6957 = vmatprep.subr.bf16.mxu0 %v6378
      %6958 = vmatpush1.bf16.msra.mxu0 %v6377
      %6959 = vmatprep.subr.bf16.mxu0 %v6380
      %6960 = vmatpush1.bf16.msra.mxu0 %v6379
      %6961 = vmatprep.subr.bf16.mxu0 %v6382
      %6962 = vmatpush1.bf16.msra.mxu0 %v6381
      %6963 = vmatprep.subr.bf16.mxu0 %v6384
      %6964 = vmatpush1.bf16.msra.mxu0 %v6383
      %6965 = vmatprep.subr.bf16.mxu0 %v6386
      %6966 = vmatpush1.bf16.msra.mxu0 %v6385
      %6967 = vmatprep.subr.bf16.mxu0 0
      %6968 = vmatpush1.bf16.msra.mxu0 0
      %6969 = vmatprep.subr.bf16.mxu0 0
      %6970 = vmatpush1.bf16.msra.mxu0 0
      %6971 = vmatprep.subr.bf16.mxu0 0
      %6972 = vmatpush1.bf16.msra.mxu0 0
      %6973 = vmatprep.subr.bf16.mxu0 0
      %6974 = vmatpush1.bf16.msra.mxu0 0
      %6975 = vmatprep.subr.bf16.mxu0 0
      %6976 = vmatpush1.bf16.msra.mxu0 0
      %6977 = vmatprep.subr.bf16.mxu0 0
      %6978 = vmatpush1.bf16.msra.mxu0 0
      %6979 = vmatprep.subr.bf16.mxu0 0
      %6980 = vmatpush1.bf16.msra.mxu0 0
      %6981 = vmatprep.subr.bf16.mxu0 0
      %6982 = vmatpush1.bf16.msra.mxu0 0
      %6983 = vmatprep.mubr.bf16.mxu0 0
      %6984 = vmatmul.mubr.bf16.gmra.mrb[0].mxu0 %v6595
      %v6985 = vpop.f32.mrb[0].mxu0
      %v6986 = vadd.f32 %v6913, %v6985
      %v6987 = vpop.f32.mrb[0].mxu0
      %v6988 = vadd.f32 %v6915, %v6987
      %v6989 = vpop.f32.mrb[0].mxu0
      %v6990 = vadd.f32 %v6917, %v6989
      %v6991 = vpop.f32.mrb[0].mxu0
      %v6992 = vadd.f32 %v6919, %v6991
      %6993 = vmatprep.mubr.bf16.mxu0 0
      %6994 = vmatmul.mubr.bf16.gmra.mrb[0].mxu0 %v6604
      %v6995 = vpop.f32.mrb[0].mxu0
      %v6996 = vadd.f32 %v6923, %v6995
      %v6997 = vpop.f32.mrb[0].mxu0
      %v6998 = vadd.f32 %v6925, %v6997
      %v6999 = vpop.f32.mrb[0].mxu0
      %v7000 = vadd.f32 %v6927, %v6999
      %v7001 = vpop.f32.mrb[0].mxu0
      %v7002 = vadd.f32 %v6929, %v7001
      %7003 = vmatprep.mubr.bf16.mxu0 0
      %7004 = vmatmul.mubr.bf16.gmra.mrb[0].mxu0 %v6613
      %v7005 = vpop.f32.mrb[0].mxu0
      %v7006 = vadd.f32 %v6933, %v7005
      %v7007 = vpop.f32.mrb[0].mxu0
      %v7008 = vadd.f32 %v6935, %v7007
      %v7009 = vpop.f32.mrb[0].mxu0
      %v7010 = vadd.f32 %v6937, %v7009
      %v7011 = vpop.f32.mrb[0].mxu0
      %v7012 = vadd.f32 %v6939, %v7011
      %7013 = vmatprep.mubr.bf16.mxu0 0
      %7014 = vmatmul.mubr.bf16.gmra.mrb[0].mxu0 %v6622
      %v7015 = vpop.f32.mrb[0].mxu0
      %v7016 = vadd.f32 %v6943, %v7015
      %v7017 = vpop.f32.mrb[0].mxu0
      %v7018 = vadd.f32 %v6945, %v7017
      %v7019 = vpop.f32.mrb[0].mxu0
      %v7020 = vadd.f32 %v6947, %v7019
      %v7021 = vpop.f32.mrb[0].mxu0
      %v7022 = vadd.f32 %v6949, %v7021
      %7023 = vdwg.mxu0
      %v7024 = vmax.f32 %v6986, 0.0
      %v7025 = vmax.f32 %v6988, 0.0
      %v7026 = vmax.f32 %v6990, 0.0
      %v7027 = vmax.f32 %v6992, 0.0
      %v7028 = vmax.f32 %v6996, 0.0
      %v7029 = vmax.f32 %v6998, 0.0
      %v7030 = vmax.f32 %v7000, 0.0
      %v7031 = vmax.f32 %v7002, 0.0
      %v7032 = vmax.f32 %v7006, 0.0
      %v7033 = vmax.f32 %v7008, 0.0
      %v7034 = vmax.f32 %v7010, 0.0
      %v7035 = vmax.f32 %v7012, 0.0
      %v7036 = vmax.f32 %v7016, 0.0
      %v7037 = vmax.f32 %v7018, 0.0
      %v7038 = vmax.f32 %v7020, 0.0
      %v7039 = vmax.f32 %v7022, 0.0
      %7056 = vrot.lane.b32.xlu0 %v7024, 17
      %v7057 = vpop.permute.xlu0 %7056
      %7058 = vrot.lane.b32.xlu0 %v7025, 17
      %v7059 = vpop.permute.xlu0 %7058
      %7060 = vrot.lane.b32.xlu0 %v7026, 17
      %v7061 = vpop.permute.xlu0 %7060
      %7062 = vrot.lane.b32.xlu0 %v7027, 17
      %v7063 = vpop.permute.xlu0 %7062
      %7064 = vrot.lane.b32.xlu0 %v7028, 17
      %v7065 = vpop.permute.xlu0 %7064
      %7066 = vrot.lane.b32.xlu0 %v7029, 17
      %v7067 = vpop.permute.xlu0 %7066
      %7068 = vrot.lane.b32.xlu0 %v7030, 17
      %v7069 = vpop.permute.xlu0 %7068
      %7070 = vrot.lane.b32.xlu0 %v7031, 17
      %v7071 = vpop.permute.xlu0 %7070
      %7072 = vrot.lane.b32.xlu0 %v7032, 17
      %v7073 = vpop.permute.xlu0 %7072
      %7074 = vrot.lane.b32.xlu0 %v7033, 17
      %v7075 = vpop.permute.xlu0 %7074
      %7076 = vrot.lane.b32.xlu0 %v7034, 17
      %v7077 = vpop.permute.xlu0 %7076
      %7078 = vrot.lane.b32.xlu0 %v7035, 17
      %v7079 = vpop.permute.xlu0 %7078
      %7080 = vrot.lane.b32.xlu0 %v7036, 17
      %v7081 = vpop.permute.xlu0 %7080
      %7082 = vrot.lane.b32.xlu0 %v7037, 17
      %v7083 = vpop.permute.xlu0 %7082
      %7084 = vrot.lane.b32.xlu0 %v7038, 17
      %v7085 = vpop.permute.xlu0 %7084
      %7086 = vrot.lane.b32.xlu0 %v7039, 17
      %v7087 = vpop.permute.xlu0 %7086
      %v7088 = vsel %vm433, %v7057, %v7059
      %v7089 = vsel %vm433, %v7061, %v7063
      %v7090 = vsel %vm433, %v7065, %v7067
      %v7091 = vsel %vm433, %v7069, %v7071
      %v7092 = vsel %vm433, %v7073, %v7075
      %v7093 = vsel %vm433, %v7077, %v7079
      %v7094 = vsel %vm433, %v7081, %v7083
      %v7095 = vsel %vm433, %v7085, %v7087
      %7120 = vst.msk [vmem:[#allocation2] sm:$0xff] %vm926, %v7057
      %7121 = vst [vmem:[#allocation2 + $0x8] sm:$0xff] %v7088
      %7122 = vst.msk [vmem:[#allocation2 + $0x10] sm:$0xff] %vm433, %v7059
      %7123 = vst.msk [vmem:[#allocation2 + $0x18] sm:$0xff] %vm926, %v7061
      %7124 = vst [vmem:[#allocation2 + $0x20] sm:$0xff] %v7089
      %7125 = vst.msk [vmem:[#allocation2 + $0x28] sm:$0xff] %vm433, %v7063
      %7126 = vst.msk [vmem:[#allocation2 + $0x30] sm:$0xff] %vm926, %v7065
      %7127 = vst [vmem:[#allocation2 + $0x38] sm:$0xff] %v7090
      %7128 = vst.msk [vmem:[#allocation2 + $0x40] sm:$0xff] %vm433, %v7067
      %7129 = vst.msk [vmem:[#allocation2 + $0x48] sm:$0xff] %vm926, %v7069
      %7130 = vst [vmem:[#allocation2 + $0x50] sm:$0xff] %v7091
      %7131 = vst.msk [vmem:[#allocation2 + $0x58] sm:$0xff] %vm433, %v7071
      %7132 = vst.msk [vmem:[#allocation2 + $0x60] sm:$0xff] %vm926, %v7073
      %7133 = vst [vmem:[#allocation2 + $0x68] sm:$0xff] %v7092
      %7134 = vst.msk [vmem:[#allocation2 + $0x70] sm:$0xff] %vm433, %v7075
      %7135 = vst.msk [vmem:[#allocation2 + $0x78] sm:$0xff] %vm926, %v7077
      %7136 = vst [vmem:[#allocation2 + $0x80] sm:$0xff] %v7093
      %7137 = vst.msk [vmem:[#allocation2 + $0x88] sm:$0xff] %vm433, %v7079
      %7138 = vst.msk [vmem:[#allocation2 + $0x90] sm:$0xff] %vm926, %v7081
      %7139 = vst [vmem:[#allocation2 + $0x98] sm:$0xff] %v7094
      %7140 = vst.msk [vmem:[#allocation2 + $0xa0] sm:$0xff] %vm433, %v7083
      %7141 = vst.msk [vmem:[#allocation2 + $0xa8] sm:$0xff] %vm926, %v7085
      %7142 = vst [vmem:[#allocation2 + $0xb0] sm:$0xff] %v7095
      %7143 = vst.msk [vmem:[#allocation2 + $0xb8] sm:$0xff] %vm433, %v7087
      %v7144 = vld [vmem:[#allocation2] sm:$0xff]
      %v7145 = vld [vmem:[#allocation2 + $0x8] sm:$0xff]
      %v7146 = vld [vmem:[#allocation2 + $0x18] sm:$0xff]
      %v7147 = vld [vmem:[#allocation2 + $0x20] sm:$0xff]
      %v7148 = vld [vmem:[#allocation2 + $0x30] sm:$0xff]
      %v7149 = vld [vmem:[#allocation2 + $0x38] sm:$0xff]
      %v7150 = vld [vmem:[#allocation2 + $0x48] sm:$0xff]
      %v7151 = vld [vmem:[#allocation2 + $0x50] sm:$0xff]
      %v7152 = vld [vmem:[#allocation2 + $0x60] sm:$0xff]
      %v7153 = vld [vmem:[#allocation2 + $0x68] sm:$0xff]
      %v7154 = vld [vmem:[#allocation2 + $0x78] sm:$0xff]
      %v7155 = vld [vmem:[#allocation2 + $0x80] sm:$0xff]
      %v7156 = vld [vmem:[#allocation2 + $0x90] sm:$0xff]
      %v7157 = vld [vmem:[#allocation2 + $0x98] sm:$0xff]
      %v7158 = vld [vmem:[#allocation2 + $0xa8] sm:$0xff]
      %v7159 = vld [vmem:[#allocation2 + $0xb0] sm:$0xff]
      %v7160 = vsel %vm455, %v7144, 0.0
      %v7161 = vsel %vm456, %v7145, 0.0
      %v7162 = vsel %vm455, %v7146, 0.0
      %v7163 = vsel %vm456, %v7147, 0.0
      %v7164 = vsel %vm455, %v7148, 0.0
      %v7165 = vsel %vm456, %v7149, 0.0
      %v7166 = vsel %vm455, %v7150, 0.0
      %v7167 = vsel %vm456, %v7151, 0.0
      %v7168 = vsel %vm455, %v7152, 0.0
      %v7169 = vsel %vm456, %v7153, 0.0
      %v7170 = vsel %vm455, %v7154, 0.0
      %v7171 = vsel %vm456, %v7155, 0.0
      %v7172 = vsel %vm455, %v7156, 0.0
      %v7173 = vsel %vm456, %v7157, 0.0
      %v7174 = vsel %vm455, %v7158, 0.0
      %v7175 = vsel %vm456, %v7159, 0.0
      %7176 = vst [vmem:[#allocation3] sm:$0xff] %v7160
      %7177 = vst [vmem:[#allocation3 + $0x8] sm:$0xff] %v7161
      %7178 = vst [vmem:[#allocation3 + $0x10] sm:$0xff] %v7162
      %7179 = vst [vmem:[#allocation3 + $0x18] sm:$0xff] %v7163
      %7180 = vst [vmem:[#allocation3 + $0x20] sm:$0xff] %v7164
      %7181 = vst [vmem:[#allocation3 + $0x28] sm:$0xff] %v7165
      %7182 = vst [vmem:[#allocation3 + $0x30] sm:$0xff] %v7166
      %7183 = vst [vmem:[#allocation3 + $0x38] sm:$0xff] %v7167
      %7184 = vst [vmem:[#allocation3 + $0x40] sm:$0xff] %v7168
      %7185 = vst [vmem:[#allocation3 + $0x48] sm:$0xff] %v7169
      %7186 = vst [vmem:[#allocation3 + $0x50] sm:$0xff] %v7170
      %7187 = vst [vmem:[#allocation3 + $0x58] sm:$0xff] %v7171
      %7188 = vst [vmem:[#allocation3 + $0x60] sm:$0xff] %v7172
      %7189 = vst [vmem:[#allocation3 + $0x68] sm:$0xff] %v7173
      %7190 = vst [vmem:[#allocation3 + $0x70] sm:$0xff] %v7174
      %7191 = vst [vmem:[#allocation3 + $0x78] sm:$0xff] %v7175
      %v7192 = vld [vmem:[#allocation2] sm:$0xff]
      %v7193 = vld [vmem:[#allocation2 + $0x8] sm:$0xff]
      %v7194 = vld [vmem:[#allocation2 + $0x10] sm:$0xff]
      %v7195 = vld [vmem:[#allocation2 + $0x18] sm:$0xff]
      %v7196 = vld [vmem:[#allocation2 + $0x20] sm:$0xff]
      %v7197 = vld [vmem:[#allocation2 + $0x28] sm:$0xff]
      %v7198 = vld [vmem:[#allocation2 + $0x30] sm:$0xff]
      %v7199 = vld [vmem:[#allocation2 + $0x38] sm:$0xff]
      %v7200 = vld [vmem:[#allocation2 + $0x40] sm:$0xff]
      %v7201 = vld [vmem:[#allocation2 + $0x48] sm:$0xff]
      %v7202 = vld [vmem:[#allocation2 + $0x50] sm:$0xff]
      %v7203 = vld [vmem:[#allocation2 + $0x58] sm:$0xff]
      %v7204 = vld [vmem:[#allocation2 + $0x60] sm:$0xff]
      %v7205 = vld [vmem:[#allocation2 + $0x68] sm:$0xff]
      %v7206 = vld [vmem:[#allocation2 + $0x70] sm:$0xff]
      %v7207 = vld [vmem:[#allocation2 + $0x78] sm:$0xff]
      %v7208 = vld [vmem:[#allocation2 + $0x80] sm:$0xff]
      %v7209 = vld [vmem:[#allocation2 + $0x88] sm:$0xff]
      %v7210 = vld [vmem:[#allocation2 + $0x90] sm:$0xff]
      %v7211 = vld [vmem:[#allocation2 + $0x98] sm:$0xff]
      %v7212 = vld [vmem:[#allocation2 + $0xa0] sm:$0xff]
      %v7213 = vld [vmem:[#allocation2 + $0xa8] sm:$0xff]
      %v7214 = vld [vmem:[#allocation2 + $0xb0] sm:$0xff]
      %v7215 = vld [vmem:[#allocation2 + $0xb8] sm:$0xff]
      %7240 = vrot.lane.b32.xlu0 %v7192, 127
      %v7241 = vpop.permute.xlu0 %7240
      %7242 = vrot.lane.b32.xlu0 %v7193, 127
      %v7243 = vpop.permute.xlu0 %7242
      %7244 = vrot.lane.b32.xlu0 %v7194, 127
      %v7245 = vpop.permute.xlu0 %7244
      %7246 = vrot.lane.b32.xlu0 %v7195, 127
      %v7247 = vpop.permute.xlu0 %7246
      %7248 = vrot.lane.b32.xlu0 %v7196, 127
      %v7249 = vpop.permute.xlu0 %7248
      %7250 = vrot.lane.b32.xlu0 %v7197, 127
      %v7251 = vpop.permute.xlu0 %7250
      %7252 = vrot.lane.b32.xlu0 %v7198, 127
      %v7253 = vpop.permute.xlu0 %7252
      %7254 = vrot.lane.b32.xlu0 %v7199, 127
      %v7255 = vpop.permute.xlu0 %7254
      %7256 = vrot.lane.b32.xlu0 %v7200, 127
      %v7257 = vpop.permute.xlu0 %7256
      %7258 = vrot.lane.b32.xlu0 %v7201, 127
      %v7259 = vpop.permute.xlu0 %7258
      %7260 = vrot.lane.b32.xlu0 %v7202, 127
      %v7261 = vpop.permute.xlu0 %7260
      %7262 = vrot.lane.b32.xlu0 %v7203, 127
      %v7263 = vpop.permute.xlu0 %7262
      %7264 = vrot.lane.b32.xlu0 %v7204, 127
      %v7265 = vpop.permute.xlu0 %7264
      %7266 = vrot.lane.b32.xlu0 %v7205, 127
      %v7267 = vpop.permute.xlu0 %7266
      %7268 = vrot.lane.b32.xlu0 %v7206, 127
      %v7269 = vpop.permute.xlu0 %7268
      %7270 = vrot.lane.b32.xlu0 %v7207, 127
      %v7271 = vpop.permute.xlu0 %7270
      %7272 = vrot.lane.b32.xlu0 %v7208, 127
      %v7273 = vpop.permute.xlu0 %7272
      %7274 = vrot.lane.b32.xlu0 %v7209, 127
      %v7275 = vpop.permute.xlu0 %7274
      %7276 = vrot.lane.b32.xlu0 %v7210, 127
      %v7277 = vpop.permute.xlu0 %7276
      %7278 = vrot.lane.b32.xlu0 %v7211, 127
      %v7279 = vpop.permute.xlu0 %7278
      %7280 = vrot.lane.b32.xlu0 %v7212, 127
      %v7281 = vpop.permute.xlu0 %7280
      %7282 = vrot.lane.b32.xlu0 %v7213, 127
      %v7283 = vpop.permute.xlu0 %7282
      %7284 = vrot.lane.b32.xlu0 %v7214, 127
      %v7285 = vpop.permute.xlu0 %7284
      %7286 = vrot.lane.b32.xlu0 %v7215, 127
      %v7287 = vpop.permute.xlu0 %7286
      %v7288 = vsel %vm476, %v7241, %v7243
      %v7289 = vsel %vm476, %v7243, %v7245
      %v7290 = vsel %vm476, %v7247, %v7249
      %v7291 = vsel %vm476, %v7249, %v7251
      %v7292 = vsel %vm476, %v7253, %v7255
      %v7293 = vsel %vm476, %v7255, %v7257
      %v7294 = vsel %vm476, %v7259, %v7261
      %v7295 = vsel %vm476, %v7261, %v7263
      %v7296 = vsel %vm476, %v7265, %v7267
      %v7297 = vsel %vm476, %v7267, %v7269
      %v7298 = vsel %vm476, %v7271, %v7273
      %v7299 = vsel %vm476, %v7273, %v7275
      %v7300 = vsel %vm476, %v7277, %v7279
      %v7301 = vsel %vm476, %v7279, %v7281
      %v7302 = vsel %vm476, %v7283, %v7285
      %v7303 = vsel %vm476, %v7285, %v7287
      %7320 = vst [vmem:[#allocation3 + $0x80] sm:$0xff] %v7288
      %7321 = vst [vmem:[#allocation3 + $0x88] sm:$0xff] %v7289
      %7322 = vst [vmem:[#allocation3 + $0x90] sm:$0xff] %v7290
      %7323 = vst [vmem:[#allocation3 + $0x98] sm:$0xff] %v7291
      %7324 = vst [vmem:[#allocation3 + $0xa0] sm:$0xff] %v7292
      %7325 = vst [vmem:[#allocation3 + $0xa8] sm:$0xff] %v7293
      %7326 = vst [vmem:[#allocation3 + $0xb0] sm:$0xff] %v7294
      %7327 = vst [vmem:[#allocation3 + $0xb8] sm:$0xff] %v7295
      %7328 = vst [vmem:[#allocation3 + $0xc0] sm:$0xff] %v7296
      %7329 = vst [vmem:[#allocation3 + $0xc8] sm:$0xff] %v7297
      %7330 = vst [vmem:[#allocation3 + $0xd0] sm:$0xff] %v7298
      %7331 = vst [vmem:[#allocation3 + $0xd8] sm:$0xff] %v7299
      %7332 = vst [vmem:[#allocation3 + $0xe0] sm:$0xff] %v7300
      %7333 = vst [vmem:[#allocation3 + $0xe8] sm:$0xff] %v7301
      %7334 = vst [vmem:[#allocation3 + $0xf0] sm:$0xff] %v7302
      %7335 = vst [vmem:[#allocation3 + $0xf8] sm:$0xff] %v7303
      %v7336 = vld [vmem:[#allocation2] sm:$0xff]
      %v7337 = vld [vmem:[#allocation2 + $0x8] sm:$0xff]
      %v7338 = vld [vmem:[#allocation2 + $0x10] sm:$0xff]
      %v7339 = vld [vmem:[#allocation2 + $0x18] sm:$0xff]
      %v7340 = vld [vmem:[#allocation2 + $0x20] sm:$0xff]
      %v7341 = vld [vmem:[#allocation2 + $0x28] sm:$0xff]
      %v7342 = vld [vmem:[#allocation2 + $0x30] sm:$0xff]
      %v7343 = vld [vmem:[#allocation2 + $0x38] sm:$0xff]
      %v7344 = vld [vmem:[#allocation2 + $0x40] sm:$0xff]
      %v7345 = vld [vmem:[#allocation2 + $0x48] sm:$0xff]
      %v7346 = vld [vmem:[#allocation2 + $0x50] sm:$0xff]
      %v7347 = vld [vmem:[#allocation2 + $0x58] sm:$0xff]
      %v7348 = vld [vmem:[#allocation2 + $0x60] sm:$0xff]
      %v7349 = vld [vmem:[#allocation2 + $0x68] sm:$0xff]
      %v7350 = vld [vmem:[#allocation2 + $0x70] sm:$0xff]
      %v7351 = vld [vmem:[#allocation2 + $0x78] sm:$0xff]
      %v7352 = vld [vmem:[#allocation2 + $0x80] sm:$0xff]
      %v7353 = vld [vmem:[#allocation2 + $0x88] sm:$0xff]
      %v7354 = vld [vmem:[#allocation2 + $0x90] sm:$0xff]
      %v7355 = vld [vmem:[#allocation2 + $0x98] sm:$0xff]
      %v7356 = vld [vmem:[#allocation2 + $0xa0] sm:$0xff]
      %v7357 = vld [vmem:[#allocation2 + $0xa8] sm:$0xff]
      %v7358 = vld [vmem:[#allocation2 + $0xb0] sm:$0xff]
      %v7359 = vld [vmem:[#allocation2 + $0xb8] sm:$0xff]
      %7384 = vrot.lane.b32.xlu0 %v7336, 126
      %v7385 = vpop.permute.xlu0 %7384
      %7386 = vrot.lane.b32.xlu0 %v7337, 126
      %v7387 = vpop.permute.xlu0 %7386
      %7388 = vrot.lane.b32.xlu0 %v7338, 126
      %v7389 = vpop.permute.xlu0 %7388
      %7390 = vrot.lane.b32.xlu0 %v7339, 126
      %v7391 = vpop.permute.xlu0 %7390
      %7392 = vrot.lane.b32.xlu0 %v7340, 126
      %v7393 = vpop.permute.xlu0 %7392
      %7394 = vrot.lane.b32.xlu0 %v7341, 126
      %v7395 = vpop.permute.xlu0 %7394
      %7396 = vrot.lane.b32.xlu0 %v7342, 126
      %v7397 = vpop.permute.xlu0 %7396
      %7398 = vrot.lane.b32.xlu0 %v7343, 126
      %v7399 = vpop.permute.xlu0 %7398
      %7400 = vrot.lane.b32.xlu0 %v7344, 126
      %v7401 = vpop.permute.xlu0 %7400
      %7402 = vrot.lane.b32.xlu0 %v7345, 126
      %v7403 = vpop.permute.xlu0 %7402
      %7404 = vrot.lane.b32.xlu0 %v7346, 126
      %v7405 = vpop.permute.xlu0 %7404
      %7406 = vrot.lane.b32.xlu0 %v7347, 126
      %v7407 = vpop.permute.xlu0 %7406
      %7408 = vrot.lane.b32.xlu0 %v7348, 126
      %v7409 = vpop.permute.xlu0 %7408
      %7410 = vrot.lane.b32.xlu0 %v7349, 126
      %v7411 = vpop.permute.xlu0 %7410
      %7412 = vrot.lane.b32.xlu0 %v7350, 126
      %v7413 = vpop.permute.xlu0 %7412
      %7414 = vrot.lane.b32.xlu0 %v7351, 126
      %v7415 = vpop.permute.xlu0 %7414
      %7416 = vrot.lane.b32.xlu0 %v7352, 126
      %v7417 = vpop.permute.xlu0 %7416
      %7418 = vrot.lane.b32.xlu0 %v7353, 126
      %v7419 = vpop.permute.xlu0 %7418
      %7420 = vrot.lane.b32.xlu0 %v7354, 126
      %v7421 = vpop.permute.xlu0 %7420
      %7422 = vrot.lane.b32.xlu0 %v7355, 126
      %v7423 = vpop.permute.xlu0 %7422
      %7424 = vrot.lane.b32.xlu0 %v7356, 126
      %v7425 = vpop.permute.xlu0 %7424
      %7426 = vrot.lane.b32.xlu0 %v7357, 126
      %v7427 = vpop.permute.xlu0 %7426
      %7428 = vrot.lane.b32.xlu0 %v7358, 126
      %v7429 = vpop.permute.xlu0 %7428
      %7430 = vrot.lane.b32.xlu0 %v7359, 126
      %v7431 = vpop.permute.xlu0 %7430
      %v7432 = vsel %vm499, %v7385, %v7387
      %v7433 = vsel %vm499, %v7387, %v7389
      %v7434 = vsel %vm499, %v7391, %v7393
      %v7435 = vsel %vm499, %v7393, %v7395
      %v7436 = vsel %vm499, %v7397, %v7399
      %v7437 = vsel %vm499, %v7399, %v7401
      %v7438 = vsel %vm499, %v7403, %v7405
      %v7439 = vsel %vm499, %v7405, %v7407
      %v7440 = vsel %vm499, %v7409, %v7411
      %v7441 = vsel %vm499, %v7411, %v7413
      %v7442 = vsel %vm499, %v7415, %v7417
      %v7443 = vsel %vm499, %v7417, %v7419
      %v7444 = vsel %vm499, %v7421, %v7423
      %v7445 = vsel %vm499, %v7423, %v7425
      %v7446 = vsel %vm499, %v7427, %v7429
      %v7447 = vsel %vm499, %v7429, %v7431
      %v7464 = vsel %vm488, %v7432, 0.0
      %v7465 = vsel %vm489, %v7433, 0.0
      %v7466 = vsel %vm488, %v7434, 0.0
      %v7467 = vsel %vm489, %v7435, 0.0
      %v7468 = vsel %vm488, %v7436, 0.0
      %v7469 = vsel %vm489, %v7437, 0.0
      %v7470 = vsel %vm488, %v7438, 0.0
      %v7471 = vsel %vm489, %v7439, 0.0
      %v7472 = vsel %vm488, %v7440, 0.0
      %v7473 = vsel %vm489, %v7441, 0.0
      %v7474 = vsel %vm488, %v7442, 0.0
      %v7475 = vsel %vm489, %v7443, 0.0
      %v7476 = vsel %vm488, %v7444, 0.0
      %v7477 = vsel %vm489, %v7445, 0.0
      %v7478 = vsel %vm488, %v7446, 0.0
      %v7479 = vsel %vm489, %v7447, 0.0
      %7480 = vst [vmem:[#allocation3 + $0x100] sm:$0xff] %v7464
      %7481 = vst [vmem:[#allocation3 + $0x108] sm:$0xff] %v7465
      %7482 = vst [vmem:[#allocation3 + $0x110] sm:$0xff] %v7466
      %7483 = vst [vmem:[#allocation3 + $0x118] sm:$0xff] %v7467
      %7484 = vst [vmem:[#allocation3 + $0x120] sm:$0xff] %v7468
      %7485 = vst [vmem:[#allocation3 + $0x128] sm:$0xff] %v7469
      %7486 = vst [vmem:[#allocation3 + $0x130] sm:$0xff] %v7470
      %7487 = vst [vmem:[#allocation3 + $0x138] sm:$0xff] %v7471
      %7488 = vst [vmem:[#allocation3 + $0x140] sm:$0xff] %v7472
      %7489 = vst [vmem:[#allocation3 + $0x148] sm:$0xff] %v7473
      %7490 = vst [vmem:[#allocation3 + $0x150] sm:$0xff] %v7474
      %7491 = vst [vmem:[#allocation3 + $0x158] sm:$0xff] %v7475
      %7492 = vst [vmem:[#allocation3 + $0x160] sm:$0xff] %v7476
      %7493 = vst [vmem:[#allocation3 + $0x168] sm:$0xff] %v7477
      %7494 = vst [vmem:[#allocation3 + $0x170] sm:$0xff] %v7478
      %7495 = vst [vmem:[#allocation3 + $0x178] sm:$0xff] %v7479
      %v7496 = vld [vmem:[#allocation2] sm:$0xff]
      %v7497 = vld [vmem:[#allocation2 + $0x8] sm:$0xff]
      %v7498 = vld [vmem:[#allocation2 + $0x10] sm:$0xff]
      %v7499 = vld [vmem:[#allocation2 + $0x18] sm:$0xff]
      %v7500 = vld [vmem:[#allocation2 + $0x20] sm:$0xff]
      %v7501 = vld [vmem:[#allocation2 + $0x28] sm:$0xff]
      %v7502 = vld [vmem:[#allocation2 + $0x30] sm:$0xff]
      %v7503 = vld [vmem:[#allocation2 + $0x38] sm:$0xff]
      %v7504 = vld [vmem:[#allocation2 + $0x40] sm:$0xff]
      %v7505 = vld [vmem:[#allocation2 + $0x48] sm:$0xff]
      %v7506 = vld [vmem:[#allocation2 + $0x50] sm:$0xff]
      %v7507 = vld [vmem:[#allocation2 + $0x58] sm:$0xff]
      %v7508 = vld [vmem:[#allocation2 + $0x60] sm:$0xff]
      %v7509 = vld [vmem:[#allocation2 + $0x68] sm:$0xff]
      %v7510 = vld [vmem:[#allocation2 + $0x70] sm:$0xff]
      %v7511 = vld [vmem:[#allocation2 + $0x78] sm:$0xff]
      %v7512 = vld [vmem:[#allocation2 + $0x80] sm:$0xff]
      %v7513 = vld [vmem:[#allocation2 + $0x88] sm:$0xff]
      %v7514 = vld [vmem:[#allocation2 + $0x90] sm:$0xff]
      %v7515 = vld [vmem:[#allocation2 + $0x98] sm:$0xff]
      %v7516 = vld [vmem:[#allocation2 + $0xa0] sm:$0xff]
      %v7517 = vld [vmem:[#allocation2 + $0xa8] sm:$0xff]
      %v7518 = vld [vmem:[#allocation2 + $0xb0] sm:$0xff]
      %v7519 = vld [vmem:[#allocation2 + $0xb8] sm:$0xff]
      %7544 = vrot.lane.b32.xlu0 %v7496, 112
      %v7545 = vpop.permute.xlu0 %7544
      %7546 = vrot.lane.b32.xlu0 %v7497, 112
      %v7547 = vpop.permute.xlu0 %7546
      %7548 = vrot.lane.b32.xlu0 %v7498, 112
      %v7549 = vpop.permute.xlu0 %7548
      %7550 = vrot.lane.b32.xlu0 %v7499, 112
      %v7551 = vpop.permute.xlu0 %7550
      %7552 = vrot.lane.b32.xlu0 %v7500, 112
      %v7553 = vpop.permute.xlu0 %7552
      %7554 = vrot.lane.b32.xlu0 %v7501, 112
      %v7555 = vpop.permute.xlu0 %7554
      %7556 = vrot.lane.b32.xlu0 %v7502, 112
      %v7557 = vpop.permute.xlu0 %7556
      %7558 = vrot.lane.b32.xlu0 %v7503, 112
      %v7559 = vpop.permute.xlu0 %7558
      %7560 = vrot.lane.b32.xlu0 %v7504, 112
      %v7561 = vpop.permute.xlu0 %7560
      %7562 = vrot.lane.b32.xlu0 %v7505, 112
      %v7563 = vpop.permute.xlu0 %7562
      %7564 = vrot.lane.b32.xlu0 %v7506, 112
      %v7565 = vpop.permute.xlu0 %7564
      %7566 = vrot.lane.b32.xlu0 %v7507, 112
      %v7567 = vpop.permute.xlu0 %7566
      %7568 = vrot.lane.b32.xlu0 %v7508, 112
      %v7569 = vpop.permute.xlu0 %7568
      %7570 = vrot.lane.b32.xlu0 %v7509, 112
      %v7571 = vpop.permute.xlu0 %7570
      %7572 = vrot.lane.b32.xlu0 %v7510, 112
      %v7573 = vpop.permute.xlu0 %7572
      %7574 = vrot.lane.b32.xlu0 %v7511, 112
      %v7575 = vpop.permute.xlu0 %7574
      %7576 = vrot.lane.b32.xlu0 %v7512, 112
      %v7577 = vpop.permute.xlu0 %7576
      %7578 = vrot.lane.b32.xlu0 %v7513, 112
      %v7579 = vpop.permute.xlu0 %7578
      %7580 = vrot.lane.b32.xlu0 %v7514, 112
      %v7581 = vpop.permute.xlu0 %7580
      %7582 = vrot.lane.b32.xlu0 %v7515, 112
      %v7583 = vpop.permute.xlu0 %7582
      %7584 = vrot.lane.b32.xlu0 %v7516, 112
      %v7585 = vpop.permute.xlu0 %7584
      %7586 = vrot.lane.b32.xlu0 %v7517, 112
      %v7587 = vpop.permute.xlu0 %7586
      %7588 = vrot.lane.b32.xlu0 %v7518, 112
      %v7589 = vpop.permute.xlu0 %7588
      %7590 = vrot.lane.b32.xlu0 %v7519, 112
      %v7591 = vpop.permute.xlu0 %7590
      %v7592 = vsel %vm520, %v7545, %v7547
      %v7593 = vsel %vm520, %v7547, %v7549
      %v7594 = vsel %vm520, %v7551, %v7553
      %v7595 = vsel %vm520, %v7553, %v7555
      %v7596 = vsel %vm520, %v7557, %v7559
      %v7597 = vsel %vm520, %v7559, %v7561
      %v7598 = vsel %vm520, %v7563, %v7565
      %v7599 = vsel %vm520, %v7565, %v7567
      %v7600 = vsel %vm520, %v7569, %v7571
      %v7601 = vsel %vm520, %v7571, %v7573
      %v7602 = vsel %vm520, %v7575, %v7577
      %v7603 = vsel %vm520, %v7577, %v7579
      %v7604 = vsel %vm520, %v7581, %v7583
      %v7605 = vsel %vm520, %v7583, %v7585
      %v7606 = vsel %vm520, %v7587, %v7589
      %v7607 = vsel %vm520, %v7589, %v7591
      %v7624 = vsel %vm455, %v7592, 0.0
      %v7625 = vsel %vm456, %v7593, 0.0
      %v7626 = vsel %vm455, %v7594, 0.0
      %v7627 = vsel %vm456, %v7595, 0.0
      %v7628 = vsel %vm455, %v7596, 0.0
      %v7629 = vsel %vm456, %v7597, 0.0
      %v7630 = vsel %vm455, %v7598, 0.0
      %v7631 = vsel %vm456, %v7599, 0.0
      %v7632 = vsel %vm455, %v7600, 0.0
      %v7633 = vsel %vm456, %v7601, 0.0
      %v7634 = vsel %vm455, %v7602, 0.0
      %v7635 = vsel %vm456, %v7603, 0.0
      %v7636 = vsel %vm455, %v7604, 0.0
      %v7637 = vsel %vm456, %v7605, 0.0
      %v7638 = vsel %vm455, %v7606, 0.0
      %v7639 = vsel %vm456, %v7607, 0.0
      %7640 = vst [vmem:[#allocation3 + $0x180] sm:$0xff] %v7624
      %7641 = vst [vmem:[#allocation3 + $0x188] sm:$0xff] %v7625
      %7642 = vst [vmem:[#allocation3 + $0x190] sm:$0xff] %v7626
      %7643 = vst [vmem:[#allocation3 + $0x198] sm:$0xff] %v7627
      %7644 = vst [vmem:[#allocation3 + $0x1a0] sm:$0xff] %v7628
      %7645 = vst [vmem:[#allocation3 + $0x1a8] sm:$0xff] %v7629
      %7646 = vst [vmem:[#allocation3 + $0x1b0] sm:$0xff] %v7630
      %7647 = vst [vmem:[#allocation3 + $0x1b8] sm:$0xff] %v7631
      %7648 = vst [vmem:[#allocation3 + $0x1c0] sm:$0xff] %v7632
      %7649 = vst [vmem:[#allocation3 + $0x1c8] sm:$0xff] %v7633
      %7650 = vst [vmem:[#allocation3 + $0x1d0] sm:$0xff] %v7634
      %7651 = vst [vmem:[#allocation3 + $0x1d8] sm:$0xff] %v7635
      %7652 = vst [vmem:[#allocation3 + $0x1e0] sm:$0xff] %v7636
      %7653 = vst [vmem:[#allocation3 + $0x1e8] sm:$0xff] %v7637
      %7654 = vst [vmem:[#allocation3 + $0x1f0] sm:$0xff] %v7638
      %7655 = vst [vmem:[#allocation3 + $0x1f8] sm:$0xff] %v7639
      %v7656 = vld [vmem:[#allocation2] sm:$0xff]
      %v7657 = vld [vmem:[#allocation2 + $0x8] sm:$0xff]
      %v7658 = vld [vmem:[#allocation2 + $0x10] sm:$0xff]
      %v7659 = vld [vmem:[#allocation2 + $0x18] sm:$0xff]
      %v7660 = vld [vmem:[#allocation2 + $0x20] sm:$0xff]
      %v7661 = vld [vmem:[#allocation2 + $0x28] sm:$0xff]
      %v7662 = vld [vmem:[#allocation2 + $0x30] sm:$0xff]
      %v7663 = vld [vmem:[#allocation2 + $0x38] sm:$0xff]
      %v7664 = vld [vmem:[#allocation2 + $0x40] sm:$0xff]
      %v7665 = vld [vmem:[#allocation2 + $0x48] sm:$0xff]
      %v7666 = vld [vmem:[#allocation2 + $0x50] sm:$0xff]
      %v7667 = vld [vmem:[#allocation2 + $0x58] sm:$0xff]
      %v7668 = vld [vmem:[#allocation2 + $0x60] sm:$0xff]
      %v7669 = vld [vmem:[#allocation2 + $0x68] sm:$0xff]
      %v7670 = vld [vmem:[#allocation2 + $0x70] sm:$0xff]
      %v7671 = vld [vmem:[#allocation2 + $0x78] sm:$0xff]
      %v7672 = vld [vmem:[#allocation2 + $0x80] sm:$0xff]
      %v7673 = vld [vmem:[#allocation2 + $0x88] sm:$0xff]
      %v7674 = vld [vmem:[#allocation2 + $0x90] sm:$0xff]
      %v7675 = vld [vmem:[#allocation2 + $0x98] sm:$0xff]
      %v7676 = vld [vmem:[#allocation2 + $0xa0] sm:$0xff]
      %v7677 = vld [vmem:[#allocation2 + $0xa8] sm:$0xff]
      %v7678 = vld [vmem:[#allocation2 + $0xb0] sm:$0xff]
      %v7679 = vld [vmem:[#allocation2 + $0xb8] sm:$0xff]
      %7704 = vrot.lane.b32.xlu0 %v7656, 111
      %v7705 = vpop.permute.xlu0 %7704
      %7706 = vrot.lane.b32.xlu0 %v7657, 111
      %v7707 = vpop.permute.xlu0 %7706
      %7708 = vrot.lane.b32.xlu0 %v7658, 111
      %v7709 = vpop.permute.xlu0 %7708
      %7710 = vrot.lane.b32.xlu0 %v7659, 111
      %v7711 = vpop.permute.xlu0 %7710
      %7712 = vrot.lane.b32.xlu0 %v7660, 111
      %v7713 = vpop.permute.xlu0 %7712
      %7714 = vrot.lane.b32.xlu0 %v7661, 111
      %v7715 = vpop.permute.xlu0 %7714
      %7716 = vrot.lane.b32.xlu0 %v7662, 111
      %v7717 = vpop.permute.xlu0 %7716
      %7718 = vrot.lane.b32.xlu0 %v7663, 111
      %v7719 = vpop.permute.xlu0 %7718
      %7720 = vrot.lane.b32.xlu0 %v7664, 111
      %v7721 = vpop.permute.xlu0 %7720
      %7722 = vrot.lane.b32.xlu0 %v7665, 111
      %v7723 = vpop.permute.xlu0 %7722
      %7724 = vrot.lane.b32.xlu0 %v7666, 111
      %v7725 = vpop.permute.xlu0 %7724
      %7726 = vrot.lane.b32.xlu0 %v7667, 111
      %v7727 = vpop.permute.xlu0 %7726
      %7728 = vrot.lane.b32.xlu0 %v7668, 111
      %v7729 = vpop.permute.xlu0 %7728
      %7730 = vrot.lane.b32.xlu0 %v7669, 111
      %v7731 = vpop.permute.xlu0 %7730
      %7732 = vrot.lane.b32.xlu0 %v7670, 111
      %v7733 = vpop.permute.xlu0 %7732
      %7734 = vrot.lane.b32.xlu0 %v7671, 111
      %v7735 = vpop.permute.xlu0 %7734
      %7736 = vrot.lane.b32.xlu0 %v7672, 111
      %v7737 = vpop.permute.xlu0 %7736
      %7738 = vrot.lane.b32.xlu0 %v7673, 111
      %v7739 = vpop.permute.xlu0 %7738
      %7740 = vrot.lane.b32.xlu0 %v7674, 111
      %v7741 = vpop.permute.xlu0 %7740
      %7742 = vrot.lane.b32.xlu0 %v7675, 111
      %v7743 = vpop.permute.xlu0 %7742
      %7744 = vrot.lane.b32.xlu0 %v7676, 111
      %v7745 = vpop.permute.xlu0 %7744
      %7746 = vrot.lane.b32.xlu0 %v7677, 111
      %v7747 = vpop.permute.xlu0 %7746
      %7748 = vrot.lane.b32.xlu0 %v7678, 111
      %v7749 = vpop.permute.xlu0 %7748
      %7750 = vrot.lane.b32.xlu0 %v7679, 111
      %v7751 = vpop.permute.xlu0 %7750
      %v7752 = vsel %vm547, %v7705, %v7707
      %v7753 = vsel %vm547, %v7707, %v7709
      %v7754 = vsel %vm547, %v7711, %v7713
      %v7755 = vsel %vm547, %v7713, %v7715
      %v7756 = vsel %vm547, %v7717, %v7719
      %v7757 = vsel %vm547, %v7719, %v7721
      %v7758 = vsel %vm547, %v7723, %v7725
      %v7759 = vsel %vm547, %v7725, %v7727
      %v7760 = vsel %vm547, %v7729, %v7731
      %v7761 = vsel %vm547, %v7731, %v7733
      %v7762 = vsel %vm547, %v7735, %v7737
      %v7763 = vsel %vm547, %v7737, %v7739
      %v7764 = vsel %vm547, %v7741, %v7743
      %v7765 = vsel %vm547, %v7743, %v7745
      %v7766 = vsel %vm547, %v7747, %v7749
      %v7767 = vsel %vm547, %v7749, %v7751
      %7784 = vst [vmem:[#allocation3 + $0x200] sm:$0xff] %v7752
      %7785 = vst [vmem:[#allocation3 + $0x208] sm:$0xff] %v7753
      %7786 = vst [vmem:[#allocation3 + $0x210] sm:$0xff] %v7754
      %7787 = vst [vmem:[#allocation3 + $0x218] sm:$0xff] %v7755
      %7788 = vst [vmem:[#allocation3 + $0x220] sm:$0xff] %v7756
      %7789 = vst [vmem:[#allocation3 + $0x228] sm:$0xff] %v7757
      %7790 = vst [vmem:[#allocation3 + $0x230] sm:$0xff] %v7758
      %7791 = vst [vmem:[#allocation3 + $0x238] sm:$0xff] %v7759
      %7792 = vst [vmem:[#allocation3 + $0x240] sm:$0xff] %v7760
      %7793 = vst [vmem:[#allocation3 + $0x248] sm:$0xff] %v7761
      %7794 = vst [vmem:[#allocation3 + $0x250] sm:$0xff] %v7762
      %7795 = vst [vmem:[#allocation3 + $0x258] sm:$0xff] %v7763
      %7796 = vst [vmem:[#allocation3 + $0x260] sm:$0xff] %v7764
      %7797 = vst [vmem:[#allocation3 + $0x268] sm:$0xff] %v7765
      %7798 = vst [vmem:[#allocation3 + $0x270] sm:$0xff] %v7766
      %7799 = vst [vmem:[#allocation3 + $0x278] sm:$0xff] %v7767
      %v7800 = vld [vmem:[#allocation2] sm:$0xff]
      %v7801 = vld [vmem:[#allocation2 + $0x8] sm:$0xff]
      %v7802 = vld [vmem:[#allocation2 + $0x10] sm:$0xff]
      %v7803 = vld [vmem:[#allocation2 + $0x18] sm:$0xff]
      %v7804 = vld [vmem:[#allocation2 + $0x20] sm:$0xff]
      %v7805 = vld [vmem:[#allocation2 + $0x28] sm:$0xff]
      %v7806 = vld [vmem:[#allocation2 + $0x30] sm:$0xff]
      %v7807 = vld [vmem:[#allocation2 + $0x38] sm:$0xff]
      %v7808 = vld [vmem:[#allocation2 + $0x40] sm:$0xff]
      %v7809 = vld [vmem:[#allocation2 + $0x48] sm:$0xff]
      %v7810 = vld [vmem:[#allocation2 + $0x50] sm:$0xff]
      %v7811 = vld [vmem:[#allocation2 + $0x58] sm:$0xff]
      %v7812 = vld [vmem:[#allocation2 + $0x60] sm:$0xff]
      %v7813 = vld [vmem:[#allocation2 + $0x68] sm:$0xff]
      %v7814 = vld [vmem:[#allocation2 + $0x70] sm:$0xff]
      %v7815 = vld [vmem:[#allocation2 + $0x78] sm:$0xff]
      %v7816 = vld [vmem:[#allocation2 + $0x80] sm:$0xff]
      %v7817 = vld [vmem:[#allocation2 + $0x88] sm:$0xff]
      %v7818 = vld [vmem:[#allocation2 + $0x90] sm:$0xff]
      %v7819 = vld [vmem:[#allocation2 + $0x98] sm:$0xff]
      %v7820 = vld [vmem:[#allocation2 + $0xa0] sm:$0xff]
      %v7821 = vld [vmem:[#allocation2 + $0xa8] sm:$0xff]
      %v7822 = vld [vmem:[#allocation2 + $0xb0] sm:$0xff]
      %v7823 = vld [vmem:[#allocation2 + $0xb8] sm:$0xff]
      %7848 = vrot.lane.b32.xlu0 %v7800, 110
      %v7849 = vpop.permute.xlu0 %7848
      %7850 = vrot.lane.b32.xlu0 %v7801, 110
      %v7851 = vpop.permute.xlu0 %7850
      %7852 = vrot.lane.b32.xlu0 %v7802, 110
      %v7853 = vpop.permute.xlu0 %7852
      %7854 = vrot.lane.b32.xlu0 %v7803, 110
      %v7855 = vpop.permute.xlu0 %7854
      %7856 = vrot.lane.b32.xlu0 %v7804, 110
      %v7857 = vpop.permute.xlu0 %7856
      %7858 = vrot.lane.b32.xlu0 %v7805, 110
      %v7859 = vpop.permute.xlu0 %7858
      %7860 = vrot.lane.b32.xlu0 %v7806, 110
      %v7861 = vpop.permute.xlu0 %7860
      %7862 = vrot.lane.b32.xlu0 %v7807, 110
      %v7863 = vpop.permute.xlu0 %7862
      %7864 = vrot.lane.b32.xlu0 %v7808, 110
      %v7865 = vpop.permute.xlu0 %7864
      %7866 = vrot.lane.b32.xlu0 %v7809, 110
      %v7867 = vpop.permute.xlu0 %7866
      %7868 = vrot.lane.b32.xlu0 %v7810, 110
      %v7869 = vpop.permute.xlu0 %7868
      %7870 = vrot.lane.b32.xlu0 %v7811, 110
      %v7871 = vpop.permute.xlu0 %7870
      %7872 = vrot.lane.b32.xlu0 %v7812, 110
      %v7873 = vpop.permute.xlu0 %7872
      %7874 = vrot.lane.b32.xlu0 %v7813, 110
      %v7875 = vpop.permute.xlu0 %7874
      %7876 = vrot.lane.b32.xlu0 %v7814, 110
      %v7877 = vpop.permute.xlu0 %7876
      %7878 = vrot.lane.b32.xlu0 %v7815, 110
      %v7879 = vpop.permute.xlu0 %7878
      %7880 = vrot.lane.b32.xlu0 %v7816, 110
      %v7881 = vpop.permute.xlu0 %7880
      %7882 = vrot.lane.b32.xlu0 %v7817, 110
      %v7883 = vpop.permute.xlu0 %7882
      %7884 = vrot.lane.b32.xlu0 %v7818, 110
      %v7885 = vpop.permute.xlu0 %7884
      %7886 = vrot.lane.b32.xlu0 %v7819, 110
      %v7887 = vpop.permute.xlu0 %7886
      %7888 = vrot.lane.b32.xlu0 %v7820, 110
      %v7889 = vpop.permute.xlu0 %7888
      %7890 = vrot.lane.b32.xlu0 %v7821, 110
      %v7891 = vpop.permute.xlu0 %7890
      %7892 = vrot.lane.b32.xlu0 %v7822, 110
      %v7893 = vpop.permute.xlu0 %7892
      %7894 = vrot.lane.b32.xlu0 %v7823, 110
      %v7895 = vpop.permute.xlu0 %7894
      %v7896 = vsel %vm566, %v7849, %v7851
      %v7897 = vsel %vm566, %v7851, %v7853
      %v7898 = vsel %vm566, %v7855, %v7857
      %v7899 = vsel %vm566, %v7857, %v7859
      %v7900 = vsel %vm566, %v7861, %v7863
      %v7901 = vsel %vm566, %v7863, %v7865
      %v7902 = vsel %vm566, %v7867, %v7869
      %v7903 = vsel %vm566, %v7869, %v7871
      %v7904 = vsel %vm566, %v7873, %v7875
      %v7905 = vsel %vm566, %v7875, %v7877
      %v7906 = vsel %vm566, %v7879, %v7881
      %v7907 = vsel %vm566, %v7881, %v7883
      %v7908 = vsel %vm566, %v7885, %v7887
      %v7909 = vsel %vm566, %v7887, %v7889
      %v7910 = vsel %vm566, %v7891, %v7893
      %v7911 = vsel %vm566, %v7893, %v7895
      %v7928 = vsel %vm488, %v7896, 0.0
      %v7929 = vsel %vm489, %v7897, 0.0
      %v7930 = vsel %vm488, %v7898, 0.0
      %v7931 = vsel %vm489, %v7899, 0.0
      %v7932 = vsel %vm488, %v7900, 0.0
      %v7933 = vsel %vm489, %v7901, 0.0
      %v7934 = vsel %vm488, %v7902, 0.0
      %v7935 = vsel %vm489, %v7903, 0.0
      %v7936 = vsel %vm488, %v7904, 0.0
      %v7937 = vsel %vm489, %v7905, 0.0
      %v7938 = vsel %vm488, %v7906, 0.0
      %v7939 = vsel %vm489, %v7907, 0.0
      %v7940 = vsel %vm488, %v7908, 0.0
      %v7941 = vsel %vm489, %v7909, 0.0
      %v7942 = vsel %vm488, %v7910, 0.0
      %v7943 = vsel %vm489, %v7911, 0.0
      %7944 = vst [vmem:[#allocation3 + $0x280] sm:$0xff] %v7928
      %7945 = vst [vmem:[#allocation3 + $0x288] sm:$0xff] %v7929
      %7946 = vst [vmem:[#allocation3 + $0x290] sm:$0xff] %v7930
      %7947 = vst [vmem:[#allocation3 + $0x298] sm:$0xff] %v7931
      %7948 = vst [vmem:[#allocation3 + $0x2a0] sm:$0xff] %v7932
      %7949 = vst [vmem:[#allocation3 + $0x2a8] sm:$0xff] %v7933
      %7950 = vst [vmem:[#allocation3 + $0x2b0] sm:$0xff] %v7934
      %7951 = vst [vmem:[#allocation3 + $0x2b8] sm:$0xff] %v7935
      %7952 = vst [vmem:[#allocation3 + $0x2c0] sm:$0xff] %v7936
      %7953 = vst [vmem:[#allocation3 + $0x2c8] sm:$0xff] %v7937
      %7954 = vst [vmem:[#allocation3 + $0x2d0] sm:$0xff] %v7938
      %7955 = vst [vmem:[#allocation3 + $0x2d8] sm:$0xff] %v7939
      %7956 = vst [vmem:[#allocation3 + $0x2e0] sm:$0xff] %v7940
      %7957 = vst [vmem:[#allocation3 + $0x2e8] sm:$0xff] %v7941
      %7958 = vst [vmem:[#allocation3 + $0x2f0] sm:$0xff] %v7942
      %7959 = vst [vmem:[#allocation3 + $0x2f8] sm:$0xff] %v7943
      %v7960 = vld [vmem:[#allocation2] sm:$0xff]
      %v7961 = vld [vmem:[#allocation2 + $0x8] sm:$0xff]
      %v7962 = vld [vmem:[#allocation2 + $0x10] sm:$0xff]
      %v7963 = vld [vmem:[#allocation2 + $0x18] sm:$0xff]
      %v7964 = vld [vmem:[#allocation2 + $0x20] sm:$0xff]
      %v7965 = vld [vmem:[#allocation2 + $0x28] sm:$0xff]
      %v7966 = vld [vmem:[#allocation2 + $0x30] sm:$0xff]
      %v7967 = vld [vmem:[#allocation2 + $0x38] sm:$0xff]
      %v7968 = vld [vmem:[#allocation2 + $0x40] sm:$0xff]
      %v7969 = vld [vmem:[#allocation2 + $0x48] sm:$0xff]
      %v7970 = vld [vmem:[#allocation2 + $0x50] sm:$0xff]
      %v7971 = vld [vmem:[#allocation2 + $0x58] sm:$0xff]
      %v7972 = vld [vmem:[#allocation2 + $0x60] sm:$0xff]
      %v7973 = vld [vmem:[#allocation2 + $0x68] sm:$0xff]
      %v7974 = vld [vmem:[#allocation2 + $0x70] sm:$0xff]
      %v7975 = vld [vmem:[#allocation2 + $0x78] sm:$0xff]
      %v7976 = vld [vmem:[#allocation2 + $0x80] sm:$0xff]
      %v7977 = vld [vmem:[#allocation2 + $0x88] sm:$0xff]
      %v7978 = vld [vmem:[#allocation2 + $0x90] sm:$0xff]
      %v7979 = vld [vmem:[#allocation2 + $0x98] sm:$0xff]
      %v7980 = vld [vmem:[#allocation2 + $0xa0] sm:$0xff]
      %v7981 = vld [vmem:[#allocation2 + $0xa8] sm:$0xff]
      %v7982 = vld [vmem:[#allocation2 + $0xb0] sm:$0xff]
      %v7983 = vld [vmem:[#allocation2 + $0xb8] sm:$0xff]
      %8008 = vrot.lane.b32.xlu0 %v7960, 96
      %v8009 = vpop.permute.xlu0 %8008
      %8010 = vrot.lane.b32.xlu0 %v7961, 96
      %v8011 = vpop.permute.xlu0 %8010
      %8012 = vrot.lane.b32.xlu0 %v7962, 96
      %v8013 = vpop.permute.xlu0 %8012
      %8014 = vrot.lane.b32.xlu0 %v7963, 96
      %v8015 = vpop.permute.xlu0 %8014
      %8016 = vrot.lane.b32.xlu0 %v7964, 96
      %v8017 = vpop.permute.xlu0 %8016
      %8018 = vrot.lane.b32.xlu0 %v7965, 96
      %v8019 = vpop.permute.xlu0 %8018
      %8020 = vrot.lane.b32.xlu0 %v7966, 96
      %v8021 = vpop.permute.xlu0 %8020
      %8022 = vrot.lane.b32.xlu0 %v7967, 96
      %v8023 = vpop.permute.xlu0 %8022
      %8024 = vrot.lane.b32.xlu0 %v7968, 96
      %v8025 = vpop.permute.xlu0 %8024
      %8026 = vrot.lane.b32.xlu0 %v7969, 96
      %v8027 = vpop.permute.xlu0 %8026
      %8028 = vrot.lane.b32.xlu0 %v7970, 96
      %v8029 = vpop.permute.xlu0 %8028
      %8030 = vrot.lane.b32.xlu0 %v7971, 96
      %v8031 = vpop.permute.xlu0 %8030
      %8032 = vrot.lane.b32.xlu0 %v7972, 96
      %v8033 = vpop.permute.xlu0 %8032
      %8034 = vrot.lane.b32.xlu0 %v7973, 96
      %v8035 = vpop.permute.xlu0 %8034
      %8036 = vrot.lane.b32.xlu0 %v7974, 96
      %v8037 = vpop.permute.xlu0 %8036
      %8038 = vrot.lane.b32.xlu0 %v7975, 96
      %v8039 = vpop.permute.xlu0 %8038
      %8040 = vrot.lane.b32.xlu0 %v7976, 96
      %v8041 = vpop.permute.xlu0 %8040
      %8042 = vrot.lane.b32.xlu0 %v7977, 96
      %v8043 = vpop.permute.xlu0 %8042
      %8044 = vrot.lane.b32.xlu0 %v7978, 96
      %v8045 = vpop.permute.xlu0 %8044
      %8046 = vrot.lane.b32.xlu0 %v7979, 96
      %v8047 = vpop.permute.xlu0 %8046
      %8048 = vrot.lane.b32.xlu0 %v7980, 96
      %v8049 = vpop.permute.xlu0 %8048
      %8050 = vrot.lane.b32.xlu0 %v7981, 96
      %v8051 = vpop.permute.xlu0 %8050
      %8052 = vrot.lane.b32.xlu0 %v7982, 96
      %v8053 = vpop.permute.xlu0 %8052
      %8054 = vrot.lane.b32.xlu0 %v7983, 96
      %v8055 = vpop.permute.xlu0 %8054
      %v8056 = vsel %vm593, %v8009, %v8011
      %v8057 = vsel %vm593, %v8011, %v8013
      %v8058 = vsel %vm593, %v8015, %v8017
      %v8059 = vsel %vm593, %v8017, %v8019
      %v8060 = vsel %vm593, %v8021, %v8023
      %v8061 = vsel %vm593, %v8023, %v8025
      %v8062 = vsel %vm593, %v8027, %v8029
      %v8063 = vsel %vm593, %v8029, %v8031
      %v8064 = vsel %vm593, %v8033, %v8035
      %v8065 = vsel %vm593, %v8035, %v8037
      %v8066 = vsel %vm593, %v8039, %v8041
      %v8067 = vsel %vm593, %v8041, %v8043
      %v8068 = vsel %vm593, %v8045, %v8047
      %v8069 = vsel %vm593, %v8047, %v8049
      %v8070 = vsel %vm593, %v8051, %v8053
      %v8071 = vsel %vm593, %v8053, %v8055
      %v8088 = vsel %vm455, %v8056, 0.0
      %v8089 = vsel %vm456, %v8057, 0.0
      %v8090 = vsel %vm455, %v8058, 0.0
      %v8091 = vsel %vm456, %v8059, 0.0
      %v8092 = vsel %vm455, %v8060, 0.0
      %v8093 = vsel %vm456, %v8061, 0.0
      %v8094 = vsel %vm455, %v8062, 0.0
      %v8095 = vsel %vm456, %v8063, 0.0
      %v8096 = vsel %vm455, %v8064, 0.0
      %v8097 = vsel %vm456, %v8065, 0.0
      %v8098 = vsel %vm455, %v8066, 0.0
      %v8099 = vsel %vm456, %v8067, 0.0
      %v8100 = vsel %vm455, %v8068, 0.0
      %v8101 = vsel %vm456, %v8069, 0.0
      %v8102 = vsel %vm455, %v8070, 0.0
      %v8103 = vsel %vm456, %v8071, 0.0
      %8104 = vst [vmem:[#allocation3 + $0x300] sm:$0xff] %v8088
      %8105 = vst [vmem:[#allocation3 + $0x308] sm:$0xff] %v8089
      %8106 = vst [vmem:[#allocation3 + $0x310] sm:$0xff] %v8090
      %8107 = vst [vmem:[#allocation3 + $0x318] sm:$0xff] %v8091
      %8108 = vst [vmem:[#allocation3 + $0x320] sm:$0xff] %v8092
      %8109 = vst [vmem:[#allocation3 + $0x328] sm:$0xff] %v8093
      %8110 = vst [vmem:[#allocation3 + $0x330] sm:$0xff] %v8094
      %8111 = vst [vmem:[#allocation3 + $0x338] sm:$0xff] %v8095
      %8112 = vst [vmem:[#allocation3 + $0x340] sm:$0xff] %v8096
      %8113 = vst [vmem:[#allocation3 + $0x348] sm:$0xff] %v8097
      %8114 = vst [vmem:[#allocation3 + $0x350] sm:$0xff] %v8098
      %8115 = vst [vmem:[#allocation3 + $0x358] sm:$0xff] %v8099
      %8116 = vst [vmem:[#allocation3 + $0x360] sm:$0xff] %v8100
      %8117 = vst [vmem:[#allocation3 + $0x368] sm:$0xff] %v8101
      %8118 = vst [vmem:[#allocation3 + $0x370] sm:$0xff] %v8102
      %8119 = vst [vmem:[#allocation3 + $0x378] sm:$0xff] %v8103
      %v8120 = vld [vmem:[#allocation2] sm:$0xff]
      %v8121 = vld [vmem:[#allocation2 + $0x8] sm:$0xff]
      %v8122 = vld [vmem:[#allocation2 + $0x10] sm:$0xff]
      %v8123 = vld [vmem:[#allocation2 + $0x18] sm:$0xff]
      %v8124 = vld [vmem:[#allocation2 + $0x20] sm:$0xff]
      %v8125 = vld [vmem:[#allocation2 + $0x28] sm:$0xff]
      %v8126 = vld [vmem:[#allocation2 + $0x30] sm:$0xff]
      %v8127 = vld [vmem:[#allocation2 + $0x38] sm:$0xff]
      %v8128 = vld [vmem:[#allocation2 + $0x40] sm:$0xff]
      %v8129 = vld [vmem:[#allocation2 + $0x48] sm:$0xff]
      %v8130 = vld [vmem:[#allocation2 + $0x50] sm:$0xff]
      %v8131 = vld [vmem:[#allocation2 + $0x58] sm:$0xff]
      %v8132 = vld [vmem:[#allocation2 + $0x60] sm:$0xff]
      %v8133 = vld [vmem:[#allocation2 + $0x68] sm:$0xff]
      %v8134 = vld [vmem:[#allocation2 + $0x70] sm:$0xff]
      %v8135 = vld [vmem:[#allocation2 + $0x78] sm:$0xff]
      %v8136 = vld [vmem:[#allocation2 + $0x80] sm:$0xff]
      %v8137 = vld [vmem:[#allocation2 + $0x88] sm:$0xff]
      %v8138 = vld [vmem:[#allocation2 + $0x90] sm:$0xff]
      %v8139 = vld [vmem:[#allocation2 + $0x98] sm:$0xff]
      %v8140 = vld [vmem:[#allocation2 + $0xa0] sm:$0xff]
      %v8141 = vld [vmem:[#allocation2 + $0xa8] sm:$0xff]
      %v8142 = vld [vmem:[#allocation2 + $0xb0] sm:$0xff]
      %v8143 = vld [vmem:[#allocation2 + $0xb8] sm:$0xff]
      %8168 = vrot.lane.b32.xlu0 %v8120, 95
      %v8169 = vpop.permute.xlu0 %8168
      %8170 = vrot.lane.b32.xlu0 %v8121, 95
      %v8171 = vpop.permute.xlu0 %8170
      %8172 = vrot.lane.b32.xlu0 %v8122, 95
      %v8173 = vpop.permute.xlu0 %8172
      %8174 = vrot.lane.b32.xlu0 %v8123, 95
      %v8175 = vpop.permute.xlu0 %8174
      %8176 = vrot.lane.b32.xlu0 %v8124, 95
      %v8177 = vpop.permute.xlu0 %8176
      %8178 = vrot.lane.b32.xlu0 %v8125, 95
      %v8179 = vpop.permute.xlu0 %8178
      %8180 = vrot.lane.b32.xlu0 %v8126, 95
      %v8181 = vpop.permute.xlu0 %8180
      %8182 = vrot.lane.b32.xlu0 %v8127, 95
      %v8183 = vpop.permute.xlu0 %8182
      %8184 = vrot.lane.b32.xlu0 %v8128, 95
      %v8185 = vpop.permute.xlu0 %8184
      %8186 = vrot.lane.b32.xlu0 %v8129, 95
      %v8187 = vpop.permute.xlu0 %8186
      %8188 = vrot.lane.b32.xlu0 %v8130, 95
      %v8189 = vpop.permute.xlu0 %8188
      %8190 = vrot.lane.b32.xlu0 %v8131, 95
      %v8191 = vpop.permute.xlu0 %8190
      %8192 = vrot.lane.b32.xlu0 %v8132, 95
      %v8193 = vpop.permute.xlu0 %8192
      %8194 = vrot.lane.b32.xlu0 %v8133, 95
      %v8195 = vpop.permute.xlu0 %8194
      %8196 = vrot.lane.b32.xlu0 %v8134, 95
      %v8197 = vpop.permute.xlu0 %8196
      %8198 = vrot.lane.b32.xlu0 %v8135, 95
      %v8199 = vpop.permute.xlu0 %8198
      %8200 = vrot.lane.b32.xlu0 %v8136, 95
      %v8201 = vpop.permute.xlu0 %8200
      %8202 = vrot.lane.b32.xlu0 %v8137, 95
      %v8203 = vpop.permute.xlu0 %8202
      %8204 = vrot.lane.b32.xlu0 %v8138, 95
      %v8205 = vpop.permute.xlu0 %8204
      %8206 = vrot.lane.b32.xlu0 %v8139, 95
      %v8207 = vpop.permute.xlu0 %8206
      %8208 = vrot.lane.b32.xlu0 %v8140, 95
      %v8209 = vpop.permute.xlu0 %8208
      %8210 = vrot.lane.b32.xlu0 %v8141, 95
      %v8211 = vpop.permute.xlu0 %8210
      %8212 = vrot.lane.b32.xlu0 %v8142, 95
      %v8213 = vpop.permute.xlu0 %8212
      %8214 = vrot.lane.b32.xlu0 %v8143, 95
      %v8215 = vpop.permute.xlu0 %8214
      %v8216 = vsel %vm617, %v8169, %v8171
      %v8217 = vsel %vm617, %v8171, %v8173
      %v8218 = vsel %vm617, %v8175, %v8177
      %v8219 = vsel %vm617, %v8177, %v8179
      %v8220 = vsel %vm617, %v8181, %v8183
      %v8221 = vsel %vm617, %v8183, %v8185
      %v8222 = vsel %vm617, %v8187, %v8189
      %v8223 = vsel %vm617, %v8189, %v8191
      %v8224 = vsel %vm617, %v8193, %v8195
      %v8225 = vsel %vm617, %v8195, %v8197
      %v8226 = vsel %vm617, %v8199, %v8201
      %v8227 = vsel %vm617, %v8201, %v8203
      %v8228 = vsel %vm617, %v8205, %v8207
      %v8229 = vsel %vm617, %v8207, %v8209
      %v8230 = vsel %vm617, %v8211, %v8213
      %v8231 = vsel %vm617, %v8213, %v8215
      %8248 = vst [vmem:[#allocation3 + $0x380] sm:$0xff] %v8216
      %8249 = vst [vmem:[#allocation3 + $0x388] sm:$0xff] %v8217
      %8250 = vst [vmem:[#allocation3 + $0x390] sm:$0xff] %v8218
      %8251 = vst [vmem:[#allocation3 + $0x398] sm:$0xff] %v8219
      %8252 = vst [vmem:[#allocation3 + $0x3a0] sm:$0xff] %v8220
      %8253 = vst [vmem:[#allocation3 + $0x3a8] sm:$0xff] %v8221
      %8254 = vst [vmem:[#allocation3 + $0x3b0] sm:$0xff] %v8222
      %8255 = vst [vmem:[#allocation3 + $0x3b8] sm:$0xff] %v8223
      %8256 = vst [vmem:[#allocation3 + $0x3c0] sm:$0xff] %v8224
      %8257 = vst [vmem:[#allocation3 + $0x3c8] sm:$0xff] %v8225
      %8258 = vst [vmem:[#allocation3 + $0x3d0] sm:$0xff] %v8226
      %8259 = vst [vmem:[#allocation3 + $0x3d8] sm:$0xff] %v8227
      %8260 = vst [vmem:[#allocation3 + $0x3e0] sm:$0xff] %v8228
      %8261 = vst [vmem:[#allocation3 + $0x3e8] sm:$0xff] %v8229
      %8262 = vst [vmem:[#allocation3 + $0x3f0] sm:$0xff] %v8230
      %8263 = vst [vmem:[#allocation3 + $0x3f8] sm:$0xff] %v8231
      %v8264 = vld [vmem:[#allocation2] sm:$0xff]
      %v8265 = vld [vmem:[#allocation2 + $0x8] sm:$0xff]
      %v8266 = vld [vmem:[#allocation2 + $0x10] sm:$0xff]
      %v8267 = vld [vmem:[#allocation2 + $0x18] sm:$0xff]
      %v8268 = vld [vmem:[#allocation2 + $0x20] sm:$0xff]
      %v8269 = vld [vmem:[#allocation2 + $0x28] sm:$0xff]
      %v8270 = vld [vmem:[#allocation2 + $0x30] sm:$0xff]
      %v8271 = vld [vmem:[#allocation2 + $0x38] sm:$0xff]
      %v8272 = vld [vmem:[#allocation2 + $0x40] sm:$0xff]
      %v8273 = vld [vmem:[#allocation2 + $0x48] sm:$0xff]
      %v8274 = vld [vmem:[#allocation2 + $0x50] sm:$0xff]
      %v8275 = vld [vmem:[#allocation2 + $0x58] sm:$0xff]
      %v8276 = vld [vmem:[#allocation2 + $0x60] sm:$0xff]
      %v8277 = vld [vmem:[#allocation2 + $0x68] sm:$0xff]
      %v8278 = vld [vmem:[#allocation2 + $0x70] sm:$0xff]
      %v8279 = vld [vmem:[#allocation2 + $0x78] sm:$0xff]
      %v8280 = vld [vmem:[#allocation2 + $0x80] sm:$0xff]
      %v8281 = vld [vmem:[#allocation2 + $0x88] sm:$0xff]
      %v8282 = vld [vmem:[#allocation2 + $0x90] sm:$0xff]
      %v8283 = vld [vmem:[#allocation2 + $0x98] sm:$0xff]
      %v8284 = vld [vmem:[#allocation2 + $0xa0] sm:$0xff]
      %v8285 = vld [vmem:[#allocation2 + $0xa8] sm:$0xff]
      %v8286 = vld [vmem:[#allocation2 + $0xb0] sm:$0xff]
      %v8287 = vld [vmem:[#allocation2 + $0xb8] sm:$0xff]
      %8312 = vrot.lane.b32.xlu0 %v8264, 94
      %v8313 = vpop.permute.xlu0 %8312
      %8314 = vrot.lane.b32.xlu0 %v8265, 94
      %v8315 = vpop.permute.xlu0 %8314
      %8316 = vrot.lane.b32.xlu0 %v8266, 94
      %v8317 = vpop.permute.xlu0 %8316
      %8318 = vrot.lane.b32.xlu0 %v8267, 94
      %v8319 = vpop.permute.xlu0 %8318
      %8320 = vrot.lane.b32.xlu0 %v8268, 94
      %v8321 = vpop.permute.xlu0 %8320
      %8322 = vrot.lane.b32.xlu0 %v8269, 94
      %v8323 = vpop.permute.xlu0 %8322
      %8324 = vrot.lane.b32.xlu0 %v8270, 94
      %v8325 = vpop.permute.xlu0 %8324
      %8326 = vrot.lane.b32.xlu0 %v8271, 94
      %v8327 = vpop.permute.xlu0 %8326
      %8328 = vrot.lane.b32.xlu0 %v8272, 94
      %v8329 = vpop.permute.xlu0 %8328
      %8330 = vrot.lane.b32.xlu0 %v8273, 94
      %v8331 = vpop.permute.xlu0 %8330
      %8332 = vrot.lane.b32.xlu0 %v8274, 94
      %v8333 = vpop.permute.xlu0 %8332
      %8334 = vrot.lane.b32.xlu0 %v8275, 94
      %v8335 = vpop.permute.xlu0 %8334
      %8336 = vrot.lane.b32.xlu0 %v8276, 94
      %v8337 = vpop.permute.xlu0 %8336
      %8338 = vrot.lane.b32.xlu0 %v8277, 94
      %v8339 = vpop.permute.xlu0 %8338
      %8340 = vrot.lane.b32.xlu0 %v8278, 94
      %v8341 = vpop.permute.xlu0 %8340
      %8342 = vrot.lane.b32.xlu0 %v8279, 94
      %v8343 = vpop.permute.xlu0 %8342
      %8344 = vrot.lane.b32.xlu0 %v8280, 94
      %v8345 = vpop.permute.xlu0 %8344
      %8346 = vrot.lane.b32.xlu0 %v8281, 94
      %v8347 = vpop.permute.xlu0 %8346
      %8348 = vrot.lane.b32.xlu0 %v8282, 94
      %v8349 = vpop.permute.xlu0 %8348
      %8350 = vrot.lane.b32.xlu0 %v8283, 94
      %v8351 = vpop.permute.xlu0 %8350
      %8352 = vrot.lane.b32.xlu0 %v8284, 94
      %v8353 = vpop.permute.xlu0 %8352
      %8354 = vrot.lane.b32.xlu0 %v8285, 94
      %v8355 = vpop.permute.xlu0 %8354
      %8356 = vrot.lane.b32.xlu0 %v8286, 94
      %v8357 = vpop.permute.xlu0 %8356
      %8358 = vrot.lane.b32.xlu0 %v8287, 94
      %v8359 = vpop.permute.xlu0 %8358
      %v8360 = vsel %vm636, %v8313, %v8315
      %v8361 = vsel %vm636, %v8315, %v8317
      %v8362 = vsel %vm636, %v8319, %v8321
      %v8363 = vsel %vm636, %v8321, %v8323
      %v8364 = vsel %vm636, %v8325, %v8327
      %v8365 = vsel %vm636, %v8327, %v8329
      %v8366 = vsel %vm636, %v8331, %v8333
      %v8367 = vsel %vm636, %v8333, %v8335
      %v8368 = vsel %vm636, %v8337, %v8339
      %v8369 = vsel %vm636, %v8339, %v8341
      %v8370 = vsel %vm636, %v8343, %v8345
      %v8371 = vsel %vm636, %v8345, %v8347
      %v8372 = vsel %vm636, %v8349, %v8351
      %v8373 = vsel %vm636, %v8351, %v8353
      %v8374 = vsel %vm636, %v8355, %v8357
      %v8375 = vsel %vm636, %v8357, %v8359
      %v8392 = vsel %vm488, %v8360, 0.0
      %v8393 = vsel %vm489, %v8361, 0.0
      %v8394 = vsel %vm488, %v8362, 0.0
      %v8395 = vsel %vm489, %v8363, 0.0
      %v8396 = vsel %vm488, %v8364, 0.0
      %v8397 = vsel %vm489, %v8365, 0.0
      %v8398 = vsel %vm488, %v8366, 0.0
      %v8399 = vsel %vm489, %v8367, 0.0
      %v8400 = vsel %vm488, %v8368, 0.0
      %v8401 = vsel %vm489, %v8369, 0.0
      %v8402 = vsel %vm488, %v8370, 0.0
      %v8403 = vsel %vm489, %v8371, 0.0
      %v8404 = vsel %vm488, %v8372, 0.0
      %v8405 = vsel %vm489, %v8373, 0.0
      %v8406 = vsel %vm488, %v8374, 0.0
      %v8407 = vsel %vm489, %v8375, 0.0
      %8408 = vst [vmem:[#allocation3 + $0x400] sm:$0xff] %v8392
      %8409 = vst [vmem:[#allocation3 + $0x408] sm:$0xff] %v8393
      %8410 = vst [vmem:[#allocation3 + $0x410] sm:$0xff] %v8394
      %8411 = vst [vmem:[#allocation3 + $0x418] sm:$0xff] %v8395
      %8412 = vst [vmem:[#allocation3 + $0x420] sm:$0xff] %v8396
      %8413 = vst [vmem:[#allocation3 + $0x428] sm:$0xff] %v8397
      %8414 = vst [vmem:[#allocation3 + $0x430] sm:$0xff] %v8398
      %8415 = vst [vmem:[#allocation3 + $0x438] sm:$0xff] %v8399
      %8416 = vst [vmem:[#allocation3 + $0x440] sm:$0xff] %v8400
      %8417 = vst [vmem:[#allocation3 + $0x448] sm:$0xff] %v8401
      %8418 = vst [vmem:[#allocation3 + $0x450] sm:$0xff] %v8402
      %8419 = vst [vmem:[#allocation3 + $0x458] sm:$0xff] %v8403
      %8420 = vst [vmem:[#allocation3 + $0x460] sm:$0xff] %v8404
      %8421 = vst [vmem:[#allocation3 + $0x468] sm:$0xff] %v8405
      %8422 = vst [vmem:[#allocation3 + $0x470] sm:$0xff] %v8406
      %8423 = vst [vmem:[#allocation3 + $0x478] sm:$0xff] %v8407
      %v8424 = vld [vmem:[#allocation3] sm:$0xff]
      %v8425 = vld [vmem:[#allocation3 + $0x8] sm:$0xff]
      %v8426 = vld [vmem:[#allocation3 + $0x10] sm:$0xff]
      %v8427 = vld [vmem:[#allocation3 + $0x18] sm:$0xff]
      %v8428 = vld [vmem:[#allocation3 + $0x20] sm:$0xff]
      %v8429 = vld [vmem:[#allocation3 + $0x28] sm:$0xff]
      %v8430 = vld [vmem:[#allocation3 + $0x30] sm:$0xff]
      %v8431 = vld [vmem:[#allocation3 + $0x38] sm:$0xff]
      %v8432 = vld [vmem:[#allocation3 + $0x40] sm:$0xff]
      %v8433 = vld [vmem:[#allocation3 + $0x48] sm:$0xff]
      %v8434 = vld [vmem:[#allocation3 + $0x50] sm:$0xff]
      %v8435 = vld [vmem:[#allocation3 + $0x58] sm:$0xff]
      %v8436 = vld [vmem:[#allocation3 + $0x60] sm:$0xff]
      %v8437 = vld [vmem:[#allocation3 + $0x68] sm:$0xff]
      %v8438 = vld [vmem:[#allocation3 + $0x70] sm:$0xff]
      %v8439 = vld [vmem:[#allocation3 + $0x78] sm:$0xff]
      %v8440 = vld [vmem:[#allocation3 + $0x80] sm:$0xff]
      %v8441 = vld [vmem:[#allocation3 + $0x88] sm:$0xff]
      %v8442 = vld [vmem:[#allocation3 + $0x90] sm:$0xff]
      %v8443 = vld [vmem:[#allocation3 + $0x98] sm:$0xff]
      %v8444 = vld [vmem:[#allocation3 + $0xa0] sm:$0xff]
      %v8445 = vld [vmem:[#allocation3 + $0xa8] sm:$0xff]
      %v8446 = vld [vmem:[#allocation3 + $0xb0] sm:$0xff]
      %v8447 = vld [vmem:[#allocation3 + $0xb8] sm:$0xff]
      %v8448 = vld [vmem:[#allocation3 + $0xc0] sm:$0xff]
      %v8449 = vld [vmem:[#allocation3 + $0xc8] sm:$0xff]
      %v8450 = vld [vmem:[#allocation3 + $0xd0] sm:$0xff]
      %v8451 = vld [vmem:[#allocation3 + $0xd8] sm:$0xff]
      %v8452 = vld [vmem:[#allocation3 + $0xe0] sm:$0xff]
      %v8453 = vld [vmem:[#allocation3 + $0xe8] sm:$0xff]
      %v8454 = vld [vmem:[#allocation3 + $0xf0] sm:$0xff]
      %v8455 = vld [vmem:[#allocation3 + $0xf8] sm:$0xff]
      %v8456 = vld [vmem:[#allocation3 + $0x100] sm:$0xff]
      %v8457 = vld [vmem:[#allocation3 + $0x108] sm:$0xff]
      %v8458 = vld [vmem:[#allocation3 + $0x110] sm:$0xff]
      %v8459 = vld [vmem:[#allocation3 + $0x118] sm:$0xff]
      %v8460 = vld [vmem:[#allocation3 + $0x120] sm:$0xff]
      %v8461 = vld [vmem:[#allocation3 + $0x128] sm:$0xff]
      %v8462 = vld [vmem:[#allocation3 + $0x130] sm:$0xff]
      %v8463 = vld [vmem:[#allocation3 + $0x138] sm:$0xff]
      %v8464 = vld [vmem:[#allocation3 + $0x140] sm:$0xff]
      %v8465 = vld [vmem:[#allocation3 + $0x148] sm:$0xff]
      %v8466 = vld [vmem:[#allocation3 + $0x150] sm:$0xff]
      %v8467 = vld [vmem:[#allocation3 + $0x158] sm:$0xff]
      %v8468 = vld [vmem:[#allocation3 + $0x160] sm:$0xff]
      %v8469 = vld [vmem:[#allocation3 + $0x168] sm:$0xff]
      %v8470 = vld [vmem:[#allocation3 + $0x170] sm:$0xff]
      %v8471 = vld [vmem:[#allocation3 + $0x178] sm:$0xff]
      %v8472 = vld [vmem:[#allocation3 + $0x180] sm:$0xff]
      %v8473 = vld [vmem:[#allocation3 + $0x188] sm:$0xff]
      %v8474 = vld [vmem:[#allocation3 + $0x190] sm:$0xff]
      %v8475 = vld [vmem:[#allocation3 + $0x198] sm:$0xff]
      %v8476 = vld [vmem:[#allocation3 + $0x1a0] sm:$0xff]
      %v8477 = vld [vmem:[#allocation3 + $0x1a8] sm:$0xff]
      %v8478 = vld [vmem:[#allocation3 + $0x1b0] sm:$0xff]
      %v8479 = vld [vmem:[#allocation3 + $0x1b8] sm:$0xff]
      %v8480 = vld [vmem:[#allocation3 + $0x1c0] sm:$0xff]
      %v8481 = vld [vmem:[#allocation3 + $0x1c8] sm:$0xff]
      %v8482 = vld [vmem:[#allocation3 + $0x1d0] sm:$0xff]
      %v8483 = vld [vmem:[#allocation3 + $0x1d8] sm:$0xff]
      %v8484 = vld [vmem:[#allocation3 + $0x1e0] sm:$0xff]
      %v8485 = vld [vmem:[#allocation3 + $0x1e8] sm:$0xff]
      %v8486 = vld [vmem:[#allocation3 + $0x1f0] sm:$0xff]
      %v8487 = vld [vmem:[#allocation3 + $0x1f8] sm:$0xff]
      %v8488 = vld [vmem:[#allocation3 + $0x200] sm:$0xff]
      %v8489 = vld [vmem:[#allocation3 + $0x208] sm:$0xff]
      %v8490 = vld [vmem:[#allocation3 + $0x210] sm:$0xff]
      %v8491 = vld [vmem:[#allocation3 + $0x218] sm:$0xff]
      %v8492 = vld [vmem:[#allocation3 + $0x220] sm:$0xff]
      %v8493 = vld [vmem:[#allocation3 + $0x228] sm:$0xff]
      %v8494 = vld [vmem:[#allocation3 + $0x230] sm:$0xff]
      %v8495 = vld [vmem:[#allocation3 + $0x238] sm:$0xff]
      %v8496 = vld [vmem:[#allocation3 + $0x240] sm:$0xff]
      %v8497 = vld [vmem:[#allocation3 + $0x248] sm:$0xff]
      %v8498 = vld [vmem:[#allocation3 + $0x250] sm:$0xff]
      %v8499 = vld [vmem:[#allocation3 + $0x258] sm:$0xff]
      %v8500 = vld [vmem:[#allocation3 + $0x260] sm:$0xff]
      %v8501 = vld [vmem:[#allocation3 + $0x268] sm:$0xff]
      %v8502 = vld [vmem:[#allocation3 + $0x270] sm:$0xff]
      %v8503 = vld [vmem:[#allocation3 + $0x278] sm:$0xff]
      %v8504 = vld [vmem:[#allocation3 + $0x280] sm:$0xff]
      %v8505 = vld [vmem:[#allocation3 + $0x288] sm:$0xff]
      %v8506 = vld [vmem:[#allocation3 + $0x290] sm:$0xff]
      %v8507 = vld [vmem:[#allocation3 + $0x298] sm:$0xff]
      %v8508 = vld [vmem:[#allocation3 + $0x2a0] sm:$0xff]
      %v8509 = vld [vmem:[#allocation3 + $0x2a8] sm:$0xff]
      %v8510 = vld [vmem:[#allocation3 + $0x2b0] sm:$0xff]
      %v8511 = vld [vmem:[#allocation3 + $0x2b8] sm:$0xff]
      %v8512 = vld [vmem:[#allocation3 + $0x2c0] sm:$0xff]
      %v8513 = vld [vmem:[#allocation3 + $0x2c8] sm:$0xff]
      %v8514 = vld [vmem:[#allocation3 + $0x2d0] sm:$0xff]
      %v8515 = vld [vmem:[#allocation3 + $0x2d8] sm:$0xff]
      %v8516 = vld [vmem:[#allocation3 + $0x2e0] sm:$0xff]
      %v8517 = vld [vmem:[#allocation3 + $0x2e8] sm:$0xff]
      %v8518 = vld [vmem:[#allocation3 + $0x2f0] sm:$0xff]
      %v8519 = vld [vmem:[#allocation3 + $0x2f8] sm:$0xff]
      %v8520 = vld [vmem:[#allocation3 + $0x300] sm:$0xff]
      %v8521 = vld [vmem:[#allocation3 + $0x308] sm:$0xff]
      %v8522 = vld [vmem:[#allocation3 + $0x310] sm:$0xff]
      %v8523 = vld [vmem:[#allocation3 + $0x318] sm:$0xff]
      %v8524 = vld [vmem:[#allocation3 + $0x320] sm:$0xff]
      %v8525 = vld [vmem:[#allocation3 + $0x328] sm:$0xff]
      %v8526 = vld [vmem:[#allocation3 + $0x330] sm:$0xff]
      %v8527 = vld [vmem:[#allocation3 + $0x338] sm:$0xff]
      %v8528 = vld [vmem:[#allocation3 + $0x340] sm:$0xff]
      %v8529 = vld [vmem:[#allocation3 + $0x348] sm:$0xff]
      %v8530 = vld [vmem:[#allocation3 + $0x350] sm:$0xff]
      %v8531 = vld [vmem:[#allocation3 + $0x358] sm:$0xff]
      %v8532 = vld [vmem:[#allocation3 + $0x360] sm:$0xff]
      %v8533 = vld [vmem:[#allocation3 + $0x368] sm:$0xff]
      %v8534 = vld [vmem:[#allocation3 + $0x370] sm:$0xff]
      %v8535 = vld [vmem:[#allocation3 + $0x378] sm:$0xff]
      %v8536 = vld [vmem:[#allocation3 + $0x380] sm:$0xff]
      %v8537 = vld [vmem:[#allocation3 + $0x388] sm:$0xff]
      %v8538 = vld [vmem:[#allocation3 + $0x390] sm:$0xff]
      %v8539 = vld [vmem:[#allocation3 + $0x398] sm:$0xff]
      %v8540 = vld [vmem:[#allocation3 + $0x3a0] sm:$0xff]
      %v8541 = vld [vmem:[#allocation3 + $0x3a8] sm:$0xff]
      %v8542 = vld [vmem:[#allocation3 + $0x3b0] sm:$0xff]
      %v8543 = vld [vmem:[#allocation3 + $0x3b8] sm:$0xff]
      %v8544 = vld [vmem:[#allocation3 + $0x3c0] sm:$0xff]
      %v8545 = vld [vmem:[#allocation3 + $0x3c8] sm:$0xff]
      %v8546 = vld [vmem:[#allocation3 + $0x3d0] sm:$0xff]
      %v8547 = vld [vmem:[#allocation3 + $0x3d8] sm:$0xff]
      %v8548 = vld [vmem:[#allocation3 + $0x3e0] sm:$0xff]
      %v8549 = vld [vmem:[#allocation3 + $0x3e8] sm:$0xff]
      %v8550 = vld [vmem:[#allocation3 + $0x3f0] sm:$0xff]
      %v8551 = vld [vmem:[#allocation3 + $0x3f8] sm:$0xff]
      %v8552 = vld [vmem:[#allocation3 + $0x400] sm:$0xff]
      %v8553 = vld [vmem:[#allocation3 + $0x408] sm:$0xff]
      %v8554 = vld [vmem:[#allocation3 + $0x410] sm:$0xff]
      %v8555 = vld [vmem:[#allocation3 + $0x418] sm:$0xff]
      %v8556 = vld [vmem:[#allocation3 + $0x420] sm:$0xff]
      %v8557 = vld [vmem:[#allocation3 + $0x428] sm:$0xff]
      %v8558 = vld [vmem:[#allocation3 + $0x430] sm:$0xff]
      %v8559 = vld [vmem:[#allocation3 + $0x438] sm:$0xff]
      %v8560 = vld [vmem:[#allocation3 + $0x440] sm:$0xff]
      %v8561 = vld [vmem:[#allocation3 + $0x448] sm:$0xff]
      %v8562 = vld [vmem:[#allocation3 + $0x450] sm:$0xff]
      %v8563 = vld [vmem:[#allocation3 + $0x458] sm:$0xff]
      %v8564 = vld [vmem:[#allocation3 + $0x460] sm:$0xff]
      %v8565 = vld [vmem:[#allocation3 + $0x468] sm:$0xff]
      %v8566 = vld [vmem:[#allocation3 + $0x470] sm:$0xff]
      %v8567 = vld [vmem:[#allocation3 + $0x478] sm:$0xff]
      %v8568 = vpack.c.bf16 %v8426, %v8424
      %v8569 = vpack.c.bf16 %v8427, %v8425
      %v8570 = vpack.c.bf16 %v8430, %v8428
      %v8571 = vpack.c.bf16 %v8431, %v8429
      %v8572 = vpack.c.bf16 %v8434, %v8432
      %v8573 = vpack.c.bf16 %v8435, %v8433
      %v8574 = vpack.c.bf16 %v8438, %v8436
      %v8575 = vpack.c.bf16 %v8439, %v8437
      %v8576 = vpack.c.bf16 %v8442, %v8440
      %v8577 = vpack.c.bf16 %v8443, %v8441
      %v8578 = vpack.c.bf16 %v8446, %v8444
      %v8579 = vpack.c.bf16 %v8447, %v8445
      %v8580 = vpack.c.bf16 %v8450, %v8448
      %v8581 = vpack.c.bf16 %v8451, %v8449
      %v8582 = vpack.c.bf16 %v8454, %v8452
      %v8583 = vpack.c.bf16 %v8455, %v8453
      %v8584 = vpack.c.bf16 %v8458, %v8456
      %v8585 = vpack.c.bf16 %v8459, %v8457
      %v8586 = vpack.c.bf16 %v8462, %v8460
      %v8587 = vpack.c.bf16 %v8463, %v8461
      %v8588 = vpack.c.bf16 %v8466, %v8464
      %v8589 = vpack.c.bf16 %v8467, %v8465
      %v8590 = vpack.c.bf16 %v8470, %v8468
      %v8591 = vpack.c.bf16 %v8471, %v8469
      %v8592 = vpack.c.bf16 %v8474, %v8472
      %v8593 = vpack.c.bf16 %v8475, %v8473
      %v8594 = vpack.c.bf16 %v8478, %v8476
      %v8595 = vpack.c.bf16 %v8479, %v8477
      %v8596 = vpack.c.bf16 %v8482, %v8480
      %v8597 = vpack.c.bf16 %v8483, %v8481
      %v8598 = vpack.c.bf16 %v8486, %v8484
      %v8599 = vpack.c.bf16 %v8487, %v8485
      %v8600 = vpack.c.bf16 %v8490, %v8488
      %v8601 = vpack.c.bf16 %v8491, %v8489
      %v8602 = vpack.c.bf16 %v8494, %v8492
      %v8603 = vpack.c.bf16 %v8495, %v8493
      %v8604 = vpack.c.bf16 %v8498, %v8496
      %v8605 = vpack.c.bf16 %v8499, %v8497
      %v8606 = vpack.c.bf16 %v8502, %v8500
      %v8607 = vpack.c.bf16 %v8503, %v8501
      %v8608 = vpack.c.bf16 %v8506, %v8504
      %v8609 = vpack.c.bf16 %v8507, %v8505
      %v8610 = vpack.c.bf16 %v8510, %v8508
      %v8611 = vpack.c.bf16 %v8511, %v8509
      %v8612 = vpack.c.bf16 %v8514, %v8512
      %v8613 = vpack.c.bf16 %v8515, %v8513
      %v8614 = vpack.c.bf16 %v8518, %v8516
      %v8615 = vpack.c.bf16 %v8519, %v8517
      %v8616 = vpack.c.bf16 %v8522, %v8520
      %v8617 = vpack.c.bf16 %v8523, %v8521
      %v8618 = vpack.c.bf16 %v8526, %v8524
      %v8619 = vpack.c.bf16 %v8527, %v8525
      %v8620 = vpack.c.bf16 %v8530, %v8528
      %v8621 = vpack.c.bf16 %v8531, %v8529
      %v8622 = vpack.c.bf16 %v8534, %v8532
      %v8623 = vpack.c.bf16 %v8535, %v8533
      %v8624 = vpack.c.bf16 %v8538, %v8536
      %v8625 = vpack.c.bf16 %v8539, %v8537
      %v8626 = vpack.c.bf16 %v8542, %v8540
      %v8627 = vpack.c.bf16 %v8543, %v8541
      %v8628 = vpack.c.bf16 %v8546, %v8544
      %v8629 = vpack.c.bf16 %v8547, %v8545
      %v8630 = vpack.c.bf16 %v8550, %v8548
      %v8631 = vpack.c.bf16 %v8551, %v8549
      %v8632 = vpack.c.bf16 %v8554, %v8552
      %v8633 = vpack.c.bf16 %v8555, %v8553
      %v8634 = vpack.c.bf16 %v8558, %v8556
      %v8635 = vpack.c.bf16 %v8559, %v8557
      %v8636 = vpack.c.bf16 %v8562, %v8560
      %v8637 = vpack.c.bf16 %v8563, %v8561
      %v8638 = vpack.c.bf16 %v8566, %v8564
      %v8639 = vpack.c.bf16 %v8567, %v8565
      %v8640 = vld [vmem:[%s8] sm:$0xff]
      %v8641 = vld [vmem:[%s8 + $0x8] sm:$0x3]
      %v8642 = vld [vmem:[%s9] sm:$0x7]
      %8644 = vset.pattern.permute.xlu0 0
      %8645 = vperm.xlu0 %8644, %v8642
      %v8646 = vpop.permute.xlu0 %8645
      %v8650 = vcombine.high %v8640, %v8640
      %v8652 = vunpack.c.l.s4 1983009808
      %v8653 = vunpack.c.0.s8 %v8652
      %v8654 = vlaneseq
      %v8655 = vshrl.u32 %v8654, 7
      %v8656 = vsub.s32 %v8653, %v8655
      %v8657 = vrot.slane %v8640, %v8656
      %v8659 = vunpack.c.l.s4 1983009808
      %v8660 = vunpack.c.0.s8 %v8659
      %v8661 = vlaneseq
      %v8662 = vshrl.u32 %v8661, 7
      %v8663 = vsub.s32 %v8660, %v8662
      %v8664 = vrot.slane %v8650, %v8663
      %v8665 = vcombine.high %v8657, %v8657
      %v8666 = vcombine.high %v8664, %v8664
      %v8668 = vunpack.c.l.s4 1983009808
      %v8669 = vunpack.c.0.s8 %v8668
      %v8670 = vlaneseq
      %v8671 = vshrl.u32 %v8670, 7
      %v8672 = vsub.s32 %v8669, %v8671
      %v8673 = vrot.slane %v8641, %v8672
      %v8679 = vsel %vm2791, %v8673, 0
      %8681 = vmatprep.subr.bf16.mxu0 %v8569
      %8682 = vmatpush1.bf16.msra.mxu0 %v8568
      %8683 = vmatprep.subr.bf16.mxu0 %v8571
      %8684 = vmatpush1.bf16.msra.mxu0 %v8570
      %8685 = vmatprep.subr.bf16.mxu0 %v8573
      %8686 = vmatpush1.bf16.msra.mxu0 %v8572
      %8687 = vmatprep.subr.bf16.mxu0 %v8575
      %8688 = vmatpush1.bf16.msra.mxu0 %v8574
      %8689 = vmatprep.subr.bf16.mxu0 %v8577
      %8690 = vmatpush1.bf16.msra.mxu0 %v8576
      %8691 = vmatprep.subr.bf16.mxu0 %v8579
      %8692 = vmatpush1.bf16.msra.mxu0 %v8578
      %8693 = vmatprep.subr.bf16.mxu0 %v8581
      %8694 = vmatpush1.bf16.msra.mxu0 %v8580
      %8695 = vmatprep.subr.bf16.mxu0 %v8583
      %8696 = vmatpush1.bf16.msra.mxu0 %v8582
      %8697 = vmatprep.subr.bf16.mxu0 %v8585
      %8698 = vmatpush1.bf16.msra.mxu0 %v8584
      %8699 = vmatprep.subr.bf16.mxu0 %v8587
      %8700 = vmatpush1.bf16.msra.mxu0 %v8586
      %8701 = vmatprep.subr.bf16.mxu0 %v8589
      %8702 = vmatpush1.bf16.msra.mxu0 %v8588
      %8703 = vmatprep.subr.bf16.mxu0 %v8591
      %8704 = vmatpush1.bf16.msra.mxu0 %v8590
      %8705 = vmatprep.subr.bf16.mxu0 %v8593
      %8706 = vmatpush1.bf16.msra.mxu0 %v8592
      %8707 = vmatprep.subr.bf16.mxu0 %v8595
      %8708 = vmatpush1.bf16.msra.mxu0 %v8594
      %8709 = vmatprep.subr.bf16.mxu0 %v8597
      %8710 = vmatpush1.bf16.msra.mxu0 %v8596
      %8711 = vmatprep.subr.bf16.mxu0 %v8599
      %8712 = vmatpush1.bf16.msra.mxu0 %v8598
      %8713 = vmatprep.mubr.bf16.mxu0 %v8665
      %8714 = vmatmul.mubr.bf16.gmra.mrb[0].mxu0 %v8657
      %v8715 = vpop.f32.mrb[0].mxu0
      %v8716 = vadd.f32 %v8646, %v8715
      %v8717 = vpop.f32.mrb[0].mxu0
      %v8718 = vadd.f32 %v8646, %v8717
      %v8719 = vpop.f32.mrb[0].mxu0
      %v8720 = vpop.f32.mrb[0].mxu0
      %8721 = vdwg.mxu0
      %8722 = vmatprep.subr.bf16.mxu0 %v8601
      %8723 = vmatpush1.bf16.msra.mxu0 %v8600
      %8724 = vmatprep.subr.bf16.mxu0 %v8603
      %8725 = vmatpush1.bf16.msra.mxu0 %v8602
      %8726 = vmatprep.subr.bf16.mxu0 %v8605
      %8727 = vmatpush1.bf16.msra.mxu0 %v8604
      %8728 = vmatprep.subr.bf16.mxu0 %v8607
      %8729 = vmatpush1.bf16.msra.mxu0 %v8606
      %8730 = vmatprep.subr.bf16.mxu0 %v8609
      %8731 = vmatpush1.bf16.msra.mxu0 %v8608
      %8732 = vmatprep.subr.bf16.mxu0 %v8611
      %8733 = vmatpush1.bf16.msra.mxu0 %v8610
      %8734 = vmatprep.subr.bf16.mxu0 %v8613
      %8735 = vmatpush1.bf16.msra.mxu0 %v8612
      %8736 = vmatprep.subr.bf16.mxu0 %v8615
      %8737 = vmatpush1.bf16.msra.mxu0 %v8614
      %8738 = vmatprep.subr.bf16.mxu0 %v8617
      %8739 = vmatpush1.bf16.msra.mxu0 %v8616
      %8740 = vmatprep.subr.bf16.mxu0 %v8619
      %8741 = vmatpush1.bf16.msra.mxu0 %v8618
      %8742 = vmatprep.subr.bf16.mxu0 %v8621
      %8743 = vmatpush1.bf16.msra.mxu0 %v8620
      %8744 = vmatprep.subr.bf16.mxu0 %v8623
      %8745 = vmatpush1.bf16.msra.mxu0 %v8622
      %8746 = vmatprep.subr.bf16.mxu0 %v8625
      %8747 = vmatpush1.bf16.msra.mxu0 %v8624
      %8748 = vmatprep.subr.bf16.mxu0 %v8627
      %8749 = vmatpush1.bf16.msra.mxu0 %v8626
      %8750 = vmatprep.subr.bf16.mxu0 %v8629
      %8751 = vmatpush1.bf16.msra.mxu0 %v8628
      %8752 = vmatprep.subr.bf16.mxu0 %v8631
      %8753 = vmatpush1.bf16.msra.mxu0 %v8630
      %8754 = vmatprep.mubr.bf16.mxu0 %v8666
      %8755 = vmatmul.mubr.bf16.gmra.mrb[0].mxu0 %v8664
      %v8756 = vpop.f32.mrb[0].mxu0
      %v8757 = vadd.f32 %v8716, %v8756
      %v8758 = vpop.f32.mrb[0].mxu0
      %v8759 = vadd.f32 %v8718, %v8758
      %v8760 = vpop.f32.mrb[0].mxu0
      %v8761 = vpop.f32.mrb[0].mxu0
      %8762 = vdwg.mxu0
      %8763 = vmatprep.subr.bf16.mxu0 %v8633
      %8764 = vmatpush1.bf16.msra.mxu0 %v8632
      %8765 = vmatprep.subr.bf16.mxu0 %v8635
      %8766 = vmatpush1.bf16.msra.mxu0 %v8634
      %8767 = vmatprep.subr.bf16.mxu0 %v8637
      %8768 = vmatpush1.bf16.msra.mxu0 %v8636
      %8769 = vmatprep.subr.bf16.mxu0 %v8639
      %8770 = vmatpush1.bf16.msra.mxu0 %v8638
      %8771 = vmatprep.subr.bf16.mxu0 0
      %8772 = vmatpush1.bf16.msra.mxu0 0
      %8773 = vmatprep.subr.bf16.mxu0 0
      %8774 = vmatpush1.bf16.msra.mxu0 0
      %8775 = vmatprep.subr.bf16.mxu0 0
      %8776 = vmatpush1.bf16.msra.mxu0 0
      %8777 = vmatprep.subr.bf16.mxu0 0
      %8778 = vmatpush1.bf16.msra.mxu0 0
      %8779 = vmatprep.subr.bf16.mxu0 0
      %8780 = vmatpush1.bf16.msra.mxu0 0
      %8781 = vmatprep.subr.bf16.mxu0 0
      %8782 = vmatpush1.bf16.msra.mxu0 0
      %8783 = vmatprep.subr.bf16.mxu0 0
      %8784 = vmatpush1.bf16.msra.mxu0 0
      %8785 = vmatprep.subr.bf16.mxu0 0
      %8786 = vmatpush1.bf16.msra.mxu0 0
      %8787 = vmatprep.subr.bf16.mxu0 0
      %8788 = vmatpush1.bf16.msra.mxu0 0
      %8789 = vmatprep.subr.bf16.mxu0 0
      %8790 = vmatpush1.bf16.msra.mxu0 0
      %8791 = vmatprep.subr.bf16.mxu0 0
      %8792 = vmatpush1.bf16.msra.mxu0 0
      %8793 = vmatprep.subr.bf16.mxu0 0
      %8794 = vmatpush1.bf16.msra.mxu0 0
      %8795 = vmatprep.mubr.bf16.mxu0 0
      %8796 = vmatmul.mubr.bf16.gmra.mrb[0].mxu0 %v8679
      %v8797 = vpop.f32.mrb[0].mxu0
      %v8798 = vadd.f32 %v8757, %v8797
      %v8799 = vpop.f32.mrb[0].mxu0
      %v8800 = vadd.f32 %v8759, %v8799
      %v8801 = vpop.f32.mrb[0].mxu0
      %v8802 = vpop.f32.mrb[0].mxu0
      %8803 = vdwg.mxu0
      %v8806 = vcombine.low %v8798, %v8800
      %8808 = vst [vmem:[%s339] sm:$0x77] %v8806
      %p8809 = scmp.lt.s32.totalorder %s27, 1
      %s8810 = scalar_select %p8809, %s27, 1
      %s8811 = smul.addr %s8810, 2
      %s8812 = smul.addr %s8811, 4
      %s8813 = scalar_lea.vmem %s10, %s8812
      // Predicated region
      $region57: #{convnet_forward.1} parent=55 // pred_check
        %p8814 = pneg %p239
      $region58: #{convnet_forward.1} parent=55 // pred_check_branch
        %8816 = sbr.rel (%p8814) target = $region60
      $region59: #{convnet_forward.1} parent=55 // pred_region
        _
      $region60: #{convnet_forward.1} parent=55 // pred_fallthru
        _
    $region56: #{convnet_forward.1} parent=5 // pred_fallthru
      _
    %p8817 = scmp.le.s32.totalorder 2, %s22
    // Predicated region
    $region61: #{convnet_forward.1} parent=5 // pred_check
      %p8818 = pneg %p8817
    $region62: #{convnet_forward.1} parent=5 // pred_check_branch
      %8820 = sbr.rel (%p8818) target = $region64
    $region63: #{convnet_forward.1} parent=5 // pred_region
      %s8821 = ssub.s32 %s22, 2
      // Predicated region
      $region65: #{convnet_forward.1} parent=63 // pred_check
        %p8822 = pneg %p245
      $region66: #{convnet_forward.1} parent=63 // pred_check_branch
        %8824 = sbr.rel (%p8822) target = $region68
      $region67: #{convnet_forward.1} parent=63 // pred_region
        %p8825 = scmp.lt.s32.totalorder %s28, 1
        %s8826 = scalar_select %p8825, %s28, 1
        %s8827 = smul.addr %s8826, 2
        %s8828 = smul.addr %s8827, 4
        %s8829 = scalar_lea.vmem %s10, %s8828
      $region68: #{convnet_forward.1} parent=63 // pred_fallthru
        _
    $region64: #{convnet_forward.1} parent=5 // pred_fallthru
      _
  $region6: #{convnet_forward.1} parent=0 // loop_footer
    %s26 = sadd.s32 1, %s22
  $region7: #{convnet_forward.1} parent=0 // loop_footer_branch
    %21 = sbr.rel target = $region3
  $region8: #{convnet_forward.1} parent=0 // loop_exit
    _

</llo_original>
